<compile_context>
chip_gen: v7x
topology: tpu7x:2x2x1
jax: 0.10.0
libtpu: 0.0.40
codegen_flags: <defaults>
</compile_context>

<pallas_src>
import functools
import math

import jax
import jax.numpy as jnp
from jax import lax
from jax.experimental import pallas as pl
from jax.experimental.pallas import tpu as pltpu


# -----------------------------------------------------------------------------
# Kernel: 3x3 conv + bias + ReLU (+ optional fused 2x2 max-pool / lane fold)
# -----------------------------------------------------------------------------
def _conv3x3_relu_kernel(x_mid_ref, x_top_ref, x_bot_ref, w_ref, b_ref, o_ref,
                         *stage, hb, pool, fold, single_matmul):
    """One (batch, row-block) tile of a padded 3x3 conv.

    x_mid_ref: (1, hb, W, Cin)    bf16  current row block
    x_top_ref: (1, 1,  W, Cin)    bf16  row above the block (clamped at border)
    x_bot_ref: (1, 1,  W, Cin)    bf16  row below the block (clamped at border)
    w_ref:     (9*Cin, Cout)      bf16  weights, (dy, dx, cin) flattened
    b_ref:     (1, Cout)          f32   bias
    o_ref:     (1, hb', Wo', C')  bf16  output block (pooled and/or lane-folded)
    stage:     optional (hb', W, Cout) f32 VMEM scratch (only when pool/fold).
    """
    rb = pl.program_id(1)
    n_rb = pl.num_programs(1)

    W = x_mid_ref.shape[2]
    cin = x_mid_ref.shape[3]
    cout = w_ref.shape[1]

    x_mid = x_mid_ref[0]                       # (hb, W, cin)
    top = x_top_ref[0, 0]                      # (W, cin)
    bot = x_bot_ref[0, 0]                      # (W, cin)

    # Zero the halo rows at the image border (multiply-mask: cheap, robust).
    keep_top = (rb > 0).astype(x_mid.dtype)
    keep_bot = (rb < n_rb - 1).astype(x_mid.dtype)
    top = top * keep_top
    bot = bot * keep_bot

    # Rows rb*hb-1 .. rb*hb+hb of the (virtually zero-padded) image.  Promote to
    # f32 so the W-halo rolls below act on unpacked 32-bit sublanes.
    xa = jnp.concatenate([top[None], x_mid, bot[None]], axis=0)      # (hb+2, W, cin)
    xa_f = xa.astype(jnp.float32)

    # W halo: XLU rolls + edge-column zero masks (review #5, no zero-col concat).
    col = lax.broadcasted_iota(jnp.int32, xa_f.shape, 1)
    x_l = jnp.where(col == 0, 0.0,
                    pltpu.roll(xa_f, 1, axis=1)).astype(jnp.bfloat16)       # col w -> w-1
    x_r = jnp.where(col == W - 1, 0.0,
                    pltpu.roll(xa_f, W - 1, axis=1)).astype(jnp.bfloat16)   # col w -> w+1
    x_c = xa_f.astype(jnp.bfloat16)

    # Pack the three dx taps onto the lane axis once (review #1): the per-row
    # matmul K becomes 3*Cin instead of Cin.
    x_cat = jnp.concatenate([x_l, x_c, x_r], axis=-1)                # (hb+2, W, 3*cin)

    def row_group(dy):                                               # (hb*W, 3*cin)
        return x_cat[dy:dy + hb].reshape(hb * W, 3 * cin)

    if single_matmul:
        # First conv (Cin=3): a single (hb*W, 27) x (27, Cout) matmul.
        patch = jnp.concatenate([row_group(0), row_group(1), row_group(2)], axis=-1)
        acc = jnp.dot(patch, w_ref[...], preferred_element_type=jnp.float32)
    else:
        # Three matmuls with K = 3*Cin (192 for Cin=64, 384 for Cin=128);
        # accumulator initialized from the first dot (review #6).
        acc = jnp.dot(row_group(0), w_ref[pl.ds(0, 3 * cin), :],
                      preferred_element_type=jnp.float32)
        for dy in (1, 2):
            acc = acc + jnp.dot(row_group(dy),
                                w_ref[pl.ds(dy * 3 * cin, 3 * cin), :],
                                preferred_element_type=jnp.float32)

    # Bias + ReLU in f32 (keeps the epilogue off the bf16 VALU path on v5e).
    y = jnp.maximum(acc + b_ref[...], 0.0).reshape(hb, W, cout)

    if pool:
        # H half of the fused 2x2/stride-2 max-pool: leading-dim reshape + max.
        yr = y.reshape(hb // 2, 2, W, cout)
        y = jnp.maximum(yr[:, 0], yr[:, 1])                          # (hb//2, W, cout)

    if not (pool or fold):
        o_ref[...] = y[None].astype(o_ref.dtype)
        return

    # W half of the pool and/or the lane-dense fold (review #2) go through an
    # f32 VMEM staging buffer so even/odd column selection is a sublane-strided
    # ref read (pl.ds with stride) rather than a strided value slice.
    stage_ref = stage[0]
    stage_ref[...] = y

    if pool and fold:
        q = W // 4
        c0 = stage_ref[:, pl.ds(0, q, 4), :]
        c1 = stage_ref[:, pl.ds(1, q, 4), :]
        c2 = stage_ref[:, pl.ds(2, q, 4), :]
        c3 = stage_ref[:, pl.ds(3, q, 4), :]
        # [pooled even cols | pooled odd cols] on lanes -> bit-identical NHWC.
        z = jnp.concatenate([jnp.maximum(c0, c1), jnp.maximum(c2, c3)], axis=-1)
    elif pool:
        h2 = W // 2
        z = jnp.maximum(stage_ref[:, pl.ds(0, h2, 2), :],
                        stage_ref[:, pl.ds(1, h2, 2), :])
    else:  # fold only (Cout == 64, no pool)
        h2 = W // 2
        z = jnp.concatenate([stage_ref[:, pl.ds(0, h2, 2), :],
                             stage_ref[:, pl.ds(1, h2, 2), :]], axis=-1)

    o_ref[...] = z[None].astype(o_ref.dtype)


# -----------------------------------------------------------------------------
# Wrapper
# -----------------------------------------------------------------------------
def _pick_block_rows(H, W, cout, pool, acc_budget_bytes=4 * 1024 * 1024):
    """Largest valid divisor of H whose f32 accumulator fits the budget.

    Always returns a true divisor of H (review robustness fix) and prefers
    >= 2 row blocks (pipeline overlap + v7x dual-TensorCore sharding).
    """
    divisors = [d for d in range(1, H + 1)
                if H % d == 0 and (not pool or d % 2 == 0)]
    fitting = [d for d in divisors if d * W * cout * 4 <= acc_budget_bytes]
    candidates = fitting if fitting else divisors[:1]
    hb = max(candidates)
    if hb == H:
        smaller = [d for d in (fitting if fitting else divisors) if d < H]
        if smaller:
            hb = max(smaller)
    return hb


def _vmem_limit_bytes(hb, W, Cin, Cout, out_h_blk, Wo_s, Cout_s, stage_rows):
    """Footprint-based VMEM request, capped well below physical VMEM (review #4)."""
    blk_in = (hb + 2) * W * Cin * 2              # mid + 2 halo rows (bf16)
    blk_out = out_h_blk * Wo_s * Cout_s * 2      # output block (bf16)
    wgt = 9 * Cin * Cout * 2 + Cout * 4          # weights + bias
    pipelined = 2 * (blk_in + blk_out + wgt)     # double-buffered operands
    temps = ((hb + 2) * W * Cin * (4 * 3 + 2 * 3 + 2 * 3)   # f32/bf16 halo copies, x_cat
             + hb * W * (3 * Cin * 2 + Cout * 4 * 2)         # row groups + acc + y
             + stage_rows * W * Cout * 4)                    # staging scratch
    total = 2 * (pipelined + temps)              # ~2x headroom
    return int(min(max(total, 8 * 1024 * 1024), 32 * 1024 * 1024))


def conv3x3_relu(x_nhwc, w9, b, *, pool=False, block_rows=None):
    """x_nhwc: (N, H, W, Cin) bf16 -> (N, H[/2], W[/2], Cout) bf16.

    w9: (9*Cin, Cout) bf16 weights, (dy, dx, cin) flattened.  b: (Cout,) f32.
    If pool=True, a 2x2/stride-2 max-pool is fused into the epilogue.
    """
    N, H, W, Cin = x_nhwc.shape
    K9, Cout = w9.shape
    assert K9 == 9 * Cin, (K9, Cin)
    if pool:
        assert H % 2 == 0 and W % 2 == 0, "fused 2x2 pool needs even H, W"

    hb = block_rows or _pick_block_rows(H, W, Cout, pool)
    assert H % hb == 0 and (not pool or hb % 2 == 0), (H, hb, pool)
    n_rb = H // hb
    single_matmul = (9 * Cin) <= 128

    Ho, Wo = (H // 2, W // 2) if pool else (H, W)
    out_h_blk = hb // 2 if pool else hb

    # Lane-dense store for Cout == 64 (review #2): fold W column pairs onto the
    # lane axis so HBM stores are 128 lanes wide.
    fold = (Cout == 64) and ((W % 4 == 0) if pool else (W % 2 == 0))
    Wo_s = Wo // 2 if fold else Wo
    Cout_s = 2 * Cout if fold else Cout

    stage_rows = (hb // 2 if pool else hb) if (pool or fold) else 0
    scratch = ([pltpu.VMEM((stage_rows, W, Cout), jnp.float32)]
               if (pool or fold) else [])

    b2 = b.reshape(1, Cout).astype(jnp.float32)

    cost = pl.CostEstimate(
        flops=int(2 * N * H * W * 9 * Cin * Cout),
        transcendentals=0,
        bytes_accessed=int(x_nhwc.size * 2                 # bf16 activations
                           + 2 * N * n_rb * W * Cin * 2    # halo rows
                           + w9.size * 2 + b2.size * 4
                           + N * Ho * Wo * Cout * 2))

    kernel = functools.partial(_conv3x3_relu_kernel, hb=hb, pool=pool, fold=fold,
                               single_matmul=single_matmul)

    out = pl.pallas_call(
        kernel,
        out_shape=jax.ShapeDtypeStruct((N, Ho, Wo_s, Cout_s), jnp.bfloat16),
        grid_spec=pltpu.PrefetchScalarGridSpec(
            num_scalar_prefetch=0,
            grid=(N, n_rb),
            in_specs=[
                # Current row block.
                pl.BlockSpec((1, hb, W, Cin), lambda n, rb: (n, rb, 0, 0)),
                # Halo row above (clamped; zero-masked in-kernel at rb == 0).
                pl.BlockSpec((1, 1, W, Cin),
                             lambda n, rb: (n, jnp.maximum(rb * hb - 1, 0), 0, 0)),
                # Halo row below (clamped; zero-masked in-kernel at rb == last).
                pl.BlockSpec((1, 1, W, Cin),
                             lambda n, rb: (n, jnp.minimum(rb * hb + hb, H - 1), 0, 0)),
                # Weights / bias: constant block index -> stay VMEM resident.
                pl.BlockSpec((9 * Cin, Cout), lambda n, rb: (0, 0)),
                pl.BlockSpec((1, Cout), lambda n, rb: (0, 0)),
            ],
            out_specs=pl.BlockSpec((1, out_h_blk, Wo_s, Cout_s),
                                   lambda n, rb: (n, rb, 0, 0)),
            scratch_shapes=scratch),
        compiler_params=pltpu.CompilerParams(
            dimension_semantics=("parallel", "parallel"),
            vmem_limit_bytes=_vmem_limit_bytes(hb, W, Cin, Cout, out_h_blk,
                                               Wo_s, Cout_s, stage_rows)),
        cost_estimate=cost,
    )(x_nhwc, x_nhwc, x_nhwc, w9, b2)

    if fold:
        # The folded slab is bit-identical to row-major NHWC, so this reshape
        # back to the logical shape is a free bitcast at the XLA level.
        out = out.reshape(N, Ho, Wo, Cout)
    return out


# -----------------------------------------------------------------------------
# Parameters (deterministic; mirrors VGG init_weights: kaiming fan_out, bias=0)
# -----------------------------------------------------------------------------
# (cin, cout, fuse_2x2_maxpool_after_this_conv)
_CONV_PLAN = [
    (3, 64, False),
    (64, 64, True),
    (64, 128, False),
    (128, 128, True),
    (128, 256, False),
]


def init_params(key):
    params = []
    for cin, cout, _ in _CONV_PLAN:
        key, wkey = jax.random.split(key)
        std = math.sqrt(2.0 / (cout * 9))   # kaiming_normal, mode='fan_out', relu
        w = std * jax.random.normal(wkey, (3, 3, cin, cout), jnp.float32)
        w9 = w.reshape(9 * cin, cout).astype(jnp.bfloat16)   # (dy, dx, cin) flattened
        b = jnp.zeros((cout,), jnp.float32)
        params.append((w9, b))
    return tuple(params)


# -----------------------------------------------------------------------------
# Vgg19.forward (slice1) — NCHW f32 in, NCHW f32 out (like the torch module)
# -----------------------------------------------------------------------------
@jax.jit
def vgg19_slice1(x_nchw, params):
    h = jnp.transpose(x_nchw, (0, 2, 3, 1)).astype(jnp.bfloat16)   # NCHW -> NHWC bf16
    for (w9, b), (_, _, pool) in zip(params, _CONV_PLAN):
        h = conv3x3_relu(h, w9, b, pool=pool)
    return jnp.transpose(h, (0, 3, 1, 2)).astype(jnp.float32)      # NHWC -> NCHW f32


# -----------------------------------------------------------------------------
# Pure-JAX reference (same bf16 rounding between layers) for a sanity check
# -----------------------------------------------------------------------------
def _reference(x_nchw, params):
    h = jnp.transpose(x_nchw, (0, 2, 3, 1)).astype(jnp.bfloat16).astype(jnp.float32)
    for (w9, b), (cin, cout, pool) in zip(params, _CONV_PLAN):
        w = w9.astype(jnp.float32).reshape(3, 3, cin, cout)
        h = lax.conv_general_dilated(
            h, w, window_strides=(1, 1), padding="SAME",
            dimension_numbers=("NHWC", "HWIO", "NHWC"),
            preferred_element_type=jnp.float32)
        h = jnp.maximum(h + b, 0.0)
        if pool:
            h = jnp.maximum(jnp.maximum(h[:, 0::2, 0::2], h[:, 1::2, 0::2]),
                            jnp.maximum(h[:, 0::2, 1::2], h[:, 1::2, 1::2]))
        h = h.astype(jnp.bfloat16).astype(jnp.float32)
    return jnp.transpose(h, (0, 3, 1, 2))


if __name__ == "__main__":
    key = jax.random.PRNGKey(0)
    pkey, xkey = jax.random.split(key)
    params = init_params(pkey)

    # Small input consistent with the module (3 input channels; VGG19 documents
    # a 32x32 minimum; 32x32 also exercises multi-row-block halos + pooling).
    N, C, H, W = 2, 3, 32, 32
    x = jax.random.normal(xkey, (N, C, H, W), jnp.float32)

    out = jax.block_until_ready(vgg19_slice1(x, params))
    ref = jax.block_until_ready(_reference(x, params))

    expected_shape = (N, 256, H // 4, W // 4)
    assert out.shape == expected_shape, (out.shape, expected_shape)
    assert out.dtype == jnp.float32
    assert bool(jnp.all(out >= 0.0))          # ReLU output must be non-negative

    max_err = float(jnp.max(jnp.abs(out - ref)))
    scale = float(jnp.max(jnp.abs(ref))) + 1e-6
    assert max_err <= 0.05 * scale + 1e-2, ("mismatch vs reference", max_err, scale)

    print("KERNEL_OK")
</pallas_src>

<mosaic_0001>
module attributes {stable_mosaic.version = 11 : i64} {
  func.func @_conv3x3_relu_kernel(%arg0: i32, %arg1: i32, %arg2: memref<1x16x32x3xbf16, #tpu.memory_space<vmem>>, %arg3: memref<1x1x32x3xbf16, #tpu.memory_space<vmem>>, %arg4: memref<1x1x32x3xbf16, #tpu.memory_space<vmem>>, %arg5: memref<27x64xbf16, #tpu.memory_space<vmem>>, %arg6: memref<1x64xf32, #tpu.memory_space<vmem>>, %arg7: memref<1x16x16x128xbf16, #tpu.memory_space<vmem>>, %arg8: memref<16x32x64xf32, #tpu.memory_space<vmem>>) attributes {dimension_semantics = [#tpu.dimension_semantics<parallel>, #tpu.dimension_semantics<parallel>], iteration_bounds = array<i64: 2, 2>, scalar_prefetch = 0 : i64, scratch_operands = 1 : i64, tpu.core_type = #tpu.core_type<tc>, window_params = [{transform_indices = @transform_0, window_bounds = array<i64: 1, 16, 32, 3>}, {transform_indices = @transform_1, window_bounds = array<i64: 1, 1, 32, 3>}, {transform_indices = @transform_2, window_bounds = array<i64: 1, 1, 32, 3>}, {pipeline_mode = #tpu.pipeline_mode<synchronous>, transform_indices = @transform_3, window_bounds = array<i64: 27, 64>}, {pipeline_mode = #tpu.pipeline_mode<synchronous>, transform_indices = @transform_4, window_bounds = array<i64: 1, 64>}, {transform_indices = @transform_5, window_bounds = array<i64: 1, 16, 16, 128>}]} {
    %c0 = arith.constant 0 : index
    %c0_0 = arith.constant 0 : index
    %c0_1 = arith.constant 0 : index
    %c0_2 = arith.constant 0 : index
    %0 = vector.load %arg2[%c0, %c0_0, %c0_1, %c0_2] : memref<1x16x32x3xbf16, #tpu.memory_space<vmem>>, vector<1x16x32x3xbf16>
    %1 = vector.shape_cast %0 : vector<1x16x32x3xbf16> to vector<16x32x3xbf16>
    %c0_3 = arith.constant 0 : index
    %c0_4 = arith.constant 0 : index
    %c0_5 = arith.constant 0 : index
    %c0_6 = arith.constant 0 : index
    %2 = vector.load %arg3[%c0_3, %c0_4, %c0_5, %c0_6] : memref<1x1x32x3xbf16, #tpu.memory_space<vmem>>, vector<1x1x32x3xbf16>
    %3 = vector.shape_cast %2 : vector<1x1x32x3xbf16> to vector<32x3xbf16>
    %c0_7 = arith.constant 0 : index
    %c0_8 = arith.constant 0 : index
    %c0_9 = arith.constant 0 : index
    %c0_10 = arith.constant 0 : index
    %4 = vector.load %arg4[%c0_7, %c0_8, %c0_9, %c0_10] : memref<1x1x32x3xbf16, #tpu.memory_space<vmem>>, vector<1x1x32x3xbf16>
    %5 = vector.shape_cast %4 : vector<1x1x32x3xbf16> to vector<32x3xbf16>
    %c0_i32 = arith.constant 0 : i32
    %6 = arith.cmpi sgt, %arg1, %c0_i32 : i32
    %7 = arith.extui %6 : i1 to i32
    %8 = arith.sitofp %7 : i32 to f32
    %9 = arith.truncf %8 : f32 to bf16
    %c1_i32 = arith.constant 1 : i32
    %10 = arith.cmpi slt, %arg1, %c1_i32 : i32
    %11 = arith.extui %10 : i1 to i32
    %12 = arith.sitofp %11 : i32 to f32
    %13 = arith.truncf %12 : f32 to bf16
    %14 = vector.broadcast %9 : bf16 to vector<32x3xbf16>
    %15 = arith.mulf %3, %14 : vector<32x3xbf16>
    %16 = vector.broadcast %13 : bf16 to vector<32x3xbf16>
    %17 = arith.mulf %5, %16 : vector<32x3xbf16>
    %18 = vector.shape_cast %15 : vector<32x3xbf16> to vector<1x32x3xbf16>
    %19 = vector.shape_cast %17 : vector<32x3xbf16> to vector<1x32x3xbf16>
    %20 = tpu.concatenate %18, %1, %19 in 0 : vector<1x32x3xbf16>, vector<16x32x3xbf16>, vector<1x32x3xbf16> -> vector<18x32x3xbf16>
    %21 = arith.extf %20 : vector<18x32x3xbf16> to vector<18x32x3xf32>
    %22 = tpu.iota {dimensions = array<i32: 1>} : vector<18x32x3xi32>
    %c0_i32_11 = arith.constant 0 : i32
    %23 = vector.broadcast %c0_i32_11 : i32 to vector<18x32x3xi32>
    %24 = arith.cmpi eq, %22, %23 : vector<18x32x3xi32>
    %c1_i32_12 = arith.constant 1 : i32
    %25 = tpu.dynamic_rotate %21 by %c1_i32_12 dim 1 : vector<18x32x3xf32>, i32 -> vector<18x32x3xf32>
    %cst = arith.constant 0.000000e+00 : f32
    %26 = vector.broadcast %cst : f32 to vector<18x32x3xf32>
    %27 = arith.select %24, %26, %25 : vector<18x32x3xi1>, vector<18x32x3xf32>
    %28 = arith.truncf %27 : vector<18x32x3xf32> to vector<18x32x3xbf16>
    %c31_i32 = arith.constant 31 : i32
    %29 = vector.broadcast %c31_i32 : i32 to vector<18x32x3xi32>
    %30 = arith.cmpi eq, %22, %29 : vector<18x32x3xi32>
    %c31_i32_13 = arith.constant 31 : i32
    %31 = tpu.dynamic_rotate %21 by %c31_i32_13 dim 1 : vector<18x32x3xf32>, i32 -> vector<18x32x3xf32>
    %cst_14 = arith.constant 0.000000e+00 : f32
    %32 = vector.broadcast %cst_14 : f32 to vector<18x32x3xf32>
    %33 = arith.select %30, %32, %31 : vector<18x32x3xi1>, vector<18x32x3xf32>
    %34 = arith.truncf %33 : vector<18x32x3xf32> to vector<18x32x3xbf16>
    %35 = arith.truncf %21 : vector<18x32x3xf32> to vector<18x32x3xbf16>
    %36 = tpu.concatenate %28, %35, %34 in 2 : vector<18x32x3xbf16>, vector<18x32x3xbf16>, vector<18x32x3xbf16> -> vector<18x32x9xbf16>
    %37 = vector.extract_strided_slice %36 {offsets = [0, 0, 0], sizes = [16, 32, 9], strides = [1, 1, 1]} : vector<18x32x9xbf16> to vector<16x32x9xbf16>
    %38 = vector.shape_cast %37 : vector<16x32x9xbf16> to vector<512x9xbf16>
    %39 = vector.extract_strided_slice %36 {offsets = [1, 0, 0], sizes = [16, 32, 9], strides = [1, 1, 1]} : vector<18x32x9xbf16> to vector<16x32x9xbf16>
    %40 = vector.shape_cast %39 : vector<16x32x9xbf16> to vector<512x9xbf16>
    %41 = vector.extract_strided_slice %36 {offsets = [2, 0, 0], sizes = [16, 32, 9], strides = [1, 1, 1]} : vector<18x32x9xbf16> to vector<16x32x9xbf16>
    %42 = vector.shape_cast %41 : vector<16x32x9xbf16> to vector<512x9xbf16>
    %43 = tpu.concatenate %38, %40, %42 in 1 : vector<512x9xbf16>, vector<512x9xbf16>, vector<512x9xbf16> -> vector<512x27xbf16>
    %c0_15 = arith.constant 0 : index
    %c0_16 = arith.constant 0 : index
    %44 = vector.load %arg5[%c0_15, %c0_16] : memref<27x64xbf16, #tpu.memory_space<vmem>>, vector<27x64xbf16>
    %cst_17 = arith.constant dense<0.000000e+00> : vector<512x64xf32>
    %45 = tpu.matmul %43, %44, %cst_17 {dimension_numbers = #tpu.dot_dimension_numbers<[1], [0], [0], [1], [0, 0, 1, 1], [], []>} : vector<512x27xbf16>, vector<27x64xbf16>, vector<512x64xf32> -> vector<512x64xf32>
    %c0_18 = arith.constant 0 : index
    %c0_19 = arith.constant 0 : index
    %46 = vector.load %arg6[%c0_18, %c0_19] : memref<1x64xf32, #tpu.memory_space<vmem>>, vector<1x64xf32>
    %47 = vector.broadcast %46 : vector<1x64xf32> to vector<512x64xf32>
    %48 = arith.addf %45, %47 : vector<512x64xf32>
    %cst_20 = arith.constant 0.000000e+00 : f32
    %49 = vector.broadcast %cst_20 : f32 to vector<512x64xf32>
    %50 = arith.maximumf %48, %49 : vector<512x64xf32>
    %51 = vector.shape_cast %50 : vector<512x64xf32> to vector<16x32x64xf32>
    %c0_21 = arith.constant 0 : index
    %c0_22 = arith.constant 0 : index
    %c0_23 = arith.constant 0 : index
    %52 = vector.load %arg8[%c0_21, %c0_22, %c0_23] : memref<16x32x64xf32, #tpu.memory_space<vmem>>, vector<16x32x64xf32>
    tpu.vector_store %arg8[%c0_21, %c0_22, %c0_23], %51 {strides = array<i32>} : memref<16x32x64xf32, #tpu.memory_space<vmem>>, vector<16x32x64xf32>,
    %c0_24 = arith.constant 0 : index
    %c0_25 = arith.constant 0 : index
    %c0_26 = arith.constant 0 : index
    %53 = tpu.strided_load %arg8[%c0_24, %c0_25, %c0_26] {strides = array<i32: 1, 2, 1>} : memref<16x32x64xf32, #tpu.memory_space<vmem>>, vector<16x16x64xf32>
    %c0_27 = arith.constant 0 : index
    %c1 = arith.constant 1 : index
    %c0_28 = arith.constant 0 : index
    %54 = tpu.strided_load %arg8[%c0_27, %c1, %c0_28] {strides = array<i32: 1, 2, 1>} : memref<16x32x64xf32, #tpu.memory_space<vmem>>, vector<16x16x64xf32>
    %55 = tpu.concatenate %53, %54 in 2 : vector<16x16x64xf32>, vector<16x16x64xf32> -> vector<16x16x128xf32>
    %56 = vector.shape_cast %55 : vector<16x16x128xf32> to vector<1x16x16x128xf32>
    %57 = arith.truncf %56 : vector<1x16x16x128xf32> to vector<1x16x16x128xbf16>
    %c0_29 = arith.constant 0 : index
    %c0_30 = arith.constant 0 : index
    %c0_31 = arith.constant 0 : index
    %c0_32 = arith.constant 0 : index
    %58 = vector.load %arg7[%c0_29, %c0_30, %c0_31, %c0_32] : memref<1x16x16x128xbf16, #tpu.memory_space<vmem>>, vector<1x16x16x128xbf16>
    tpu.vector_store %arg7[%c0_29, %c0_30, %c0_31, %c0_32], %57 {strides = array<i32>} : memref<1x16x16x128xbf16, #tpu.memory_space<vmem>>, vector<1x16x16x128xbf16>,
    return
  }
  func.func @transform_0(%arg0: i32, %arg1: i32) -> (i32, i32, i32, i32) {
    %c0_i32 = arith.constant 0 : i32
    %c0_i32_0 = arith.constant 0 : i32
    %c0_i32_1 = arith.constant 0 : i32
    return %arg0, %arg1, %c0_i32, %c0_i32_0 : i32, i32, i32, i32
  }
  func.func @transform_1(%arg0: i32, %arg1: i32) -> (i32, i32, i32, i32) {
    %c16_i32 = arith.constant 16 : i32
    %0 = arith.muli %arg1, %c16_i32 : i32
    %c1_i32 = arith.constant 1 : i32
    %1 = arith.subi %0, %c1_i32 : i32
    %c0_i32 = arith.constant 0 : i32
    %2 = arith.maxsi %1, %c0_i32 : i32
    %c0_i32_0 = arith.constant 0 : i32
    %c0_i32_1 = arith.constant 0 : i32
    %c0_i32_2 = arith.constant 0 : i32
    return %arg0, %2, %c0_i32_0, %c0_i32_1 : i32, i32, i32, i32
  }
  func.func @transform_2(%arg0: i32, %arg1: i32) -> (i32, i32, i32, i32) {
    %c16_i32 = arith.constant 16 : i32
    %0 = arith.muli %arg1, %c16_i32 : i32
    %c16_i32_0 = arith.constant 16 : i32
    %1 = arith.addi %0, %c16_i32_0 : i32
    %c31_i32 = arith.constant 31 : i32
    %2 = arith.minsi %1, %c31_i32 : i32
    %c0_i32 = arith.constant 0 : i32
    %c0_i32_1 = arith.constant 0 : i32
    %c0_i32_2 = arith.constant 0 : i32
    return %arg0, %2, %c0_i32, %c0_i32_1 : i32, i32, i32, i32
  }
  func.func @transform_3(%arg0: i32, %arg1: i32) -> (i32, i32) {
    %c0_i32 = arith.constant 0 : i32
    %c0_i32_0 = arith.constant 0 : i32
    %c0_i32_1 = arith.constant 0 : i32
    return %c0_i32, %c0_i32_0 : i32, i32
  }
  func.func @transform_4(%arg0: i32, %arg1: i32) -> (i32, i32) {
    %c0_i32 = arith.constant 0 : i32
    %c0_i32_0 = arith.constant 0 : i32
    %c0_i32_1 = arith.constant 0 : i32
    return %c0_i32, %c0_i32_0 : i32, i32
  }
  func.func @transform_5(%arg0: i32, %arg1: i32) -> (i32, i32, i32, i32) {
    %c0_i32 = arith.constant 0 : i32
    %c0_i32_0 = arith.constant 0 : i32
    %c0_i32_1 = arith.constant 0 : i32
    return %arg0, %arg1, %c0_i32, %c0_i32_0 : i32, i32, i32, i32
  }
}

module attributes {stable_mosaic.version = 11 : i64} {
  func.func @_conv3x3_relu_kernel(%arg0: i32, %arg1: i32, %arg2: memref<1x16x32x64xbf16, #tpu.memory_space<vmem>>, %arg3: memref<1x1x32x64xbf16, #tpu.memory_space<vmem>>, %arg4: memref<1x1x32x64xbf16, #tpu.memory_space<vmem>>, %arg5: memref<576x64xbf16, #tpu.memory_space<vmem>>, %arg6: memref<1x64xf32, #tpu.memory_space<vmem>>, %arg7: memref<1x8x8x128xbf16, #tpu.memory_space<vmem>>, %arg8: memref<8x32x64xf32, #tpu.memory_space<vmem>>) attributes {dimension_semantics = [#tpu.dimension_semantics<parallel>, #tpu.dimension_semantics<parallel>], iteration_bounds = array<i64: 2, 2>, scalar_prefetch = 0 : i64, scratch_operands = 1 : i64, tpu.core_type = #tpu.core_type<tc>, window_params = [{transform_indices = @transform_0, window_bounds = array<i64: 1, 16, 32, 64>}, {transform_indices = @transform_1, window_bounds = array<i64: 1, 1, 32, 64>}, {transform_indices = @transform_2, window_bounds = array<i64: 1, 1, 32, 64>}, {pipeline_mode = #tpu.pipeline_mode<synchronous>, transform_indices = @transform_3, window_bounds = array<i64: 576, 64>}, {pipeline_mode = #tpu.pipeline_mode<synchronous>, transform_indices = @transform_4, window_bounds = array<i64: 1, 64>}, {transform_indices = @transform_5, window_bounds = array<i64: 1, 8, 8, 128>}]} {
    %c0 = arith.constant 0 : index
    %c0_0 = arith.constant 0 : index
    %c0_1 = arith.constant 0 : index
    %c0_2 = arith.constant 0 : index
    %0 = vector.load %arg2[%c0, %c0_0, %c0_1, %c0_2] : memref<1x16x32x64xbf16, #tpu.memory_space<vmem>>, vector<1x16x32x64xbf16>
    %1 = vector.shape_cast %0 : vector<1x16x32x64xbf16> to vector<16x32x64xbf16>
    %c0_3 = arith.constant 0 : index
    %c0_4 = arith.constant 0 : index
    %c0_5 = arith.constant 0 : index
    %c0_6 = arith.constant 0 : index
    %2 = vector.load %arg3[%c0_3, %c0_4, %c0_5, %c0_6] : memref<1x1x32x64xbf16, #tpu.memory_space<vmem>>, vector<1x1x32x64xbf16>
    %3 = vector.shape_cast %2 : vector<1x1x32x64xbf16> to vector<32x64xbf16>
    %c0_7 = arith.constant 0 : index
    %c0_8 = arith.constant 0 : index
    %c0_9 = arith.constant 0 : index
    %c0_10 = arith.constant 0 : index
    %4 = vector.load %arg4[%c0_7, %c0_8, %c0_9, %c0_10] : memref<1x1x32x64xbf16, #tpu.memory_space<vmem>>, vector<1x1x32x64xbf16>
    %5 = vector.shape_cast %4 : vector<1x1x32x64xbf16> to vector<32x64xbf16>
    %c0_i32 = arith.constant 0 : i32
    %6 = arith.cmpi sgt, %arg1, %c0_i32 : i32
    %7 = arith.extui %6 : i1 to i32
    %8 = arith.sitofp %7 : i32 to f32
    %9 = arith.truncf %8 : f32 to bf16
    %c1_i32 = arith.constant 1 : i32
    %10 = arith.cmpi slt, %arg1, %c1_i32 : i32
    %11 = arith.extui %10 : i1 to i32
    %12 = arith.sitofp %11 : i32 to f32
    %13 = arith.truncf %12 : f32 to bf16
    %14 = vector.broadcast %9 : bf16 to vector<32x64xbf16>
    %15 = arith.mulf %3, %14 : vector<32x64xbf16>
    %16 = vector.broadcast %13 : bf16 to vector<32x64xbf16>
    %17 = arith.mulf %5, %16 : vector<32x64xbf16>
    %18 = vector.shape_cast %15 : vector<32x64xbf16> to vector<1x32x64xbf16>
    %19 = vector.shape_cast %17 : vector<32x64xbf16> to vector<1x32x64xbf16>
    %20 = tpu.concatenate %18, %1, %19 in 0 : vector<1x32x64xbf16>, vector<16x32x64xbf16>, vector<1x32x64xbf16> -> vector<18x32x64xbf16>
    %21 = arith.extf %20 : vector<18x32x64xbf16> to vector<18x32x64xf32>
    %22 = tpu.iota {dimensions = array<i32: 1>} : vector<18x32x64xi32>
    %c0_i32_11 = arith.constant 0 : i32
    %23 = vector.broadcast %c0_i32_11 : i32 to vector<18x32x64xi32>
    %24 = arith.cmpi eq, %22, %23 : vector<18x32x64xi32>
    %c1_i32_12 = arith.constant 1 : i32
    %25 = tpu.dynamic_rotate %21 by %c1_i32_12 dim 1 : vector<18x32x64xf32>, i32 -> vector<18x32x64xf32>
    %cst = arith.constant 0.000000e+00 : f32
    %26 = vector.broadcast %cst : f32 to vector<18x32x64xf32>
    %27 = arith.select %24, %26, %25 : vector<18x32x64xi1>, vector<18x32x64xf32>
    %28 = arith.truncf %27 : vector<18x32x64xf32> to vector<18x32x64xbf16>
    %c31_i32 = arith.constant 31 : i32
    %29 = vector.broadcast %c31_i32 : i32 to vector<18x32x64xi32>
    %30 = arith.cmpi eq, %22, %29 : vector<18x32x64xi32>
    %c31_i32_13 = arith.constant 31 : i32
    %31 = tpu.dynamic_rotate %21 by %c31_i32_13 dim 1 : vector<18x32x64xf32>, i32 -> vector<18x32x64xf32>
    %cst_14 = arith.constant 0.000000e+00 : f32
    %32 = vector.broadcast %cst_14 : f32 to vector<18x32x64xf32>
    %33 = arith.select %30, %32, %31 : vector<18x32x64xi1>, vector<18x32x64xf32>
    %34 = arith.truncf %33 : vector<18x32x64xf32> to vector<18x32x64xbf16>
    %35 = arith.truncf %21 : vector<18x32x64xf32> to vector<18x32x64xbf16>
    %36 = tpu.concatenate %28, %35, %34 in 2 : vector<18x32x64xbf16>, vector<18x32x64xbf16>, vector<18x32x64xbf16> -> vector<18x32x192xbf16>
    %37 = vector.extract_strided_slice %36 {offsets = [0, 0, 0], sizes = [16, 32, 192], strides = [1, 1, 1]} : vector<18x32x192xbf16> to vector<16x32x192xbf16>
    %38 = vector.shape_cast %37 : vector<16x32x192xbf16> to vector<512x192xbf16>
    %c0_15 = arith.constant 0 : index
    %c0_16 = arith.constant 0 : index
    %39 = vector.load %arg5[%c0_15, %c0_16] : memref<576x64xbf16, #tpu.memory_space<vmem>>, vector<192x64xbf16>
    %cst_17 = arith.constant dense<0.000000e+00> : vector<512x64xf32>
    %40 = tpu.matmul %38, %39, %cst_17 {dimension_numbers = #tpu.dot_dimension_numbers<[1], [0], [0], [1], [0, 0, 1, 1], [], []>} : vector<512x192xbf16>, vector<192x64xbf16>, vector<512x64xf32> -> vector<512x64xf32>
    %41 = vector.extract_strided_slice %36 {offsets = [1, 0, 0], sizes = [16, 32, 192], strides = [1, 1, 1]} : vector<18x32x192xbf16> to vector<16x32x192xbf16>
    %42 = vector.shape_cast %41 : vector<16x32x192xbf16> to vector<512x192xbf16>
    %c192 = arith.constant 192 : index
    %c0_18 = arith.constant 0 : index
    %43 = vector.load %arg5[%c192, %c0_18] : memref<576x64xbf16, #tpu.memory_space<vmem>>, vector<192x64xbf16>
    %cst_19 = arith.constant dense<0.000000e+00> : vector<512x64xf32>
    %44 = tpu.matmul %42, %43, %cst_19 {dimension_numbers = #tpu.dot_dimension_numbers<[1], [0], [0], [1], [0, 0, 1, 1], [], []>} : vector<512x192xbf16>, vector<192x64xbf16>, vector<512x64xf32> -> vector<512x64xf32>
    %45 = arith.addf %40, %44 : vector<512x64xf32>
    %46 = vector.extract_strided_slice %36 {offsets = [2, 0, 0], sizes = [16, 32, 192], strides = [1, 1, 1]} : vector<18x32x192xbf16> to vector<16x32x192xbf16>
    %47 = vector.shape_cast %46 : vector<16x32x192xbf16> to vector<512x192xbf16>
    %c384 = arith.constant 384 : index
    %c0_20 = arith.constant 0 : index
    %48 = vector.load %arg5[%c384, %c0_20] : memref<576x64xbf16, #tpu.memory_space<vmem>>, vector<192x64xbf16>
    %cst_21 = arith.constant dense<0.000000e+00> : vector<512x64xf32>
    %49 = tpu.matmul %47, %48, %cst_21 {dimension_numbers = #tpu.dot_dimension_numbers<[1], [0], [0], [1], [0, 0, 1, 1], [], []>} : vector<512x192xbf16>, vector<192x64xbf16>, vector<512x64xf32> -> vector<512x64xf32>
    %50 = arith.addf %45, %49 : vector<512x64xf32>
    %c0_22 = arith.constant 0 : index
    %c0_23 = arith.constant 0 : index
    %51 = vector.load %arg6[%c0_22, %c0_23] : memref<1x64xf32, #tpu.memory_space<vmem>>, vector<1x64xf32>
    %52 = vector.broadcast %51 : vector<1x64xf32> to vector<512x64xf32>
    %53 = arith.addf %50, %52 : vector<512x64xf32>
    %cst_24 = arith.constant 0.000000e+00 : f32
    %54 = vector.broadcast %cst_24 : f32 to vector<512x64xf32>
    %55 = arith.maximumf %53, %54 : vector<512x64xf32>
    %56 = vector.shape_cast %55 : vector<512x64xf32> to vector<16x32x64xf32>
    %57 = vector.shape_cast %56 : vector<16x32x64xf32> to vector<8x2x32x64xf32>
    %58 = vector.extract_strided_slice %57 {offsets = [0, 0, 0, 0], sizes = [8, 1, 32, 64], strides = [1, 1, 1, 1]} : vector<8x2x32x64xf32> to vector<8x1x32x64xf32>
    %59 = vector.shape_cast %58 : vector<8x1x32x64xf32> to vector<8x32x64xf32>
    %60 = vector.extract_strided_slice %57 {offsets = [0, 1, 0, 0], sizes = [8, 1, 32, 64], strides = [1, 1, 1, 1]} : vector<8x2x32x64xf32> to vector<8x1x32x64xf32>
    %61 = vector.shape_cast %60 : vector<8x1x32x64xf32> to vector<8x32x64xf32>
    %62 = arith.maximumf %59, %61 : vector<8x32x64xf32>
    %c0_25 = arith.constant 0 : index
    %c0_26 = arith.constant 0 : index
    %c0_27 = arith.constant 0 : index
    %63 = vector.load %arg8[%c0_25, %c0_26, %c0_27] : memref<8x32x64xf32, #tpu.memory_space<vmem>>, vector<8x32x64xf32>
    tpu.vector_store %arg8[%c0_25, %c0_26, %c0_27], %62 {strides = array<i32>} : memref<8x32x64xf32, #tpu.memory_space<vmem>>, vector<8x32x64xf32>,
    %c0_28 = arith.constant 0 : index
    %c0_29 = arith.constant 0 : index
    %c0_30 = arith.constant 0 : index
    %64 = tpu.strided_load %arg8[%c0_28, %c0_29, %c0_30] {strides = array<i32: 1, 4, 1>} : memref<8x32x64xf32, #tpu.memory_space<vmem>>, vector<8x8x64xf32>
    %c0_31 = arith.constant 0 : index
    %c1 = arith.constant 1 : index
    %c0_32 = arith.constant 0 : index
    %65 = tpu.strided_load %arg8[%c0_31, %c1, %c0_32] {strides = array<i32: 1, 4, 1>} : memref<8x32x64xf32, #tpu.memory_space<vmem>>, vector<8x8x64xf32>
    %c0_33 = arith.constant 0 : index
    %c2 = arith.constant 2 : index
    %c0_34 = arith.constant 0 : index
    %66 = tpu.strided_load %arg8[%c0_33, %c2, %c0_34] {strides = array<i32: 1, 4, 1>} : memref<8x32x64xf32, #tpu.memory_space<vmem>>, vector<8x8x64xf32>
    %c0_35 = arith.constant 0 : index
    %c3 = arith.constant 3 : index
    %c0_36 = arith.constant 0 : index
    %67 = tpu.strided_load %arg8[%c0_35, %c3, %c0_36] {strides = array<i32: 1, 4, 1>} : memref<8x32x64xf32, #tpu.memory_space<vmem>>, vector<8x8x64xf32>
    %68 = arith.maximumf %64, %65 : vector<8x8x64xf32>
    %69 = arith.maximumf %66, %67 : vector<8x8x64xf32>
    %70 = tpu.concatenate %68, %69 in 2 : vector<8x8x64xf32>, vector<8x8x64xf32> -> vector<8x8x128xf32>
    %71 = vector.shape_cast %70 : vector<8x8x128xf32> to vector<1x8x8x128xf32>
    %72 = arith.truncf %71 : vector<1x8x8x128xf32> to vector<1x8x8x128xbf16>
    %c0_37 = arith.constant 0 : index
    %c0_38 = arith.constant 0 : index
    %c0_39 = arith.constant 0 : index
    %c0_40 = arith.constant 0 : index
    %73 = vector.load %arg7[%c0_37, %c0_38, %c0_39, %c0_40] : memref<1x8x8x128xbf16, #tpu.memory_space<vmem>>, vector<1x8x8x128xbf16>
    tpu.vector_store %arg7[%c0_37, %c0_38, %c0_39, %c0_40], %72 {strides = array<i32>} : memref<1x8x8x128xbf16, #tpu.memory_space<vmem>>, vector<1x8x8x128xbf16>,
    return
  }
  func.func @transform_0(%arg0: i32, %arg1: i32) -> (i32, i32, i32, i32) {
    %c0_i32 = arith.constant 0 : i32
    %c0_i32_0 = arith.constant 0 : i32
    %c0_i32_1 = arith.constant 0 : i32
    return %arg0, %arg1, %c0_i32, %c0_i32_0 : i32, i32, i32, i32
  }
  func.func @transform_1(%arg0: i32, %arg1: i32) -> (i32, i32, i32, i32) {
    %c16_i32 = arith.constant 16 : i32
    %0 = arith.muli %arg1, %c16_i32 : i32
    %c1_i32 = arith.constant 1 : i32
    %1 = arith.subi %0, %c1_i32 : i32
    %c0_i32 = arith.constant 0 : i32
    %2 = arith.maxsi %1, %c0_i32 : i32
    %c0_i32_0 = arith.constant 0 : i32
    %c0_i32_1 = arith.constant 0 : i32
    %c0_i32_2 = arith.constant 0 : i32
    return %arg0, %2, %c0_i32_0, %c0_i32_1 : i32, i32, i32, i32
  }
  func.func @transform_2(%arg0: i32, %arg1: i32) -> (i32, i32, i32, i32) {
    %c16_i32 = arith.constant 16 : i32
    %0 = arith.muli %arg1, %c16_i32 : i32
    %c16_i32_0 = arith.constant 16 : i32
    %1 = arith.addi %0, %c16_i32_0 : i32
    %c31_i32 = arith.constant 31 : i32
    %2 = arith.minsi %1, %c31_i32 : i32
    %c0_i32 = arith.constant 0 : i32
    %c0_i32_1 = arith.constant 0 : i32
    %c0_i32_2 = arith.constant 0 : i32
    return %arg0, %2, %c0_i32, %c0_i32_1 : i32, i32, i32, i32
  }
  func.func @transform_3(%arg0: i32, %arg1: i32) -> (i32, i32) {
    %c0_i32 = arith.constant 0 : i32
    %c0_i32_0 = arith.constant 0 : i32
    %c0_i32_1 = arith.constant 0 : i32
    return %c0_i32, %c0_i32_0 : i32, i32
  }
  func.func @transform_4(%arg0: i32, %arg1: i32) -> (i32, i32) {
    %c0_i32 = arith.constant 0 : i32
    %c0_i32_0 = arith.constant 0 : i32
    %c0_i32_1 = arith.constant 0 : i32
    return %c0_i32, %c0_i32_0 : i32, i32
  }
  func.func @transform_5(%arg0: i32, %arg1: i32) -> (i32, i32, i32, i32) {
    %c0_i32 = arith.constant 0 : i32
    %c0_i32_0 = arith.constant 0 : i32
    %c0_i32_1 = arith.constant 0 : i32
    return %arg0, %arg1, %c0_i32, %c0_i32_0 : i32, i32, i32, i32
  }
}

module attributes {stable_mosaic.version = 11 : i64} {
  func.func @_conv3x3_relu_kernel(%arg0: i32, %arg1: i32, %arg2: memref<1x8x16x128xbf16, #tpu.memory_space<vmem>>, %arg3: memref<1x1x16x128xbf16, #tpu.memory_space<vmem>>, %arg4: memref<1x1x16x128xbf16, #tpu.memory_space<vmem>>, %arg5: memref<1152x128xbf16, #tpu.memory_space<vmem>>, %arg6: memref<1x128xf32, #tpu.memory_space<vmem>>, %arg7: memref<1x4x8x128xbf16, #tpu.memory_space<vmem>>, %arg8: memref<4x16x128xf32, #tpu.memory_space<vmem>>) attributes {dimension_semantics = [#tpu.dimension_semantics<parallel>, #tpu.dimension_semantics<parallel>], iteration_bounds = array<i64: 2, 2>, scalar_prefetch = 0 : i64, scratch_operands = 1 : i64, tpu.core_type = #tpu.core_type<tc>, window_params = [{transform_indices = @transform_0, window_bounds = array<i64: 1, 8, 16, 128>}, {transform_indices = @transform_1, window_bounds = array<i64: 1, 1, 16, 128>}, {transform_indices = @transform_2, window_bounds = array<i64: 1, 1, 16, 128>}, {pipeline_mode = #tpu.pipeline_mode<synchronous>, transform_indices = @transform_3, window_bounds = array<i64: 1152, 128>}, {pipeline_mode = #tpu.pipeline_mode<synchronous>, transform_indices = @transform_4, window_bounds = array<i64: 1, 128>}, {transform_indices = @transform_5, window_bounds = array<i64: 1, 4, 8, 128>}]} {
    %c0 = arith.constant 0 : index
    %c0_0 = arith.constant 0 : index
    %c0_1 = arith.constant 0 : index
    %c0_2 = arith.constant 0 : index
    %0 = vector.load %arg2[%c0, %c0_0, %c0_1, %c0_2] : memref<1x8x16x128xbf16, #tpu.memory_space<vmem>>, vector<1x8x16x128xbf16>
    %1 = vector.shape_cast %0 : vector<1x8x16x128xbf16> to vector<8x16x128xbf16>
    %c0_3 = arith.constant 0 : index
    %c0_4 = arith.constant 0 : index
    %c0_5 = arith.constant 0 : index
    %c0_6 = arith.constant 0 : index
    %2 = vector.load %arg3[%c0_3, %c0_4, %c0_5, %c0_6] : memref<1x1x16x128xbf16, #tpu.memory_space<vmem>>, vector<1x1x16x128xbf16>
    %3 = vector.shape_cast %2 : vector<1x1x16x128xbf16> to vector<16x128xbf16>
    %c0_7 = arith.constant 0 : index
    %c0_8 = arith.constant 0 : index
    %c0_9 = arith.constant 0 : index
    %c0_10 = arith.constant 0 : index
    %4 = vector.load %arg4[%c0_7, %c0_8, %c0_9, %c0_10] : memref<1x1x16x128xbf16, #tpu.memory_space<vmem>>, vector<1x1x16x128xbf16>
    %5 = vector.shape_cast %4 : vector<1x1x16x128xbf16> to vector<16x128xbf16>
    %c0_i32 = arith.constant 0 : i32
    %6 = arith.cmpi sgt, %arg1, %c0_i32 : i32
    %7 = arith.extui %6 : i1 to i32
    %8 = arith.sitofp %7 : i32 to f32
    %9 = arith.truncf %8 : f32 to bf16
    %c1_i32 = arith.constant 1 : i32
    %10 = arith.cmpi slt, %arg1, %c1_i32 : i32
    %11 = arith.extui %10 : i1 to i32
    %12 = arith.sitofp %11 : i32 to f32
    %13 = arith.truncf %12 : f32 to bf16
    %14 = vector.broadcast %9 : bf16 to vector<16x128xbf16>
    %15 = arith.mulf %3, %14 : vector<16x128xbf16>
    %16 = vector.broadcast %13 : bf16 to vector<16x128xbf16>
    %17 = arith.mulf %5, %16 : vector<16x128xbf16>
    %18 = vector.shape_cast %15 : vector<16x128xbf16> to vector<1x16x128xbf16>
    %19 = vector.shape_cast %17 : vector<16x128xbf16> to vector<1x16x128xbf16>
    %20 = tpu.concatenate %18, %1, %19 in 0 : vector<1x16x128xbf16>, vector<8x16x128xbf16>, vector<1x16x128xbf16> -> vector<10x16x128xbf16>
    %21 = arith.extf %20 : vector<10x16x128xbf16> to vector<10x16x128xf32>
    %22 = tpu.iota {dimensions = array<i32: 1>} : vector<10x16x128xi32>
    %c0_i32_11 = arith.constant 0 : i32
    %23 = vector.broadcast %c0_i32_11 : i32 to vector<10x16x128xi32>
    %24 = arith.cmpi eq, %22, %23 : vector<10x16x128xi32>
    %c1_i32_12 = arith.constant 1 : i32
    %25 = tpu.dynamic_rotate %21 by %c1_i32_12 dim 1 : vector<10x16x128xf32>, i32 -> vector<10x16x128xf32>
    %cst = arith.constant 0.000000e+00 : f32
    %26 = vector.broadcast %cst : f32 to vector<10x16x128xf32>
    %27 = arith.select %24, %26, %25 : vector<10x16x128xi1>, vector<10x16x128xf32>
    %28 = arith.truncf %27 : vector<10x16x128xf32> to vector<10x16x128xbf16>
    %c15_i32 = arith.constant 15 : i32
    %29 = vector.broadcast %c15_i32 : i32 to vector<10x16x128xi32>
    %30 = arith.cmpi eq, %22, %29 : vector<10x16x128xi32>
    %c15_i32_13 = arith.constant 15 : i32
    %31 = tpu.dynamic_rotate %21 by %c15_i32_13 dim 1 : vector<10x16x128xf32>, i32 -> vector<10x16x128xf32>
    %cst_14 = arith.constant 0.000000e+00 : f32
    %32 = vector.broadcast %cst_14 : f32 to vector<10x16x128xf32>
    %33 = arith.select %30, %32, %31 : vector<10x16x128xi1>, vector<10x16x128xf32>
    %34 = arith.truncf %33 : vector<10x16x128xf32> to vector<10x16x128xbf16>
    %35 = arith.truncf %21 : vector<10x16x128xf32> to vector<10x16x128xbf16>
    %36 = tpu.concatenate %28, %35, %34 in 2 : vector<10x16x128xbf16>, vector<10x16x128xbf16>, vector<10x16x128xbf16> -> vector<10x16x384xbf16>
    %37 = vector.extract_strided_slice %36 {offsets = [0, 0, 0], sizes = [8, 16, 384], strides = [1, 1, 1]} : vector<10x16x384xbf16> to vector<8x16x384xbf16>
    %38 = vector.shape_cast %37 : vector<8x16x384xbf16> to vector<128x384xbf16>
    %c0_15 = arith.constant 0 : index
    %c0_16 = arith.constant 0 : index
    %39 = vector.load %arg5[%c0_15, %c0_16] : memref<1152x128xbf16, #tpu.memory_space<vmem>>, vector<384x128xbf16>
    %cst_17 = arith.constant dense<0.000000e+00> : vector<128x128xf32>
    %40 = tpu.matmul %38, %39, %cst_17 {dimension_numbers = #tpu.dot_dimension_numbers<[1], [0], [0], [1], [0, 0, 1, 1], [], []>} : vector<128x384xbf16>, vector<384x128xbf16>, vector<128x128xf32> -> vector<128x128xf32>
    %41 = vector.extract_strided_slice %36 {offsets = [1, 0, 0], sizes = [8, 16, 384], strides = [1, 1, 1]} : vector<10x16x384xbf16> to vector<8x16x384xbf16>
    %42 = vector.shape_cast %41 : vector<8x16x384xbf16> to vector<128x384xbf16>
    %c384 = arith.constant 384 : index
    %c0_18 = arith.constant 0 : index
    %43 = vector.load %arg5[%c384, %c0_18] : memref<1152x128xbf16, #tpu.memory_space<vmem>>, vector<384x128xbf16>
    %cst_19 = arith.constant dense<0.000000e+00> : vector<128x128xf32>
    %44 = tpu.matmul %42, %43, %cst_19 {dimension_numbers = #tpu.dot_dimension_numbers<[1], [0], [0], [1], [0, 0, 1, 1], [], []>} : vector<128x384xbf16>, vector<384x128xbf16>, vector<128x128xf32> -> vector<128x128xf32>
    %45 = arith.addf %40, %44 : vector<128x128xf32>
    %46 = vector.extract_strided_slice %36 {offsets = [2, 0, 0], sizes = [8, 16, 384], strides = [1, 1, 1]} : vector<10x16x384xbf16> to vector<8x16x384xbf16>
    %47 = vector.shape_cast %46 : vector<8x16x384xbf16> to vector<128x384xbf16>
    %c768 = arith.constant 768 : index
    %c0_20 = arith.constant 0 : index
    %48 = vector.load %arg5[%c768, %c0_20] : memref<1152x128xbf16, #tpu.memory_space<vmem>>, vector<384x128xbf16>
    %cst_21 = arith.constant dense<0.000000e+00> : vector<128x128xf32>
    %49 = tpu.matmul %47, %48, %cst_21 {dimension_numbers = #tpu.dot_dimension_numbers<[1], [0], [0], [1], [0, 0, 1, 1], [], []>} : vector<128x384xbf16>, vector<384x128xbf16>, vector<128x128xf32> -> vector<128x128xf32>
    %50 = arith.addf %45, %49 : vector<128x128xf32>
    %c0_22 = arith.constant 0 : index
    %c0_23 = arith.constant 0 : index
    %51 = vector.load %arg6[%c0_22, %c0_23] : memref<1x128xf32, #tpu.memory_space<vmem>>, vector<1x128xf32>
    %52 = vector.broadcast %51 : vector<1x128xf32> to vector<128x128xf32>
    %53 = arith.addf %50, %52 : vector<128x128xf32>
    %cst_24 = arith.constant 0.000000e+00 : f32
    %54 = vector.broadcast %cst_24 : f32 to vector<128x128xf32>
    %55 = arith.maximumf %53, %54 : vector<128x128xf32>
    %56 = vector.shape_cast %55 : vector<128x128xf32> to vector<8x16x128xf32>
    %57 = vector.shape_cast %56 : vector<8x16x128xf32> to vector<4x2x16x128xf32>
    %58 = vector.extract_strided_slice %57 {offsets = [0, 0, 0, 0], sizes = [4, 1, 16, 128], strides = [1, 1, 1, 1]} : vector<4x2x16x128xf32> to vector<4x1x16x128xf32>
    %59 = vector.shape_cast %58 : vector<4x1x16x128xf32> to vector<4x16x128xf32>
    %60 = vector.extract_strided_slice %57 {offsets = [0, 1, 0, 0], sizes = [4, 1, 16, 128], strides = [1, 1, 1, 1]} : vector<4x2x16x128xf32> to vector<4x1x16x128xf32>
    %61 = vector.shape_cast %60 : vector<4x1x16x128xf32> to vector<4x16x128xf32>
    %62 = arith.maximumf %59, %61 : vector<4x16x128xf32>
    %c0_25 = arith.constant 0 : index
    %c0_26 = arith.constant 0 : index
    %c0_27 = arith.constant 0 : index
    %63 = vector.load %arg8[%c0_25, %c0_26, %c0_27] : memref<4x16x128xf32, #tpu.memory_space<vmem>>, vector<4x16x128xf32>
    tpu.vector_store %arg8[%c0_25, %c0_26, %c0_27], %62 {strides = array<i32>} : memref<4x16x128xf32, #tpu.memory_space<vmem>>, vector<4x16x128xf32>,
    %c0_28 = arith.constant 0 : index
    %c0_29 = arith.constant 0 : index
    %c0_30 = arith.constant 0 : index
    %64 = tpu.strided_load %arg8[%c0_28, %c0_29, %c0_30] {strides = array<i32: 1, 2, 1>} : memref<4x16x128xf32, #tpu.memory_space<vmem>>, vector<4x8x128xf32>
    %c0_31 = arith.constant 0 : index
    %c1 = arith.constant 1 : index
    %c0_32 = arith.constant 0 : index
    %65 = tpu.strided_load %arg8[%c0_31, %c1, %c0_32] {strides = array<i32: 1, 2, 1>} : memref<4x16x128xf32, #tpu.memory_space<vmem>>, vector<4x8x128xf32>
    %66 = arith.maximumf %64, %65 : vector<4x8x128xf32>
    %67 = vector.shape_cast %66 : vector<4x8x128xf32> to vector<1x4x8x128xf32>
    %68 = arith.truncf %67 : vector<1x4x8x128xf32> to vector<1x4x8x128xbf16>
    %c0_33 = arith.constant 0 : index
    %c0_34 = arith.constant 0 : index
    %c0_35 = arith.constant 0 : index
    %c0_36 = arith.constant 0 : index
    %69 = vector.load %arg7[%c0_33, %c0_34, %c0_35, %c0_36] : memref<1x4x8x128xbf16, #tpu.memory_space<vmem>>, vector<1x4x8x128xbf16>
    tpu.vector_store %arg7[%c0_33, %c0_34, %c0_35, %c0_36], %68 {strides = array<i32>} : memref<1x4x8x128xbf16, #tpu.memory_space<vmem>>, vector<1x4x8x128xbf16>,
    return
  }
  func.func @transform_0(%arg0: i32, %arg1: i32) -> (i32, i32, i32, i32) {
    %c0_i32 = arith.constant 0 : i32
    %c0_i32_0 = arith.constant 0 : i32
    %c0_i32_1 = arith.constant 0 : i32
    return %arg0, %arg1, %c0_i32, %c0_i32_0 : i32, i32, i32, i32
  }
  func.func @transform_1(%arg0: i32, %arg1: i32) -> (i32, i32, i32, i32) {
    %c8_i32 = arith.constant 8 : i32
    %0 = arith.muli %arg1, %c8_i32 : i32
    %c1_i32 = arith.constant 1 : i32
    %1 = arith.subi %0, %c1_i32 : i32
    %c0_i32 = arith.constant 0 : i32
    %2 = arith.maxsi %1, %c0_i32 : i32
    %c0_i32_0 = arith.constant 0 : i32
    %c0_i32_1 = arith.constant 0 : i32
    %c0_i32_2 = arith.constant 0 : i32
    return %arg0, %2, %c0_i32_0, %c0_i32_1 : i32, i32, i32, i32
  }
  func.func @transform_2(%arg0: i32, %arg1: i32) -> (i32, i32, i32, i32) {
    %c8_i32 = arith.constant 8 : i32
    %0 = arith.muli %arg1, %c8_i32 : i32
    %c8_i32_0 = arith.constant 8 : i32
    %1 = arith.addi %0, %c8_i32_0 : i32
    %c15_i32 = arith.constant 15 : i32
    %2 = arith.minsi %1, %c15_i32 : i32
    %c0_i32 = arith.constant 0 : i32
    %c0_i32_1 = arith.constant 0 : i32
    %c0_i32_2 = arith.constant 0 : i32
    return %arg0, %2, %c0_i32, %c0_i32_1 : i32, i32, i32, i32
  }
  func.func @transform_3(%arg0: i32, %arg1: i32) -> (i32, i32) {
    %c0_i32 = arith.constant 0 : i32
    %c0_i32_0 = arith.constant 0 : i32
    %c0_i32_1 = arith.constant 0 : i32
    return %c0_i32, %c0_i32_0 : i32, i32
  }
  func.func @transform_4(%arg0: i32, %arg1: i32) -> (i32, i32) {
    %c0_i32 = arith.constant 0 : i32
    %c0_i32_0 = arith.constant 0 : i32
    %c0_i32_1 = arith.constant 0 : i32
    return %c0_i32, %c0_i32_0 : i32, i32
  }
  func.func @transform_5(%arg0: i32, %arg1: i32) -> (i32, i32, i32, i32) {
    %c0_i32 = arith.constant 0 : i32
    %c0_i32_0 = arith.constant 0 : i32
    %c0_i32_1 = arith.constant 0 : i32
    return %arg0, %arg1, %c0_i32, %c0_i32_0 : i32, i32, i32, i32
  }
}

module attributes {stable_mosaic.version = 11 : i64} {
  func.func @_conv3x3_relu_kernel(%arg0: i32, %arg1: i32, %arg2: memref<1x8x16x64xbf16, #tpu.memory_space<vmem>>, %arg3: memref<1x1x16x64xbf16, #tpu.memory_space<vmem>>, %arg4: memref<1x1x16x64xbf16, #tpu.memory_space<vmem>>, %arg5: memref<576x128xbf16, #tpu.memory_space<vmem>>, %arg6: memref<1x128xf32, #tpu.memory_space<vmem>>, %arg7: memref<1x8x16x128xbf16, #tpu.memory_space<vmem>>) attributes {dimension_semantics = [#tpu.dimension_semantics<parallel>, #tpu.dimension_semantics<parallel>], iteration_bounds = array<i64: 2, 2>, scalar_prefetch = 0 : i64, scratch_operands = 0 : i64, tpu.core_type = #tpu.core_type<tc>, window_params = [{transform_indices = @transform_0, window_bounds = array<i64: 1, 8, 16, 64>}, {transform_indices = @transform_1, window_bounds = array<i64: 1, 1, 16, 64>}, {transform_indices = @transform_2, window_bounds = array<i64: 1, 1, 16, 64>}, {pipeline_mode = #tpu.pipeline_mode<synchronous>, transform_indices = @transform_3, window_bounds = array<i64: 576, 128>}, {pipeline_mode = #tpu.pipeline_mode<synchronous>, transform_indices = @transform_4, window_bounds = array<i64: 1, 128>}, {transform_indices = @transform_5, window_bounds = array<i64: 1, 8, 16, 128>}]} {
    %c0 = arith.constant 0 : index
    %c0_0 = arith.constant 0 : index
    %c0_1 = arith.constant 0 : index
    %c0_2 = arith.constant 0 : index
    %0 = vector.load %arg2[%c0, %c0_0, %c0_1, %c0_2] : memref<1x8x16x64xbf16, #tpu.memory_space<vmem>>, vector<1x8x16x64xbf16>
    %1 = vector.shape_cast %0 : vector<1x8x16x64xbf16> to vector<8x16x64xbf16>
    %c0_3 = arith.constant 0 : index
    %c0_4 = arith.constant 0 : index
    %c0_5 = arith.constant 0 : index
    %c0_6 = arith.constant 0 : index
    %2 = vector.load %arg3[%c0_3, %c0_4, %c0_5, %c0_6] : memref<1x1x16x64xbf16, #tpu.memory_space<vmem>>, vector<1x1x16x64xbf16>
    %3 = vector.shape_cast %2 : vector<1x1x16x64xbf16> to vector<16x64xbf16>
    %c0_7 = arith.constant 0 : index
    %c0_8 = arith.constant 0 : index
    %c0_9 = arith.constant 0 : index
    %c0_10 = arith.constant 0 : index
    %4 = vector.load %arg4[%c0_7, %c0_8, %c0_9, %c0_10] : memref<1x1x16x64xbf16, #tpu.memory_space<vmem>>, vector<1x1x16x64xbf16>
    %5 = vector.shape_cast %4 : vector<1x1x16x64xbf16> to vector<16x64xbf16>
    %c0_i32 = arith.constant 0 : i32
    %6 = arith.cmpi sgt, %arg1, %c0_i32 : i32
    %7 = arith.extui %6 : i1 to i32
    %8 = arith.sitofp %7 : i32 to f32
    %9 = arith.truncf %8 : f32 to bf16
    %c1_i32 = arith.constant 1 : i32
    %10 = arith.cmpi slt, %arg1, %c1_i32 : i32
    %11 = arith.extui %10 : i1 to i32
    %12 = arith.sitofp %11 : i32 to f32
    %13 = arith.truncf %12 : f32 to bf16
    %14 = vector.broadcast %9 : bf16 to vector<16x64xbf16>
    %15 = arith.mulf %3, %14 : vector<16x64xbf16>
    %16 = vector.broadcast %13 : bf16 to vector<16x64xbf16>
    %17 = arith.mulf %5, %16 : vector<16x64xbf16>
    %18 = vector.shape_cast %15 : vector<16x64xbf16> to vector<1x16x64xbf16>
    %19 = vector.shape_cast %17 : vector<16x64xbf16> to vector<1x16x64xbf16>
    %20 = tpu.concatenate %18, %1, %19 in 0 : vector<1x16x64xbf16>, vector<8x16x64xbf16>, vector<1x16x64xbf16> -> vector<10x16x64xbf16>
    %21 = arith.extf %20 : vector<10x16x64xbf16> to vector<10x16x64xf32>
    %22 = tpu.iota {dimensions = array<i32: 1>} : vector<10x16x64xi32>
    %c0_i32_11 = arith.constant 0 : i32
    %23 = vector.broadcast %c0_i32_11 : i32 to vector<10x16x64xi32>
    %24 = arith.cmpi eq, %22, %23 : vector<10x16x64xi32>
    %c1_i32_12 = arith.constant 1 : i32
    %25 = tpu.dynamic_rotate %21 by %c1_i32_12 dim 1 : vector<10x16x64xf32>, i32 -> vector<10x16x64xf32>
    %cst = arith.constant 0.000000e+00 : f32
    %26 = vector.broadcast %cst : f32 to vector<10x16x64xf32>
    %27 = arith.select %24, %26, %25 : vector<10x16x64xi1>, vector<10x16x64xf32>
    %28 = arith.truncf %27 : vector<10x16x64xf32> to vector<10x16x64xbf16>
    %c15_i32 = arith.constant 15 : i32
    %29 = vector.broadcast %c15_i32 : i32 to vector<10x16x64xi32>
    %30 = arith.cmpi eq, %22, %29 : vector<10x16x64xi32>
    %c15_i32_13 = arith.constant 15 : i32
    %31 = tpu.dynamic_rotate %21 by %c15_i32_13 dim 1 : vector<10x16x64xf32>, i32 -> vector<10x16x64xf32>
    %cst_14 = arith.constant 0.000000e+00 : f32
    %32 = vector.broadcast %cst_14 : f32 to vector<10x16x64xf32>
    %33 = arith.select %30, %32, %31 : vector<10x16x64xi1>, vector<10x16x64xf32>
    %34 = arith.truncf %33 : vector<10x16x64xf32> to vector<10x16x64xbf16>
    %35 = arith.truncf %21 : vector<10x16x64xf32> to vector<10x16x64xbf16>
    %36 = tpu.concatenate %28, %35, %34 in 2 : vector<10x16x64xbf16>, vector<10x16x64xbf16>, vector<10x16x64xbf16> -> vector<10x16x192xbf16>
    %37 = vector.extract_strided_slice %36 {offsets = [0, 0, 0], sizes = [8, 16, 192], strides = [1, 1, 1]} : vector<10x16x192xbf16> to vector<8x16x192xbf16>
    %38 = vector.shape_cast %37 : vector<8x16x192xbf16> to vector<128x192xbf16>
    %c0_15 = arith.constant 0 : index
    %c0_16 = arith.constant 0 : index
    %39 = vector.load %arg5[%c0_15, %c0_16] : memref<576x128xbf16, #tpu.memory_space<vmem>>, vector<192x128xbf16>
    %cst_17 = arith.constant dense<0.000000e+00> : vector<128x128xf32>
    %40 = tpu.matmul %38, %39, %cst_17 {dimension_numbers = #tpu.dot_dimension_numbers<[1], [0], [0], [1], [0, 0, 1, 1], [], []>} : vector<128x192xbf16>, vector<192x128xbf16>, vector<128x128xf32> -> vector<128x128xf32>
    %41 = vector.extract_strided_slice %36 {offsets = [1, 0, 0], sizes = [8, 16, 192], strides = [1, 1, 1]} : vector<10x16x192xbf16> to vector<8x16x192xbf16>
    %42 = vector.shape_cast %41 : vector<8x16x192xbf16> to vector<128x192xbf16>
    %c192 = arith.constant 192 : index
    %c0_18 = arith.constant 0 : index
    %43 = vector.load %arg5[%c192, %c0_18] : memref<576x128xbf16, #tpu.memory_space<vmem>>, vector<192x128xbf16>
    %cst_19 = arith.constant dense<0.000000e+00> : vector<128x128xf32>
    %44 = tpu.matmul %42, %43, %cst_19 {dimension_numbers = #tpu.dot_dimension_numbers<[1], [0], [0], [1], [0, 0, 1, 1], [], []>} : vector<128x192xbf16>, vector<192x128xbf16>, vector<128x128xf32> -> vector<128x128xf32>
    %45 = arith.addf %40, %44 : vector<128x128xf32>
    %46 = vector.extract_strided_slice %36 {offsets = [2, 0, 0], sizes = [8, 16, 192], strides = [1, 1, 1]} : vector<10x16x192xbf16> to vector<8x16x192xbf16>
    %47 = vector.shape_cast %46 : vector<8x16x192xbf16> to vector<128x192xbf16>
    %c384 = arith.constant 384 : index
    %c0_20 = arith.constant 0 : index
    %48 = vector.load %arg5[%c384, %c0_20] : memref<576x128xbf16, #tpu.memory_space<vmem>>, vector<192x128xbf16>
    %cst_21 = arith.constant dense<0.000000e+00> : vector<128x128xf32>
    %49 = tpu.matmul %47, %48, %cst_21 {dimension_numbers = #tpu.dot_dimension_numbers<[1], [0], [0], [1], [0, 0, 1, 1], [], []>} : vector<128x192xbf16>, vector<192x128xbf16>, vector<128x128xf32> -> vector<128x128xf32>
    %50 = arith.addf %45, %49 : vector<128x128xf32>
    %c0_22 = arith.constant 0 : index
    %c0_23 = arith.constant 0 : index
    %51 = vector.load %arg6[%c0_22, %c0_23] : memref<1x128xf32, #tpu.memory_space<vmem>>, vector<1x128xf32>
    %52 = vector.broadcast %51 : vector<1x128xf32> to vector<128x128xf32>
    %53 = arith.addf %50, %52 : vector<128x128xf32>
    %cst_24 = arith.constant 0.000000e+00 : f32
    %54 = vector.broadcast %cst_24 : f32 to vector<128x128xf32>
    %55 = arith.maximumf %53, %54 : vector<128x128xf32>
    %56 = vector.shape_cast %55 : vector<128x128xf32> to vector<8x16x128xf32>
    %57 = vector.shape_cast %56 : vector<8x16x128xf32> to vector<1x8x16x128xf32>
    %58 = arith.truncf %57 : vector<1x8x16x128xf32> to vector<1x8x16x128xbf16>
    %c0_25 = arith.constant 0 : index
    %c0_26 = arith.constant 0 : index
    %c0_27 = arith.constant 0 : index
    %c0_28 = arith.constant 0 : index
    %59 = vector.load %arg7[%c0_25, %c0_26, %c0_27, %c0_28] : memref<1x8x16x128xbf16, #tpu.memory_space<vmem>>, vector<1x8x16x128xbf16>
    tpu.vector_store %arg7[%c0_25, %c0_26, %c0_27, %c0_28], %58 {strides = array<i32>} : memref<1x8x16x128xbf16, #tpu.memory_space<vmem>>, vector<1x8x16x128xbf16>,
    return
  }
  func.func @transform_0(%arg0: i32, %arg1: i32) -> (i32, i32, i32, i32) {
    %c0_i32 = arith.constant 0 : i32
    %c0_i32_0 = arith.constant 0 : i32
    %c0_i32_1 = arith.constant 0 : i32
    return %arg0, %arg1, %c0_i32, %c0_i32_0 : i32, i32, i32, i32
  }
  func.func @transform_1(%arg0: i32, %arg1: i32) -> (i32, i32, i32, i32) {
    %c8_i32 = arith.constant 8 : i32
    %0 = arith.muli %arg1, %c8_i32 : i32
    %c1_i32 = arith.constant 1 : i32
    %1 = arith.subi %0, %c1_i32 : i32
    %c0_i32 = arith.constant 0 : i32
    %2 = arith.maxsi %1, %c0_i32 : i32
    %c0_i32_0 = arith.constant 0 : i32
    %c0_i32_1 = arith.constant 0 : i32
    %c0_i32_2 = arith.constant 0 : i32
    return %arg0, %2, %c0_i32_0, %c0_i32_1 : i32, i32, i32, i32
  }
  func.func @transform_2(%arg0: i32, %arg1: i32) -> (i32, i32, i32, i32) {
    %c8_i32 = arith.constant 8 : i32
    %0 = arith.muli %arg1, %c8_i32 : i32
    %c8_i32_0 = arith.constant 8 : i32
    %1 = arith.addi %0, %c8_i32_0 : i32
    %c15_i32 = arith.constant 15 : i32
    %2 = arith.minsi %1, %c15_i32 : i32
    %c0_i32 = arith.constant 0 : i32
    %c0_i32_1 = arith.constant 0 : i32
    %c0_i32_2 = arith.constant 0 : i32
    return %arg0, %2, %c0_i32, %c0_i32_1 : i32, i32, i32, i32
  }
  func.func @transform_3(%arg0: i32, %arg1: i32) -> (i32, i32) {
    %c0_i32 = arith.constant 0 : i32
    %c0_i32_0 = arith.constant 0 : i32
    %c0_i32_1 = arith.constant 0 : i32
    return %c0_i32, %c0_i32_0 : i32, i32
  }
  func.func @transform_4(%arg0: i32, %arg1: i32) -> (i32, i32) {
    %c0_i32 = arith.constant 0 : i32
    %c0_i32_0 = arith.constant 0 : i32
    %c0_i32_1 = arith.constant 0 : i32
    return %c0_i32, %c0_i32_0 : i32, i32
  }
  func.func @transform_5(%arg0: i32, %arg1: i32) -> (i32, i32, i32, i32) {
    %c0_i32 = arith.constant 0 : i32
    %c0_i32_0 = arith.constant 0 : i32
    %c0_i32_1 = arith.constant 0 : i32
    return %arg0, %arg1, %c0_i32, %c0_i32_0 : i32, i32, i32, i32
  }
}

module attributes {stable_mosaic.version = 11 : i64} {
  func.func @_conv3x3_relu_kernel(%arg0: i32, %arg1: i32, %arg2: memref<1x4x8x128xbf16, #tpu.memory_space<vmem>>, %arg3: memref<1x1x8x128xbf16, #tpu.memory_space<vmem>>, %arg4: memref<1x1x8x128xbf16, #tpu.memory_space<vmem>>, %arg5: memref<1152x256xbf16, #tpu.memory_space<vmem>>, %arg6: memref<1x256xf32, #tpu.memory_space<vmem>>, %arg7: memref<1x4x8x256xbf16, #tpu.memory_space<vmem>>) attributes {dimension_semantics = [#tpu.dimension_semantics<parallel>, #tpu.dimension_semantics<parallel>], iteration_bounds = array<i64: 2, 2>, scalar_prefetch = 0 : i64, scratch_operands = 0 : i64, tpu.core_type = #tpu.core_type<tc>, window_params = [{transform_indices = @transform_0, window_bounds = array<i64: 1, 4, 8, 128>}, {transform_indices = @transform_1, window_bounds = array<i64: 1, 1, 8, 128>}, {transform_indices = @transform_2, window_bounds = array<i64: 1, 1, 8, 128>}, {pipeline_mode = #tpu.pipeline_mode<synchronous>, transform_indices = @transform_3, window_bounds = array<i64: 1152, 256>}, {pipeline_mode = #tpu.pipeline_mode<synchronous>, transform_indices = @transform_4, window_bounds = array<i64: 1, 256>}, {transform_indices = @transform_5, window_bounds = array<i64: 1, 4, 8, 256>}]} {
    %c0 = arith.constant 0 : index
    %c0_0 = arith.constant 0 : index
    %c0_1 = arith.constant 0 : index
    %c0_2 = arith.constant 0 : index
    %0 = vector.load %arg2[%c0, %c0_0, %c0_1, %c0_2] : memref<1x4x8x128xbf16, #tpu.memory_space<vmem>>, vector<1x4x8x128xbf16>
    %1 = vector.shape_cast %0 : vector<1x4x8x128xbf16> to vector<4x8x128xbf16>
    %c0_3 = arith.constant 0 : index
    %c0_4 = arith.constant 0 : index
    %c0_5 = arith.constant 0 : index
    %c0_6 = arith.constant 0 : index
    %2 = vector.load %arg3[%c0_3, %c0_4, %c0_5, %c0_6] : memref<1x1x8x128xbf16, #tpu.memory_space<vmem>>, vector<1x1x8x128xbf16>
    %3 = vector.shape_cast %2 : vector<1x1x8x128xbf16> to vector<8x128xbf16>
    %c0_7 = arith.constant 0 : index
    %c0_8 = arith.constant 0 : index
    %c0_9 = arith.constant 0 : index
    %c0_10 = arith.constant 0 : index
    %4 = vector.load %arg4[%c0_7, %c0_8, %c0_9, %c0_10] : memref<1x1x8x128xbf16, #tpu.memory_space<vmem>>, vector<1x1x8x128xbf16>
    %5 = vector.shape_cast %4 : vector<1x1x8x128xbf16> to vector<8x128xbf16>
    %c0_i32 = arith.constant 0 : i32
    %6 = arith.cmpi sgt, %arg1, %c0_i32 : i32
    %7 = arith.extui %6 : i1 to i32
    %8 = arith.sitofp %7 : i32 to f32
    %9 = arith.truncf %8 : f32 to bf16
    %c1_i32 = arith.constant 1 : i32
    %10 = arith.cmpi slt, %arg1, %c1_i32 : i32
    %11 = arith.extui %10 : i1 to i32
    %12 = arith.sitofp %11 : i32 to f32
    %13 = arith.truncf %12 : f32 to bf16
    %14 = vector.broadcast %9 : bf16 to vector<8x128xbf16>
    %15 = arith.mulf %3, %14 : vector<8x128xbf16>
    %16 = vector.broadcast %13 : bf16 to vector<8x128xbf16>
    %17 = arith.mulf %5, %16 : vector<8x128xbf16>
    %18 = vector.shape_cast %15 : vector<8x128xbf16> to vector<1x8x128xbf16>
    %19 = vector.shape_cast %17 : vector<8x128xbf16> to vector<1x8x128xbf16>
    %20 = tpu.concatenate %18, %1, %19 in 0 : vector<1x8x128xbf16>, vector<4x8x128xbf16>, vector<1x8x128xbf16> -> vector<6x8x128xbf16>
    %21 = arith.extf %20 : vector<6x8x128xbf16> to vector<6x8x128xf32>
    %22 = tpu.iota {dimensions = array<i32: 1>} : vector<6x8x128xi32>
    %c0_i32_11 = arith.constant 0 : i32
    %23 = vector.broadcast %c0_i32_11 : i32 to vector<6x8x128xi32>
    %24 = arith.cmpi eq, %22, %23 : vector<6x8x128xi32>
    %c1_i32_12 = arith.constant 1 : i32
    %25 = tpu.dynamic_rotate %21 by %c1_i32_12 dim 1 : vector<6x8x128xf32>, i32 -> vector<6x8x128xf32>
    %cst = arith.constant 0.000000e+00 : f32
    %26 = vector.broadcast %cst : f32 to vector<6x8x128xf32>
    %27 = arith.select %24, %26, %25 : vector<6x8x128xi1>, vector<6x8x128xf32>
    %28 = arith.truncf %27 : vector<6x8x128xf32> to vector<6x8x128xbf16>
    %c7_i32 = arith.constant 7 : i32
    %29 = vector.broadcast %c7_i32 : i32 to vector<6x8x128xi32>
    %30 = arith.cmpi eq, %22, %29 : vector<6x8x128xi32>
    %c7_i32_13 = arith.constant 7 : i32
    %31 = tpu.dynamic_rotate %21 by %c7_i32_13 dim 1 : vector<6x8x128xf32>, i32 -> vector<6x8x128xf32>
    %cst_14 = arith.constant 0.000000e+00 : f32
    %32 = vector.broadcast %cst_14 : f32 to vector<6x8x128xf32>
    %33 = arith.select %30, %32, %31 : vector<6x8x128xi1>, vector<6x8x128xf32>
    %34 = arith.truncf %33 : vector<6x8x128xf32> to vector<6x8x128xbf16>
    %35 = arith.truncf %21 : vector<6x8x128xf32> to vector<6x8x128xbf16>
    %36 = tpu.concatenate %28, %35, %34 in 2 : vector<6x8x128xbf16>, vector<6x8x128xbf16>, vector<6x8x128xbf16> -> vector<6x8x384xbf16>
    %37 = vector.extract_strided_slice %36 {offsets = [0, 0, 0], sizes = [4, 8, 384], strides = [1, 1, 1]} : vector<6x8x384xbf16> to vector<4x8x384xbf16>
    %38 = vector.shape_cast %37 : vector<4x8x384xbf16> to vector<32x384xbf16>
    %c0_15 = arith.constant 0 : index
    %c0_16 = arith.constant 0 : index
    %39 = vector.load %arg5[%c0_15, %c0_16] : memref<1152x256xbf16, #tpu.memory_space<vmem>>, vector<384x256xbf16>
    %cst_17 = arith.constant dense<0.000000e+00> : vector<32x256xf32>
    %40 = tpu.matmul %38, %39, %cst_17 {dimension_numbers = #tpu.dot_dimension_numbers<[1], [0], [0], [1], [0, 0, 1, 1], [], []>} : vector<32x384xbf16>, vector<384x256xbf16>, vector<32x256xf32> -> vector<32x256xf32>
    %41 = vector.extract_strided_slice %36 {offsets = [1, 0, 0], sizes = [4, 8, 384], strides = [1, 1, 1]} : vector<6x8x384xbf16> to vector<4x8x384xbf16>
    %42 = vector.shape_cast %41 : vector<4x8x384xbf16> to vector<32x384xbf16>
    %c384 = arith.constant 384 : index
    %c0_18 = arith.constant 0 : index
    %43 = vector.load %arg5[%c384, %c0_18] : memref<1152x256xbf16, #tpu.memory_space<vmem>>, vector<384x256xbf16>
    %cst_19 = arith.constant dense<0.000000e+00> : vector<32x256xf32>
    %44 = tpu.matmul %42, %43, %cst_19 {dimension_numbers = #tpu.dot_dimension_numbers<[1], [0], [0], [1], [0, 0, 1, 1], [], []>} : vector<32x384xbf16>, vector<384x256xbf16>, vector<32x256xf32> -> vector<32x256xf32>
    %45 = arith.addf %40, %44 : vector<32x256xf32>
    %46 = vector.extract_strided_slice %36 {offsets = [2, 0, 0], sizes = [4, 8, 384], strides = [1, 1, 1]} : vector<6x8x384xbf16> to vector<4x8x384xbf16>
    %47 = vector.shape_cast %46 : vector<4x8x384xbf16> to vector<32x384xbf16>
    %c768 = arith.constant 768 : index
    %c0_20 = arith.constant 0 : index
    %48 = vector.load %arg5[%c768, %c0_20] : memref<1152x256xbf16, #tpu.memory_space<vmem>>, vector<384x256xbf16>
    %cst_21 = arith.constant dense<0.000000e+00> : vector<32x256xf32>
    %49 = tpu.matmul %47, %48, %cst_21 {dimension_numbers = #tpu.dot_dimension_numbers<[1], [0], [0], [1], [0, 0, 1, 1], [], []>} : vector<32x384xbf16>, vector<384x256xbf16>, vector<32x256xf32> -> vector<32x256xf32>
    %50 = arith.addf %45, %49 : vector<32x256xf32>
    %c0_22 = arith.constant 0 : index
    %c0_23 = arith.constant 0 : index
    %51 = vector.load %arg6[%c0_22, %c0_23] : memref<1x256xf32, #tpu.memory_space<vmem>>, vector<1x256xf32>
    %52 = vector.broadcast %51 : vector<1x256xf32> to vector<32x256xf32>
    %53 = arith.addf %50, %52 : vector<32x256xf32>
    %cst_24 = arith.constant 0.000000e+00 : f32
    %54 = vector.broadcast %cst_24 : f32 to vector<32x256xf32>
    %55 = arith.maximumf %53, %54 : vector<32x256xf32>
    %56 = vector.shape_cast %55 : vector<32x256xf32> to vector<4x8x256xf32>
    %57 = vector.shape_cast %56 : vector<4x8x256xf32> to vector<1x4x8x256xf32>
    %58 = arith.truncf %57 : vector<1x4x8x256xf32> to vector<1x4x8x256xbf16>
    %c0_25 = arith.constant 0 : index
    %c0_26 = arith.constant 0 : index
    %c0_27 = arith.constant 0 : index
    %c0_28 = arith.constant 0 : index
    %59 = vector.load %arg7[%c0_25, %c0_26, %c0_27, %c0_28] : memref<1x4x8x256xbf16, #tpu.memory_space<vmem>>, vector<1x4x8x256xbf16>
    tpu.vector_store %arg7[%c0_25, %c0_26, %c0_27, %c0_28], %58 {strides = array<i32>} : memref<1x4x8x256xbf16, #tpu.memory_space<vmem>>, vector<1x4x8x256xbf16>,
    return
  }
  func.func @transform_0(%arg0: i32, %arg1: i32) -> (i32, i32, i32, i32) {
    %c0_i32 = arith.constant 0 : i32
    %c0_i32_0 = arith.constant 0 : i32
    %c0_i32_1 = arith.constant 0 : i32
    return %arg0, %arg1, %c0_i32, %c0_i32_0 : i32, i32, i32, i32
  }
  func.func @transform_1(%arg0: i32, %arg1: i32) -> (i32, i32, i32, i32) {
    %c4_i32 = arith.constant 4 : i32
    %0 = arith.muli %arg1, %c4_i32 : i32
    %c1_i32 = arith.constant 1 : i32
    %1 = arith.subi %0, %c1_i32 : i32
    %c0_i32 = arith.constant 0 : i32
    %2 = arith.maxsi %1, %c0_i32 : i32
    %c0_i32_0 = arith.constant 0 : i32
    %c0_i32_1 = arith.constant 0 : i32
    %c0_i32_2 = arith.constant 0 : i32
    return %arg0, %2, %c0_i32_0, %c0_i32_1 : i32, i32, i32, i32
  }
  func.func @transform_2(%arg0: i32, %arg1: i32) -> (i32, i32, i32, i32) {
    %c4_i32 = arith.constant 4 : i32
    %0 = arith.muli %arg1, %c4_i32 : i32
    %c4_i32_0 = arith.constant 4 : i32
    %1 = arith.addi %0, %c4_i32_0 : i32
    %c7_i32 = arith.constant 7 : i32
    %2 = arith.minsi %1, %c7_i32 : i32
    %c0_i32 = arith.constant 0 : i32
    %c0_i32_1 = arith.constant 0 : i32
    %c0_i32_2 = arith.constant 0 : i32
    return %arg0, %2, %c0_i32, %c0_i32_1 : i32, i32, i32, i32
  }
  func.func @transform_3(%arg0: i32, %arg1: i32) -> (i32, i32) {
    %c0_i32 = arith.constant 0 : i32
    %c0_i32_0 = arith.constant 0 : i32
    %c0_i32_1 = arith.constant 0 : i32
    return %c0_i32, %c0_i32_0 : i32, i32
  }
  func.func @transform_4(%arg0: i32, %arg1: i32) -> (i32, i32) {
    %c0_i32 = arith.constant 0 : i32
    %c0_i32_0 = arith.constant 0 : i32
    %c0_i32_1 = arith.constant 0 : i32
    return %c0_i32, %c0_i32_0 : i32, i32
  }
  func.func @transform_5(%arg0: i32, %arg1: i32) -> (i32, i32, i32, i32) {
    %c0_i32 = arith.constant 0 : i32
    %c0_i32_0 = arith.constant 0 : i32
    %c0_i32_1 = arith.constant 0 : i32
    return %arg0, %arg1, %c0_i32, %c0_i32_0 : i32, i32, i32, i32
  }
}

</mosaic_0001>

<llo_original>
// kernel: vgg19_slice1.5
$region0: #{vgg19_slice1.5}
  #allocation0 [shape = 'u32[]', space=smem, size = 0x4, offset = 0x4, fixed_abs, tag = 'smem constant byte address 0x4 - core index']
  #allocation1 [shape = 'u32[144,128]{1,0:T(1,128)}', space=vmem, size = 0x12000, scoped, tag = 'internal scratch']
  #allocation2 [shape = 'f32[16,32,64]{2,1,0:T(8,128)}', space=vmem, size = 0x40000, scoped, tag = 'scratch operand']
  %s0 = inlined_call_operand.vmem [shape: bf16[2,32,32,3], index: 0, kind: input, shape index: {}, may-alias: {0,1,2}]
  %s1 = inlined_call_operand.vmem [shape: bf16[2,32,32,3], index: 1, kind: input, shape index: {}, may-alias: {0,1,2}]
  %s2 = inlined_call_operand.vmem [shape: bf16[2,32,32,3], index: 2, kind: input, shape index: {}, may-alias: {0,1,2}]
  %s3 = inlined_call_operand.vmem [shape: bf16[27,64], index: 3, kind: input, shape index: {}]
  %s4 = inlined_call_operand.vmem [shape: f32[1,64], index: 4, kind: input, shape index: {}]
  %s5 = inlined_call_operand.vmem [shape: bf16[2,32,16,128], index: 5, kind: output, shape index: {}]
  %s6 = sld [smem:[#allocation0]]
  $region53: #{vgg19_slice1.5} parent=0
    _
  %s8 = ssub.s32 1, %s6
  %s9 = scalar_select 0, %s8, %s6
  loop: start=0, step=1, limit=6
  $region2: #{vgg19_slice1.5} parent=0 // loop_pre_header
    _
  $region3: #{vgg19_slice1.5} parent=0 // loop_header
    %s11 = sphi 0, %s15
    %p12 = scmp.ge.s32.totalorder %s11, 6
    %s18 = sphi 0, %s30
    %s19 = sphi 0, %s26
    %s20 = sphi 0, %s18
    %s21 = sphi 0, %s19
    %s22 = sphi 0, %s20
    %s23 = sphi 0, %s21
    %s35 = sphi 0, %s37
    %s38 = sphi 0, %s35
    %s39 = sphi 0, %s38
    %s55 = sphi 0, %s39
    %s71 = sphi 0, %s73
    %s74 = sphi 0, %s71
    %s75 = sphi 0, %s74
    %s91 = sphi 0, %s75
    %s107 = sphi 0, %s109
    %s110 = sphi 0, %s107
    %s111 = sphi 0, %s110
    %s127 = sphi 0, %s111
    %s131 = sphi 0, %s131
    %s133 = sphi 0, %s131
    %s134 = sphi 0, %s133
    %s148 = sphi 0, %s134
    %s152 = sphi 0, %s152
    %s154 = sphi 0, %s152
    %s155 = sphi 0, %s154
    %s169 = sphi 0, %s155
    %s177 = sphi 0, %s179
    %s180 = sphi 0, %s177
    %s181 = sphi 0, %s180
    %s197 = sphi 0, %s181
  $region4: #{vgg19_slice1.5} parent=0 // loop_header_branch
    %14 = sbr.rel (%p12) target = $region8
  $region5: #{vgg19_slice1.5} parent=0 // loop_body
    %s16 = ssub.s32 %s11, 1
    %s17 = ssub.s32 %s11, 2
    %s24 = sadd.s32 1, %s19
    %p25 = scmp.ge.s32.totalorder %s24, 2
    %s26 = scalar_select %p25, 0, %s24
    %s27 = sadd.s32 1, %s18
    %s28 = scalar_select %p25, %s27, %s18
    %p29 = scmp.ge.s32.totalorder %s28, 2
    %s30 = scalar_select %p29, 0, %s28
    %s31 = ssub.s32 %s18, %s30
    %s32 = ssub.s32 %s19, %s26
    %s33 = sor.u32 %s31, %s32
    %p34 = scmp.eq.s32.totalorder %s33, 0
    %s36 = sadd.s32 %s35, 1
    %s37 = scalar_select %p34, %s35, %s36
    %p40 = pneg %p34
    %p41 = scmp.eq.s32.totalorder %s11, 3
    %p42 = por %p40, %p41
    %p43 = scmp.ne.s32.totalorder %s35, %s38
    %p44 = scmp.eq.s32.totalorder %s11, 0
    %p45 = por %p43, %p44
    %p46 = scmp.ne.s32.totalorder %s35, %s38
    %p47 = scmp.eq.s32.totalorder %s16, 3
    %p48 = por %p46, %p47
    %p49 = scmp.ne.s32.totalorder %s38, %s39
    %p50 = scmp.eq.s32.totalorder %s16, 0
    %p51 = por %p49, %p50
    %p52 = scmp.ne.s32.totalorder %s38, %s39
    %p53 = scmp.eq.s32.totalorder %s17, 3
    %p54 = por %p52, %p53
    %p56 = scmp.ne.s32.totalorder %s39, %s55
    %p57 = scmp.eq.s32.totalorder %s17, 0
    %p58 = por %p56, %p57
    %s59 = smul.u32 %s19, 16
    %s60 = ssub.s32 %s59, 1
    %p61 = scmp.gt.s32.totalorder %s60, 0
    %s62 = scalar_select %p61, %s60, 0
    %s63 = smul.u32 %s26, 16
    %s64 = ssub.s32 %s63, 1
    %p65 = scmp.gt.s32.totalorder %s64, 0
    %s66 = scalar_select %p65, %s64, 0
    %s67 = ssub.s32 %s18, %s30
    %s68 = ssub.s32 %s62, %s66
    %s69 = sor.u32 %s67, %s68
    %p70 = scmp.eq.s32.totalorder %s69, 0
    %s72 = sadd.s32 %s71, 1
    %s73 = scalar_select %p70, %s71, %s72
    %p76 = pneg %p70
    %p77 = scmp.eq.s32.totalorder %s11, 3
    %p78 = por %p76, %p77
    %p79 = scmp.ne.s32.totalorder %s71, %s74
    %p80 = scmp.eq.s32.totalorder %s11, 0
    %p81 = por %p79, %p80
    %p82 = scmp.ne.s32.totalorder %s71, %s74
    %p83 = scmp.eq.s32.totalorder %s16, 3
    %p84 = por %p82, %p83
    %p85 = scmp.ne.s32.totalorder %s74, %s75
    %p86 = scmp.eq.s32.totalorder %s16, 0
    %p87 = por %p85, %p86
    %p88 = scmp.ne.s32.totalorder %s74, %s75
    %p89 = scmp.eq.s32.totalorder %s17, 3
    %p90 = por %p88, %p89
    %p92 = scmp.ne.s32.totalorder %s75, %s91
    %p93 = scmp.eq.s32.totalorder %s17, 0
    %p94 = por %p92, %p93
    %s95 = smul.u32 %s19, 16
    %s96 = sadd.s32 %s95, 16
    %p97 = scmp.lt.s32.totalorder %s96, 31
    %s98 = scalar_select %p97, %s96, 31
    %s99 = smul.u32 %s26, 16
    %s100 = sadd.s32 %s99, 16
    %p101 = scmp.lt.s32.totalorder %s100, 31
    %s102 = scalar_select %p101, %s100, 31
    %s103 = ssub.s32 %s18, %s30
    %s104 = ssub.s32 %s98, %s102
    %s105 = sor.u32 %s103, %s104
    %p106 = scmp.eq.s32.totalorder %s105, 0
    %s108 = sadd.s32 %s107, 1
    %s109 = scalar_select %p106, %s107, %s108
    %p112 = pneg %p106
    %p113 = scmp.eq.s32.totalorder %s11, 3
    %p114 = por %p112, %p113
    %p115 = scmp.ne.s32.totalorder %s107, %s110
    %p116 = scmp.eq.s32.totalorder %s11, 0
    %p117 = por %p115, %p116
    %p118 = scmp.ne.s32.totalorder %s107, %s110
    %p119 = scmp.eq.s32.totalorder %s16, 3
    %p120 = por %p118, %p119
    %p121 = scmp.ne.s32.totalorder %s110, %s111
    %p122 = scmp.eq.s32.totalorder %s16, 0
    %p123 = por %p121, %p122
    %p124 = scmp.ne.s32.totalorder %s110, %s111
    %p125 = scmp.eq.s32.totalorder %s17, 3
    %p126 = por %p124, %p125
    %p128 = scmp.ne.s32.totalorder %s111, %s127
    %p129 = scmp.eq.s32.totalorder %s17, 0
    %p130 = por %p128, %p129
    %s132 = sadd.s32 %s131, 1
    %p135 = scmp.eq.s32.totalorder %s11, 3
    %p136 = scmp.ne.s32.totalorder %s131, %s133
    %p137 = scmp.eq.s32.totalorder %s11, 0
    %p138 = por %p136, %p137
    %p139 = scmp.ne.s32.totalorder %s131, %s133
    %p140 = scmp.eq.s32.totalorder %s16, 3
    %p141 = por %p139, %p140
    %p142 = scmp.ne.s32.totalorder %s133, %s134
    %p143 = scmp.eq.s32.totalorder %s16, 0
    %p144 = por %p142, %p143
    %p145 = scmp.ne.s32.totalorder %s133, %s134
    %p146 = scmp.eq.s32.totalorder %s17, 3
    %p147 = por %p145, %p146
    %p149 = scmp.ne.s32.totalorder %s134, %s148
    %p150 = scmp.eq.s32.totalorder %s17, 0
    %p151 = por %p149, %p150
    %s153 = sadd.s32 %s152, 1
    %p156 = scmp.eq.s32.totalorder %s11, 3
    %p157 = scmp.ne.s32.totalorder %s152, %s154
    %p158 = scmp.eq.s32.totalorder %s11, 0
    %p159 = por %p157, %p158
    %p160 = scmp.ne.s32.totalorder %s152, %s154
    %p161 = scmp.eq.s32.totalorder %s16, 3
    %p162 = por %p160, %p161
    %p163 = scmp.ne.s32.totalorder %s154, %s155
    %p164 = scmp.eq.s32.totalorder %s16, 0
    %p165 = por %p163, %p164
    %p166 = scmp.ne.s32.totalorder %s154, %s155
    %p167 = scmp.eq.s32.totalorder %s17, 3
    %p168 = por %p166, %p167
    %p170 = scmp.ne.s32.totalorder %s155, %s169
    %p171 = scmp.eq.s32.totalorder %s17, 0
    %p172 = por %p170, %p171
    %s173 = ssub.s32 %s18, %s30
    %s174 = ssub.s32 %s19, %s26
    %s175 = sor.u32 %s173, %s174
    %p176 = scmp.eq.s32.totalorder %s175, 0
    %s178 = sadd.s32 %s177, 1
    %s179 = scalar_select %p176, %s177, %s178
    %p182 = pneg %p176
    %p183 = scmp.eq.s32.totalorder %s11, 3
    %p184 = por %p182, %p183
    %p185 = scmp.ne.s32.totalorder %s177, %s180
    %p186 = scmp.eq.s32.totalorder %s11, 0
    %p187 = por %p185, %p186
    %p188 = scmp.ne.s32.totalorder %s177, %s180
    %p189 = scmp.eq.s32.totalorder %s16, 3
    %p190 = por %p188, %p189
    %p191 = scmp.ne.s32.totalorder %s180, %s181
    %p192 = scmp.eq.s32.totalorder %s16, 0
    %p193 = por %p191, %p192
    %p194 = scmp.ne.s32.totalorder %s180, %s181
    %p195 = scmp.eq.s32.totalorder %s17, 3
    %p196 = por %p194, %p195
    %p198 = scmp.ne.s32.totalorder %s181, %s197
    %p199 = scmp.eq.s32.totalorder %s17, 0
    %p200 = por %p198, %p199
    %p201 = scmp.le.s32.totalorder 1, %s11
    %p202 = scmp.lt.s32.totalorder %s11, 5
    %p203 = pnand %p201, %p202
    %p204 = pneg %p203
    // Predicated region
    $region9: #{vgg19_slice1.5} parent=5 // pred_check
      _
    $region10: #{vgg19_slice1.5} parent=5 // pred_check_branch
      %206 = sbr.rel (%p203) target = $region12
    $region11: #{vgg19_slice1.5} parent=5 // pred_region
      %s207 = ssub.s32 %s11, 1
      // Predicated region
      $region13: #{vgg19_slice1.5} parent=11 // pred_check
        %p208 = pneg %p144
      $region14: #{vgg19_slice1.5} parent=11 // pred_check_branch
        %210 = sbr.rel (%p208) target = $region16
      $region15: #{vgg19_slice1.5} parent=11 // pred_region
        _
      $region16: #{vgg19_slice1.5} parent=11 // pred_fallthru
        _
      // Predicated region
      $region17: #{vgg19_slice1.5} parent=11 // pred_check
        %p211 = pneg %p165
      $region18: #{vgg19_slice1.5} parent=11 // pred_check_branch
        %213 = sbr.rel (%p211) target = $region20
      $region19: #{vgg19_slice1.5} parent=11 // pred_region
        _
      $region20: #{vgg19_slice1.5} parent=11 // pred_fallthru
        _
    $region12: #{vgg19_slice1.5} parent=5 // pred_fallthru
      _
    %p214 = scmp.lt.s32.totalorder %s11, 4
    // Predicated region
    $region21: #{vgg19_slice1.5} parent=5 // pred_check
      %p215 = pneg %p214
    $region22: #{vgg19_slice1.5} parent=5 // pred_check_branch
      %217 = sbr.rel (%p215) target = $region24
    $region23: #{vgg19_slice1.5} parent=5 // pred_region
      // Predicated region
      $region25: #{vgg19_slice1.5} parent=23 // pred_check
        %p218 = pneg %p45
      $region26: #{vgg19_slice1.5} parent=23 // pred_check_branch
        %220 = sbr.rel (%p218) target = $region28
      $region27: #{vgg19_slice1.5} parent=23 // pred_region
        %s221 = smul.u32 16, %s19
        %p222 = scmp.lt.s32.totalorder %s18, 1
        %s223 = scalar_select %p222, %s18, 1
        %p224 = scmp.lt.s32.totalorder %s221, 31
        %s225 = scalar_select %p224, %s221, 31
        %s226 = smul.addr %s225, 4
        %s227 = smul.addr %s223, 128
        %s228 = sadd.s32 %s226, %s227
        %s229 = smul.addr %s228, 4
        %s230 = scalar_lea.vmem %s0, %s229
        %s231 = smul.u32 16, %s19
      $region28: #{vgg19_slice1.5} parent=23 // pred_fallthru
        _
      // Predicated region
      $region29: #{vgg19_slice1.5} parent=23 // pred_check
        %p232 = pneg %p81
      $region30: #{vgg19_slice1.5} parent=23 // pred_check_branch
        %234 = sbr.rel (%p232) target = $region32
      $region31: #{vgg19_slice1.5} parent=23 // pred_region
        %s235 = smul.u32 %s19, 16
        %s236 = ssub.s32 %s235, 1
        %p237 = scmp.gt.s32.totalorder %s236, 0
        %s238 = scalar_select %p237, %s236, 0
        %p239 = scmp.lt.s32.totalorder %s18, 1
        %s240 = scalar_select %p239, %s18, 1
        %p241 = scmp.lt.s32.totalorder %s238, 31
        %s242 = scalar_select %p241, %s238, 31
        %s243 = smul.addr %s242, 4
        %s244 = smul.addr %s240, 128
        %s245 = sadd.s32 %s243, %s244
        %s246 = smul.addr %s245, 4
        %s247 = scalar_lea.vmem %s1, %s246
        %s248 = smul.u32 %s19, 16
        %s249 = ssub.s32 %s248, 1
        %p250 = scmp.gt.s32.totalorder %s249, 0
        %s251 = scalar_select %p250, %s249, 0
      $region32: #{vgg19_slice1.5} parent=23 // pred_fallthru
        _
      // Predicated region
      $region33: #{vgg19_slice1.5} parent=23 // pred_check
        %p252 = pneg %p117
      $region34: #{vgg19_slice1.5} parent=23 // pred_check_branch
        %254 = sbr.rel (%p252) target = $region36
      $region35: #{vgg19_slice1.5} parent=23 // pred_region
        %s255 = smul.u32 %s19, 16
        %s256 = sadd.s32 %s255, 16
        %p257 = scmp.lt.s32.totalorder %s256, 31
        %s258 = scalar_select %p257, %s256, 31
        %p259 = scmp.lt.s32.totalorder %s18, 1
        %s260 = scalar_select %p259, %s18, 1
        %p261 = scmp.lt.s32.totalorder %s258, 31
        %s262 = scalar_select %p261, %s258, 31
        %s263 = smul.addr %s262, 4
        %s264 = smul.addr %s260, 128
        %s265 = sadd.s32 %s263, %s264
        %s266 = smul.addr %s265, 4
        %s267 = scalar_lea.vmem %s2, %s266
        %s268 = smul.u32 %s19, 16
        %s269 = sadd.s32 %s268, 16
        %p270 = scmp.lt.s32.totalorder %s269, 31
        %s271 = scalar_select %p270, %s269, 31
      $region36: #{vgg19_slice1.5} parent=23 // pred_fallthru
        _
    $region24: #{vgg19_slice1.5} parent=5 // pred_fallthru
      _
    %p272 = scmp.le.s32.totalorder 1, %s11
    %p273 = scmp.lt.s32.totalorder %s11, 5
    %p274 = pnand %p272, %p273
    %p275 = pneg %p274
    // Predicated region
    $region37: #{vgg19_slice1.5} parent=5 // pred_check
      _
    $region38: #{vgg19_slice1.5} parent=5 // pred_check_branch
      %277 = sbr.rel (%p274) target = $region40
    $region39: #{vgg19_slice1.5} parent=5 // pred_region
      %s278 = ssub.s32 %s11, 1
      %s279 = smul.u32 16, %s21
      %p280 = scmp.lt.s32.totalorder %s20, 1
      %s281 = scalar_select %p280, %s20, 1
      %p282 = scmp.lt.s32.totalorder %s279, 31
      %s283 = scalar_select %p282, %s279, 31
      %s284 = smul.addr %s283, 4
      %s285 = smul.addr %s281, 128
      %s286 = sadd.s32 %s284, %s285
      %s287 = smul.addr %s286, 4
      %s288 = scalar_lea.vmem %s0, %s287
      %p289 = pneg %p51
      %p290 = pneg %p48
      %s291 = smul.u32 %s21, 16
      %s292 = ssub.s32 %s291, 1
      %p293 = scmp.gt.s32.totalorder %s292, 0
      %s294 = scalar_select %p293, %s292, 0
      %p295 = scmp.lt.s32.totalorder %s20, 1
      %s296 = scalar_select %p295, %s20, 1
      %p297 = scmp.lt.s32.totalorder %s294, 31
      %s298 = scalar_select %p297, %s294, 31
      %s299 = smul.addr %s298, 4
      %s300 = smul.addr %s296, 128
      %s301 = sadd.s32 %s299, %s300
      %s302 = smul.addr %s301, 4
      %s303 = scalar_lea.vmem %s1, %s302
      %p304 = pneg %p87
      %p305 = pneg %p84
      %s306 = smul.u32 %s21, 16
      %s307 = sadd.s32 %s306, 16
      %p308 = scmp.lt.s32.totalorder %s307, 31
      %s309 = scalar_select %p308, %s307, 31
      %p310 = scmp.lt.s32.totalorder %s20, 1
      %s311 = scalar_select %p310, %s20, 1
      %p312 = scmp.lt.s32.totalorder %s309, 31
      %s313 = scalar_select %p312, %s309, 31
      %s314 = smul.addr %s313, 4
      %s315 = smul.addr %s311, 128
      %s316 = sadd.s32 %s314, %s315
      %s317 = smul.addr %s316, 4
      %s318 = scalar_lea.vmem %s2, %s317
      %p319 = pneg %p123
      %p320 = pneg %p120
      %p321 = pneg %p144
      %p322 = pneg %p141
      %p323 = pneg %p165
      %p324 = pneg %p162
      %p325 = pneg %p193
      %p326 = pneg %p190
      %s327 = smul.u32 16, %s21
      %p328 = scmp.lt.s32.totalorder %s20, 1
      %s329 = scalar_select %p328, %s20, 1
      %p330 = scmp.lt.s32.totalorder %s327, 31
      %s331 = scalar_select %p330, %s327, 31
      %s332 = smul.addr %s331, 2
      %s333 = smul.addr %s329, 64
      %s334 = sadd.s32 %s332, %s333
      %s335 = smul.addr %s334, 4
      %s336 = scalar_lea.vmem %s5, %s335
      %s337 = smul.u32 16, %s21
      %p338 = scmp.lt.s32.totalorder %s20, 1
      %s339 = scalar_select %p338, %s20, 1
      %p340 = scmp.lt.s32.totalorder %s337, 31
      %s341 = scalar_select %p340, %s337, 31
      %s342 = smul.addr %s341, 4
      %s343 = smul.addr %s339, 128
      %s344 = sadd.s32 %s342, %s343
      %s345 = smul.addr %s344, 4
      %s346 = scalar_lea.vmem %s0, %s345
      %s347 = smul.u32 16, %s21
      %s348 = smul.u32 %s21, 16
      %s349 = ssub.s32 %s348, 1
      %p350 = scmp.gt.s32.totalorder %s349, 0
      %s351 = scalar_select %p350, %s349, 0
      %p352 = scmp.lt.s32.totalorder %s20, 1
      %s353 = scalar_select %p352, %s20, 1
      %p354 = scmp.lt.s32.totalorder %s351, 31
      %s355 = scalar_select %p354, %s351, 31
      %s356 = smul.addr %s355, 4
      %s357 = smul.addr %s353, 128
      %s358 = sadd.s32 %s356, %s357
      %s359 = smul.addr %s358, 4
      %s360 = scalar_lea.vmem %s1, %s359
      %s361 = smul.u32 %s21, 16
      %s362 = ssub.s32 %s361, 1
      %p363 = scmp.gt.s32.totalorder %s362, 0
      %s364 = scalar_select %p363, %s362, 0
      %s365 = smul.u32 %s21, 16
      %s366 = sadd.s32 %s365, 16
      %p367 = scmp.lt.s32.totalorder %s366, 31
      %s368 = scalar_select %p367, %s366, 31
      %p369 = scmp.lt.s32.totalorder %s20, 1
      %s370 = scalar_select %p369, %s20, 1
      %p371 = scmp.lt.s32.totalorder %s368, 31
      %s372 = scalar_select %p371, %s368, 31
      %s373 = smul.addr %s372, 4
      %s374 = smul.addr %s370, 128
      %s375 = sadd.s32 %s373, %s374
      %s376 = smul.addr %s375, 4
      %s377 = scalar_lea.vmem %s2, %s376
      %s378 = smul.u32 %s21, 16
      %s379 = sadd.s32 %s378, 16
      %p380 = scmp.lt.s32.totalorder %s379, 31
      %s381 = scalar_select %p380, %s379, 31
      %s382 = smul.u32 16, %s21
      %p383 = scmp.lt.s32.totalorder %s20, 1
      %s384 = scalar_select %p383, %s20, 1
      %p385 = scmp.lt.s32.totalorder %s382, 31
      %s386 = scalar_select %p385, %s382, 31
      %s387 = smul.addr %s386, 2
      %s388 = smul.addr %s384, 64
      %s389 = sadd.s32 %s387, %s388
      %s390 = smul.addr %s389, 4
      %s391 = scalar_lea.vmem %s5, %s390
      %s392 = smul.u32 16, %s21
      %v394 = vld [vmem:[%s346] sm:$0xf]
      %v395 = vld [vmem:[%s346 + $0x4] sm:$0xf]
      %v396 = vld [vmem:[%s346 + $0x8] sm:$0xf]
      %v397 = vld [vmem:[%s346 + $0xc] sm:$0xf]
      %v398 = vld [vmem:[%s346 + $0x10] sm:$0xf]
      %v399 = vld [vmem:[%s346 + $0x14] sm:$0xf]
      %v400 = vld [vmem:[%s346 + $0x18] sm:$0xf]
      %v401 = vld [vmem:[%s346 + $0x1c] sm:$0xf]
      %v402 = vld [vmem:[%s346 + $0x20] sm:$0xf]
      %v403 = vld [vmem:[%s346 + $0x24] sm:$0xf]
      %v404 = vld [vmem:[%s346 + $0x28] sm:$0xf]
      %v405 = vld [vmem:[%s346 + $0x2c] sm:$0xf]
      %v406 = vld [vmem:[%s346 + $0x30] sm:$0xf]
      %v407 = vld [vmem:[%s346 + $0x34] sm:$0xf]
      %v408 = vld [vmem:[%s346 + $0x38] sm:$0xf]
      %v409 = vld [vmem:[%s346 + $0x3c] sm:$0xf]
      %v410 = vld [vmem:[%s346 + $0x40] sm:$0xf]
      %v411 = vld [vmem:[%s346 + $0x44] sm:$0xf]
      %v412 = vld [vmem:[%s346 + $0x48] sm:$0xf]
      %v413 = vld [vmem:[%s346 + $0x4c] sm:$0xf]
      %v414 = vld [vmem:[%s346 + $0x50] sm:$0xf]
      %v415 = vld [vmem:[%s346 + $0x54] sm:$0xf]
      %v416 = vld [vmem:[%s346 + $0x58] sm:$0xf]
      %v417 = vld [vmem:[%s346 + $0x5c] sm:$0xf]
      %v418 = vld [vmem:[%s346 + $0x60] sm:$0xf]
      %v419 = vld [vmem:[%s346 + $0x64] sm:$0xf]
      %v420 = vld [vmem:[%s346 + $0x68] sm:$0xf]
      %v421 = vld [vmem:[%s346 + $0x6c] sm:$0xf]
      %v422 = vld [vmem:[%s346 + $0x70] sm:$0xf]
      %v423 = vld [vmem:[%s346 + $0x74] sm:$0xf]
      %v424 = vld [vmem:[%s346 + $0x78] sm:$0xf]
      %v425 = vld [vmem:[%s346 + $0x7c] sm:$0xf]
      %v426 = vld [vmem:[%s346 + $0x80] sm:$0xf]
      %v427 = vld [vmem:[%s346 + $0x84] sm:$0xf]
      %v428 = vld [vmem:[%s346 + $0x88] sm:$0xf]
      %v429 = vld [vmem:[%s346 + $0x8c] sm:$0xf]
      %v430 = vld [vmem:[%s346 + $0x90] sm:$0xf]
      %v431 = vld [vmem:[%s346 + $0x94] sm:$0xf]
      %v432 = vld [vmem:[%s346 + $0x98] sm:$0xf]
      %v433 = vld [vmem:[%s346 + $0x9c] sm:$0xf]
      %v434 = vld [vmem:[%s346 + $0xa0] sm:$0xf]
      %v435 = vld [vmem:[%s346 + $0xa4] sm:$0xf]
      %v436 = vld [vmem:[%s346 + $0xa8] sm:$0xf]
      %v437 = vld [vmem:[%s346 + $0xac] sm:$0xf]
      %v438 = vld [vmem:[%s346 + $0xb0] sm:$0xf]
      %v439 = vld [vmem:[%s346 + $0xb4] sm:$0xf]
      %v440 = vld [vmem:[%s346 + $0xb8] sm:$0xf]
      %v441 = vld [vmem:[%s346 + $0xbc] sm:$0xf]
      %v442 = vld [vmem:[%s346 + $0xc0] sm:$0xf]
      %v443 = vld [vmem:[%s346 + $0xc4] sm:$0xf]
      %v444 = vld [vmem:[%s346 + $0xc8] sm:$0xf]
      %v445 = vld [vmem:[%s346 + $0xcc] sm:$0xf]
      %v446 = vld [vmem:[%s346 + $0xd0] sm:$0xf]
      %v447 = vld [vmem:[%s346 + $0xd4] sm:$0xf]
      %v448 = vld [vmem:[%s346 + $0xd8] sm:$0xf]
      %v449 = vld [vmem:[%s346 + $0xdc] sm:$0xf]
      %v450 = vld [vmem:[%s346 + $0xe0] sm:$0xf]
      %v451 = vld [vmem:[%s346 + $0xe4] sm:$0xf]
      %v452 = vld [vmem:[%s346 + $0xe8] sm:$0xf]
      %v453 = vld [vmem:[%s346 + $0xec] sm:$0xf]
      %v454 = vld [vmem:[%s346 + $0xf0] sm:$0xf]
      %v455 = vld [vmem:[%s346 + $0xf4] sm:$0xf]
      %v456 = vld [vmem:[%s346 + $0xf8] sm:$0xf]
      %v457 = vld [vmem:[%s346 + $0xfc] sm:$0xf]
      %v458 = vld [vmem:[%s360] sm:$0xf]
      %v459 = vld [vmem:[%s360 + $0x4] sm:$0xf]
      %v460 = vld [vmem:[%s360 + $0x8] sm:$0xf]
      %v461 = vld [vmem:[%s360 + $0xc] sm:$0xf]
      %v462 = vld [vmem:[%s377] sm:$0xf]
      %v463 = vld [vmem:[%s377 + $0x4] sm:$0xf]
      %v464 = vld [vmem:[%s377 + $0x8] sm:$0xf]
      %v465 = vld [vmem:[%s377 + $0xc] sm:$0xf]
      %p466 = scmp.gt.s32.totalorder %s21, 0
      %s467 = scalar_select %p466, 1, 0
      %s468 = scvt.s32.f32 %s467
      %p470 = scmp.ne.f32.partialorder %s468, %s468
      %s471 = sshrl.u32 %s468, 16
      %s472 = sand.u32 %s471, 1
      %s473 = sadd.s32 32767, %s472
      %s474 = sadd.s32 %s468, %s473
      %s475 = sand.u32 %s474, 4294901760
      %s476 = scalar_select %p470, 2143289344, %s475
      %s478 = sshrl.u32 %s476, 16
      %p479 = scmp.lt.s32.totalorder %s21, 1
      %s480 = scalar_select %p479, 1, 0
      %s481 = scvt.s32.f32 %s480
      %p483 = scmp.ne.f32.partialorder %s481, %s481
      %s484 = sshrl.u32 %s481, 16
      %s485 = sand.u32 %s484, 1
      %s486 = sadd.s32 32767, %s485
      %s487 = sadd.s32 %s481, %s486
      %s488 = sand.u32 %s487, 4294901760
      %s489 = scalar_select %p483, 2143289344, %s488
      %s491 = sshrl.u32 %s489, 16
      %s492 = sshll.u32 %s478, 16
      %s493 = sor.u32 %s478, %s492
      %v494 = vstv %s493
      %v496 = vmul.bf16 %v458, %v494
      %v497 = vmul.bf16 %v459, %v494
      %v498 = vmul.bf16 %v460, %v494
      %v499 = vmul.bf16 %v461, %v494
      %s500 = sshll.u32 %s491, 16
      %s501 = sor.u32 %s491, %s500
      %v502 = vstv %s501
      %v504 = vmul.bf16 %v462, %v502
      %v505 = vmul.bf16 %v463, %v502
      %v506 = vmul.bf16 %v464, %v502
      %v507 = vmul.bf16 %v465, %v502
      %v508 = vunpack.c.l.bf16 %v496
      %v509 = vunpack.c.l.bf16 %v497
      %v510 = vunpack.c.l.bf16 %v498
      %v511 = vunpack.c.l.bf16 %v499
      %v512 = vunpack.c.l.bf16 %v394
      %v513 = vunpack.c.l.bf16 %v395
      %v514 = vunpack.c.l.bf16 %v396
      %v515 = vunpack.c.l.bf16 %v397
      %v516 = vunpack.c.l.bf16 %v398
      %v517 = vunpack.c.l.bf16 %v399
      %v518 = vunpack.c.l.bf16 %v400
      %v519 = vunpack.c.l.bf16 %v401
      %v520 = vunpack.c.l.bf16 %v402
      %v521 = vunpack.c.l.bf16 %v403
      %v522 = vunpack.c.l.bf16 %v404
      %v523 = vunpack.c.l.bf16 %v405
      %v524 = vunpack.c.l.bf16 %v406
      %v525 = vunpack.c.l.bf16 %v407
      %v526 = vunpack.c.l.bf16 %v408
      %v527 = vunpack.c.l.bf16 %v409
      %v528 = vunpack.c.l.bf16 %v410
      %v529 = vunpack.c.l.bf16 %v411
      %v530 = vunpack.c.l.bf16 %v412
      %v531 = vunpack.c.l.bf16 %v413
      %v532 = vunpack.c.l.bf16 %v414
      %v533 = vunpack.c.l.bf16 %v415
      %v534 = vunpack.c.l.bf16 %v416
      %v535 = vunpack.c.l.bf16 %v417
      %v536 = vunpack.c.l.bf16 %v418
      %v537 = vunpack.c.l.bf16 %v419
      %v538 = vunpack.c.l.bf16 %v420
      %v539 = vunpack.c.l.bf16 %v421
      %v540 = vunpack.c.l.bf16 %v422
      %v541 = vunpack.c.l.bf16 %v423
      %v542 = vunpack.c.l.bf16 %v424
      %v543 = vunpack.c.l.bf16 %v425
      %v544 = vunpack.c.l.bf16 %v426
      %v545 = vunpack.c.l.bf16 %v427
      %v546 = vunpack.c.l.bf16 %v428
      %v547 = vunpack.c.l.bf16 %v429
      %v548 = vunpack.c.l.bf16 %v430
      %v549 = vunpack.c.l.bf16 %v431
      %v550 = vunpack.c.l.bf16 %v432
      %v551 = vunpack.c.l.bf16 %v433
      %v552 = vunpack.c.l.bf16 %v434
      %v553 = vunpack.c.l.bf16 %v435
      %v554 = vunpack.c.l.bf16 %v436
      %v555 = vunpack.c.l.bf16 %v437
      %v556 = vunpack.c.l.bf16 %v438
      %v557 = vunpack.c.l.bf16 %v439
      %v558 = vunpack.c.l.bf16 %v440
      %v559 = vunpack.c.l.bf16 %v441
      %v560 = vunpack.c.l.bf16 %v442
      %v561 = vunpack.c.l.bf16 %v443
      %v562 = vunpack.c.l.bf16 %v444
      %v563 = vunpack.c.l.bf16 %v445
      %v564 = vunpack.c.l.bf16 %v446
      %v565 = vunpack.c.l.bf16 %v447
      %v566 = vunpack.c.l.bf16 %v448
      %v567 = vunpack.c.l.bf16 %v449
      %v568 = vunpack.c.l.bf16 %v450
      %v569 = vunpack.c.l.bf16 %v451
      %v570 = vunpack.c.l.bf16 %v452
      %v571 = vunpack.c.l.bf16 %v453
      %v572 = vunpack.c.l.bf16 %v454
      %v573 = vunpack.c.l.bf16 %v455
      %v574 = vunpack.c.l.bf16 %v456
      %v575 = vunpack.c.l.bf16 %v457
      %v576 = vunpack.c.l.bf16 %v504
      %v577 = vunpack.c.l.bf16 %v505
      %v578 = vunpack.c.l.bf16 %v506
      %v579 = vunpack.c.l.bf16 %v507
      %v580 = vlaneseq
      %v581 = vshrl.u32 %v580, 7
      %v582 = vadd.s32 %v581, 8
      %v583 = vadd.s32 %v581, 16
      %v584 = vadd.s32 %v581, 24
      %vm585 = vcmp.eq.s32.totalorder %v581, 0
      %vm586 = vcmp.eq.s32.totalorder %v582, 0
      %vm587 = vcmp.eq.s32.totalorder %v583, 0
      %vm588 = vcmp.eq.s32.totalorder %v584, 0
      %v589 = vrot.slane %v508, 7
      %v590 = vrot.slane %v512, 7
      %v591 = vrot.slane %v516, 7
      %v592 = vrot.slane %v520, 7
      %v593 = vrot.slane %v524, 7
      %v594 = vrot.slane %v528, 7
      %v595 = vrot.slane %v532, 7
      %v596 = vrot.slane %v536, 7
      %v597 = vrot.slane %v540, 7
      %v598 = vrot.slane %v544, 7
      %v599 = vrot.slane %v548, 7
      %v600 = vrot.slane %v552, 7
      %v601 = vrot.slane %v556, 7
      %v602 = vrot.slane %v560, 7
      %v603 = vrot.slane %v564, 7
      %v604 = vrot.slane %v568, 7
      %v605 = vrot.slane %v572, 7
      %v606 = vrot.slane %v576, 7
      %v607 = vrot.slane %v509, 7
      %v608 = vrot.slane %v513, 7
      %v609 = vrot.slane %v517, 7
      %v610 = vrot.slane %v521, 7
      %v611 = vrot.slane %v525, 7
      %v612 = vrot.slane %v529, 7
      %v613 = vrot.slane %v533, 7
      %v614 = vrot.slane %v537, 7
      %v615 = vrot.slane %v541, 7
      %v616 = vrot.slane %v545, 7
      %v617 = vrot.slane %v549, 7
      %v618 = vrot.slane %v553, 7
      %v619 = vrot.slane %v557, 7
      %v620 = vrot.slane %v561, 7
      %v621 = vrot.slane %v565, 7
      %v622 = vrot.slane %v569, 7
      %v623 = vrot.slane %v573, 7
      %v624 = vrot.slane %v577, 7
      %v625 = vrot.slane %v510, 7
      %v626 = vrot.slane %v514, 7
      %v627 = vrot.slane %v518, 7
      %v628 = vrot.slane %v522, 7
      %v629 = vrot.slane %v526, 7
      %v630 = vrot.slane %v530, 7
      %v631 = vrot.slane %v534, 7
      %v632 = vrot.slane %v538, 7
      %v633 = vrot.slane %v542, 7
      %v634 = vrot.slane %v546, 7
      %v635 = vrot.slane %v550, 7
      %v636 = vrot.slane %v554, 7
      %v637 = vrot.slane %v558, 7
      %v638 = vrot.slane %v562, 7
      %v639 = vrot.slane %v566, 7
      %v640 = vrot.slane %v570, 7
      %v641 = vrot.slane %v574, 7
      %v642 = vrot.slane %v578, 7
      %v643 = vrot.slane %v511, 7
      %v644 = vrot.slane %v515, 7
      %v645 = vrot.slane %v519, 7
      %v646 = vrot.slane %v523, 7
      %v647 = vrot.slane %v527, 7
      %v648 = vrot.slane %v531, 7
      %v649 = vrot.slane %v535, 7
      %v650 = vrot.slane %v539, 7
      %v651 = vrot.slane %v543, 7
      %v652 = vrot.slane %v547, 7
      %v653 = vrot.slane %v551, 7
      %v654 = vrot.slane %v555, 7
      %v655 = vrot.slane %v559, 7
      %v656 = vrot.slane %v563, 7
      %v657 = vrot.slane %v567, 7
      %v658 = vrot.slane %v571, 7
      %v659 = vrot.slane %v575, 7
      %v660 = vrot.slane %v579, 7
      %vm661 = vcmp.lt.s32.totalorder %v581, 1
      %v662 = vsel %vm661, %v625, %v643
      %v663 = vsel %vm661, %v626, %v644
      %v664 = vsel %vm661, %v627, %v645
      %v665 = vsel %vm661, %v628, %v646
      %v666 = vsel %vm661, %v629, %v647
      %v667 = vsel %vm661, %v630, %v648
      %v668 = vsel %vm661, %v631, %v649
      %v669 = vsel %vm661, %v632, %v650
      %v670 = vsel %vm661, %v633, %v651
      %v671 = vsel %vm661, %v634, %v652
      %v672 = vsel %vm661, %v635, %v653
      %v673 = vsel %vm661, %v636, %v654
      %v674 = vsel %vm661, %v637, %v655
      %v675 = vsel %vm661, %v638, %v656
      %v676 = vsel %vm661, %v639, %v657
      %v677 = vsel %vm661, %v640, %v658
      %v678 = vsel %vm661, %v641, %v659
      %v679 = vsel %vm661, %v642, %v660
      %v680 = vsel %vm661, %v607, %v625
      %v681 = vsel %vm661, %v608, %v626
      %v682 = vsel %vm661, %v609, %v627
      %v683 = vsel %vm661, %v610, %v628
      %v684 = vsel %vm661, %v611, %v629
      %v685 = vsel %vm661, %v612, %v630
      %v686 = vsel %vm661, %v613, %v631
      %v687 = vsel %vm661, %v614, %v632
      %v688 = vsel %vm661, %v615, %v633
      %v689 = vsel %vm661, %v616, %v634
      %v690 = vsel %vm661, %v617, %v635
      %v691 = vsel %vm661, %v618, %v636
      %v692 = vsel %vm661, %v619, %v637
      %v693 = vsel %vm661, %v620, %v638
      %v694 = vsel %vm661, %v621, %v639
      %v695 = vsel %vm661, %v622, %v640
      %v696 = vsel %vm661, %v623, %v641
      %v697 = vsel %vm661, %v624, %v642
      %v698 = vsel %vm661, %v589, %v607
      %v699 = vsel %vm661, %v590, %v608
      %v700 = vsel %vm661, %v591, %v609
      %v701 = vsel %vm661, %v592, %v610
      %v702 = vsel %vm661, %v593, %v611
      %v703 = vsel %vm661, %v594, %v612
      %v704 = vsel %vm661, %v595, %v613
      %v705 = vsel %vm661, %v596, %v614
      %v706 = vsel %vm661, %v597, %v615
      %v707 = vsel %vm661, %v598, %v616
      %v708 = vsel %vm661, %v599, %v617
      %v709 = vsel %vm661, %v600, %v618
      %v710 = vsel %vm661, %v601, %v619
      %v711 = vsel %vm661, %v602, %v620
      %v712 = vsel %vm661, %v603, %v621
      %v713 = vsel %vm661, %v604, %v622
      %v714 = vsel %vm661, %v605, %v623
      %v715 = vsel %vm661, %v606, %v624
      %v716 = vsel %vm661, %v643, %v589
      %v717 = vsel %vm661, %v644, %v590
      %v718 = vsel %vm661, %v645, %v591
      %v719 = vsel %vm661, %v646, %v592
      %v720 = vsel %vm661, %v647, %v593
      %v721 = vsel %vm661, %v648, %v594
      %v722 = vsel %vm661, %v649, %v595
      %v723 = vsel %vm661, %v650, %v596
      %v724 = vsel %vm661, %v651, %v597
      %v725 = vsel %vm661, %v652, %v598
      %v726 = vsel %vm661, %v653, %v599
      %v727 = vsel %vm661, %v654, %v600
      %v728 = vsel %vm661, %v655, %v601
      %v729 = vsel %vm661, %v656, %v602
      %v730 = vsel %vm661, %v657, %v603
      %v731 = vsel %vm661, %v658, %v604
      %v732 = vsel %vm661, %v659, %v605
      %v733 = vsel %vm661, %v660, %v606
      %v734 = vsel %vm585, 0.0, %v716
      %v735 = vsel %vm586, 0.0, %v698
      %v736 = vsel %vm587, 0.0, %v680
      %v737 = vsel %vm588, 0.0, %v662
      %v738 = vsel %vm585, 0.0, %v717
      %v739 = vsel %vm586, 0.0, %v699
      %v740 = vsel %vm587, 0.0, %v681
      %v741 = vsel %vm588, 0.0, %v663
      %v742 = vsel %vm585, 0.0, %v718
      %v743 = vsel %vm586, 0.0, %v700
      %v744 = vsel %vm587, 0.0, %v682
      %v745 = vsel %vm588, 0.0, %v664
      %v746 = vsel %vm585, 0.0, %v719
      %v747 = vsel %vm586, 0.0, %v701
      %v748 = vsel %vm587, 0.0, %v683
      %v749 = vsel %vm588, 0.0, %v665
      %v750 = vsel %vm585, 0.0, %v720
      %v751 = vsel %vm586, 0.0, %v702
      %v752 = vsel %vm587, 0.0, %v684
      %v753 = vsel %vm588, 0.0, %v666
      %v754 = vsel %vm585, 0.0, %v721
      %v755 = vsel %vm586, 0.0, %v703
      %v756 = vsel %vm587, 0.0, %v685
      %v757 = vsel %vm588, 0.0, %v667
      %v758 = vsel %vm585, 0.0, %v722
      %v759 = vsel %vm586, 0.0, %v704
      %v760 = vsel %vm587, 0.0, %v686
      %v761 = vsel %vm588, 0.0, %v668
      %v762 = vsel %vm585, 0.0, %v723
      %v763 = vsel %vm586, 0.0, %v705
      %v764 = vsel %vm587, 0.0, %v687
      %v765 = vsel %vm588, 0.0, %v669
      %v766 = vsel %vm585, 0.0, %v724
      %v767 = vsel %vm586, 0.0, %v706
      %v768 = vsel %vm587, 0.0, %v688
      %v769 = vsel %vm588, 0.0, %v670
      %v770 = vsel %vm585, 0.0, %v725
      %v771 = vsel %vm586, 0.0, %v707
      %v772 = vsel %vm587, 0.0, %v689
      %v773 = vsel %vm588, 0.0, %v671
      %v774 = vsel %vm585, 0.0, %v726
      %v775 = vsel %vm586, 0.0, %v708
      %v776 = vsel %vm587, 0.0, %v690
      %v777 = vsel %vm588, 0.0, %v672
      %v778 = vsel %vm585, 0.0, %v727
      %v779 = vsel %vm586, 0.0, %v709
      %v780 = vsel %vm587, 0.0, %v691
      %v781 = vsel %vm588, 0.0, %v673
      %v782 = vsel %vm585, 0.0, %v728
      %v783 = vsel %vm586, 0.0, %v710
      %v784 = vsel %vm587, 0.0, %v692
      %v785 = vsel %vm588, 0.0, %v674
      %v786 = vsel %vm585, 0.0, %v729
      %v787 = vsel %vm586, 0.0, %v711
      %v788 = vsel %vm587, 0.0, %v693
      %v789 = vsel %vm588, 0.0, %v675
      %v790 = vsel %vm585, 0.0, %v730
      %v791 = vsel %vm586, 0.0, %v712
      %v792 = vsel %vm587, 0.0, %v694
      %v793 = vsel %vm588, 0.0, %v676
      %v794 = vsel %vm585, 0.0, %v731
      %v795 = vsel %vm586, 0.0, %v713
      %v796 = vsel %vm587, 0.0, %v695
      %v797 = vsel %vm588, 0.0, %v677
      %v798 = vsel %vm585, 0.0, %v732
      %v799 = vsel %vm586, 0.0, %v714
      %v800 = vsel %vm587, 0.0, %v696
      %v801 = vsel %vm588, 0.0, %v678
      %v802 = vsel %vm585, 0.0, %v733
      %v803 = vsel %vm586, 0.0, %v715
      %v804 = vsel %vm587, 0.0, %v697
      %v805 = vsel %vm588, 0.0, %v679
      %v806 = vpack.c.bf16 %v735, %v734
      %v807 = vpack.c.bf16 %v737, %v736
      %v808 = vpack.c.bf16 %v739, %v738
      %v809 = vpack.c.bf16 %v741, %v740
      %v810 = vpack.c.bf16 %v743, %v742
      %v811 = vpack.c.bf16 %v745, %v744
      %v812 = vpack.c.bf16 %v747, %v746
      %v813 = vpack.c.bf16 %v749, %v748
      %v814 = vpack.c.bf16 %v751, %v750
      %v815 = vpack.c.bf16 %v753, %v752
      %v816 = vpack.c.bf16 %v755, %v754
      %v817 = vpack.c.bf16 %v757, %v756
      %v818 = vpack.c.bf16 %v759, %v758
      %v819 = vpack.c.bf16 %v761, %v760
      %v820 = vpack.c.bf16 %v763, %v762
      %v821 = vpack.c.bf16 %v765, %v764
      %v822 = vpack.c.bf16 %v767, %v766
      %v823 = vpack.c.bf16 %v769, %v768
      %v824 = vpack.c.bf16 %v771, %v770
      %v825 = vpack.c.bf16 %v773, %v772
      %v826 = vpack.c.bf16 %v775, %v774
      %v827 = vpack.c.bf16 %v777, %v776
      %v828 = vpack.c.bf16 %v779, %v778
      %v829 = vpack.c.bf16 %v781, %v780
      %v830 = vpack.c.bf16 %v783, %v782
      %v831 = vpack.c.bf16 %v785, %v784
      %v832 = vpack.c.bf16 %v787, %v786
      %v833 = vpack.c.bf16 %v789, %v788
      %v834 = vpack.c.bf16 %v791, %v790
      %v835 = vpack.c.bf16 %v793, %v792
      %v836 = vpack.c.bf16 %v795, %v794
      %v837 = vpack.c.bf16 %v797, %v796
      %v838 = vpack.c.bf16 %v799, %v798
      %v839 = vpack.c.bf16 %v801, %v800
      %v840 = vpack.c.bf16 %v803, %v802
      %v841 = vpack.c.bf16 %v805, %v804
      %vm842 = vcmp.eq.s32.totalorder %v581, 31
      %vm843 = vcmp.eq.s32.totalorder %v582, 31
      %vm844 = vcmp.eq.s32.totalorder %v583, 31
      %vm845 = vcmp.eq.s32.totalorder %v584, 31
      %v846 = vrot.slane %v508, 1
      %v847 = vrot.slane %v512, 1
      %v848 = vrot.slane %v516, 1
      %v849 = vrot.slane %v520, 1
      %v850 = vrot.slane %v524, 1
      %v851 = vrot.slane %v528, 1
      %v852 = vrot.slane %v532, 1
      %v853 = vrot.slane %v536, 1
      %v854 = vrot.slane %v540, 1
      %v855 = vrot.slane %v544, 1
      %v856 = vrot.slane %v548, 1
      %v857 = vrot.slane %v552, 1
      %v858 = vrot.slane %v556, 1
      %v859 = vrot.slane %v560, 1
      %v860 = vrot.slane %v564, 1
      %v861 = vrot.slane %v568, 1
      %v862 = vrot.slane %v572, 1
      %v863 = vrot.slane %v576, 1
      %v864 = vrot.slane %v509, 1
      %v865 = vrot.slane %v513, 1
      %v866 = vrot.slane %v517, 1
      %v867 = vrot.slane %v521, 1
      %v868 = vrot.slane %v525, 1
      %v869 = vrot.slane %v529, 1
      %v870 = vrot.slane %v533, 1
      %v871 = vrot.slane %v537, 1
      %v872 = vrot.slane %v541, 1
      %v873 = vrot.slane %v545, 1
      %v874 = vrot.slane %v549, 1
      %v875 = vrot.slane %v553, 1
      %v876 = vrot.slane %v557, 1
      %v877 = vrot.slane %v561, 1
      %v878 = vrot.slane %v565, 1
      %v879 = vrot.slane %v569, 1
      %v880 = vrot.slane %v573, 1
      %v881 = vrot.slane %v577, 1
      %v882 = vrot.slane %v510, 1
      %v883 = vrot.slane %v514, 1
      %v884 = vrot.slane %v518, 1
      %v885 = vrot.slane %v522, 1
      %v886 = vrot.slane %v526, 1
      %v887 = vrot.slane %v530, 1
      %v888 = vrot.slane %v534, 1
      %v889 = vrot.slane %v538, 1
      %v890 = vrot.slane %v542, 1
      %v891 = vrot.slane %v546, 1
      %v892 = vrot.slane %v550, 1
      %v893 = vrot.slane %v554, 1
      %v894 = vrot.slane %v558, 1
      %v895 = vrot.slane %v562, 1
      %v896 = vrot.slane %v566, 1
      %v897 = vrot.slane %v570, 1
      %v898 = vrot.slane %v574, 1
      %v899 = vrot.slane %v578, 1
      %v900 = vrot.slane %v511, 1
      %v901 = vrot.slane %v515, 1
      %v902 = vrot.slane %v519, 1
      %v903 = vrot.slane %v523, 1
      %v904 = vrot.slane %v527, 1
      %v905 = vrot.slane %v531, 1
      %v906 = vrot.slane %v535, 1
      %v907 = vrot.slane %v539, 1
      %v908 = vrot.slane %v543, 1
      %v909 = vrot.slane %v547, 1
      %v910 = vrot.slane %v551, 1
      %v911 = vrot.slane %v555, 1
      %v912 = vrot.slane %v559, 1
      %v913 = vrot.slane %v563, 1
      %v914 = vrot.slane %v567, 1
      %v915 = vrot.slane %v571, 1
      %v916 = vrot.slane %v575, 1
      %v917 = vrot.slane %v579, 1
      %vm918 = vcmp.lt.s32.totalorder %v581, 7
      %v919 = vsel %vm918, %v882, %v900
      %v920 = vsel %vm918, %v883, %v901
      %v921 = vsel %vm918, %v884, %v902
      %v922 = vsel %vm918, %v885, %v903
      %v923 = vsel %vm918, %v886, %v904
      %v924 = vsel %vm918, %v887, %v905
      %v925 = vsel %vm918, %v888, %v906
      %v926 = vsel %vm918, %v889, %v907
      %v927 = vsel %vm918, %v890, %v908
      %v928 = vsel %vm918, %v891, %v909
      %v929 = vsel %vm918, %v892, %v910
      %v930 = vsel %vm918, %v893, %v911
      %v931 = vsel %vm918, %v894, %v912
      %v932 = vsel %vm918, %v895, %v913
      %v933 = vsel %vm918, %v896, %v914
      %v934 = vsel %vm918, %v897, %v915
      %v935 = vsel %vm918, %v898, %v916
      %v936 = vsel %vm918, %v899, %v917
      %v937 = vsel %vm918, %v864, %v882
      %v938 = vsel %vm918, %v865, %v883
      %v939 = vsel %vm918, %v866, %v884
      %v940 = vsel %vm918, %v867, %v885
      %v941 = vsel %vm918, %v868, %v886
      %v942 = vsel %vm918, %v869, %v887
      %v943 = vsel %vm918, %v870, %v888
      %v944 = vsel %vm918, %v871, %v889
      %v945 = vsel %vm918, %v872, %v890
      %v946 = vsel %vm918, %v873, %v891
      %v947 = vsel %vm918, %v874, %v892
      %v948 = vsel %vm918, %v875, %v893
      %v949 = vsel %vm918, %v876, %v894
      %v950 = vsel %vm918, %v877, %v895
      %v951 = vsel %vm918, %v878, %v896
      %v952 = vsel %vm918, %v879, %v897
      %v953 = vsel %vm918, %v880, %v898
      %v954 = vsel %vm918, %v881, %v899
      %v955 = vsel %vm918, %v846, %v864
      %v956 = vsel %vm918, %v847, %v865
      %v957 = vsel %vm918, %v848, %v866
      %v958 = vsel %vm918, %v849, %v867
      %v959 = vsel %vm918, %v850, %v868
      %v960 = vsel %vm918, %v851, %v869
      %v961 = vsel %vm918, %v852, %v870
      %v962 = vsel %vm918, %v853, %v871
      %v963 = vsel %vm918, %v854, %v872
      %v964 = vsel %vm918, %v855, %v873
      %v965 = vsel %vm918, %v856, %v874
      %v966 = vsel %vm918, %v857, %v875
      %v967 = vsel %vm918, %v858, %v876
      %v968 = vsel %vm918, %v859, %v877
      %v969 = vsel %vm918, %v860, %v878
      %v970 = vsel %vm918, %v861, %v879
      %v971 = vsel %vm918, %v862, %v880
      %v972 = vsel %vm918, %v863, %v881
      %v973 = vsel %vm918, %v900, %v846
      %v974 = vsel %vm918, %v901, %v847
      %v975 = vsel %vm918, %v902, %v848
      %v976 = vsel %vm918, %v903, %v849
      %v977 = vsel %vm918, %v904, %v850
      %v978 = vsel %vm918, %v905, %v851
      %v979 = vsel %vm918, %v906, %v852
      %v980 = vsel %vm918, %v907, %v853
      %v981 = vsel %vm918, %v908, %v854
      %v982 = vsel %vm918, %v909, %v855
      %v983 = vsel %vm918, %v910, %v856
      %v984 = vsel %vm918, %v911, %v857
      %v985 = vsel %vm918, %v912, %v858
      %v986 = vsel %vm918, %v913, %v859
      %v987 = vsel %vm918, %v914, %v860
      %v988 = vsel %vm918, %v915, %v861
      %v989 = vsel %vm918, %v916, %v862
      %v990 = vsel %vm918, %v917, %v863
      %v991 = vsel %vm842, 0.0, %v955
      %v992 = vsel %vm843, 0.0, %v937
      %v993 = vsel %vm844, 0.0, %v919
      %v994 = vsel %vm845, 0.0, %v973
      %v995 = vsel %vm842, 0.0, %v956
      %v996 = vsel %vm843, 0.0, %v938
      %v997 = vsel %vm844, 0.0, %v920
      %v998 = vsel %vm845, 0.0, %v974
      %v999 = vsel %vm842, 0.0, %v957
      %v1000 = vsel %vm843, 0.0, %v939
      %v1001 = vsel %vm844, 0.0, %v921
      %v1002 = vsel %vm845, 0.0, %v975
      %v1003 = vsel %vm842, 0.0, %v958
      %v1004 = vsel %vm843, 0.0, %v940
      %v1005 = vsel %vm844, 0.0, %v922
      %v1006 = vsel %vm845, 0.0, %v976
      %v1007 = vsel %vm842, 0.0, %v959
      %v1008 = vsel %vm843, 0.0, %v941
      %v1009 = vsel %vm844, 0.0, %v923
      %v1010 = vsel %vm845, 0.0, %v977
      %v1011 = vsel %vm842, 0.0, %v960
      %v1012 = vsel %vm843, 0.0, %v942
      %v1013 = vsel %vm844, 0.0, %v924
      %v1014 = vsel %vm845, 0.0, %v978
      %v1015 = vsel %vm842, 0.0, %v961
      %v1016 = vsel %vm843, 0.0, %v943
      %v1017 = vsel %vm844, 0.0, %v925
      %v1018 = vsel %vm845, 0.0, %v979
      %v1019 = vsel %vm842, 0.0, %v962
      %v1020 = vsel %vm843, 0.0, %v944
      %v1021 = vsel %vm844, 0.0, %v926
      %v1022 = vsel %vm845, 0.0, %v980
      %v1023 = vsel %vm842, 0.0, %v963
      %v1024 = vsel %vm843, 0.0, %v945
      %v1025 = vsel %vm844, 0.0, %v927
      %v1026 = vsel %vm845, 0.0, %v981
      %v1027 = vsel %vm842, 0.0, %v964
      %v1028 = vsel %vm843, 0.0, %v946
      %v1029 = vsel %vm844, 0.0, %v928
      %v1030 = vsel %vm845, 0.0, %v982
      %v1031 = vsel %vm842, 0.0, %v965
      %v1032 = vsel %vm843, 0.0, %v947
      %v1033 = vsel %vm844, 0.0, %v929
      %v1034 = vsel %vm845, 0.0, %v983
      %v1035 = vsel %vm842, 0.0, %v966
      %v1036 = vsel %vm843, 0.0, %v948
      %v1037 = vsel %vm844, 0.0, %v930
      %v1038 = vsel %vm845, 0.0, %v984
      %v1039 = vsel %vm842, 0.0, %v967
      %v1040 = vsel %vm843, 0.0, %v949
      %v1041 = vsel %vm844, 0.0, %v931
      %v1042 = vsel %vm845, 0.0, %v985
      %v1043 = vsel %vm842, 0.0, %v968
      %v1044 = vsel %vm843, 0.0, %v950
      %v1045 = vsel %vm844, 0.0, %v932
      %v1046 = vsel %vm845, 0.0, %v986
      %v1047 = vsel %vm842, 0.0, %v969
      %v1048 = vsel %vm843, 0.0, %v951
      %v1049 = vsel %vm844, 0.0, %v933
      %v1050 = vsel %vm845, 0.0, %v987
      %v1051 = vsel %vm842, 0.0, %v970
      %v1052 = vsel %vm843, 0.0, %v952
      %v1053 = vsel %vm844, 0.0, %v934
      %v1054 = vsel %vm845, 0.0, %v988
      %v1055 = vsel %vm842, 0.0, %v971
      %v1056 = vsel %vm843, 0.0, %v953
      %v1057 = vsel %vm844, 0.0, %v935
      %v1058 = vsel %vm845, 0.0, %v989
      %v1059 = vsel %vm842, 0.0, %v972
      %v1060 = vsel %vm843, 0.0, %v954
      %v1061 = vsel %vm844, 0.0, %v936
      %v1062 = vsel %vm845, 0.0, %v990
      %v1063 = vpack.c.bf16 %v992, %v991
      %v1064 = vpack.c.bf16 %v994, %v993
      %v1065 = vpack.c.bf16 %v996, %v995
      %v1066 = vpack.c.bf16 %v998, %v997
      %v1067 = vpack.c.bf16 %v1000, %v999
      %v1068 = vpack.c.bf16 %v1002, %v1001
      %v1069 = vpack.c.bf16 %v1004, %v1003
      %v1070 = vpack.c.bf16 %v1006, %v1005
      %v1071 = vpack.c.bf16 %v1008, %v1007
      %v1072 = vpack.c.bf16 %v1010, %v1009
      %v1073 = vpack.c.bf16 %v1012, %v1011
      %v1074 = vpack.c.bf16 %v1014, %v1013
      %v1075 = vpack.c.bf16 %v1016, %v1015
      %v1076 = vpack.c.bf16 %v1018, %v1017
      %v1077 = vpack.c.bf16 %v1020, %v1019
      %v1078 = vpack.c.bf16 %v1022, %v1021
      %v1079 = vpack.c.bf16 %v1024, %v1023
      %v1080 = vpack.c.bf16 %v1026, %v1025
      %v1081 = vpack.c.bf16 %v1028, %v1027
      %v1082 = vpack.c.bf16 %v1030, %v1029
      %v1083 = vpack.c.bf16 %v1032, %v1031
      %v1084 = vpack.c.bf16 %v1034, %v1033
      %v1085 = vpack.c.bf16 %v1036, %v1035
      %v1086 = vpack.c.bf16 %v1038, %v1037
      %v1087 = vpack.c.bf16 %v1040, %v1039
      %v1088 = vpack.c.bf16 %v1042, %v1041
      %v1089 = vpack.c.bf16 %v1044, %v1043
      %v1090 = vpack.c.bf16 %v1046, %v1045
      %v1091 = vpack.c.bf16 %v1048, %v1047
      %v1092 = vpack.c.bf16 %v1050, %v1049
      %v1093 = vpack.c.bf16 %v1052, %v1051
      %v1094 = vpack.c.bf16 %v1054, %v1053
      %v1095 = vpack.c.bf16 %v1056, %v1055
      %v1096 = vpack.c.bf16 %v1058, %v1057
      %v1097 = vpack.c.bf16 %v1060, %v1059
      %v1098 = vpack.c.bf16 %v1062, %v1061
      %v1171 = vunpack.c.l.b16 %v496
      %v1172 = vunpack.c.l.b16 %v497
      %v1173 = vunpack.c.l.b16 %v498
      %v1174 = vunpack.c.l.b16 %v499
      %v1175 = vunpack.c.l.b16 %v394
      %v1176 = vunpack.c.l.b16 %v395
      %v1177 = vunpack.c.l.b16 %v396
      %v1178 = vunpack.c.l.b16 %v397
      %v1179 = vunpack.c.l.b16 %v398
      %v1180 = vunpack.c.l.b16 %v399
      %v1181 = vunpack.c.l.b16 %v400
      %v1182 = vunpack.c.l.b16 %v401
      %v1183 = vunpack.c.l.b16 %v402
      %v1184 = vunpack.c.l.b16 %v403
      %v1185 = vunpack.c.l.b16 %v404
      %v1186 = vunpack.c.l.b16 %v405
      %v1187 = vunpack.c.l.b16 %v406
      %v1188 = vunpack.c.l.b16 %v407
      %v1189 = vunpack.c.l.b16 %v408
      %v1190 = vunpack.c.l.b16 %v409
      %v1191 = vunpack.c.l.b16 %v410
      %v1192 = vunpack.c.l.b16 %v411
      %v1193 = vunpack.c.l.b16 %v412
      %v1194 = vunpack.c.l.b16 %v413
      %v1195 = vunpack.c.l.b16 %v414
      %v1196 = vunpack.c.l.b16 %v415
      %v1197 = vunpack.c.l.b16 %v416
      %v1198 = vunpack.c.l.b16 %v417
      %v1199 = vunpack.c.l.b16 %v418
      %v1200 = vunpack.c.l.b16 %v419
      %v1201 = vunpack.c.l.b16 %v420
      %v1202 = vunpack.c.l.b16 %v421
      %v1203 = vunpack.c.l.b16 %v422
      %v1204 = vunpack.c.l.b16 %v423
      %v1205 = vunpack.c.l.b16 %v424
      %v1206 = vunpack.c.l.b16 %v425
      %v1207 = vunpack.c.l.b16 %v426
      %v1208 = vunpack.c.l.b16 %v427
      %v1209 = vunpack.c.l.b16 %v428
      %v1210 = vunpack.c.l.b16 %v429
      %v1211 = vunpack.c.l.b16 %v430
      %v1212 = vunpack.c.l.b16 %v431
      %v1213 = vunpack.c.l.b16 %v432
      %v1214 = vunpack.c.l.b16 %v433
      %v1215 = vunpack.c.l.b16 %v434
      %v1216 = vunpack.c.l.b16 %v435
      %v1217 = vunpack.c.l.b16 %v436
      %v1218 = vunpack.c.l.b16 %v437
      %v1219 = vunpack.c.l.b16 %v438
      %v1220 = vunpack.c.l.b16 %v439
      %v1221 = vunpack.c.l.b16 %v440
      %v1222 = vunpack.c.l.b16 %v441
      %v1223 = vunpack.c.l.b16 %v442
      %v1224 = vunpack.c.l.b16 %v443
      %v1225 = vunpack.c.l.b16 %v444
      %v1226 = vunpack.c.l.b16 %v445
      %v1227 = vunpack.c.l.b16 %v446
      %v1228 = vunpack.c.l.b16 %v447
      %v1229 = vunpack.c.l.b16 %v448
      %v1230 = vunpack.c.l.b16 %v449
      %v1231 = vunpack.c.l.b16 %v450
      %v1232 = vunpack.c.l.b16 %v451
      %v1233 = vunpack.c.l.b16 %v452
      %v1234 = vunpack.c.l.b16 %v453
      %v1235 = vunpack.c.l.b16 %v454
      %v1236 = vunpack.c.l.b16 %v455
      %v1237 = vunpack.c.l.b16 %v456
      %v1238 = vunpack.c.l.b16 %v457
      %v1239 = vunpack.c.l.b16 %v504
      %v1240 = vunpack.c.l.b16 %v505
      %v1241 = vunpack.c.l.b16 %v506
      %v1242 = vunpack.c.l.b16 %v507
      %v1243 = vpack.c.b16 %v1172, %v1171
      %v1244 = vpack.c.b16 %v1174, %v1173
      %v1245 = vpack.c.b16 %v1176, %v1175
      %v1246 = vpack.c.b16 %v1178, %v1177
      %v1247 = vpack.c.b16 %v1180, %v1179
      %v1248 = vpack.c.b16 %v1182, %v1181
      %v1249 = vpack.c.b16 %v1184, %v1183
      %v1250 = vpack.c.b16 %v1186, %v1185
      %v1251 = vpack.c.b16 %v1188, %v1187
      %v1252 = vpack.c.b16 %v1190, %v1189
      %v1253 = vpack.c.b16 %v1192, %v1191
      %v1254 = vpack.c.b16 %v1194, %v1193
      %v1255 = vpack.c.b16 %v1196, %v1195
      %v1256 = vpack.c.b16 %v1198, %v1197
      %v1257 = vpack.c.b16 %v1200, %v1199
      %v1258 = vpack.c.b16 %v1202, %v1201
      %v1259 = vpack.c.b16 %v1204, %v1203
      %v1260 = vpack.c.b16 %v1206, %v1205
      %v1261 = vpack.c.b16 %v1208, %v1207
      %v1262 = vpack.c.b16 %v1210, %v1209
      %v1263 = vpack.c.b16 %v1212, %v1211
      %v1264 = vpack.c.b16 %v1214, %v1213
      %v1265 = vpack.c.b16 %v1216, %v1215
      %v1266 = vpack.c.b16 %v1218, %v1217
      %v1267 = vpack.c.b16 %v1220, %v1219
      %v1268 = vpack.c.b16 %v1222, %v1221
      %v1269 = vpack.c.b16 %v1224, %v1223
      %v1270 = vpack.c.b16 %v1226, %v1225
      %v1271 = vpack.c.b16 %v1228, %v1227
      %v1272 = vpack.c.b16 %v1230, %v1229
      %v1273 = vpack.c.b16 %v1232, %v1231
      %v1274 = vpack.c.b16 %v1234, %v1233
      %v1275 = vpack.c.b16 %v1236, %v1235
      %v1276 = vpack.c.b16 %v1238, %v1237
      %v1277 = vpack.c.b16 %v1240, %v1239
      %v1278 = vpack.c.b16 %v1242, %v1241
      %1279 = vrot.lane.b32.xlu0 %v1243, 3
      %v1280 = vpop.permute.xlu0 %1279
      %1281 = vrot.lane.b32.xlu0 %v1244, 3
      %v1282 = vpop.permute.xlu0 %1281
      %1283 = vrot.lane.b32.xlu0 %v1245, 3
      %v1284 = vpop.permute.xlu0 %1283
      %1285 = vrot.lane.b32.xlu0 %v1246, 3
      %v1286 = vpop.permute.xlu0 %1285
      %1287 = vrot.lane.b32.xlu0 %v1247, 3
      %v1288 = vpop.permute.xlu0 %1287
      %1289 = vrot.lane.b32.xlu0 %v1248, 3
      %v1290 = vpop.permute.xlu0 %1289
      %1291 = vrot.lane.b32.xlu0 %v1249, 3
      %v1292 = vpop.permute.xlu0 %1291
      %1293 = vrot.lane.b32.xlu0 %v1250, 3
      %v1294 = vpop.permute.xlu0 %1293
      %1295 = vrot.lane.b32.xlu0 %v1251, 3
      %v1296 = vpop.permute.xlu0 %1295
      %1297 = vrot.lane.b32.xlu0 %v1252, 3
      %v1298 = vpop.permute.xlu0 %1297
      %1299 = vrot.lane.b32.xlu0 %v1253, 3
      %v1300 = vpop.permute.xlu0 %1299
      %1301 = vrot.lane.b32.xlu0 %v1254, 3
      %v1302 = vpop.permute.xlu0 %1301
      %1303 = vrot.lane.b32.xlu0 %v1255, 3
      %v1304 = vpop.permute.xlu0 %1303
      %1305 = vrot.lane.b32.xlu0 %v1256, 3
      %v1306 = vpop.permute.xlu0 %1305
      %1307 = vrot.lane.b32.xlu0 %v1257, 3
      %v1308 = vpop.permute.xlu0 %1307
      %1309 = vrot.lane.b32.xlu0 %v1258, 3
      %v1310 = vpop.permute.xlu0 %1309
      %1311 = vrot.lane.b32.xlu0 %v1259, 3
      %v1312 = vpop.permute.xlu0 %1311
      %1313 = vrot.lane.b32.xlu0 %v1260, 3
      %v1314 = vpop.permute.xlu0 %1313
      %1315 = vrot.lane.b32.xlu0 %v1261, 3
      %v1316 = vpop.permute.xlu0 %1315
      %1317 = vrot.lane.b32.xlu0 %v1262, 3
      %v1318 = vpop.permute.xlu0 %1317
      %1319 = vrot.lane.b32.xlu0 %v1263, 3
      %v1320 = vpop.permute.xlu0 %1319
      %1321 = vrot.lane.b32.xlu0 %v1264, 3
      %v1322 = vpop.permute.xlu0 %1321
      %1323 = vrot.lane.b32.xlu0 %v1265, 3
      %v1324 = vpop.permute.xlu0 %1323
      %1325 = vrot.lane.b32.xlu0 %v1266, 3
      %v1326 = vpop.permute.xlu0 %1325
      %1327 = vrot.lane.b32.xlu0 %v1267, 3
      %v1328 = vpop.permute.xlu0 %1327
      %1329 = vrot.lane.b32.xlu0 %v1268, 3
      %v1330 = vpop.permute.xlu0 %1329
      %1331 = vrot.lane.b32.xlu0 %v1269, 3
      %v1332 = vpop.permute.xlu0 %1331
      %1333 = vrot.lane.b32.xlu0 %v1270, 3
      %v1334 = vpop.permute.xlu0 %1333
      %1335 = vrot.lane.b32.xlu0 %v1271, 3
      %v1336 = vpop.permute.xlu0 %1335
      %1337 = vrot.lane.b32.xlu0 %v1272, 3
      %v1338 = vpop.permute.xlu0 %1337
      %1339 = vrot.lane.b32.xlu0 %v1273, 3
      %v1340 = vpop.permute.xlu0 %1339
      %1341 = vrot.lane.b32.xlu0 %v1274, 3
      %v1342 = vpop.permute.xlu0 %1341
      %1343 = vrot.lane.b32.xlu0 %v1275, 3
      %v1344 = vpop.permute.xlu0 %1343
      %1345 = vrot.lane.b32.xlu0 %v1276, 3
      %v1346 = vpop.permute.xlu0 %1345
      %1347 = vrot.lane.b32.xlu0 %v1277, 3
      %v1348 = vpop.permute.xlu0 %1347
      %1349 = vrot.lane.b32.xlu0 %v1278, 3
      %v1350 = vpop.permute.xlu0 %1349
      %1387 = vrot.lane.b32.xlu0 %v1063, 6
      %v1388 = vpop.permute.xlu0 %1387
      %1389 = vrot.lane.b32.xlu0 %v1064, 6
      %v1390 = vpop.permute.xlu0 %1389
      %1391 = vrot.lane.b32.xlu0 %v1065, 6
      %v1392 = vpop.permute.xlu0 %1391
      %1393 = vrot.lane.b32.xlu0 %v1066, 6
      %v1394 = vpop.permute.xlu0 %1393
      %1395 = vrot.lane.b32.xlu0 %v1067, 6
      %v1396 = vpop.permute.xlu0 %1395
      %1397 = vrot.lane.b32.xlu0 %v1068, 6
      %v1398 = vpop.permute.xlu0 %1397
      %1399 = vrot.lane.b32.xlu0 %v1069, 6
      %v1400 = vpop.permute.xlu0 %1399
      %1401 = vrot.lane.b32.xlu0 %v1070, 6
      %v1402 = vpop.permute.xlu0 %1401
      %1403 = vrot.lane.b32.xlu0 %v1071, 6
      %v1404 = vpop.permute.xlu0 %1403
      %1405 = vrot.lane.b32.xlu0 %v1072, 6
      %v1406 = vpop.permute.xlu0 %1405
      %1407 = vrot.lane.b32.xlu0 %v1073, 6
      %v1408 = vpop.permute.xlu0 %1407
      %1409 = vrot.lane.b32.xlu0 %v1074, 6
      %v1410 = vpop.permute.xlu0 %1409
      %1411 = vrot.lane.b32.xlu0 %v1075, 6
      %v1412 = vpop.permute.xlu0 %1411
      %1413 = vrot.lane.b32.xlu0 %v1076, 6
      %v1414 = vpop.permute.xlu0 %1413
      %1415 = vrot.lane.b32.xlu0 %v1077, 6
      %v1416 = vpop.permute.xlu0 %1415
      %1417 = vrot.lane.b32.xlu0 %v1078, 6
      %v1418 = vpop.permute.xlu0 %1417
      %1419 = vrot.lane.b32.xlu0 %v1079, 6
      %v1420 = vpop.permute.xlu0 %1419
      %1421 = vrot.lane.b32.xlu0 %v1080, 6
      %v1422 = vpop.permute.xlu0 %1421
      %1423 = vrot.lane.b32.xlu0 %v1081, 6
      %v1424 = vpop.permute.xlu0 %1423
      %1425 = vrot.lane.b32.xlu0 %v1082, 6
      %v1426 = vpop.permute.xlu0 %1425
      %1427 = vrot.lane.b32.xlu0 %v1083, 6
      %v1428 = vpop.permute.xlu0 %1427
      %1429 = vrot.lane.b32.xlu0 %v1084, 6
      %v1430 = vpop.permute.xlu0 %1429
      %1431 = vrot.lane.b32.xlu0 %v1085, 6
      %v1432 = vpop.permute.xlu0 %1431
      %1433 = vrot.lane.b32.xlu0 %v1086, 6
      %v1434 = vpop.permute.xlu0 %1433
      %1435 = vrot.lane.b32.xlu0 %v1087, 6
      %v1436 = vpop.permute.xlu0 %1435
      %1437 = vrot.lane.b32.xlu0 %v1088, 6
      %v1438 = vpop.permute.xlu0 %1437
      %1439 = vrot.lane.b32.xlu0 %v1089, 6
      %v1440 = vpop.permute.xlu0 %1439
      %1441 = vrot.lane.b32.xlu0 %v1090, 6
      %v1442 = vpop.permute.xlu0 %1441
      %1443 = vrot.lane.b32.xlu0 %v1091, 6
      %v1444 = vpop.permute.xlu0 %1443
      %1445 = vrot.lane.b32.xlu0 %v1092, 6
      %v1446 = vpop.permute.xlu0 %1445
      %1447 = vrot.lane.b32.xlu0 %v1093, 6
      %v1448 = vpop.permute.xlu0 %1447
      %1449 = vrot.lane.b32.xlu0 %v1094, 6
      %v1450 = vpop.permute.xlu0 %1449
      %1451 = vrot.lane.b32.xlu0 %v1095, 6
      %v1452 = vpop.permute.xlu0 %1451
      %1453 = vrot.lane.b32.xlu0 %v1096, 6
      %v1454 = vpop.permute.xlu0 %1453
      %1455 = vrot.lane.b32.xlu0 %v1097, 6
      %v1456 = vpop.permute.xlu0 %1455
      %1457 = vrot.lane.b32.xlu0 %v1098, 6
      %v1458 = vpop.permute.xlu0 %1457
      %vm1459 = vcmask 23552
      %v1462 = vsel %vm1459, %v806, %v1280
      %v1465 = vsel %vm1459, %v807, %v1282
      %v1468 = vsel %vm1459, %v808, %v1284
      %v1471 = vsel %vm1459, %v809, %v1286
      %v1474 = vsel %vm1459, %v810, %v1288
      %v1477 = vsel %vm1459, %v811, %v1290
      %v1480 = vsel %vm1459, %v812, %v1292
      %v1483 = vsel %vm1459, %v813, %v1294
      %v1486 = vsel %vm1459, %v814, %v1296
      %v1489 = vsel %vm1459, %v815, %v1298
      %v1492 = vsel %vm1459, %v816, %v1300
      %v1495 = vsel %vm1459, %v817, %v1302
      %v1498 = vsel %vm1459, %v818, %v1304
      %v1501 = vsel %vm1459, %v819, %v1306
      %v1504 = vsel %vm1459, %v820, %v1308
      %v1507 = vsel %vm1459, %v821, %v1310
      %v1510 = vsel %vm1459, %v822, %v1312
      %v1513 = vsel %vm1459, %v823, %v1314
      %v1516 = vsel %vm1459, %v824, %v1316
      %v1519 = vsel %vm1459, %v825, %v1318
      %v1522 = vsel %vm1459, %v826, %v1320
      %v1525 = vsel %vm1459, %v827, %v1322
      %v1528 = vsel %vm1459, %v828, %v1324
      %v1531 = vsel %vm1459, %v829, %v1326
      %v1534 = vsel %vm1459, %v830, %v1328
      %v1537 = vsel %vm1459, %v831, %v1330
      %v1540 = vsel %vm1459, %v832, %v1332
      %v1543 = vsel %vm1459, %v833, %v1334
      %v1546 = vsel %vm1459, %v834, %v1336
      %v1549 = vsel %vm1459, %v835, %v1338
      %v1552 = vsel %vm1459, %v836, %v1340
      %v1555 = vsel %vm1459, %v837, %v1342
      %v1558 = vsel %vm1459, %v838, %v1344
      %v1561 = vsel %vm1459, %v839, %v1346
      %v1564 = vsel %vm1459, %v840, %v1348
      %v1567 = vsel %vm1459, %v841, %v1350
      %vm1568 = vcmask 48128
      %v1570 = vsel %vm1568, %v1462, %v1388
      %v1572 = vsel %vm1568, %v1465, %v1390
      %v1574 = vsel %vm1568, %v1468, %v1392
      %v1576 = vsel %vm1568, %v1471, %v1394
      %v1578 = vsel %vm1568, %v1474, %v1396
      %v1580 = vsel %vm1568, %v1477, %v1398
      %v1582 = vsel %vm1568, %v1480, %v1400
      %v1584 = vsel %vm1568, %v1483, %v1402
      %v1586 = vsel %vm1568, %v1486, %v1404
      %v1588 = vsel %vm1568, %v1489, %v1406
      %v1590 = vsel %vm1568, %v1492, %v1408
      %v1592 = vsel %vm1568, %v1495, %v1410
      %v1594 = vsel %vm1568, %v1498, %v1412
      %v1596 = vsel %vm1568, %v1501, %v1414
      %v1598 = vsel %vm1568, %v1504, %v1416
      %v1600 = vsel %vm1568, %v1507, %v1418
      %v1602 = vsel %vm1568, %v1510, %v1420
      %v1604 = vsel %vm1568, %v1513, %v1422
      %v1606 = vsel %vm1568, %v1516, %v1424
      %v1608 = vsel %vm1568, %v1519, %v1426
      %v1610 = vsel %vm1568, %v1522, %v1428
      %v1612 = vsel %vm1568, %v1525, %v1430
      %v1614 = vsel %vm1568, %v1528, %v1432
      %v1616 = vsel %vm1568, %v1531, %v1434
      %v1618 = vsel %vm1568, %v1534, %v1436
      %v1620 = vsel %vm1568, %v1537, %v1438
      %v1622 = vsel %vm1568, %v1540, %v1440
      %v1624 = vsel %vm1568, %v1543, %v1442
      %v1626 = vsel %vm1568, %v1546, %v1444
      %v1628 = vsel %vm1568, %v1549, %v1446
      %v1630 = vsel %vm1568, %v1552, %v1448
      %v1632 = vsel %vm1568, %v1555, %v1450
      %v1634 = vsel %vm1568, %v1558, %v1452
      %v1636 = vsel %vm1568, %v1561, %v1454
      %v1638 = vsel %vm1568, %v1564, %v1456
      %v1640 = vsel %vm1568, %v1567, %v1458
      %1673 = vrot.lane.b32.xlu0 %v1574, 9
      %v1674 = vpop.permute.xlu0 %1673
      %1675 = vrot.lane.b32.xlu0 %v1576, 9
      %v1676 = vpop.permute.xlu0 %1675
      %1677 = vrot.lane.b32.xlu0 %v1578, 9
      %v1678 = vpop.permute.xlu0 %1677
      %1679 = vrot.lane.b32.xlu0 %v1580, 9
      %v1680 = vpop.permute.xlu0 %1679
      %1681 = vrot.lane.b32.xlu0 %v1582, 9
      %v1682 = vpop.permute.xlu0 %1681
      %1683 = vrot.lane.b32.xlu0 %v1584, 9
      %v1684 = vpop.permute.xlu0 %1683
      %1685 = vrot.lane.b32.xlu0 %v1586, 9
      %v1686 = vpop.permute.xlu0 %1685
      %1687 = vrot.lane.b32.xlu0 %v1588, 9
      %v1688 = vpop.permute.xlu0 %1687
      %1689 = vrot.lane.b32.xlu0 %v1590, 9
      %v1690 = vpop.permute.xlu0 %1689
      %1691 = vrot.lane.b32.xlu0 %v1592, 9
      %v1692 = vpop.permute.xlu0 %1691
      %1693 = vrot.lane.b32.xlu0 %v1594, 9
      %v1694 = vpop.permute.xlu0 %1693
      %1695 = vrot.lane.b32.xlu0 %v1596, 9
      %v1696 = vpop.permute.xlu0 %1695
      %1697 = vrot.lane.b32.xlu0 %v1598, 9
      %v1698 = vpop.permute.xlu0 %1697
      %1699 = vrot.lane.b32.xlu0 %v1600, 9
      %v1700 = vpop.permute.xlu0 %1699
      %1701 = vrot.lane.b32.xlu0 %v1602, 9
      %v1702 = vpop.permute.xlu0 %1701
      %1703 = vrot.lane.b32.xlu0 %v1604, 9
      %v1704 = vpop.permute.xlu0 %1703
      %1705 = vrot.lane.b32.xlu0 %v1606, 9
      %v1706 = vpop.permute.xlu0 %1705
      %1707 = vrot.lane.b32.xlu0 %v1608, 9
      %v1708 = vpop.permute.xlu0 %1707
      %1709 = vrot.lane.b32.xlu0 %v1610, 9
      %v1710 = vpop.permute.xlu0 %1709
      %1711 = vrot.lane.b32.xlu0 %v1612, 9
      %v1712 = vpop.permute.xlu0 %1711
      %1713 = vrot.lane.b32.xlu0 %v1614, 9
      %v1714 = vpop.permute.xlu0 %1713
      %1715 = vrot.lane.b32.xlu0 %v1616, 9
      %v1716 = vpop.permute.xlu0 %1715
      %1717 = vrot.lane.b32.xlu0 %v1618, 9
      %v1718 = vpop.permute.xlu0 %1717
      %1719 = vrot.lane.b32.xlu0 %v1620, 9
      %v1720 = vpop.permute.xlu0 %1719
      %1721 = vrot.lane.b32.xlu0 %v1622, 9
      %v1722 = vpop.permute.xlu0 %1721
      %1723 = vrot.lane.b32.xlu0 %v1624, 9
      %v1724 = vpop.permute.xlu0 %1723
      %1725 = vrot.lane.b32.xlu0 %v1626, 9
      %v1726 = vpop.permute.xlu0 %1725
      %1727 = vrot.lane.b32.xlu0 %v1628, 9
      %v1728 = vpop.permute.xlu0 %1727
      %1729 = vrot.lane.b32.xlu0 %v1630, 9
      %v1730 = vpop.permute.xlu0 %1729
      %1731 = vrot.lane.b32.xlu0 %v1632, 9
      %v1732 = vpop.permute.xlu0 %1731
      %1733 = vrot.lane.b32.xlu0 %v1634, 9
      %v1734 = vpop.permute.xlu0 %1733
      %1735 = vrot.lane.b32.xlu0 %v1636, 9
      %v1736 = vpop.permute.xlu0 %1735
      %1739 = vrot.lane.b32.xlu0 %v1578, 18
      %v1740 = vpop.permute.xlu0 %1739
      %1741 = vrot.lane.b32.xlu0 %v1580, 18
      %v1742 = vpop.permute.xlu0 %1741
      %1743 = vrot.lane.b32.xlu0 %v1582, 18
      %v1744 = vpop.permute.xlu0 %1743
      %1745 = vrot.lane.b32.xlu0 %v1584, 18
      %v1746 = vpop.permute.xlu0 %1745
      %1747 = vrot.lane.b32.xlu0 %v1586, 18
      %v1748 = vpop.permute.xlu0 %1747
      %1749 = vrot.lane.b32.xlu0 %v1588, 18
      %v1750 = vpop.permute.xlu0 %1749
      %1751 = vrot.lane.b32.xlu0 %v1590, 18
      %v1752 = vpop.permute.xlu0 %1751
      %1753 = vrot.lane.b32.xlu0 %v1592, 18
      %v1754 = vpop.permute.xlu0 %1753
      %1755 = vrot.lane.b32.xlu0 %v1594, 18
      %v1756 = vpop.permute.xlu0 %1755
      %1757 = vrot.lane.b32.xlu0 %v1596, 18
      %v1758 = vpop.permute.xlu0 %1757
      %1759 = vrot.lane.b32.xlu0 %v1598, 18
      %v1760 = vpop.permute.xlu0 %1759
      %1761 = vrot.lane.b32.xlu0 %v1600, 18
      %v1762 = vpop.permute.xlu0 %1761
      %1763 = vrot.lane.b32.xlu0 %v1602, 18
      %v1764 = vpop.permute.xlu0 %1763
      %1765 = vrot.lane.b32.xlu0 %v1604, 18
      %v1766 = vpop.permute.xlu0 %1765
      %1767 = vrot.lane.b32.xlu0 %v1606, 18
      %v1768 = vpop.permute.xlu0 %1767
      %1769 = vrot.lane.b32.xlu0 %v1608, 18
      %v1770 = vpop.permute.xlu0 %1769
      %1771 = vrot.lane.b32.xlu0 %v1610, 18
      %v1772 = vpop.permute.xlu0 %1771
      %1773 = vrot.lane.b32.xlu0 %v1612, 18
      %v1774 = vpop.permute.xlu0 %1773
      %1775 = vrot.lane.b32.xlu0 %v1614, 18
      %v1776 = vpop.permute.xlu0 %1775
      %1777 = vrot.lane.b32.xlu0 %v1616, 18
      %v1778 = vpop.permute.xlu0 %1777
      %1779 = vrot.lane.b32.xlu0 %v1618, 18
      %v1780 = vpop.permute.xlu0 %1779
      %1781 = vrot.lane.b32.xlu0 %v1620, 18
      %v1782 = vpop.permute.xlu0 %1781
      %1783 = vrot.lane.b32.xlu0 %v1622, 18
      %v1784 = vpop.permute.xlu0 %1783
      %1785 = vrot.lane.b32.xlu0 %v1624, 18
      %v1786 = vpop.permute.xlu0 %1785
      %1787 = vrot.lane.b32.xlu0 %v1626, 18
      %v1788 = vpop.permute.xlu0 %1787
      %1789 = vrot.lane.b32.xlu0 %v1628, 18
      %v1790 = vpop.permute.xlu0 %1789
      %1791 = vrot.lane.b32.xlu0 %v1630, 18
      %v1792 = vpop.permute.xlu0 %1791
      %1793 = vrot.lane.b32.xlu0 %v1632, 18
      %v1794 = vpop.permute.xlu0 %1793
      %1795 = vrot.lane.b32.xlu0 %v1634, 18
      %v1796 = vpop.permute.xlu0 %1795
      %1797 = vrot.lane.b32.xlu0 %v1636, 18
      %v1798 = vpop.permute.xlu0 %1797
      %1799 = vrot.lane.b32.xlu0 %v1638, 18
      %v1800 = vpop.permute.xlu0 %1799
      %1801 = vrot.lane.b32.xlu0 %v1640, 18
      %v1802 = vpop.permute.xlu0 %1801
      %vm1803 = vcmask 72704
      %v1805 = vsel %vm1803, %v1570, %v1674
      %v1807 = vsel %vm1803, %v1572, %v1676
      %v1809 = vsel %vm1803, %v1574, %v1678
      %v1811 = vsel %vm1803, %v1576, %v1680
      %v1813 = vsel %vm1803, %v1578, %v1682
      %v1815 = vsel %vm1803, %v1580, %v1684
      %v1817 = vsel %vm1803, %v1582, %v1686
      %v1819 = vsel %vm1803, %v1584, %v1688
      %v1821 = vsel %vm1803, %v1586, %v1690
      %v1823 = vsel %vm1803, %v1588, %v1692
      %v1825 = vsel %vm1803, %v1590, %v1694
      %v1827 = vsel %vm1803, %v1592, %v1696
      %v1829 = vsel %vm1803, %v1594, %v1698
      %v1831 = vsel %vm1803, %v1596, %v1700
      %v1833 = vsel %vm1803, %v1598, %v1702
      %v1835 = vsel %vm1803, %v1600, %v1704
      %v1837 = vsel %vm1803, %v1602, %v1706
      %v1839 = vsel %vm1803, %v1604, %v1708
      %v1841 = vsel %vm1803, %v1606, %v1710
      %v1843 = vsel %vm1803, %v1608, %v1712
      %v1845 = vsel %vm1803, %v1610, %v1714
      %v1847 = vsel %vm1803, %v1612, %v1716
      %v1849 = vsel %vm1803, %v1614, %v1718
      %v1851 = vsel %vm1803, %v1616, %v1720
      %v1853 = vsel %vm1803, %v1618, %v1722
      %v1855 = vsel %vm1803, %v1620, %v1724
      %v1857 = vsel %vm1803, %v1622, %v1726
      %v1859 = vsel %vm1803, %v1624, %v1728
      %v1861 = vsel %vm1803, %v1626, %v1730
      %v1863 = vsel %vm1803, %v1628, %v1732
      %v1865 = vsel %vm1803, %v1630, %v1734
      %v1867 = vsel %vm1803, %v1632, %v1736
      %vm1868 = vcmask 146432
      %v1870 = vsel %vm1868, %v1805, %v1740
      %v1872 = vsel %vm1868, %v1807, %v1742
      %v1874 = vsel %vm1868, %v1809, %v1744
      %v1876 = vsel %vm1868, %v1811, %v1746
      %v1878 = vsel %vm1868, %v1813, %v1748
      %v1880 = vsel %vm1868, %v1815, %v1750
      %v1882 = vsel %vm1868, %v1817, %v1752
      %v1884 = vsel %vm1868, %v1819, %v1754
      %v1886 = vsel %vm1868, %v1821, %v1756
      %v1888 = vsel %vm1868, %v1823, %v1758
      %v1890 = vsel %vm1868, %v1825, %v1760
      %v1892 = vsel %vm1868, %v1827, %v1762
      %v1894 = vsel %vm1868, %v1829, %v1764
      %v1896 = vsel %vm1868, %v1831, %v1766
      %v1898 = vsel %vm1868, %v1833, %v1768
      %v1900 = vsel %vm1868, %v1835, %v1770
      %v1902 = vsel %vm1868, %v1837, %v1772
      %v1904 = vsel %vm1868, %v1839, %v1774
      %v1906 = vsel %vm1868, %v1841, %v1776
      %v1908 = vsel %vm1868, %v1843, %v1778
      %v1910 = vsel %vm1868, %v1845, %v1780
      %v1912 = vsel %vm1868, %v1847, %v1782
      %v1914 = vsel %vm1868, %v1849, %v1784
      %v1916 = vsel %vm1868, %v1851, %v1786
      %v1918 = vsel %vm1868, %v1853, %v1788
      %v1920 = vsel %vm1868, %v1855, %v1790
      %v1922 = vsel %vm1868, %v1857, %v1792
      %v1924 = vsel %vm1868, %v1859, %v1794
      %v1926 = vsel %vm1868, %v1861, %v1796
      %v1928 = vsel %vm1868, %v1863, %v1798
      %v1930 = vsel %vm1868, %v1865, %v1800
      %v1932 = vsel %vm1868, %v1867, %v1802
      %v1933 = vld [vmem:[%s3] sm:$0xf]
      %v1934 = vld [vmem:[%s3 + $0x4] sm:$0xf]
      %v1935 = vld [vmem:[%s3 + $0x8] sm:$0xf]
      %v1936 = vld [vmem:[%s3 + $0xc] sm:$0x3]
      %v1937 = vld [vmem:[%s4] sm:$0x1]
      %v1939 = vlaneseq
      %v1940 = vshrl.u32 %v1939, 7
      %v1941 = vsub.s32 0, %v1940
      %v1942 = vrot.slane %v1937, %v1941
      %v1948 = vunpack.c.l.b16 %v1933
      %v1949 = vunpack.c.l.b16 %v1934
      %v1950 = vunpack.c.l.b16 %v1935
      %v1951 = vunpack.c.l.b16 %v1936
      %v1952 = vpack.c.b16 %v1949, %v1948
      %v1953 = vpack.c.b16 %v1951, %v1950
      %vm1955 = vcmask 220160
      %v1956 = vsel %vm1955, %v1870, 0
      %v1958 = vsel %vm1955, %v1872, 0
      %v1960 = vsel %vm1955, %v1874, 0
      %v1962 = vsel %vm1955, %v1876, 0
      %v1964 = vsel %vm1955, %v1878, 0
      %v1966 = vsel %vm1955, %v1880, 0
      %v1968 = vsel %vm1955, %v1882, 0
      %v1970 = vsel %vm1955, %v1884, 0
      %v1972 = vsel %vm1955, %v1886, 0
      %v1974 = vsel %vm1955, %v1888, 0
      %v1976 = vsel %vm1955, %v1890, 0
      %v1978 = vsel %vm1955, %v1892, 0
      %v1980 = vsel %vm1955, %v1894, 0
      %v1982 = vsel %vm1955, %v1896, 0
      %v1984 = vsel %vm1955, %v1898, 0
      %v1986 = vsel %vm1955, %v1900, 0
      %v1988 = vsel %vm1955, %v1902, 0
      %v1990 = vsel %vm1955, %v1904, 0
      %v1992 = vsel %vm1955, %v1906, 0
      %v1994 = vsel %vm1955, %v1908, 0
      %v1996 = vsel %vm1955, %v1910, 0
      %v1998 = vsel %vm1955, %v1912, 0
      %v2000 = vsel %vm1955, %v1914, 0
      %v2002 = vsel %vm1955, %v1916, 0
      %v2004 = vsel %vm1955, %v1918, 0
      %v2006 = vsel %vm1955, %v1920, 0
      %v2008 = vsel %vm1955, %v1922, 0
      %v2010 = vsel %vm1955, %v1924, 0
      %v2012 = vsel %vm1955, %v1926, 0
      %v2014 = vsel %vm1955, %v1928, 0
      %v2016 = vsel %vm1955, %v1930, 0
      %v2018 = vsel %vm1955, %v1932, 0
      %vm2020 = vcmask 1044480
      %vm2021 = vcmask 1045504
      %v2022 = vsel %vm2020, 4294967295, 65535
      %v2023 = vsel %vm2021, %v2022, 0
      %v2025 = vand.u32 %v1953, %v2023
      %2027 = vmatprep.subr.bf16.mxu0 0
      %2028 = vmatpush1.bf16.msra.mxu0 %v1952
      %2029 = vmatprep.subr.bf16.mxu0 0
      %2030 = vmatpush1.bf16.msra.mxu0 %v2025
      %2031 = vmatprep.subr.bf16.mxu0 0
      %2032 = vmatpush1.bf16.msra.mxu0 0
      %2033 = vmatprep.subr.bf16.mxu0 0
      %2034 = vmatpush1.bf16.msra.mxu0 0
      %2035 = vmatprep.subr.bf16.mxu0 0
      %2036 = vmatpush1.bf16.msra.mxu0 0
      %2037 = vmatprep.subr.bf16.mxu0 0
      %2038 = vmatpush1.bf16.msra.mxu0 0
      %2039 = vmatprep.subr.bf16.mxu0 0
      %2040 = vmatpush1.bf16.msra.mxu0 0
      %2041 = vmatprep.subr.bf16.mxu0 0
      %2042 = vmatpush1.bf16.msra.mxu0 0
      %2043 = vmatprep.subr.bf16.mxu0 0
      %2044 = vmatpush1.bf16.msra.mxu0 0
      %2045 = vmatprep.subr.bf16.mxu0 0
      %2046 = vmatpush1.bf16.msra.mxu0 0
      %2047 = vmatprep.subr.bf16.mxu0 0
      %2048 = vmatpush1.bf16.msra.mxu0 0
      %2049 = vmatprep.subr.bf16.mxu0 0
      %2050 = vmatpush1.bf16.msra.mxu0 0
      %2051 = vmatprep.subr.bf16.mxu0 0
      %2052 = vmatpush1.bf16.msra.mxu0 0
      %2053 = vmatprep.subr.bf16.mxu0 0
      %2054 = vmatpush1.bf16.msra.mxu0 0
      %2055 = vmatprep.subr.bf16.mxu0 0
      %2056 = vmatpush1.bf16.msra.mxu0 0
      %2057 = vmatprep.subr.bf16.mxu0 0
      %2058 = vmatpush1.bf16.msra.mxu0 0
      %2059 = vmatprep.mubr.bf16.mxu0 0
      %2060 = vmatmul.mubr.bf16.gmra.mrb[0].mxu0 %v1956
      %v2061 = vpop.f32.mrb[0].mxu0
      %v2062 = vadd.f32 %v1942, %v2061
      %v2063 = vpop.f32.mrb[0].mxu0
      %v2064 = vpop.f32.mrb[0].mxu0
      %v2065 = vadd.f32 %v1942, %v2064
      %v2066 = vpop.f32.mrb[0].mxu0
      %2067 = vmatprep.mubr.bf16.mxu0 0
      %2068 = vmatmul.mubr.bf16.gmra.mrb[0].mxu0 %v1958
      %v2069 = vpop.f32.mrb[0].mxu0
      %v2070 = vadd.f32 %v1942, %v2069
      %v2071 = vpop.f32.mrb[0].mxu0
      %v2072 = vpop.f32.mrb[0].mxu0
      %v2073 = vadd.f32 %v1942, %v2072
      %v2074 = vpop.f32.mrb[0].mxu0
      %2075 = vmatprep.mubr.bf16.mxu0 0
      %2076 = vmatmul.mubr.bf16.gmra.mrb[0].mxu0 %v1960
      %v2077 = vpop.f32.mrb[0].mxu0
      %v2078 = vadd.f32 %v1942, %v2077
      %v2079 = vpop.f32.mrb[0].mxu0
      %v2080 = vpop.f32.mrb[0].mxu0
      %v2081 = vadd.f32 %v1942, %v2080
      %v2082 = vpop.f32.mrb[0].mxu0
      %2083 = vmatprep.mubr.bf16.mxu0 0
      %2084 = vmatmul.mubr.bf16.gmra.mrb[0].mxu0 %v1962
      %v2085 = vpop.f32.mrb[0].mxu0
      %v2086 = vadd.f32 %v1942, %v2085
      %v2087 = vpop.f32.mrb[0].mxu0
      %v2088 = vpop.f32.mrb[0].mxu0
      %v2089 = vadd.f32 %v1942, %v2088
      %v2090 = vpop.f32.mrb[0].mxu0
      %2091 = vmatprep.mubr.bf16.mxu0 0
      %2092 = vmatmul.mubr.bf16.gmra.mrb[0].mxu0 %v1964
      %v2093 = vpop.f32.mrb[0].mxu0
      %v2094 = vadd.f32 %v1942, %v2093
      %v2095 = vpop.f32.mrb[0].mxu0
      %v2096 = vpop.f32.mrb[0].mxu0
      %v2097 = vadd.f32 %v1942, %v2096
      %v2098 = vpop.f32.mrb[0].mxu0
      %2099 = vmatprep.mubr.bf16.mxu0 0
      %2100 = vmatmul.mubr.bf16.gmra.mrb[0].mxu0 %v1966
      %v2101 = vpop.f32.mrb[0].mxu0
      %v2102 = vadd.f32 %v1942, %v2101
      %v2103 = vpop.f32.mrb[0].mxu0
      %v2104 = vpop.f32.mrb[0].mxu0
      %v2105 = vadd.f32 %v1942, %v2104
      %v2106 = vpop.f32.mrb[0].mxu0
      %2107 = vmatprep.mubr.bf16.mxu0 0
      %2108 = vmatmul.mubr.bf16.gmra.mrb[0].mxu0 %v1968
      %v2109 = vpop.f32.mrb[0].mxu0
      %v2110 = vadd.f32 %v1942, %v2109
      %v2111 = vpop.f32.mrb[0].mxu0
      %v2112 = vpop.f32.mrb[0].mxu0
      %v2113 = vadd.f32 %v1942, %v2112
      %v2114 = vpop.f32.mrb[0].mxu0
      %2115 = vmatprep.mubr.bf16.mxu0 0
      %2116 = vmatmul.mubr.bf16.gmra.mrb[0].mxu0 %v1970
      %v2117 = vpop.f32.mrb[0].mxu0
      %v2118 = vadd.f32 %v1942, %v2117
      %v2119 = vpop.f32.mrb[0].mxu0
      %v2120 = vpop.f32.mrb[0].mxu0
      %v2121 = vadd.f32 %v1942, %v2120
      %v2122 = vpop.f32.mrb[0].mxu0
      %2123 = vmatprep.mubr.bf16.mxu0 0
      %2124 = vmatmul.mubr.bf16.gmra.mrb[0].mxu0 %v1972
      %v2125 = vpop.f32.mrb[0].mxu0
      %v2126 = vadd.f32 %v1942, %v2125
      %v2127 = vpop.f32.mrb[0].mxu0
      %v2128 = vpop.f32.mrb[0].mxu0
      %v2129 = vadd.f32 %v1942, %v2128
      %v2130 = vpop.f32.mrb[0].mxu0
      %2131 = vmatprep.mubr.bf16.mxu0 0
      %2132 = vmatmul.mubr.bf16.gmra.mrb[0].mxu0 %v1974
      %v2133 = vpop.f32.mrb[0].mxu0
      %v2134 = vadd.f32 %v1942, %v2133
      %v2135 = vpop.f32.mrb[0].mxu0
      %v2136 = vpop.f32.mrb[0].mxu0
      %v2137 = vadd.f32 %v1942, %v2136
      %v2138 = vpop.f32.mrb[0].mxu0
      %2139 = vmatprep.mubr.bf16.mxu0 0
      %2140 = vmatmul.mubr.bf16.gmra.mrb[0].mxu0 %v1976
      %v2141 = vpop.f32.mrb[0].mxu0
      %v2142 = vadd.f32 %v1942, %v2141
      %v2143 = vpop.f32.mrb[0].mxu0
      %v2144 = vpop.f32.mrb[0].mxu0
      %v2145 = vadd.f32 %v1942, %v2144
      %v2146 = vpop.f32.mrb[0].mxu0
      %2147 = vmatprep.mubr.bf16.mxu0 0
      %2148 = vmatmul.mubr.bf16.gmra.mrb[0].mxu0 %v1978
      %v2149 = vpop.f32.mrb[0].mxu0
      %v2150 = vadd.f32 %v1942, %v2149
      %v2151 = vpop.f32.mrb[0].mxu0
      %v2152 = vpop.f32.mrb[0].mxu0
      %v2153 = vadd.f32 %v1942, %v2152
      %v2154 = vpop.f32.mrb[0].mxu0
      %2155 = vmatprep.mubr.bf16.mxu0 0
      %2156 = vmatmul.mubr.bf16.gmra.mrb[0].mxu0 %v1980
      %v2157 = vpop.f32.mrb[0].mxu0
      %v2158 = vadd.f32 %v1942, %v2157
      %v2159 = vpop.f32.mrb[0].mxu0
      %v2160 = vpop.f32.mrb[0].mxu0
      %v2161 = vadd.f32 %v1942, %v2160
      %v2162 = vpop.f32.mrb[0].mxu0
      %2163 = vmatprep.mubr.bf16.mxu0 0
      %2164 = vmatmul.mubr.bf16.gmra.mrb[0].mxu0 %v1982
      %v2165 = vpop.f32.mrb[0].mxu0
      %v2166 = vadd.f32 %v1942, %v2165
      %v2167 = vpop.f32.mrb[0].mxu0
      %v2168 = vpop.f32.mrb[0].mxu0
      %v2169 = vadd.f32 %v1942, %v2168
      %v2170 = vpop.f32.mrb[0].mxu0
      %2171 = vmatprep.mubr.bf16.mxu0 0
      %2172 = vmatmul.mubr.bf16.gmra.mrb[0].mxu0 %v1984
      %v2173 = vpop.f32.mrb[0].mxu0
      %v2174 = vadd.f32 %v1942, %v2173
      %v2175 = vpop.f32.mrb[0].mxu0
      %v2176 = vpop.f32.mrb[0].mxu0
      %v2177 = vadd.f32 %v1942, %v2176
      %v2178 = vpop.f32.mrb[0].mxu0
      %2179 = vmatprep.mubr.bf16.mxu0 0
      %2180 = vmatmul.mubr.bf16.gmra.mrb[0].mxu0 %v1986
      %v2181 = vpop.f32.mrb[0].mxu0
      %v2182 = vadd.f32 %v1942, %v2181
      %v2183 = vpop.f32.mrb[0].mxu0
      %v2184 = vpop.f32.mrb[0].mxu0
      %v2185 = vadd.f32 %v1942, %v2184
      %v2186 = vpop.f32.mrb[0].mxu0
      %2187 = vmatprep.mubr.bf16.mxu0 0
      %2188 = vmatmul.mubr.bf16.gmra.mrb[0].mxu0 %v1988
      %v2189 = vpop.f32.mrb[0].mxu0
      %v2190 = vadd.f32 %v1942, %v2189
      %v2191 = vpop.f32.mrb[0].mxu0
      %v2192 = vpop.f32.mrb[0].mxu0
      %v2193 = vadd.f32 %v1942, %v2192
      %v2194 = vpop.f32.mrb[0].mxu0
      %2195 = vmatprep.mubr.bf16.mxu0 0
      %2196 = vmatmul.mubr.bf16.gmra.mrb[0].mxu0 %v1990
      %v2197 = vpop.f32.mrb[0].mxu0
      %v2198 = vadd.f32 %v1942, %v2197
      %v2199 = vpop.f32.mrb[0].mxu0
      %v2200 = vpop.f32.mrb[0].mxu0
      %v2201 = vadd.f32 %v1942, %v2200
      %v2202 = vpop.f32.mrb[0].mxu0
      %2203 = vmatprep.mubr.bf16.mxu0 0
      %2204 = vmatmul.mubr.bf16.gmra.mrb[0].mxu0 %v1992
      %v2205 = vpop.f32.mrb[0].mxu0
      %v2206 = vadd.f32 %v1942, %v2205
      %v2207 = vpop.f32.mrb[0].mxu0
      %v2208 = vpop.f32.mrb[0].mxu0
      %v2209 = vadd.f32 %v1942, %v2208
      %v2210 = vpop.f32.mrb[0].mxu0
      %2211 = vmatprep.mubr.bf16.mxu0 0
      %2212 = vmatmul.mubr.bf16.gmra.mrb[0].mxu0 %v1994
      %v2213 = vpop.f32.mrb[0].mxu0
      %v2214 = vadd.f32 %v1942, %v2213
      %v2215 = vpop.f32.mrb[0].mxu0
      %v2216 = vpop.f32.mrb[0].mxu0
      %v2217 = vadd.f32 %v1942, %v2216
      %v2218 = vpop.f32.mrb[0].mxu0
      %2219 = vmatprep.mubr.bf16.mxu0 0
      %2220 = vmatmul.mubr.bf16.gmra.mrb[0].mxu0 %v1996
      %v2221 = vpop.f32.mrb[0].mxu0
      %v2222 = vadd.f32 %v1942, %v2221
      %v2223 = vpop.f32.mrb[0].mxu0
      %v2224 = vpop.f32.mrb[0].mxu0
      %v2225 = vadd.f32 %v1942, %v2224
      %v2226 = vpop.f32.mrb[0].mxu0
      %2227 = vmatprep.mubr.bf16.mxu0 0
      %2228 = vmatmul.mubr.bf16.gmra.mrb[0].mxu0 %v1998
      %v2229 = vpop.f32.mrb[0].mxu0
      %v2230 = vadd.f32 %v1942, %v2229
      %v2231 = vpop.f32.mrb[0].mxu0
      %v2232 = vpop.f32.mrb[0].mxu0
      %v2233 = vadd.f32 %v1942, %v2232
      %v2234 = vpop.f32.mrb[0].mxu0
      %2235 = vmatprep.mubr.bf16.mxu0 0
      %2236 = vmatmul.mubr.bf16.gmra.mrb[0].mxu0 %v2000
      %v2237 = vpop.f32.mrb[0].mxu0
      %v2238 = vadd.f32 %v1942, %v2237
      %v2239 = vpop.f32.mrb[0].mxu0
      %v2240 = vpop.f32.mrb[0].mxu0
      %v2241 = vadd.f32 %v1942, %v2240
      %v2242 = vpop.f32.mrb[0].mxu0
      %2243 = vmatprep.mubr.bf16.mxu0 0
      %2244 = vmatmul.mubr.bf16.gmra.mrb[0].mxu0 %v2002
      %v2245 = vpop.f32.mrb[0].mxu0
      %v2246 = vadd.f32 %v1942, %v2245
      %v2247 = vpop.f32.mrb[0].mxu0
      %v2248 = vpop.f32.mrb[0].mxu0
      %v2249 = vadd.f32 %v1942, %v2248
      %v2250 = vpop.f32.mrb[0].mxu0
      %2251 = vmatprep.mubr.bf16.mxu0 0
      %2252 = vmatmul.mubr.bf16.gmra.mrb[0].mxu0 %v2004
      %v2253 = vpop.f32.mrb[0].mxu0
      %v2254 = vadd.f32 %v1942, %v2253
      %v2255 = vpop.f32.mrb[0].mxu0
      %v2256 = vpop.f32.mrb[0].mxu0
      %v2257 = vadd.f32 %v1942, %v2256
      %v2258 = vpop.f32.mrb[0].mxu0
      %2259 = vmatprep.mubr.bf16.mxu0 0
      %2260 = vmatmul.mubr.bf16.gmra.mrb[0].mxu0 %v2006
      %v2261 = vpop.f32.mrb[0].mxu0
      %v2262 = vadd.f32 %v1942, %v2261
      %v2263 = vpop.f32.mrb[0].mxu0
      %v2264 = vpop.f32.mrb[0].mxu0
      %v2265 = vadd.f32 %v1942, %v2264
      %v2266 = vpop.f32.mrb[0].mxu0
      %2267 = vmatprep.mubr.bf16.mxu0 0
      %2268 = vmatmul.mubr.bf16.gmra.mrb[0].mxu0 %v2008
      %v2269 = vpop.f32.mrb[0].mxu0
      %v2270 = vadd.f32 %v1942, %v2269
      %v2271 = vpop.f32.mrb[0].mxu0
      %v2272 = vpop.f32.mrb[0].mxu0
      %v2273 = vadd.f32 %v1942, %v2272
      %v2274 = vpop.f32.mrb[0].mxu0
      %2275 = vmatprep.mubr.bf16.mxu0 0
      %2276 = vmatmul.mubr.bf16.gmra.mrb[0].mxu0 %v2010
      %v2277 = vpop.f32.mrb[0].mxu0
      %v2278 = vadd.f32 %v1942, %v2277
      %v2279 = vpop.f32.mrb[0].mxu0
      %v2280 = vpop.f32.mrb[0].mxu0
      %v2281 = vadd.f32 %v1942, %v2280
      %v2282 = vpop.f32.mrb[0].mxu0
      %2283 = vmatprep.mubr.bf16.mxu0 0
      %2284 = vmatmul.mubr.bf16.gmra.mrb[0].mxu0 %v2012
      %v2285 = vpop.f32.mrb[0].mxu0
      %v2286 = vadd.f32 %v1942, %v2285
      %v2287 = vpop.f32.mrb[0].mxu0
      %v2288 = vpop.f32.mrb[0].mxu0
      %v2289 = vadd.f32 %v1942, %v2288
      %v2290 = vpop.f32.mrb[0].mxu0
      %2291 = vmatprep.mubr.bf16.mxu0 0
      %2292 = vmatmul.mubr.bf16.gmra.mrb[0].mxu0 %v2014
      %v2293 = vpop.f32.mrb[0].mxu0
      %v2294 = vadd.f32 %v1942, %v2293
      %v2295 = vpop.f32.mrb[0].mxu0
      %v2296 = vpop.f32.mrb[0].mxu0
      %v2297 = vadd.f32 %v1942, %v2296
      %v2298 = vpop.f32.mrb[0].mxu0
      %2299 = vmatprep.mubr.bf16.mxu0 0
      %2300 = vmatmul.mubr.bf16.gmra.mrb[0].mxu0 %v2016
      %v2301 = vpop.f32.mrb[0].mxu0
      %v2302 = vadd.f32 %v1942, %v2301
      %v2303 = vpop.f32.mrb[0].mxu0
      %v2304 = vpop.f32.mrb[0].mxu0
      %v2305 = vadd.f32 %v1942, %v2304
      %v2306 = vpop.f32.mrb[0].mxu0
      %2307 = vmatprep.mubr.bf16.mxu0 0
      %2308 = vmatmul.mubr.bf16.gmra.mrb[0].mxu0 %v2018
      %v2309 = vpop.f32.mrb[0].mxu0
      %v2310 = vadd.f32 %v1942, %v2309
      %v2311 = vpop.f32.mrb[0].mxu0
      %v2312 = vpop.f32.mrb[0].mxu0
      %v2313 = vadd.f32 %v1942, %v2312
      %v2314 = vpop.f32.mrb[0].mxu0
      %2315 = vdwg.mxu0
      %v2316 = vmax.f32 %v2062, 0.0
      %v2317 = vmax.f32 %v2065, 0.0
      %v2318 = vmax.f32 %v2070, 0.0
      %v2319 = vmax.f32 %v2073, 0.0
      %v2320 = vmax.f32 %v2078, 0.0
      %v2321 = vmax.f32 %v2081, 0.0
      %v2322 = vmax.f32 %v2086, 0.0
      %v2323 = vmax.f32 %v2089, 0.0
      %v2324 = vmax.f32 %v2094, 0.0
      %v2325 = vmax.f32 %v2097, 0.0
      %v2326 = vmax.f32 %v2102, 0.0
      %v2327 = vmax.f32 %v2105, 0.0
      %v2328 = vmax.f32 %v2110, 0.0
      %v2329 = vmax.f32 %v2113, 0.0
      %v2330 = vmax.f32 %v2118, 0.0
      %v2331 = vmax.f32 %v2121, 0.0
      %v2332 = vmax.f32 %v2126, 0.0
      %v2333 = vmax.f32 %v2129, 0.0
      %v2334 = vmax.f32 %v2134, 0.0
      %v2335 = vmax.f32 %v2137, 0.0
      %v2336 = vmax.f32 %v2142, 0.0
      %v2337 = vmax.f32 %v2145, 0.0
      %v2338 = vmax.f32 %v2150, 0.0
      %v2339 = vmax.f32 %v2153, 0.0
      %v2340 = vmax.f32 %v2158, 0.0
      %v2341 = vmax.f32 %v2161, 0.0
      %v2342 = vmax.f32 %v2166, 0.0
      %v2343 = vmax.f32 %v2169, 0.0
      %v2344 = vmax.f32 %v2174, 0.0
      %v2345 = vmax.f32 %v2177, 0.0
      %v2346 = vmax.f32 %v2182, 0.0
      %v2347 = vmax.f32 %v2185, 0.0
      %v2348 = vmax.f32 %v2190, 0.0
      %v2349 = vmax.f32 %v2193, 0.0
      %v2350 = vmax.f32 %v2198, 0.0
      %v2351 = vmax.f32 %v2201, 0.0
      %v2352 = vmax.f32 %v2206, 0.0
      %v2353 = vmax.f32 %v2209, 0.0
      %v2354 = vmax.f32 %v2214, 0.0
      %v2355 = vmax.f32 %v2217, 0.0
      %v2356 = vmax.f32 %v2222, 0.0
      %v2357 = vmax.f32 %v2225, 0.0
      %v2358 = vmax.f32 %v2230, 0.0
      %v2359 = vmax.f32 %v2233, 0.0
      %v2360 = vmax.f32 %v2238, 0.0
      %v2361 = vmax.f32 %v2241, 0.0
      %v2362 = vmax.f32 %v2246, 0.0
      %v2363 = vmax.f32 %v2249, 0.0
      %v2364 = vmax.f32 %v2254, 0.0
      %v2365 = vmax.f32 %v2257, 0.0
      %v2366 = vmax.f32 %v2262, 0.0
      %v2367 = vmax.f32 %v2265, 0.0
      %v2368 = vmax.f32 %v2270, 0.0
      %v2369 = vmax.f32 %v2273, 0.0
      %v2370 = vmax.f32 %v2278, 0.0
      %v2371 = vmax.f32 %v2281, 0.0
      %v2372 = vmax.f32 %v2286, 0.0
      %v2373 = vmax.f32 %v2289, 0.0
      %v2374 = vmax.f32 %v2294, 0.0
      %v2375 = vmax.f32 %v2297, 0.0
      %v2376 = vmax.f32 %v2302, 0.0
      %v2377 = vmax.f32 %v2305, 0.0
      %v2378 = vmax.f32 %v2310, 0.0
      %v2379 = vmax.f32 %v2313, 0.0
      %vm2380 = vcmask 523264
      %2381 = vst.msk [vmem:[#allocation2] sm:$0xff] %vm2380, %v2316
      %2382 = vst.msk [vmem:[#allocation2 + $0x8] sm:$0xff] %vm2380, %v2317
      %2383 = vst.msk [vmem:[#allocation2 + $0x10] sm:$0xff] %vm2380, %v2318
      %2384 = vst.msk [vmem:[#allocation2 + $0x18] sm:$0xff] %vm2380, %v2319
      %2385 = vst.msk [vmem:[#allocation2 + $0x20] sm:$0xff] %vm2380, %v2320
      %2386 = vst.msk [vmem:[#allocation2 + $0x28] sm:$0xff] %vm2380, %v2321
      %2387 = vst.msk [vmem:[#allocation2 + $0x30] sm:$0xff] %vm2380, %v2322
      %2388 = vst.msk [vmem:[#allocation2 + $0x38] sm:$0xff] %vm2380, %v2323
      %2389 = vst.msk [vmem:[#allocation2 + $0x40] sm:$0xff] %vm2380, %v2324
      %2390 = vst.msk [vmem:[#allocation2 + $0x48] sm:$0xff] %vm2380, %v2325
      %2391 = vst.msk [vmem:[#allocation2 + $0x50] sm:$0xff] %vm2380, %v2326
      %2392 = vst.msk [vmem:[#allocation2 + $0x58] sm:$0xff] %vm2380, %v2327
      %2393 = vst.msk [vmem:[#allocation2 + $0x60] sm:$0xff] %vm2380, %v2328
      %2394 = vst.msk [vmem:[#allocation2 + $0x68] sm:$0xff] %vm2380, %v2329
      %2395 = vst.msk [vmem:[#allocation2 + $0x70] sm:$0xff] %vm2380, %v2330
      %2396 = vst.msk [vmem:[#allocation2 + $0x78] sm:$0xff] %vm2380, %v2331
      %2397 = vst.msk [vmem:[#allocation2 + $0x80] sm:$0xff] %vm2380, %v2332
      %2398 = vst.msk [vmem:[#allocation2 + $0x88] sm:$0xff] %vm2380, %v2333
      %2399 = vst.msk [vmem:[#allocation2 + $0x90] sm:$0xff] %vm2380, %v2334
      %2400 = vst.msk [vmem:[#allocation2 + $0x98] sm:$0xff] %vm2380, %v2335
      %2401 = vst.msk [vmem:[#allocation2 + $0xa0] sm:$0xff] %vm2380, %v2336
      %2402 = vst.msk [vmem:[#allocation2 + $0xa8] sm:$0xff] %vm2380, %v2337
      %2403 = vst.msk [vmem:[#allocation2 + $0xb0] sm:$0xff] %vm2380, %v2338
      %2404 = vst.msk [vmem:[#allocation2 + $0xb8] sm:$0xff] %vm2380, %v2339
      %2405 = vst.msk [vmem:[#allocation2 + $0xc0] sm:$0xff] %vm2380, %v2340
      %2406 = vst.msk [vmem:[#allocation2 + $0xc8] sm:$0xff] %vm2380, %v2341
      %2407 = vst.msk [vmem:[#allocation2 + $0xd0] sm:$0xff] %vm2380, %v2342
      %2408 = vst.msk [vmem:[#allocation2 + $0xd8] sm:$0xff] %vm2380, %v2343
      %2409 = vst.msk [vmem:[#allocation2 + $0xe0] sm:$0xff] %vm2380, %v2344
      %2410 = vst.msk [vmem:[#allocation2 + $0xe8] sm:$0xff] %vm2380, %v2345
      %2411 = vst.msk [vmem:[#allocation2 + $0xf0] sm:$0xff] %vm2380, %v2346
      %2412 = vst.msk [vmem:[#allocation2 + $0xf8] sm:$0xff] %vm2380, %v2347
      %2413 = vst.msk [vmem:[#allocation2 + $0x100] sm:$0xff] %vm2380, %v2348
      %2414 = vst.msk [vmem:[#allocation2 + $0x108] sm:$0xff] %vm2380, %v2349
      %2415 = vst.msk [vmem:[#allocation2 + $0x110] sm:$0xff] %vm2380, %v2350
      %2416 = vst.msk [vmem:[#allocation2 + $0x118] sm:$0xff] %vm2380, %v2351
      %2417 = vst.msk [vmem:[#allocation2 + $0x120] sm:$0xff] %vm2380, %v2352
      %2418 = vst.msk [vmem:[#allocation2 + $0x128] sm:$0xff] %vm2380, %v2353
      %2419 = vst.msk [vmem:[#allocation2 + $0x130] sm:$0xff] %vm2380, %v2354
      %2420 = vst.msk [vmem:[#allocation2 + $0x138] sm:$0xff] %vm2380, %v2355
      %2421 = vst.msk [vmem:[#allocation2 + $0x140] sm:$0xff] %vm2380, %v2356
      %2422 = vst.msk [vmem:[#allocation2 + $0x148] sm:$0xff] %vm2380, %v2357
      %2423 = vst.msk [vmem:[#allocation2 + $0x150] sm:$0xff] %vm2380, %v2358
      %2424 = vst.msk [vmem:[#allocation2 + $0x158] sm:$0xff] %vm2380, %v2359
      %2425 = vst.msk [vmem:[#allocation2 + $0x160] sm:$0xff] %vm2380, %v2360
      %2426 = vst.msk [vmem:[#allocation2 + $0x168] sm:$0xff] %vm2380, %v2361
      %2427 = vst.msk [vmem:[#allocation2 + $0x170] sm:$0xff] %vm2380, %v2362
      %2428 = vst.msk [vmem:[#allocation2 + $0x178] sm:$0xff] %vm2380, %v2363
      %2429 = vst.msk [vmem:[#allocation2 + $0x180] sm:$0xff] %vm2380, %v2364
      %2430 = vst.msk [vmem:[#allocation2 + $0x188] sm:$0xff] %vm2380, %v2365
      %2431 = vst.msk [vmem:[#allocation2 + $0x190] sm:$0xff] %vm2380, %v2366
      %2432 = vst.msk [vmem:[#allocation2 + $0x198] sm:$0xff] %vm2380, %v2367
      %2433 = vst.msk [vmem:[#allocation2 + $0x1a0] sm:$0xff] %vm2380, %v2368
      %2434 = vst.msk [vmem:[#allocation2 + $0x1a8] sm:$0xff] %vm2380, %v2369
      %2435 = vst.msk [vmem:[#allocation2 + $0x1b0] sm:$0xff] %vm2380, %v2370
      %2436 = vst.msk [vmem:[#allocation2 + $0x1b8] sm:$0xff] %vm2380, %v2371
      %2437 = vst.msk [vmem:[#allocation2 + $0x1c0] sm:$0xff] %vm2380, %v2372
      %2438 = vst.msk [vmem:[#allocation2 + $0x1c8] sm:$0xff] %vm2380, %v2373
      %2439 = vst.msk [vmem:[#allocation2 + $0x1d0] sm:$0xff] %vm2380, %v2374
      %2440 = vst.msk [vmem:[#allocation2 + $0x1d8] sm:$0xff] %vm2380, %v2375
      %2441 = vst.msk [vmem:[#allocation2 + $0x1e0] sm:$0xff] %vm2380, %v2376
      %2442 = vst.msk [vmem:[#allocation2 + $0x1e8] sm:$0xff] %vm2380, %v2377
      %2443 = vst.msk [vmem:[#allocation2 + $0x1f0] sm:$0xff] %vm2380, %v2378
      %2444 = vst.msk [vmem:[#allocation2 + $0x1f8] sm:$0xff] %vm2380, %v2379
      %v2445 = vld [vmem:[#allocation2] ss:$2 sm:$0xff]
      %s2446 = scalar_lea.vmem [#allocation2], 16
      %v2447 = vld [vmem:[%s2446] ss:$2 sm:$0xff]
      %s2448 = scalar_lea.vmem [#allocation2], 32
      %v2449 = vld [vmem:[%s2448] ss:$2 sm:$0xff]
      %s2450 = scalar_lea.vmem [#allocation2], 48
      %v2451 = vld [vmem:[%s2450] ss:$2 sm:$0xff]
      %s2452 = scalar_lea.vmem [#allocation2], 64
      %v2453 = vld [vmem:[%s2452] ss:$2 sm:$0xff]
      %s2454 = scalar_lea.vmem [#allocation2], 80
      %v2455 = vld [vmem:[%s2454] ss:$2 sm:$0xff]
      %s2456 = scalar_lea.vmem [#allocation2], 96
      %v2457 = vld [vmem:[%s2456] ss:$2 sm:$0xff]
      %s2458 = scalar_lea.vmem [#allocation2], 112
      %v2459 = vld [vmem:[%s2458] ss:$2 sm:$0xff]
      %s2460 = scalar_lea.vmem [#allocation2], 128
      %v2461 = vld [vmem:[%s2460] ss:$2 sm:$0xff]
      %s2462 = scalar_lea.vmem [#allocation2], 144
      %v2463 = vld [vmem:[%s2462] ss:$2 sm:$0xff]
      %s2464 = scalar_lea.vmem [#allocation2], 160
      %v2465 = vld [vmem:[%s2464] ss:$2 sm:$0xff]
      %s2466 = scalar_lea.vmem [#allocation2], 176
      %v2467 = vld [vmem:[%s2466] ss:$2 sm:$0xff]
      %s2468 = scalar_lea.vmem [#allocation2], 192
      %v2469 = vld [vmem:[%s2468] ss:$2 sm:$0xff]
      %s2470 = scalar_lea.vmem [#allocation2], 208
      %v2471 = vld [vmem:[%s2470] ss:$2 sm:$0xff]
      %s2472 = scalar_lea.vmem [#allocation2], 224
      %v2473 = vld [vmem:[%s2472] ss:$2 sm:$0xff]
      %s2474 = scalar_lea.vmem [#allocation2], 240
      %v2475 = vld [vmem:[%s2474] ss:$2 sm:$0xff]
      %s2476 = scalar_lea.vmem [#allocation2], 256
      %v2477 = vld [vmem:[%s2476] ss:$2 sm:$0xff]
      %s2478 = scalar_lea.vmem [#allocation2], 272
      %v2479 = vld [vmem:[%s2478] ss:$2 sm:$0xff]
      %s2480 = scalar_lea.vmem [#allocation2], 288
      %v2481 = vld [vmem:[%s2480] ss:$2 sm:$0xff]
      %s2482 = scalar_lea.vmem [#allocation2], 304
      %v2483 = vld [vmem:[%s2482] ss:$2 sm:$0xff]
      %s2484 = scalar_lea.vmem [#allocation2], 320
      %v2485 = vld [vmem:[%s2484] ss:$2 sm:$0xff]
      %s2486 = scalar_lea.vmem [#allocation2], 336
      %v2487 = vld [vmem:[%s2486] ss:$2 sm:$0xff]
      %s2488 = scalar_lea.vmem [#allocation2], 352
      %v2489 = vld [vmem:[%s2488] ss:$2 sm:$0xff]
      %s2490 = scalar_lea.vmem [#allocation2], 368
      %v2491 = vld [vmem:[%s2490] ss:$2 sm:$0xff]
      %s2492 = scalar_lea.vmem [#allocation2], 384
      %v2493 = vld [vmem:[%s2492] ss:$2 sm:$0xff]
      %s2494 = scalar_lea.vmem [#allocation2], 400
      %v2495 = vld [vmem:[%s2494] ss:$2 sm:$0xff]
      %s2496 = scalar_lea.vmem [#allocation2], 416
      %v2497 = vld [vmem:[%s2496] ss:$2 sm:$0xff]
      %s2498 = scalar_lea.vmem [#allocation2], 432
      %v2499 = vld [vmem:[%s2498] ss:$2 sm:$0xff]
      %s2500 = scalar_lea.vmem [#allocation2], 448
      %v2501 = vld [vmem:[%s2500] ss:$2 sm:$0xff]
      %s2502 = scalar_lea.vmem [#allocation2], 464
      %v2503 = vld [vmem:[%s2502] ss:$2 sm:$0xff]
      %s2504 = scalar_lea.vmem [#allocation2], 480
      %v2505 = vld [vmem:[%s2504] ss:$2 sm:$0xff]
      %s2506 = scalar_lea.vmem [#allocation2], 496
      %v2507 = vld [vmem:[%s2506] ss:$2 sm:$0xff]
      %s2508 = scalar_lea.vmem [#allocation2], 1
      %v2509 = vld [vmem:[%s2508] ss:$2 sm:$0xff]
      %s2510 = scalar_lea.vmem [#allocation2], 17
      %v2511 = vld [vmem:[%s2510] ss:$2 sm:$0xff]
      %s2512 = scalar_lea.vmem [#allocation2], 33
      %v2513 = vld [vmem:[%s2512] ss:$2 sm:$0xff]
      %s2514 = scalar_lea.vmem [#allocation2], 49
      %v2515 = vld [vmem:[%s2514] ss:$2 sm:$0xff]
      %s2516 = scalar_lea.vmem [#allocation2], 65
      %v2517 = vld [vmem:[%s2516] ss:$2 sm:$0xff]
      %s2518 = scalar_lea.vmem [#allocation2], 81
      %v2519 = vld [vmem:[%s2518] ss:$2 sm:$0xff]
      %s2520 = scalar_lea.vmem [#allocation2], 97
      %v2521 = vld [vmem:[%s2520] ss:$2 sm:$0xff]
      %s2522 = scalar_lea.vmem [#allocation2], 113
      %v2523 = vld [vmem:[%s2522] ss:$2 sm:$0xff]
      %s2524 = scalar_lea.vmem [#allocation2], 129
      %v2525 = vld [vmem:[%s2524] ss:$2 sm:$0xff]
      %s2526 = scalar_lea.vmem [#allocation2], 145
      %v2527 = vld [vmem:[%s2526] ss:$2 sm:$0xff]
      %s2528 = scalar_lea.vmem [#allocation2], 161
      %v2529 = vld [vmem:[%s2528] ss:$2 sm:$0xff]
      %s2530 = scalar_lea.vmem [#allocation2], 177
      %v2531 = vld [vmem:[%s2530] ss:$2 sm:$0xff]
      %s2532 = scalar_lea.vmem [#allocation2], 193
      %v2533 = vld [vmem:[%s2532] ss:$2 sm:$0xff]
      %s2534 = scalar_lea.vmem [#allocation2], 209
      %v2535 = vld [vmem:[%s2534] ss:$2 sm:$0xff]
      %s2536 = scalar_lea.vmem [#allocation2], 225
      %v2537 = vld [vmem:[%s2536] ss:$2 sm:$0xff]
      %s2538 = scalar_lea.vmem [#allocation2], 241
      %v2539 = vld [vmem:[%s2538] ss:$2 sm:$0xff]
      %s2540 = scalar_lea.vmem [#allocation2], 257
      %v2541 = vld [vmem:[%s2540] ss:$2 sm:$0xff]
      %s2542 = scalar_lea.vmem [#allocation2], 273
      %v2543 = vld [vmem:[%s2542] ss:$2 sm:$0xff]
      %s2544 = scalar_lea.vmem [#allocation2], 289
      %v2545 = vld [vmem:[%s2544] ss:$2 sm:$0xff]
      %s2546 = scalar_lea.vmem [#allocation2], 305
      %v2547 = vld [vmem:[%s2546] ss:$2 sm:$0xff]
      %s2548 = scalar_lea.vmem [#allocation2], 321
      %v2549 = vld [vmem:[%s2548] ss:$2 sm:$0xff]
      %s2550 = scalar_lea.vmem [#allocation2], 337
      %v2551 = vld [vmem:[%s2550] ss:$2 sm:$0xff]
      %s2552 = scalar_lea.vmem [#allocation2], 353
      %v2553 = vld [vmem:[%s2552] ss:$2 sm:$0xff]
      %s2554 = scalar_lea.vmem [#allocation2], 369
      %v2555 = vld [vmem:[%s2554] ss:$2 sm:$0xff]
      %s2556 = scalar_lea.vmem [#allocation2], 385
      %v2557 = vld [vmem:[%s2556] ss:$2 sm:$0xff]
      %s2558 = scalar_lea.vmem [#allocation2], 401
      %v2559 = vld [vmem:[%s2558] ss:$2 sm:$0xff]
      %s2560 = scalar_lea.vmem [#allocation2], 417
      %v2561 = vld [vmem:[%s2560] ss:$2 sm:$0xff]
      %s2562 = scalar_lea.vmem [#allocation2], 433
      %v2563 = vld [vmem:[%s2562] ss:$2 sm:$0xff]
      %s2564 = scalar_lea.vmem [#allocation2], 449
      %v2565 = vld [vmem:[%s2564] ss:$2 sm:$0xff]
      %s2566 = scalar_lea.vmem [#allocation2], 465
      %v2567 = vld [vmem:[%s2566] ss:$2 sm:$0xff]
      %s2568 = scalar_lea.vmem [#allocation2], 481
      %v2569 = vld [vmem:[%s2568] ss:$2 sm:$0xff]
      %s2570 = scalar_lea.vmem [#allocation2], 497
      %v2571 = vld [vmem:[%s2570] ss:$2 sm:$0xff]
      %2604 = vrot.lane.b32.xlu0 %v2509, 64
      %v2605 = vpop.permute.xlu0 %2604
      %2606 = vrot.lane.b32.xlu0 %v2511, 64
      %v2607 = vpop.permute.xlu0 %2606
      %2608 = vrot.lane.b32.xlu0 %v2513, 64
      %v2609 = vpop.permute.xlu0 %2608
      %2610 = vrot.lane.b32.xlu0 %v2515, 64
      %v2611 = vpop.permute.xlu0 %2610
      %2612 = vrot.lane.b32.xlu0 %v2517, 64
      %v2613 = vpop.permute.xlu0 %2612
      %2614 = vrot.lane.b32.xlu0 %v2519, 64
      %v2615 = vpop.permute.xlu0 %2614
      %2616 = vrot.lane.b32.xlu0 %v2521, 64
      %v2617 = vpop.permute.xlu0 %2616
      %2618 = vrot.lane.b32.xlu0 %v2523, 64
      %v2619 = vpop.permute.xlu0 %2618
      %2620 = vrot.lane.b32.xlu0 %v2525, 64
      %v2621 = vpop.permute.xlu0 %2620
      %2622 = vrot.lane.b32.xlu0 %v2527, 64
      %v2623 = vpop.permute.xlu0 %2622
      %2624 = vrot.lane.b32.xlu0 %v2529, 64
      %v2625 = vpop.permute.xlu0 %2624
      %2626 = vrot.lane.b32.xlu0 %v2531, 64
      %v2627 = vpop.permute.xlu0 %2626
      %2628 = vrot.lane.b32.xlu0 %v2533, 64
      %v2629 = vpop.permute.xlu0 %2628
      %2630 = vrot.lane.b32.xlu0 %v2535, 64
      %v2631 = vpop.permute.xlu0 %2630
      %2632 = vrot.lane.b32.xlu0 %v2537, 64
      %v2633 = vpop.permute.xlu0 %2632
      %2634 = vrot.lane.b32.xlu0 %v2539, 64
      %v2635 = vpop.permute.xlu0 %2634
      %2636 = vrot.lane.b32.xlu0 %v2541, 64
      %v2637 = vpop.permute.xlu0 %2636
      %2638 = vrot.lane.b32.xlu0 %v2543, 64
      %v2639 = vpop.permute.xlu0 %2638
      %2640 = vrot.lane.b32.xlu0 %v2545, 64
      %v2641 = vpop.permute.xlu0 %2640
      %2642 = vrot.lane.b32.xlu0 %v2547, 64
      %v2643 = vpop.permute.xlu0 %2642
      %2644 = vrot.lane.b32.xlu0 %v2549, 64
      %v2645 = vpop.permute.xlu0 %2644
      %2646 = vrot.lane.b32.xlu0 %v2551, 64
      %v2647 = vpop.permute.xlu0 %2646
      %2648 = vrot.lane.b32.xlu0 %v2553, 64
      %v2649 = vpop.permute.xlu0 %2648
      %2650 = vrot.lane.b32.xlu0 %v2555, 64
      %v2651 = vpop.permute.xlu0 %2650
      %2652 = vrot.lane.b32.xlu0 %v2557, 64
      %v2653 = vpop.permute.xlu0 %2652
      %2654 = vrot.lane.b32.xlu0 %v2559, 64
      %v2655 = vpop.permute.xlu0 %2654
      %2656 = vrot.lane.b32.xlu0 %v2561, 64
      %v2657 = vpop.permute.xlu0 %2656
      %2658 = vrot.lane.b32.xlu0 %v2563, 64
      %v2659 = vpop.permute.xlu0 %2658
      %2660 = vrot.lane.b32.xlu0 %v2565, 64
      %v2661 = vpop.permute.xlu0 %2660
      %2662 = vrot.lane.b32.xlu0 %v2567, 64
      %v2663 = vpop.permute.xlu0 %2662
      %2664 = vrot.lane.b32.xlu0 %v2569, 64
      %v2665 = vpop.permute.xlu0 %2664
      %2666 = vrot.lane.b32.xlu0 %v2571, 64
      %v2667 = vpop.permute.xlu0 %2666
      %v2700 = vsel %vm2380, %v2445, %v2605
      %v2701 = vsel %vm2380, %v2447, %v2607
      %v2702 = vsel %vm2380, %v2449, %v2609
      %v2703 = vsel %vm2380, %v2451, %v2611
      %v2704 = vsel %vm2380, %v2453, %v2613
      %v2705 = vsel %vm2380, %v2455, %v2615
      %v2706 = vsel %vm2380, %v2457, %v2617
      %v2707 = vsel %vm2380, %v2459, %v2619
      %v2708 = vsel %vm2380, %v2461, %v2621
      %v2709 = vsel %vm2380, %v2463, %v2623
      %v2710 = vsel %vm2380, %v2465, %v2625
      %v2711 = vsel %vm2380, %v2467, %v2627
      %v2712 = vsel %vm2380, %v2469, %v2629
      %v2713 = vsel %vm2380, %v2471, %v2631
      %v2714 = vsel %vm2380, %v2473, %v2633
      %v2715 = vsel %vm2380, %v2475, %v2635
      %v2716 = vsel %vm2380, %v2477, %v2637
      %v2717 = vsel %vm2380, %v2479, %v2639
      %v2718 = vsel %vm2380, %v2481, %v2641
      %v2719 = vsel %vm2380, %v2483, %v2643
      %v2720 = vsel %vm2380, %v2485, %v2645
      %v2721 = vsel %vm2380, %v2487, %v2647
      %v2722 = vsel %vm2380, %v2489, %v2649
      %v2723 = vsel %vm2380, %v2491, %v2651
      %v2724 = vsel %vm2380, %v2493, %v2653
      %v2725 = vsel %vm2380, %v2495, %v2655
      %v2726 = vsel %vm2380, %v2497, %v2657
      %v2727 = vsel %vm2380, %v2499, %v2659
      %v2728 = vsel %vm2380, %v2501, %v2661
      %v2729 = vsel %vm2380, %v2503, %v2663
      %v2730 = vsel %vm2380, %v2505, %v2665
      %v2731 = vsel %vm2380, %v2507, %v2667
      %v2732 = vpack.c.bf16 %v2701, %v2700
      %v2733 = vpack.c.bf16 %v2703, %v2702
      %v2734 = vpack.c.bf16 %v2705, %v2704
      %v2735 = vpack.c.bf16 %v2707, %v2706
      %v2736 = vpack.c.bf16 %v2709, %v2708
      %v2737 = vpack.c.bf16 %v2711, %v2710
      %v2738 = vpack.c.bf16 %v2713, %v2712
      %v2739 = vpack.c.bf16 %v2715, %v2714
      %v2740 = vpack.c.bf16 %v2717, %v2716
      %v2741 = vpack.c.bf16 %v2719, %v2718
      %v2742 = vpack.c.bf16 %v2721, %v2720
      %v2743 = vpack.c.bf16 %v2723, %v2722
      %v2744 = vpack.c.bf16 %v2725, %v2724
      %v2745 = vpack.c.bf16 %v2727, %v2726
      %v2746 = vpack.c.bf16 %v2729, %v2728
      %v2747 = vpack.c.bf16 %v2731, %v2730
      %v2764 = vunpack.c.l.b16 %v2732
      %v2765 = vunpack.c.h.b16 %v2732
      %v2766 = vunpack.c.l.b16 %v2733
      %v2767 = vunpack.c.h.b16 %v2733
      %v2768 = vunpack.c.l.b16 %v2734
      %v2769 = vunpack.c.h.b16 %v2734
      %v2770 = vunpack.c.l.b16 %v2735
      %v2771 = vunpack.c.h.b16 %v2735
      %v2772 = vunpack.c.l.b16 %v2736
      %v2773 = vunpack.c.h.b16 %v2736
      %v2774 = vunpack.c.l.b16 %v2737
      %v2775 = vunpack.c.h.b16 %v2737
      %v2776 = vunpack.c.l.b16 %v2738
      %v2777 = vunpack.c.h.b16 %v2738
      %v2778 = vunpack.c.l.b16 %v2739
      %v2779 = vunpack.c.h.b16 %v2739
      %v2780 = vunpack.c.l.b16 %v2740
      %v2781 = vunpack.c.h.b16 %v2740
      %v2782 = vunpack.c.l.b16 %v2741
      %v2783 = vunpack.c.h.b16 %v2741
      %v2784 = vunpack.c.l.b16 %v2742
      %v2785 = vunpack.c.h.b16 %v2742
      %v2786 = vunpack.c.l.b16 %v2743
      %v2787 = vunpack.c.h.b16 %v2743
      %v2788 = vunpack.c.l.b16 %v2744
      %v2789 = vunpack.c.h.b16 %v2744
      %v2790 = vunpack.c.l.b16 %v2745
      %v2791 = vunpack.c.h.b16 %v2745
      %v2792 = vunpack.c.l.b16 %v2746
      %v2793 = vunpack.c.h.b16 %v2746
      %v2794 = vunpack.c.l.b16 %v2747
      %v2795 = vunpack.c.h.b16 %v2747
      %v2796 = vpack.c.b16 %v2764, %v2764
      %v2797 = vpack.c.b16 %v2765, %v2765
      %v2798 = vpack.c.b16 %v2766, %v2766
      %v2799 = vpack.c.b16 %v2767, %v2767
      %v2800 = vpack.c.b16 %v2768, %v2768
      %v2801 = vpack.c.b16 %v2769, %v2769
      %v2802 = vpack.c.b16 %v2770, %v2770
      %v2803 = vpack.c.b16 %v2771, %v2771
      %v2804 = vpack.c.b16 %v2772, %v2772
      %v2805 = vpack.c.b16 %v2773, %v2773
      %v2806 = vpack.c.b16 %v2774, %v2774
      %v2807 = vpack.c.b16 %v2775, %v2775
      %v2808 = vpack.c.b16 %v2776, %v2776
      %v2809 = vpack.c.b16 %v2777, %v2777
      %v2810 = vpack.c.b16 %v2778, %v2778
      %v2811 = vpack.c.b16 %v2779, %v2779
      %v2812 = vpack.c.b16 %v2780, %v2780
      %v2813 = vpack.c.b16 %v2781, %v2781
      %v2814 = vpack.c.b16 %v2782, %v2782
      %v2815 = vpack.c.b16 %v2783, %v2783
      %v2816 = vpack.c.b16 %v2784, %v2784
      %v2817 = vpack.c.b16 %v2785, %v2785
      %v2818 = vpack.c.b16 %v2786, %v2786
      %v2819 = vpack.c.b16 %v2787, %v2787
      %v2820 = vpack.c.b16 %v2788, %v2788
      %v2821 = vpack.c.b16 %v2789, %v2789
      %v2822 = vpack.c.b16 %v2790, %v2790
      %v2823 = vpack.c.b16 %v2791, %v2791
      %v2824 = vpack.c.b16 %v2792, %v2792
      %v2825 = vpack.c.b16 %v2793, %v2793
      %v2826 = vpack.c.b16 %v2794, %v2794
      %v2827 = vpack.c.b16 %v2795, %v2795
      %2860 = vst [vmem:[%s391] sm:$0xf] %v2796
      %2861 = vst [vmem:[%s391 + $0x4] sm:$0xf] %v2797
      %2862 = vst [vmem:[%s391 + $0x8] sm:$0xf] %v2798
      %2863 = vst [vmem:[%s391 + $0xc] sm:$0xf] %v2799
      %2864 = vst [vmem:[%s391 + $0x10] sm:$0xf] %v2800
      %2865 = vst [vmem:[%s391 + $0x14] sm:$0xf] %v2801
      %2866 = vst [vmem:[%s391 + $0x18] sm:$0xf] %v2802
      %2867 = vst [vmem:[%s391 + $0x1c] sm:$0xf] %v2803
      %2868 = vst [vmem:[%s391 + $0x20] sm:$0xf] %v2804
      %2869 = vst [vmem:[%s391 + $0x24] sm:$0xf] %v2805
      %2870 = vst [vmem:[%s391 + $0x28] sm:$0xf] %v2806
      %2871 = vst [vmem:[%s391 + $0x2c] sm:$0xf] %v2807
      %2872 = vst [vmem:[%s391 + $0x30] sm:$0xf] %v2808
      %2873 = vst [vmem:[%s391 + $0x34] sm:$0xf] %v2809
      %2874 = vst [vmem:[%s391 + $0x38] sm:$0xf] %v2810
      %2875 = vst [vmem:[%s391 + $0x3c] sm:$0xf] %v2811
      %2876 = vst [vmem:[%s391 + $0x40] sm:$0xf] %v2812
      %2877 = vst [vmem:[%s391 + $0x44] sm:$0xf] %v2813
      %2878 = vst [vmem:[%s391 + $0x48] sm:$0xf] %v2814
      %2879 = vst [vmem:[%s391 + $0x4c] sm:$0xf] %v2815
      %2880 = vst [vmem:[%s391 + $0x50] sm:$0xf] %v2816
      %2881 = vst [vmem:[%s391 + $0x54] sm:$0xf] %v2817
      %2882 = vst [vmem:[%s391 + $0x58] sm:$0xf] %v2818
      %2883 = vst [vmem:[%s391 + $0x5c] sm:$0xf] %v2819
      %2884 = vst [vmem:[%s391 + $0x60] sm:$0xf] %v2820
      %2885 = vst [vmem:[%s391 + $0x64] sm:$0xf] %v2821
      %2886 = vst [vmem:[%s391 + $0x68] sm:$0xf] %v2822
      %2887 = vst [vmem:[%s391 + $0x6c] sm:$0xf] %v2823
      %2888 = vst [vmem:[%s391 + $0x70] sm:$0xf] %v2824
      %2889 = vst [vmem:[%s391 + $0x74] sm:$0xf] %v2825
      %2890 = vst [vmem:[%s391 + $0x78] sm:$0xf] %v2826
      %2891 = vst [vmem:[%s391 + $0x7c] sm:$0xf] %v2827
      %s2892 = smul.u32 16, %s21
      %p2893 = scmp.lt.s32.totalorder %s20, 1
      %s2894 = scalar_select %p2893, %s20, 1
      %p2895 = scmp.lt.s32.totalorder %s2892, 31
      %s2896 = scalar_select %p2895, %s2892, 31
      %s2897 = smul.addr %s2896, 2
      %s2898 = smul.addr %s2894, 64
      %s2899 = sadd.s32 %s2897, %s2898
      %s2900 = smul.addr %s2899, 4
      %s2901 = scalar_lea.vmem %s5, %s2900
      // Predicated region
      $region41: #{vgg19_slice1.5} parent=39 // pred_check
        %p2902 = pneg %p190
      $region42: #{vgg19_slice1.5} parent=39 // pred_check_branch
        %2904 = sbr.rel (%p2902) target = $region44
      $region43: #{vgg19_slice1.5} parent=39 // pred_region
        %s2905 = smul.u32 16, %s21
      $region44: #{vgg19_slice1.5} parent=39 // pred_fallthru
        _
    $region40: #{vgg19_slice1.5} parent=5 // pred_fallthru
      _
    %p2906 = scmp.le.s32.totalorder 2, %s11
    // Predicated region
    $region45: #{vgg19_slice1.5} parent=5 // pred_check
      %p2907 = pneg %p2906
    $region46: #{vgg19_slice1.5} parent=5 // pred_check_branch
      %2909 = sbr.rel (%p2907) target = $region48
    $region47: #{vgg19_slice1.5} parent=5 // pred_region
      %s2910 = ssub.s32 %s11, 2
      // Predicated region
      $region49: #{vgg19_slice1.5} parent=47 // pred_check
        %p2911 = pneg %p196
      $region50: #{vgg19_slice1.5} parent=47 // pred_check_branch
        %2913 = sbr.rel (%p2911) target = $region52
      $region51: #{vgg19_slice1.5} parent=47 // pred_region
        %s2914 = smul.u32 16, %s23
        %p2915 = scmp.lt.s32.totalorder %s22, 1
        %s2916 = scalar_select %p2915, %s22, 1
        %p2917 = scmp.lt.s32.totalorder %s2914, 31
        %s2918 = scalar_select %p2917, %s2914, 31
        %s2919 = smul.addr %s2918, 2
        %s2920 = smul.addr %s2916, 64
        %s2921 = sadd.s32 %s2919, %s2920
        %s2922 = smul.addr %s2921, 4
        %s2923 = scalar_lea.vmem %s5, %s2922
      $region52: #{vgg19_slice1.5} parent=47 // pred_fallthru
        _
    $region48: #{vgg19_slice1.5} parent=5 // pred_fallthru
      _
  $region6: #{vgg19_slice1.5} parent=0 // loop_footer
    %s15 = sadd.s32 1, %s11
  $region7: #{vgg19_slice1.5} parent=0 // loop_footer_branch
    %10 = sbr.rel target = $region3
  $region8: #{vgg19_slice1.5} parent=0 // loop_exit
    _

// kernel: vgg19_slice1.6
$region0: #{vgg19_slice1.6}
  #allocation0 [shape = 'u32[]', space=smem, size = 0x4, offset = 0x4, fixed_abs, tag = 'smem constant byte address 0x4 - core index']
  #allocation1 [shape = 'u32[144,128]{1,0:T(1,128)}', space=vmem, size = 0x12000, scoped, tag = 'internal scratch']
  #allocation2 [shape = 'f32[8,32,64]{2,1,0:T(8,128)}', space=vmem, size = 0x20000, scoped, tag = 'scratch operand']
  %s0 = inlined_call_operand.vmem [shape: bf16[2,32,32,64], index: 0, kind: input, shape index: {}, may-alias: {0,1,2}]
  %s1 = inlined_call_operand.vmem [shape: bf16[2,32,32,64], index: 1, kind: input, shape index: {}, may-alias: {0,1,2}]
  %s2 = inlined_call_operand.vmem [shape: bf16[2,32,32,64], index: 2, kind: input, shape index: {}, may-alias: {0,1,2}]
  %s3 = inlined_call_operand.vmem [shape: bf16[576,64], index: 3, kind: input, shape index: {}]
  %s4 = inlined_call_operand.vmem [shape: f32[1,64], index: 4, kind: input, shape index: {}]
  %s5 = inlined_call_operand.vmem [shape: bf16[2,16,8,128], index: 5, kind: output, shape index: {}]
  %s6 = sld [smem:[#allocation0]]
  $region53: #{vgg19_slice1.6} parent=0
    _
  %s8 = ssub.s32 1, %s6
  %s9 = scalar_select 0, %s8, %s6
  loop: start=0, step=1, limit=6
  $region2: #{vgg19_slice1.6} parent=0 // loop_pre_header
    _
  $region3: #{vgg19_slice1.6} parent=0 // loop_header
    %s11 = sphi 0, %s15
    %p12 = scmp.ge.s32.totalorder %s11, 6
    %s18 = sphi 0, %s30
    %s19 = sphi 0, %s26
    %s20 = sphi 0, %s18
    %s21 = sphi 0, %s19
    %s22 = sphi 0, %s20
    %s23 = sphi 0, %s21
    %s35 = sphi 0, %s37
    %s38 = sphi 0, %s35
    %s39 = sphi 0, %s38
    %s55 = sphi 0, %s39
    %s71 = sphi 0, %s73
    %s74 = sphi 0, %s71
    %s75 = sphi 0, %s74
    %s91 = sphi 0, %s75
    %s107 = sphi 0, %s109
    %s110 = sphi 0, %s107
    %s111 = sphi 0, %s110
    %s127 = sphi 0, %s111
    %s131 = sphi 0, %s131
    %s133 = sphi 0, %s131
    %s134 = sphi 0, %s133
    %s148 = sphi 0, %s134
    %s152 = sphi 0, %s152
    %s154 = sphi 0, %s152
    %s155 = sphi 0, %s154
    %s169 = sphi 0, %s155
    %s177 = sphi 0, %s179
    %s180 = sphi 0, %s177
    %s181 = sphi 0, %s180
    %s197 = sphi 0, %s181
  $region4: #{vgg19_slice1.6} parent=0 // loop_header_branch
    %14 = sbr.rel (%p12) target = $region8
  $region5: #{vgg19_slice1.6} parent=0 // loop_body
    %s16 = ssub.s32 %s11, 1
    %s17 = ssub.s32 %s11, 2
    %s24 = sadd.s32 1, %s19
    %p25 = scmp.ge.s32.totalorder %s24, 2
    %s26 = scalar_select %p25, 0, %s24
    %s27 = sadd.s32 1, %s18
    %s28 = scalar_select %p25, %s27, %s18
    %p29 = scmp.ge.s32.totalorder %s28, 2
    %s30 = scalar_select %p29, 0, %s28
    %s31 = ssub.s32 %s18, %s30
    %s32 = ssub.s32 %s19, %s26
    %s33 = sor.u32 %s31, %s32
    %p34 = scmp.eq.s32.totalorder %s33, 0
    %s36 = sadd.s32 %s35, 1
    %s37 = scalar_select %p34, %s35, %s36
    %p40 = pneg %p34
    %p41 = scmp.eq.s32.totalorder %s11, 3
    %p42 = por %p40, %p41
    %p43 = scmp.ne.s32.totalorder %s35, %s38
    %p44 = scmp.eq.s32.totalorder %s11, 0
    %p45 = por %p43, %p44
    %p46 = scmp.ne.s32.totalorder %s35, %s38
    %p47 = scmp.eq.s32.totalorder %s16, 3
    %p48 = por %p46, %p47
    %p49 = scmp.ne.s32.totalorder %s38, %s39
    %p50 = scmp.eq.s32.totalorder %s16, 0
    %p51 = por %p49, %p50
    %p52 = scmp.ne.s32.totalorder %s38, %s39
    %p53 = scmp.eq.s32.totalorder %s17, 3
    %p54 = por %p52, %p53
    %p56 = scmp.ne.s32.totalorder %s39, %s55
    %p57 = scmp.eq.s32.totalorder %s17, 0
    %p58 = por %p56, %p57
    %s59 = smul.u32 %s19, 16
    %s60 = ssub.s32 %s59, 1
    %p61 = scmp.gt.s32.totalorder %s60, 0
    %s62 = scalar_select %p61, %s60, 0
    %s63 = smul.u32 %s26, 16
    %s64 = ssub.s32 %s63, 1
    %p65 = scmp.gt.s32.totalorder %s64, 0
    %s66 = scalar_select %p65, %s64, 0
    %s67 = ssub.s32 %s18, %s30
    %s68 = ssub.s32 %s62, %s66
    %s69 = sor.u32 %s67, %s68
    %p70 = scmp.eq.s32.totalorder %s69, 0
    %s72 = sadd.s32 %s71, 1
    %s73 = scalar_select %p70, %s71, %s72
    %p76 = pneg %p70
    %p77 = scmp.eq.s32.totalorder %s11, 3
    %p78 = por %p76, %p77
    %p79 = scmp.ne.s32.totalorder %s71, %s74
    %p80 = scmp.eq.s32.totalorder %s11, 0
    %p81 = por %p79, %p80
    %p82 = scmp.ne.s32.totalorder %s71, %s74
    %p83 = scmp.eq.s32.totalorder %s16, 3
    %p84 = por %p82, %p83
    %p85 = scmp.ne.s32.totalorder %s74, %s75
    %p86 = scmp.eq.s32.totalorder %s16, 0
    %p87 = por %p85, %p86
    %p88 = scmp.ne.s32.totalorder %s74, %s75
    %p89 = scmp.eq.s32.totalorder %s17, 3
    %p90 = por %p88, %p89
    %p92 = scmp.ne.s32.totalorder %s75, %s91
    %p93 = scmp.eq.s32.totalorder %s17, 0
    %p94 = por %p92, %p93
    %s95 = smul.u32 %s19, 16
    %s96 = sadd.s32 %s95, 16
    %p97 = scmp.lt.s32.totalorder %s96, 31
    %s98 = scalar_select %p97, %s96, 31
    %s99 = smul.u32 %s26, 16
    %s100 = sadd.s32 %s99, 16
    %p101 = scmp.lt.s32.totalorder %s100, 31
    %s102 = scalar_select %p101, %s100, 31
    %s103 = ssub.s32 %s18, %s30
    %s104 = ssub.s32 %s98, %s102
    %s105 = sor.u32 %s103, %s104
    %p106 = scmp.eq.s32.totalorder %s105, 0
    %s108 = sadd.s32 %s107, 1
    %s109 = scalar_select %p106, %s107, %s108
    %p112 = pneg %p106
    %p113 = scmp.eq.s32.totalorder %s11, 3
    %p114 = por %p112, %p113
    %p115 = scmp.ne.s32.totalorder %s107, %s110
    %p116 = scmp.eq.s32.totalorder %s11, 0
    %p117 = por %p115, %p116
    %p118 = scmp.ne.s32.totalorder %s107, %s110
    %p119 = scmp.eq.s32.totalorder %s16, 3
    %p120 = por %p118, %p119
    %p121 = scmp.ne.s32.totalorder %s110, %s111
    %p122 = scmp.eq.s32.totalorder %s16, 0
    %p123 = por %p121, %p122
    %p124 = scmp.ne.s32.totalorder %s110, %s111
    %p125 = scmp.eq.s32.totalorder %s17, 3
    %p126 = por %p124, %p125
    %p128 = scmp.ne.s32.totalorder %s111, %s127
    %p129 = scmp.eq.s32.totalorder %s17, 0
    %p130 = por %p128, %p129
    %s132 = sadd.s32 %s131, 1
    %p135 = scmp.eq.s32.totalorder %s11, 3
    %p136 = scmp.ne.s32.totalorder %s131, %s133
    %p137 = scmp.eq.s32.totalorder %s11, 0
    %p138 = por %p136, %p137
    %p139 = scmp.ne.s32.totalorder %s131, %s133
    %p140 = scmp.eq.s32.totalorder %s16, 3
    %p141 = por %p139, %p140
    %p142 = scmp.ne.s32.totalorder %s133, %s134
    %p143 = scmp.eq.s32.totalorder %s16, 0
    %p144 = por %p142, %p143
    %p145 = scmp.ne.s32.totalorder %s133, %s134
    %p146 = scmp.eq.s32.totalorder %s17, 3
    %p147 = por %p145, %p146
    %p149 = scmp.ne.s32.totalorder %s134, %s148
    %p150 = scmp.eq.s32.totalorder %s17, 0
    %p151 = por %p149, %p150
    %s153 = sadd.s32 %s152, 1
    %p156 = scmp.eq.s32.totalorder %s11, 3
    %p157 = scmp.ne.s32.totalorder %s152, %s154
    %p158 = scmp.eq.s32.totalorder %s11, 0
    %p159 = por %p157, %p158
    %p160 = scmp.ne.s32.totalorder %s152, %s154
    %p161 = scmp.eq.s32.totalorder %s16, 3
    %p162 = por %p160, %p161
    %p163 = scmp.ne.s32.totalorder %s154, %s155
    %p164 = scmp.eq.s32.totalorder %s16, 0
    %p165 = por %p163, %p164
    %p166 = scmp.ne.s32.totalorder %s154, %s155
    %p167 = scmp.eq.s32.totalorder %s17, 3
    %p168 = por %p166, %p167
    %p170 = scmp.ne.s32.totalorder %s155, %s169
    %p171 = scmp.eq.s32.totalorder %s17, 0
    %p172 = por %p170, %p171
    %s173 = ssub.s32 %s18, %s30
    %s174 = ssub.s32 %s19, %s26
    %s175 = sor.u32 %s173, %s174
    %p176 = scmp.eq.s32.totalorder %s175, 0
    %s178 = sadd.s32 %s177, 1
    %s179 = scalar_select %p176, %s177, %s178
    %p182 = pneg %p176
    %p183 = scmp.eq.s32.totalorder %s11, 3
    %p184 = por %p182, %p183
    %p185 = scmp.ne.s32.totalorder %s177, %s180
    %p186 = scmp.eq.s32.totalorder %s11, 0
    %p187 = por %p185, %p186
    %p188 = scmp.ne.s32.totalorder %s177, %s180
    %p189 = scmp.eq.s32.totalorder %s16, 3
    %p190 = por %p188, %p189
    %p191 = scmp.ne.s32.totalorder %s180, %s181
    %p192 = scmp.eq.s32.totalorder %s16, 0
    %p193 = por %p191, %p192
    %p194 = scmp.ne.s32.totalorder %s180, %s181
    %p195 = scmp.eq.s32.totalorder %s17, 3
    %p196 = por %p194, %p195
    %p198 = scmp.ne.s32.totalorder %s181, %s197
    %p199 = scmp.eq.s32.totalorder %s17, 0
    %p200 = por %p198, %p199
    %p201 = scmp.le.s32.totalorder 1, %s11
    %p202 = scmp.lt.s32.totalorder %s11, 5
    %p203 = pnand %p201, %p202
    %p204 = pneg %p203
    // Predicated region
    $region9: #{vgg19_slice1.6} parent=5 // pred_check
      _
    $region10: #{vgg19_slice1.6} parent=5 // pred_check_branch
      %206 = sbr.rel (%p203) target = $region12
    $region11: #{vgg19_slice1.6} parent=5 // pred_region
      %s207 = ssub.s32 %s11, 1
      // Predicated region
      $region13: #{vgg19_slice1.6} parent=11 // pred_check
        %p208 = pneg %p144
      $region14: #{vgg19_slice1.6} parent=11 // pred_check_branch
        %210 = sbr.rel (%p208) target = $region16
      $region15: #{vgg19_slice1.6} parent=11 // pred_region
        _
      $region16: #{vgg19_slice1.6} parent=11 // pred_fallthru
        _
      // Predicated region
      $region17: #{vgg19_slice1.6} parent=11 // pred_check
        %p211 = pneg %p165
      $region18: #{vgg19_slice1.6} parent=11 // pred_check_branch
        %213 = sbr.rel (%p211) target = $region20
      $region19: #{vgg19_slice1.6} parent=11 // pred_region
        _
      $region20: #{vgg19_slice1.6} parent=11 // pred_fallthru
        _
    $region12: #{vgg19_slice1.6} parent=5 // pred_fallthru
      _
    %p214 = scmp.lt.s32.totalorder %s11, 4
    // Predicated region
    $region21: #{vgg19_slice1.6} parent=5 // pred_check
      %p215 = pneg %p214
    $region22: #{vgg19_slice1.6} parent=5 // pred_check_branch
      %217 = sbr.rel (%p215) target = $region24
    $region23: #{vgg19_slice1.6} parent=5 // pred_region
      // Predicated region
      $region25: #{vgg19_slice1.6} parent=23 // pred_check
        %p218 = pneg %p45
      $region26: #{vgg19_slice1.6} parent=23 // pred_check_branch
        %220 = sbr.rel (%p218) target = $region28
      $region27: #{vgg19_slice1.6} parent=23 // pred_region
        %s221 = smul.u32 16, %s19
        %p222 = scmp.lt.s32.totalorder %s18, 1
        %s223 = scalar_select %p222, %s18, 1
        %p224 = scmp.lt.s32.totalorder %s221, 31
        %s225 = scalar_select %p224, %s221, 31
        %s226 = smul.addr %s225, 4
        %s227 = smul.addr %s223, 128
        %s228 = sadd.s32 %s226, %s227
        %s229 = smul.addr %s228, 4
        %s230 = scalar_lea.vmem %s0, %s229
        %s231 = smul.u32 16, %s19
      $region28: #{vgg19_slice1.6} parent=23 // pred_fallthru
        _
      // Predicated region
      $region29: #{vgg19_slice1.6} parent=23 // pred_check
        %p232 = pneg %p81
      $region30: #{vgg19_slice1.6} parent=23 // pred_check_branch
        %234 = sbr.rel (%p232) target = $region32
      $region31: #{vgg19_slice1.6} parent=23 // pred_region
        %s235 = smul.u32 %s19, 16
        %s236 = ssub.s32 %s235, 1
        %p237 = scmp.gt.s32.totalorder %s236, 0
        %s238 = scalar_select %p237, %s236, 0
        %p239 = scmp.lt.s32.totalorder %s18, 1
        %s240 = scalar_select %p239, %s18, 1
        %p241 = scmp.lt.s32.totalorder %s238, 31
        %s242 = scalar_select %p241, %s238, 31
        %s243 = smul.addr %s242, 4
        %s244 = smul.addr %s240, 128
        %s245 = sadd.s32 %s243, %s244
        %s246 = smul.addr %s245, 4
        %s247 = scalar_lea.vmem %s1, %s246
        %s248 = smul.u32 %s19, 16
        %s249 = ssub.s32 %s248, 1
        %p250 = scmp.gt.s32.totalorder %s249, 0
        %s251 = scalar_select %p250, %s249, 0
      $region32: #{vgg19_slice1.6} parent=23 // pred_fallthru
        _
      // Predicated region
      $region33: #{vgg19_slice1.6} parent=23 // pred_check
        %p252 = pneg %p117
      $region34: #{vgg19_slice1.6} parent=23 // pred_check_branch
        %254 = sbr.rel (%p252) target = $region36
      $region35: #{vgg19_slice1.6} parent=23 // pred_region
        %s255 = smul.u32 %s19, 16
        %s256 = sadd.s32 %s255, 16
        %p257 = scmp.lt.s32.totalorder %s256, 31
        %s258 = scalar_select %p257, %s256, 31
        %p259 = scmp.lt.s32.totalorder %s18, 1
        %s260 = scalar_select %p259, %s18, 1
        %p261 = scmp.lt.s32.totalorder %s258, 31
        %s262 = scalar_select %p261, %s258, 31
        %s263 = smul.addr %s262, 4
        %s264 = smul.addr %s260, 128
        %s265 = sadd.s32 %s263, %s264
        %s266 = smul.addr %s265, 4
        %s267 = scalar_lea.vmem %s2, %s266
        %s268 = smul.u32 %s19, 16
        %s269 = sadd.s32 %s268, 16
        %p270 = scmp.lt.s32.totalorder %s269, 31
        %s271 = scalar_select %p270, %s269, 31
      $region36: #{vgg19_slice1.6} parent=23 // pred_fallthru
        _
    $region24: #{vgg19_slice1.6} parent=5 // pred_fallthru
      _
    %p272 = scmp.le.s32.totalorder 1, %s11
    %p273 = scmp.lt.s32.totalorder %s11, 5
    %p274 = pnand %p272, %p273
    %p275 = pneg %p274
    // Predicated region
    $region37: #{vgg19_slice1.6} parent=5 // pred_check
      _
    $region38: #{vgg19_slice1.6} parent=5 // pred_check_branch
      %277 = sbr.rel (%p274) target = $region40
    $region39: #{vgg19_slice1.6} parent=5 // pred_region
      %s278 = ssub.s32 %s11, 1
      %s279 = smul.u32 16, %s21
      %p280 = scmp.lt.s32.totalorder %s20, 1
      %s281 = scalar_select %p280, %s20, 1
      %p282 = scmp.lt.s32.totalorder %s279, 31
      %s283 = scalar_select %p282, %s279, 31
      %s284 = smul.addr %s283, 4
      %s285 = smul.addr %s281, 128
      %s286 = sadd.s32 %s284, %s285
      %s287 = smul.addr %s286, 4
      %s288 = scalar_lea.vmem %s0, %s287
      %p289 = pneg %p51
      %p290 = pneg %p48
      %s291 = smul.u32 %s21, 16
      %s292 = ssub.s32 %s291, 1
      %p293 = scmp.gt.s32.totalorder %s292, 0
      %s294 = scalar_select %p293, %s292, 0
      %p295 = scmp.lt.s32.totalorder %s20, 1
      %s296 = scalar_select %p295, %s20, 1
      %p297 = scmp.lt.s32.totalorder %s294, 31
      %s298 = scalar_select %p297, %s294, 31
      %s299 = smul.addr %s298, 4
      %s300 = smul.addr %s296, 128
      %s301 = sadd.s32 %s299, %s300
      %s302 = smul.addr %s301, 4
      %s303 = scalar_lea.vmem %s1, %s302
      %p304 = pneg %p87
      %p305 = pneg %p84
      %s306 = smul.u32 %s21, 16
      %s307 = sadd.s32 %s306, 16
      %p308 = scmp.lt.s32.totalorder %s307, 31
      %s309 = scalar_select %p308, %s307, 31
      %p310 = scmp.lt.s32.totalorder %s20, 1
      %s311 = scalar_select %p310, %s20, 1
      %p312 = scmp.lt.s32.totalorder %s309, 31
      %s313 = scalar_select %p312, %s309, 31
      %s314 = smul.addr %s313, 4
      %s315 = smul.addr %s311, 128
      %s316 = sadd.s32 %s314, %s315
      %s317 = smul.addr %s316, 4
      %s318 = scalar_lea.vmem %s2, %s317
      %p319 = pneg %p123
      %p320 = pneg %p120
      %p321 = pneg %p144
      %p322 = pneg %p141
      %p323 = pneg %p165
      %p324 = pneg %p162
      %p325 = pneg %p193
      %p326 = pneg %p190
      %s327 = smul.u32 8, %s21
      %p328 = scmp.lt.s32.totalorder %s20, 1
      %s329 = scalar_select %p328, %s20, 1
      %p330 = scmp.lt.s32.totalorder %s327, 15
      %s331 = scalar_select %p330, %s327, 15
      %s332 = smul.addr %s329, 16
      %s333 = sadd.s32 %s331, %s332
      %s334 = smul.addr %s333, 4
      %s335 = scalar_lea.vmem %s5, %s334
      %s336 = smul.u32 16, %s21
      %p337 = scmp.lt.s32.totalorder %s20, 1
      %s338 = scalar_select %p337, %s20, 1
      %p339 = scmp.lt.s32.totalorder %s336, 31
      %s340 = scalar_select %p339, %s336, 31
      %s341 = smul.addr %s340, 4
      %s342 = smul.addr %s338, 128
      %s343 = sadd.s32 %s341, %s342
      %s344 = smul.addr %s343, 4
      %s345 = scalar_lea.vmem %s0, %s344
      %s346 = smul.u32 16, %s21
      %s347 = smul.u32 %s21, 16
      %s348 = ssub.s32 %s347, 1
      %p349 = scmp.gt.s32.totalorder %s348, 0
      %s350 = scalar_select %p349, %s348, 0
      %p351 = scmp.lt.s32.totalorder %s20, 1
      %s352 = scalar_select %p351, %s20, 1
      %p353 = scmp.lt.s32.totalorder %s350, 31
      %s354 = scalar_select %p353, %s350, 31
      %s355 = smul.addr %s354, 4
      %s356 = smul.addr %s352, 128
      %s357 = sadd.s32 %s355, %s356
      %s358 = smul.addr %s357, 4
      %s359 = scalar_lea.vmem %s1, %s358
      %s360 = smul.u32 %s21, 16
      %s361 = ssub.s32 %s360, 1
      %p362 = scmp.gt.s32.totalorder %s361, 0
      %s363 = scalar_select %p362, %s361, 0
      %s364 = smul.u32 %s21, 16
      %s365 = sadd.s32 %s364, 16
      %p366 = scmp.lt.s32.totalorder %s365, 31
      %s367 = scalar_select %p366, %s365, 31
      %p368 = scmp.lt.s32.totalorder %s20, 1
      %s369 = scalar_select %p368, %s20, 1
      %p370 = scmp.lt.s32.totalorder %s367, 31
      %s371 = scalar_select %p370, %s367, 31
      %s372 = smul.addr %s371, 4
      %s373 = smul.addr %s369, 128
      %s374 = sadd.s32 %s372, %s373
      %s375 = smul.addr %s374, 4
      %s376 = scalar_lea.vmem %s2, %s375
      %s377 = smul.u32 %s21, 16
      %s378 = sadd.s32 %s377, 16
      %p379 = scmp.lt.s32.totalorder %s378, 31
      %s380 = scalar_select %p379, %s378, 31
      %s381 = smul.u32 8, %s21
      %p382 = scmp.lt.s32.totalorder %s20, 1
      %s383 = scalar_select %p382, %s20, 1
      %p384 = scmp.lt.s32.totalorder %s381, 15
      %s385 = scalar_select %p384, %s381, 15
      %s386 = smul.addr %s383, 16
      %s387 = sadd.s32 %s385, %s386
      %s388 = smul.addr %s387, 4
      %s389 = scalar_lea.vmem %s5, %s388
      %s390 = smul.u32 8, %s21
      %v392 = vld [vmem:[%s345] sm:$0xf]
      %v393 = vld [vmem:[%s345 + $0x4] sm:$0xf]
      %v394 = vld [vmem:[%s345 + $0x8] sm:$0xf]
      %v395 = vld [vmem:[%s345 + $0xc] sm:$0xf]
      %v396 = vld [vmem:[%s345 + $0x10] sm:$0xf]
      %v397 = vld [vmem:[%s345 + $0x14] sm:$0xf]
      %v398 = vld [vmem:[%s345 + $0x18] sm:$0xf]
      %v399 = vld [vmem:[%s345 + $0x1c] sm:$0xf]
      %v400 = vld [vmem:[%s345 + $0x20] sm:$0xf]
      %v401 = vld [vmem:[%s345 + $0x24] sm:$0xf]
      %v402 = vld [vmem:[%s345 + $0x28] sm:$0xf]
      %v403 = vld [vmem:[%s345 + $0x2c] sm:$0xf]
      %v404 = vld [vmem:[%s345 + $0x30] sm:$0xf]
      %v405 = vld [vmem:[%s345 + $0x34] sm:$0xf]
      %v406 = vld [vmem:[%s345 + $0x38] sm:$0xf]
      %v407 = vld [vmem:[%s345 + $0x3c] sm:$0xf]
      %v408 = vld [vmem:[%s345 + $0x40] sm:$0xf]
      %v409 = vld [vmem:[%s345 + $0x44] sm:$0xf]
      %v410 = vld [vmem:[%s345 + $0x48] sm:$0xf]
      %v411 = vld [vmem:[%s345 + $0x4c] sm:$0xf]
      %v412 = vld [vmem:[%s345 + $0x50] sm:$0xf]
      %v413 = vld [vmem:[%s345 + $0x54] sm:$0xf]
      %v414 = vld [vmem:[%s345 + $0x58] sm:$0xf]
      %v415 = vld [vmem:[%s345 + $0x5c] sm:$0xf]
      %v416 = vld [vmem:[%s345 + $0x60] sm:$0xf]
      %v417 = vld [vmem:[%s345 + $0x64] sm:$0xf]
      %v418 = vld [vmem:[%s345 + $0x68] sm:$0xf]
      %v419 = vld [vmem:[%s345 + $0x6c] sm:$0xf]
      %v420 = vld [vmem:[%s345 + $0x70] sm:$0xf]
      %v421 = vld [vmem:[%s345 + $0x74] sm:$0xf]
      %v422 = vld [vmem:[%s345 + $0x78] sm:$0xf]
      %v423 = vld [vmem:[%s345 + $0x7c] sm:$0xf]
      %v424 = vld [vmem:[%s345 + $0x80] sm:$0xf]
      %v425 = vld [vmem:[%s345 + $0x84] sm:$0xf]
      %v426 = vld [vmem:[%s345 + $0x88] sm:$0xf]
      %v427 = vld [vmem:[%s345 + $0x8c] sm:$0xf]
      %v428 = vld [vmem:[%s345 + $0x90] sm:$0xf]
      %v429 = vld [vmem:[%s345 + $0x94] sm:$0xf]
      %v430 = vld [vmem:[%s345 + $0x98] sm:$0xf]
      %v431 = vld [vmem:[%s345 + $0x9c] sm:$0xf]
      %v432 = vld [vmem:[%s345 + $0xa0] sm:$0xf]
      %v433 = vld [vmem:[%s345 + $0xa4] sm:$0xf]
      %v434 = vld [vmem:[%s345 + $0xa8] sm:$0xf]
      %v435 = vld [vmem:[%s345 + $0xac] sm:$0xf]
      %v436 = vld [vmem:[%s345 + $0xb0] sm:$0xf]
      %v437 = vld [vmem:[%s345 + $0xb4] sm:$0xf]
      %v438 = vld [vmem:[%s345 + $0xb8] sm:$0xf]
      %v439 = vld [vmem:[%s345 + $0xbc] sm:$0xf]
      %v440 = vld [vmem:[%s345 + $0xc0] sm:$0xf]
      %v441 = vld [vmem:[%s345 + $0xc4] sm:$0xf]
      %v442 = vld [vmem:[%s345 + $0xc8] sm:$0xf]
      %v443 = vld [vmem:[%s345 + $0xcc] sm:$0xf]
      %v444 = vld [vmem:[%s345 + $0xd0] sm:$0xf]
      %v445 = vld [vmem:[%s345 + $0xd4] sm:$0xf]
      %v446 = vld [vmem:[%s345 + $0xd8] sm:$0xf]
      %v447 = vld [vmem:[%s345 + $0xdc] sm:$0xf]
      %v448 = vld [vmem:[%s345 + $0xe0] sm:$0xf]
      %v449 = vld [vmem:[%s345 + $0xe4] sm:$0xf]
      %v450 = vld [vmem:[%s345 + $0xe8] sm:$0xf]
      %v451 = vld [vmem:[%s345 + $0xec] sm:$0xf]
      %v452 = vld [vmem:[%s345 + $0xf0] sm:$0xf]
      %v453 = vld [vmem:[%s345 + $0xf4] sm:$0xf]
      %v454 = vld [vmem:[%s345 + $0xf8] sm:$0xf]
      %v455 = vld [vmem:[%s345 + $0xfc] sm:$0xf]
      %v456 = vld [vmem:[%s359] sm:$0xf]
      %v457 = vld [vmem:[%s359 + $0x4] sm:$0xf]
      %v458 = vld [vmem:[%s359 + $0x8] sm:$0xf]
      %v459 = vld [vmem:[%s359 + $0xc] sm:$0xf]
      %v460 = vld [vmem:[%s376] sm:$0xf]
      %v461 = vld [vmem:[%s376 + $0x4] sm:$0xf]
      %v462 = vld [vmem:[%s376 + $0x8] sm:$0xf]
      %v463 = vld [vmem:[%s376 + $0xc] sm:$0xf]
      %p464 = scmp.gt.s32.totalorder %s21, 0
      %s465 = scalar_select %p464, 1, 0
      %s466 = scvt.s32.f32 %s465
      %p468 = scmp.ne.f32.partialorder %s466, %s466
      %s469 = sshrl.u32 %s466, 16
      %s470 = sand.u32 %s469, 1
      %s471 = sadd.s32 32767, %s470
      %s472 = sadd.s32 %s466, %s471
      %s473 = sand.u32 %s472, 4294901760
      %s474 = scalar_select %p468, 2143289344, %s473
      %s476 = sshrl.u32 %s474, 16
      %p477 = scmp.lt.s32.totalorder %s21, 1
      %s478 = scalar_select %p477, 1, 0
      %s479 = scvt.s32.f32 %s478
      %p481 = scmp.ne.f32.partialorder %s479, %s479
      %s482 = sshrl.u32 %s479, 16
      %s483 = sand.u32 %s482, 1
      %s484 = sadd.s32 32767, %s483
      %s485 = sadd.s32 %s479, %s484
      %s486 = sand.u32 %s485, 4294901760
      %s487 = scalar_select %p481, 2143289344, %s486
      %s489 = sshrl.u32 %s487, 16
      %s490 = sshll.u32 %s476, 16
      %s491 = sor.u32 %s476, %s490
      %v492 = vstv %s491
      %v494 = vmul.bf16 %v456, %v492
      %v495 = vmul.bf16 %v457, %v492
      %v496 = vmul.bf16 %v458, %v492
      %v497 = vmul.bf16 %v459, %v492
      %s498 = sshll.u32 %s489, 16
      %s499 = sor.u32 %s489, %s498
      %v500 = vstv %s499
      %v502 = vmul.bf16 %v460, %v500
      %v503 = vmul.bf16 %v461, %v500
      %v504 = vmul.bf16 %v462, %v500
      %v505 = vmul.bf16 %v463, %v500
      %v506 = vunpack.c.l.bf16 %v494
      %v507 = vunpack.c.l.bf16 %v495
      %v508 = vunpack.c.l.bf16 %v496
      %v509 = vunpack.c.l.bf16 %v497
      %v510 = vunpack.c.l.bf16 %v392
      %v511 = vunpack.c.l.bf16 %v393
      %v512 = vunpack.c.l.bf16 %v394
      %v513 = vunpack.c.l.bf16 %v395
      %v514 = vunpack.c.l.bf16 %v396
      %v515 = vunpack.c.l.bf16 %v397
      %v516 = vunpack.c.l.bf16 %v398
      %v517 = vunpack.c.l.bf16 %v399
      %v518 = vunpack.c.l.bf16 %v400
      %v519 = vunpack.c.l.bf16 %v401
      %v520 = vunpack.c.l.bf16 %v402
      %v521 = vunpack.c.l.bf16 %v403
      %v522 = vunpack.c.l.bf16 %v404
      %v523 = vunpack.c.l.bf16 %v405
      %v524 = vunpack.c.l.bf16 %v406
      %v525 = vunpack.c.l.bf16 %v407
      %v526 = vunpack.c.l.bf16 %v408
      %v527 = vunpack.c.l.bf16 %v409
      %v528 = vunpack.c.l.bf16 %v410
      %v529 = vunpack.c.l.bf16 %v411
      %v530 = vunpack.c.l.bf16 %v412
      %v531 = vunpack.c.l.bf16 %v413
      %v532 = vunpack.c.l.bf16 %v414
      %v533 = vunpack.c.l.bf16 %v415
      %v534 = vunpack.c.l.bf16 %v416
      %v535 = vunpack.c.l.bf16 %v417
      %v536 = vunpack.c.l.bf16 %v418
      %v537 = vunpack.c.l.bf16 %v419
      %v538 = vunpack.c.l.bf16 %v420
      %v539 = vunpack.c.l.bf16 %v421
      %v540 = vunpack.c.l.bf16 %v422
      %v541 = vunpack.c.l.bf16 %v423
      %v542 = vunpack.c.l.bf16 %v424
      %v543 = vunpack.c.l.bf16 %v425
      %v544 = vunpack.c.l.bf16 %v426
      %v545 = vunpack.c.l.bf16 %v427
      %v546 = vunpack.c.l.bf16 %v428
      %v547 = vunpack.c.l.bf16 %v429
      %v548 = vunpack.c.l.bf16 %v430
      %v549 = vunpack.c.l.bf16 %v431
      %v550 = vunpack.c.l.bf16 %v432
      %v551 = vunpack.c.l.bf16 %v433
      %v552 = vunpack.c.l.bf16 %v434
      %v553 = vunpack.c.l.bf16 %v435
      %v554 = vunpack.c.l.bf16 %v436
      %v555 = vunpack.c.l.bf16 %v437
      %v556 = vunpack.c.l.bf16 %v438
      %v557 = vunpack.c.l.bf16 %v439
      %v558 = vunpack.c.l.bf16 %v440
      %v559 = vunpack.c.l.bf16 %v441
      %v560 = vunpack.c.l.bf16 %v442
      %v561 = vunpack.c.l.bf16 %v443
      %v562 = vunpack.c.l.bf16 %v444
      %v563 = vunpack.c.l.bf16 %v445
      %v564 = vunpack.c.l.bf16 %v446
      %v565 = vunpack.c.l.bf16 %v447
      %v566 = vunpack.c.l.bf16 %v448
      %v567 = vunpack.c.l.bf16 %v449
      %v568 = vunpack.c.l.bf16 %v450
      %v569 = vunpack.c.l.bf16 %v451
      %v570 = vunpack.c.l.bf16 %v452
      %v571 = vunpack.c.l.bf16 %v453
      %v572 = vunpack.c.l.bf16 %v454
      %v573 = vunpack.c.l.bf16 %v455
      %v574 = vunpack.c.l.bf16 %v502
      %v575 = vunpack.c.l.bf16 %v503
      %v576 = vunpack.c.l.bf16 %v504
      %v577 = vunpack.c.l.bf16 %v505
      %v578 = vlaneseq
      %v579 = vshrl.u32 %v578, 7
      %v580 = vadd.s32 %v579, 8
      %v581 = vadd.s32 %v579, 16
      %v582 = vadd.s32 %v579, 24
      %vm583 = vcmp.eq.s32.totalorder %v579, 0
      %vm584 = vcmp.eq.s32.totalorder %v580, 0
      %vm585 = vcmp.eq.s32.totalorder %v581, 0
      %vm586 = vcmp.eq.s32.totalorder %v582, 0
      %v587 = vrot.slane %v506, 7
      %v588 = vrot.slane %v510, 7
      %v589 = vrot.slane %v514, 7
      %v590 = vrot.slane %v518, 7
      %v591 = vrot.slane %v522, 7
      %v592 = vrot.slane %v526, 7
      %v593 = vrot.slane %v530, 7
      %v594 = vrot.slane %v534, 7
      %v595 = vrot.slane %v538, 7
      %v596 = vrot.slane %v542, 7
      %v597 = vrot.slane %v546, 7
      %v598 = vrot.slane %v550, 7
      %v599 = vrot.slane %v554, 7
      %v600 = vrot.slane %v558, 7
      %v601 = vrot.slane %v562, 7
      %v602 = vrot.slane %v566, 7
      %v603 = vrot.slane %v570, 7
      %v604 = vrot.slane %v574, 7
      %v605 = vrot.slane %v507, 7
      %v606 = vrot.slane %v511, 7
      %v607 = vrot.slane %v515, 7
      %v608 = vrot.slane %v519, 7
      %v609 = vrot.slane %v523, 7
      %v610 = vrot.slane %v527, 7
      %v611 = vrot.slane %v531, 7
      %v612 = vrot.slane %v535, 7
      %v613 = vrot.slane %v539, 7
      %v614 = vrot.slane %v543, 7
      %v615 = vrot.slane %v547, 7
      %v616 = vrot.slane %v551, 7
      %v617 = vrot.slane %v555, 7
      %v618 = vrot.slane %v559, 7
      %v619 = vrot.slane %v563, 7
      %v620 = vrot.slane %v567, 7
      %v621 = vrot.slane %v571, 7
      %v622 = vrot.slane %v575, 7
      %v623 = vrot.slane %v508, 7
      %v624 = vrot.slane %v512, 7
      %v625 = vrot.slane %v516, 7
      %v626 = vrot.slane %v520, 7
      %v627 = vrot.slane %v524, 7
      %v628 = vrot.slane %v528, 7
      %v629 = vrot.slane %v532, 7
      %v630 = vrot.slane %v536, 7
      %v631 = vrot.slane %v540, 7
      %v632 = vrot.slane %v544, 7
      %v633 = vrot.slane %v548, 7
      %v634 = vrot.slane %v552, 7
      %v635 = vrot.slane %v556, 7
      %v636 = vrot.slane %v560, 7
      %v637 = vrot.slane %v564, 7
      %v638 = vrot.slane %v568, 7
      %v639 = vrot.slane %v572, 7
      %v640 = vrot.slane %v576, 7
      %v641 = vrot.slane %v509, 7
      %v642 = vrot.slane %v513, 7
      %v643 = vrot.slane %v517, 7
      %v644 = vrot.slane %v521, 7
      %v645 = vrot.slane %v525, 7
      %v646 = vrot.slane %v529, 7
      %v647 = vrot.slane %v533, 7
      %v648 = vrot.slane %v537, 7
      %v649 = vrot.slane %v541, 7
      %v650 = vrot.slane %v545, 7
      %v651 = vrot.slane %v549, 7
      %v652 = vrot.slane %v553, 7
      %v653 = vrot.slane %v557, 7
      %v654 = vrot.slane %v561, 7
      %v655 = vrot.slane %v565, 7
      %v656 = vrot.slane %v569, 7
      %v657 = vrot.slane %v573, 7
      %v658 = vrot.slane %v577, 7
      %vm659 = vcmp.lt.s32.totalorder %v579, 1
      %v660 = vsel %vm659, %v623, %v641
      %v661 = vsel %vm659, %v624, %v642
      %v662 = vsel %vm659, %v625, %v643
      %v663 = vsel %vm659, %v626, %v644
      %v664 = vsel %vm659, %v627, %v645
      %v665 = vsel %vm659, %v628, %v646
      %v666 = vsel %vm659, %v629, %v647
      %v667 = vsel %vm659, %v630, %v648
      %v668 = vsel %vm659, %v631, %v649
      %v669 = vsel %vm659, %v632, %v650
      %v670 = vsel %vm659, %v633, %v651
      %v671 = vsel %vm659, %v634, %v652
      %v672 = vsel %vm659, %v635, %v653
      %v673 = vsel %vm659, %v636, %v654
      %v674 = vsel %vm659, %v637, %v655
      %v675 = vsel %vm659, %v638, %v656
      %v676 = vsel %vm659, %v639, %v657
      %v677 = vsel %vm659, %v640, %v658
      %v678 = vsel %vm659, %v605, %v623
      %v679 = vsel %vm659, %v606, %v624
      %v680 = vsel %vm659, %v607, %v625
      %v681 = vsel %vm659, %v608, %v626
      %v682 = vsel %vm659, %v609, %v627
      %v683 = vsel %vm659, %v610, %v628
      %v684 = vsel %vm659, %v611, %v629
      %v685 = vsel %vm659, %v612, %v630
      %v686 = vsel %vm659, %v613, %v631
      %v687 = vsel %vm659, %v614, %v632
      %v688 = vsel %vm659, %v615, %v633
      %v689 = vsel %vm659, %v616, %v634
      %v690 = vsel %vm659, %v617, %v635
      %v691 = vsel %vm659, %v618, %v636
      %v692 = vsel %vm659, %v619, %v637
      %v693 = vsel %vm659, %v620, %v638
      %v694 = vsel %vm659, %v621, %v639
      %v695 = vsel %vm659, %v622, %v640
      %v696 = vsel %vm659, %v587, %v605
      %v697 = vsel %vm659, %v588, %v606
      %v698 = vsel %vm659, %v589, %v607
      %v699 = vsel %vm659, %v590, %v608
      %v700 = vsel %vm659, %v591, %v609
      %v701 = vsel %vm659, %v592, %v610
      %v702 = vsel %vm659, %v593, %v611
      %v703 = vsel %vm659, %v594, %v612
      %v704 = vsel %vm659, %v595, %v613
      %v705 = vsel %vm659, %v596, %v614
      %v706 = vsel %vm659, %v597, %v615
      %v707 = vsel %vm659, %v598, %v616
      %v708 = vsel %vm659, %v599, %v617
      %v709 = vsel %vm659, %v600, %v618
      %v710 = vsel %vm659, %v601, %v619
      %v711 = vsel %vm659, %v602, %v620
      %v712 = vsel %vm659, %v603, %v621
      %v713 = vsel %vm659, %v604, %v622
      %v714 = vsel %vm659, %v641, %v587
      %v715 = vsel %vm659, %v642, %v588
      %v716 = vsel %vm659, %v643, %v589
      %v717 = vsel %vm659, %v644, %v590
      %v718 = vsel %vm659, %v645, %v591
      %v719 = vsel %vm659, %v646, %v592
      %v720 = vsel %vm659, %v647, %v593
      %v721 = vsel %vm659, %v648, %v594
      %v722 = vsel %vm659, %v649, %v595
      %v723 = vsel %vm659, %v650, %v596
      %v724 = vsel %vm659, %v651, %v597
      %v725 = vsel %vm659, %v652, %v598
      %v726 = vsel %vm659, %v653, %v599
      %v727 = vsel %vm659, %v654, %v600
      %v728 = vsel %vm659, %v655, %v601
      %v729 = vsel %vm659, %v656, %v602
      %v730 = vsel %vm659, %v657, %v603
      %v731 = vsel %vm659, %v658, %v604
      %v732 = vsel %vm583, 0.0, %v714
      %v733 = vsel %vm584, 0.0, %v696
      %v734 = vsel %vm585, 0.0, %v678
      %v735 = vsel %vm586, 0.0, %v660
      %v736 = vsel %vm583, 0.0, %v715
      %v737 = vsel %vm584, 0.0, %v697
      %v738 = vsel %vm585, 0.0, %v679
      %v739 = vsel %vm586, 0.0, %v661
      %v740 = vsel %vm583, 0.0, %v716
      %v741 = vsel %vm584, 0.0, %v698
      %v742 = vsel %vm585, 0.0, %v680
      %v743 = vsel %vm586, 0.0, %v662
      %v744 = vsel %vm583, 0.0, %v717
      %v745 = vsel %vm584, 0.0, %v699
      %v746 = vsel %vm585, 0.0, %v681
      %v747 = vsel %vm586, 0.0, %v663
      %v748 = vsel %vm583, 0.0, %v718
      %v749 = vsel %vm584, 0.0, %v700
      %v750 = vsel %vm585, 0.0, %v682
      %v751 = vsel %vm586, 0.0, %v664
      %v752 = vsel %vm583, 0.0, %v719
      %v753 = vsel %vm584, 0.0, %v701
      %v754 = vsel %vm585, 0.0, %v683
      %v755 = vsel %vm586, 0.0, %v665
      %v756 = vsel %vm583, 0.0, %v720
      %v757 = vsel %vm584, 0.0, %v702
      %v758 = vsel %vm585, 0.0, %v684
      %v759 = vsel %vm586, 0.0, %v666
      %v760 = vsel %vm583, 0.0, %v721
      %v761 = vsel %vm584, 0.0, %v703
      %v762 = vsel %vm585, 0.0, %v685
      %v763 = vsel %vm586, 0.0, %v667
      %v764 = vsel %vm583, 0.0, %v722
      %v765 = vsel %vm584, 0.0, %v704
      %v766 = vsel %vm585, 0.0, %v686
      %v767 = vsel %vm586, 0.0, %v668
      %v768 = vsel %vm583, 0.0, %v723
      %v769 = vsel %vm584, 0.0, %v705
      %v770 = vsel %vm585, 0.0, %v687
      %v771 = vsel %vm586, 0.0, %v669
      %v772 = vsel %vm583, 0.0, %v724
      %v773 = vsel %vm584, 0.0, %v706
      %v774 = vsel %vm585, 0.0, %v688
      %v775 = vsel %vm586, 0.0, %v670
      %v776 = vsel %vm583, 0.0, %v725
      %v777 = vsel %vm584, 0.0, %v707
      %v778 = vsel %vm585, 0.0, %v689
      %v779 = vsel %vm586, 0.0, %v671
      %v780 = vsel %vm583, 0.0, %v726
      %v781 = vsel %vm584, 0.0, %v708
      %v782 = vsel %vm585, 0.0, %v690
      %v783 = vsel %vm586, 0.0, %v672
      %v784 = vsel %vm583, 0.0, %v727
      %v785 = vsel %vm584, 0.0, %v709
      %v786 = vsel %vm585, 0.0, %v691
      %v787 = vsel %vm586, 0.0, %v673
      %v788 = vsel %vm583, 0.0, %v728
      %v789 = vsel %vm584, 0.0, %v710
      %v790 = vsel %vm585, 0.0, %v692
      %v791 = vsel %vm586, 0.0, %v674
      %v792 = vsel %vm583, 0.0, %v729
      %v793 = vsel %vm584, 0.0, %v711
      %v794 = vsel %vm585, 0.0, %v693
      %v795 = vsel %vm586, 0.0, %v675
      %v796 = vsel %vm583, 0.0, %v730
      %v797 = vsel %vm584, 0.0, %v712
      %v798 = vsel %vm585, 0.0, %v694
      %v799 = vsel %vm586, 0.0, %v676
      %v800 = vsel %vm583, 0.0, %v731
      %v801 = vsel %vm584, 0.0, %v713
      %v802 = vsel %vm585, 0.0, %v695
      %v803 = vsel %vm586, 0.0, %v677
      %v804 = vpack.c.bf16 %v733, %v732
      %v805 = vpack.c.bf16 %v735, %v734
      %v806 = vpack.c.bf16 %v737, %v736
      %v807 = vpack.c.bf16 %v739, %v738
      %v808 = vpack.c.bf16 %v741, %v740
      %v809 = vpack.c.bf16 %v743, %v742
      %v810 = vpack.c.bf16 %v745, %v744
      %v811 = vpack.c.bf16 %v747, %v746
      %v812 = vpack.c.bf16 %v749, %v748
      %v813 = vpack.c.bf16 %v751, %v750
      %v814 = vpack.c.bf16 %v753, %v752
      %v815 = vpack.c.bf16 %v755, %v754
      %v816 = vpack.c.bf16 %v757, %v756
      %v817 = vpack.c.bf16 %v759, %v758
      %v818 = vpack.c.bf16 %v761, %v760
      %v819 = vpack.c.bf16 %v763, %v762
      %v820 = vpack.c.bf16 %v765, %v764
      %v821 = vpack.c.bf16 %v767, %v766
      %v822 = vpack.c.bf16 %v769, %v768
      %v823 = vpack.c.bf16 %v771, %v770
      %v824 = vpack.c.bf16 %v773, %v772
      %v825 = vpack.c.bf16 %v775, %v774
      %v826 = vpack.c.bf16 %v777, %v776
      %v827 = vpack.c.bf16 %v779, %v778
      %v828 = vpack.c.bf16 %v781, %v780
      %v829 = vpack.c.bf16 %v783, %v782
      %v830 = vpack.c.bf16 %v785, %v784
      %v831 = vpack.c.bf16 %v787, %v786
      %v832 = vpack.c.bf16 %v789, %v788
      %v833 = vpack.c.bf16 %v791, %v790
      %v834 = vpack.c.bf16 %v793, %v792
      %v835 = vpack.c.bf16 %v795, %v794
      %v836 = vpack.c.bf16 %v797, %v796
      %v837 = vpack.c.bf16 %v799, %v798
      %v838 = vpack.c.bf16 %v801, %v800
      %v839 = vpack.c.bf16 %v803, %v802
      %vm840 = vcmp.eq.s32.totalorder %v579, 31
      %vm841 = vcmp.eq.s32.totalorder %v580, 31
      %vm842 = vcmp.eq.s32.totalorder %v581, 31
      %vm843 = vcmp.eq.s32.totalorder %v582, 31
      %v844 = vrot.slane %v506, 1
      %v845 = vrot.slane %v510, 1
      %v846 = vrot.slane %v514, 1
      %v847 = vrot.slane %v518, 1
      %v848 = vrot.slane %v522, 1
      %v849 = vrot.slane %v526, 1
      %v850 = vrot.slane %v530, 1
      %v851 = vrot.slane %v534, 1
      %v852 = vrot.slane %v538, 1
      %v853 = vrot.slane %v542, 1
      %v854 = vrot.slane %v546, 1
      %v855 = vrot.slane %v550, 1
      %v856 = vrot.slane %v554, 1
      %v857 = vrot.slane %v558, 1
      %v858 = vrot.slane %v562, 1
      %v859 = vrot.slane %v566, 1
      %v860 = vrot.slane %v570, 1
      %v861 = vrot.slane %v574, 1
      %v862 = vrot.slane %v507, 1
      %v863 = vrot.slane %v511, 1
      %v864 = vrot.slane %v515, 1
      %v865 = vrot.slane %v519, 1
      %v866 = vrot.slane %v523, 1
      %v867 = vrot.slane %v527, 1
      %v868 = vrot.slane %v531, 1
      %v869 = vrot.slane %v535, 1
      %v870 = vrot.slane %v539, 1
      %v871 = vrot.slane %v543, 1
      %v872 = vrot.slane %v547, 1
      %v873 = vrot.slane %v551, 1
      %v874 = vrot.slane %v555, 1
      %v875 = vrot.slane %v559, 1
      %v876 = vrot.slane %v563, 1
      %v877 = vrot.slane %v567, 1
      %v878 = vrot.slane %v571, 1
      %v879 = vrot.slane %v575, 1
      %v880 = vrot.slane %v508, 1
      %v881 = vrot.slane %v512, 1
      %v882 = vrot.slane %v516, 1
      %v883 = vrot.slane %v520, 1
      %v884 = vrot.slane %v524, 1
      %v885 = vrot.slane %v528, 1
      %v886 = vrot.slane %v532, 1
      %v887 = vrot.slane %v536, 1
      %v888 = vrot.slane %v540, 1
      %v889 = vrot.slane %v544, 1
      %v890 = vrot.slane %v548, 1
      %v891 = vrot.slane %v552, 1
      %v892 = vrot.slane %v556, 1
      %v893 = vrot.slane %v560, 1
      %v894 = vrot.slane %v564, 1
      %v895 = vrot.slane %v568, 1
      %v896 = vrot.slane %v572, 1
      %v897 = vrot.slane %v576, 1
      %v898 = vrot.slane %v509, 1
      %v899 = vrot.slane %v513, 1
      %v900 = vrot.slane %v517, 1
      %v901 = vrot.slane %v521, 1
      %v902 = vrot.slane %v525, 1
      %v903 = vrot.slane %v529, 1
      %v904 = vrot.slane %v533, 1
      %v905 = vrot.slane %v537, 1
      %v906 = vrot.slane %v541, 1
      %v907 = vrot.slane %v545, 1
      %v908 = vrot.slane %v549, 1
      %v909 = vrot.slane %v553, 1
      %v910 = vrot.slane %v557, 1
      %v911 = vrot.slane %v561, 1
      %v912 = vrot.slane %v565, 1
      %v913 = vrot.slane %v569, 1
      %v914 = vrot.slane %v573, 1
      %v915 = vrot.slane %v577, 1
      %vm916 = vcmp.lt.s32.totalorder %v579, 7
      %v917 = vsel %vm916, %v880, %v898
      %v918 = vsel %vm916, %v881, %v899
      %v919 = vsel %vm916, %v882, %v900
      %v920 = vsel %vm916, %v883, %v901
      %v921 = vsel %vm916, %v884, %v902
      %v922 = vsel %vm916, %v885, %v903
      %v923 = vsel %vm916, %v886, %v904
      %v924 = vsel %vm916, %v887, %v905
      %v925 = vsel %vm916, %v888, %v906
      %v926 = vsel %vm916, %v889, %v907
      %v927 = vsel %vm916, %v890, %v908
      %v928 = vsel %vm916, %v891, %v909
      %v929 = vsel %vm916, %v892, %v910
      %v930 = vsel %vm916, %v893, %v911
      %v931 = vsel %vm916, %v894, %v912
      %v932 = vsel %vm916, %v895, %v913
      %v933 = vsel %vm916, %v896, %v914
      %v934 = vsel %vm916, %v897, %v915
      %v935 = vsel %vm916, %v862, %v880
      %v936 = vsel %vm916, %v863, %v881
      %v937 = vsel %vm916, %v864, %v882
      %v938 = vsel %vm916, %v865, %v883
      %v939 = vsel %vm916, %v866, %v884
      %v940 = vsel %vm916, %v867, %v885
      %v941 = vsel %vm916, %v868, %v886
      %v942 = vsel %vm916, %v869, %v887
      %v943 = vsel %vm916, %v870, %v888
      %v944 = vsel %vm916, %v871, %v889
      %v945 = vsel %vm916, %v872, %v890
      %v946 = vsel %vm916, %v873, %v891
      %v947 = vsel %vm916, %v874, %v892
      %v948 = vsel %vm916, %v875, %v893
      %v949 = vsel %vm916, %v876, %v894
      %v950 = vsel %vm916, %v877, %v895
      %v951 = vsel %vm916, %v878, %v896
      %v952 = vsel %vm916, %v879, %v897
      %v953 = vsel %vm916, %v844, %v862
      %v954 = vsel %vm916, %v845, %v863
      %v955 = vsel %vm916, %v846, %v864
      %v956 = vsel %vm916, %v847, %v865
      %v957 = vsel %vm916, %v848, %v866
      %v958 = vsel %vm916, %v849, %v867
      %v959 = vsel %vm916, %v850, %v868
      %v960 = vsel %vm916, %v851, %v869
      %v961 = vsel %vm916, %v852, %v870
      %v962 = vsel %vm916, %v853, %v871
      %v963 = vsel %vm916, %v854, %v872
      %v964 = vsel %vm916, %v855, %v873
      %v965 = vsel %vm916, %v856, %v874
      %v966 = vsel %vm916, %v857, %v875
      %v967 = vsel %vm916, %v858, %v876
      %v968 = vsel %vm916, %v859, %v877
      %v969 = vsel %vm916, %v860, %v878
      %v970 = vsel %vm916, %v861, %v879
      %v971 = vsel %vm916, %v898, %v844
      %v972 = vsel %vm916, %v899, %v845
      %v973 = vsel %vm916, %v900, %v846
      %v974 = vsel %vm916, %v901, %v847
      %v975 = vsel %vm916, %v902, %v848
      %v976 = vsel %vm916, %v903, %v849
      %v977 = vsel %vm916, %v904, %v850
      %v978 = vsel %vm916, %v905, %v851
      %v979 = vsel %vm916, %v906, %v852
      %v980 = vsel %vm916, %v907, %v853
      %v981 = vsel %vm916, %v908, %v854
      %v982 = vsel %vm916, %v909, %v855
      %v983 = vsel %vm916, %v910, %v856
      %v984 = vsel %vm916, %v911, %v857
      %v985 = vsel %vm916, %v912, %v858
      %v986 = vsel %vm916, %v913, %v859
      %v987 = vsel %vm916, %v914, %v860
      %v988 = vsel %vm916, %v915, %v861
      %v989 = vsel %vm840, 0.0, %v953
      %v990 = vsel %vm841, 0.0, %v935
      %v991 = vsel %vm842, 0.0, %v917
      %v992 = vsel %vm843, 0.0, %v971
      %v993 = vsel %vm840, 0.0, %v954
      %v994 = vsel %vm841, 0.0, %v936
      %v995 = vsel %vm842, 0.0, %v918
      %v996 = vsel %vm843, 0.0, %v972
      %v997 = vsel %vm840, 0.0, %v955
      %v998 = vsel %vm841, 0.0, %v937
      %v999 = vsel %vm842, 0.0, %v919
      %v1000 = vsel %vm843, 0.0, %v973
      %v1001 = vsel %vm840, 0.0, %v956
      %v1002 = vsel %vm841, 0.0, %v938
      %v1003 = vsel %vm842, 0.0, %v920
      %v1004 = vsel %vm843, 0.0, %v974
      %v1005 = vsel %vm840, 0.0, %v957
      %v1006 = vsel %vm841, 0.0, %v939
      %v1007 = vsel %vm842, 0.0, %v921
      %v1008 = vsel %vm843, 0.0, %v975
      %v1009 = vsel %vm840, 0.0, %v958
      %v1010 = vsel %vm841, 0.0, %v940
      %v1011 = vsel %vm842, 0.0, %v922
      %v1012 = vsel %vm843, 0.0, %v976
      %v1013 = vsel %vm840, 0.0, %v959
      %v1014 = vsel %vm841, 0.0, %v941
      %v1015 = vsel %vm842, 0.0, %v923
      %v1016 = vsel %vm843, 0.0, %v977
      %v1017 = vsel %vm840, 0.0, %v960
      %v1018 = vsel %vm841, 0.0, %v942
      %v1019 = vsel %vm842, 0.0, %v924
      %v1020 = vsel %vm843, 0.0, %v978
      %v1021 = vsel %vm840, 0.0, %v961
      %v1022 = vsel %vm841, 0.0, %v943
      %v1023 = vsel %vm842, 0.0, %v925
      %v1024 = vsel %vm843, 0.0, %v979
      %v1025 = vsel %vm840, 0.0, %v962
      %v1026 = vsel %vm841, 0.0, %v944
      %v1027 = vsel %vm842, 0.0, %v926
      %v1028 = vsel %vm843, 0.0, %v980
      %v1029 = vsel %vm840, 0.0, %v963
      %v1030 = vsel %vm841, 0.0, %v945
      %v1031 = vsel %vm842, 0.0, %v927
      %v1032 = vsel %vm843, 0.0, %v981
      %v1033 = vsel %vm840, 0.0, %v964
      %v1034 = vsel %vm841, 0.0, %v946
      %v1035 = vsel %vm842, 0.0, %v928
      %v1036 = vsel %vm843, 0.0, %v982
      %v1037 = vsel %vm840, 0.0, %v965
      %v1038 = vsel %vm841, 0.0, %v947
      %v1039 = vsel %vm842, 0.0, %v929
      %v1040 = vsel %vm843, 0.0, %v983
      %v1041 = vsel %vm840, 0.0, %v966
      %v1042 = vsel %vm841, 0.0, %v948
      %v1043 = vsel %vm842, 0.0, %v930
      %v1044 = vsel %vm843, 0.0, %v984
      %v1045 = vsel %vm840, 0.0, %v967
      %v1046 = vsel %vm841, 0.0, %v949
      %v1047 = vsel %vm842, 0.0, %v931
      %v1048 = vsel %vm843, 0.0, %v985
      %v1049 = vsel %vm840, 0.0, %v968
      %v1050 = vsel %vm841, 0.0, %v950
      %v1051 = vsel %vm842, 0.0, %v932
      %v1052 = vsel %vm843, 0.0, %v986
      %v1053 = vsel %vm840, 0.0, %v969
      %v1054 = vsel %vm841, 0.0, %v951
      %v1055 = vsel %vm842, 0.0, %v933
      %v1056 = vsel %vm843, 0.0, %v987
      %v1057 = vsel %vm840, 0.0, %v970
      %v1058 = vsel %vm841, 0.0, %v952
      %v1059 = vsel %vm842, 0.0, %v934
      %v1060 = vsel %vm843, 0.0, %v988
      %v1061 = vpack.c.bf16 %v990, %v989
      %v1062 = vpack.c.bf16 %v992, %v991
      %v1063 = vpack.c.bf16 %v994, %v993
      %v1064 = vpack.c.bf16 %v996, %v995
      %v1065 = vpack.c.bf16 %v998, %v997
      %v1066 = vpack.c.bf16 %v1000, %v999
      %v1067 = vpack.c.bf16 %v1002, %v1001
      %v1068 = vpack.c.bf16 %v1004, %v1003
      %v1069 = vpack.c.bf16 %v1006, %v1005
      %v1070 = vpack.c.bf16 %v1008, %v1007
      %v1071 = vpack.c.bf16 %v1010, %v1009
      %v1072 = vpack.c.bf16 %v1012, %v1011
      %v1073 = vpack.c.bf16 %v1014, %v1013
      %v1074 = vpack.c.bf16 %v1016, %v1015
      %v1075 = vpack.c.bf16 %v1018, %v1017
      %v1076 = vpack.c.bf16 %v1020, %v1019
      %v1077 = vpack.c.bf16 %v1022, %v1021
      %v1078 = vpack.c.bf16 %v1024, %v1023
      %v1079 = vpack.c.bf16 %v1026, %v1025
      %v1080 = vpack.c.bf16 %v1028, %v1027
      %v1081 = vpack.c.bf16 %v1030, %v1029
      %v1082 = vpack.c.bf16 %v1032, %v1031
      %v1083 = vpack.c.bf16 %v1034, %v1033
      %v1084 = vpack.c.bf16 %v1036, %v1035
      %v1085 = vpack.c.bf16 %v1038, %v1037
      %v1086 = vpack.c.bf16 %v1040, %v1039
      %v1087 = vpack.c.bf16 %v1042, %v1041
      %v1088 = vpack.c.bf16 %v1044, %v1043
      %v1089 = vpack.c.bf16 %v1046, %v1045
      %v1090 = vpack.c.bf16 %v1048, %v1047
      %v1091 = vpack.c.bf16 %v1050, %v1049
      %v1092 = vpack.c.bf16 %v1052, %v1051
      %v1093 = vpack.c.bf16 %v1054, %v1053
      %v1094 = vpack.c.bf16 %v1056, %v1055
      %v1095 = vpack.c.bf16 %v1058, %v1057
      %v1096 = vpack.c.bf16 %v1060, %v1059
      %v1169 = vunpack.c.l.b16 %v494
      %v1170 = vunpack.c.l.b16 %v495
      %v1171 = vunpack.c.l.b16 %v496
      %v1172 = vunpack.c.l.b16 %v497
      %v1173 = vunpack.c.l.b16 %v392
      %v1174 = vunpack.c.l.b16 %v393
      %v1175 = vunpack.c.l.b16 %v394
      %v1176 = vunpack.c.l.b16 %v395
      %v1177 = vunpack.c.l.b16 %v396
      %v1178 = vunpack.c.l.b16 %v397
      %v1179 = vunpack.c.l.b16 %v398
      %v1180 = vunpack.c.l.b16 %v399
      %v1181 = vunpack.c.l.b16 %v400
      %v1182 = vunpack.c.l.b16 %v401
      %v1183 = vunpack.c.l.b16 %v402
      %v1184 = vunpack.c.l.b16 %v403
      %v1185 = vunpack.c.l.b16 %v404
      %v1186 = vunpack.c.l.b16 %v405
      %v1187 = vunpack.c.l.b16 %v406
      %v1188 = vunpack.c.l.b16 %v407
      %v1189 = vunpack.c.l.b16 %v408
      %v1190 = vunpack.c.l.b16 %v409
      %v1191 = vunpack.c.l.b16 %v410
      %v1192 = vunpack.c.l.b16 %v411
      %v1193 = vunpack.c.l.b16 %v412
      %v1194 = vunpack.c.l.b16 %v413
      %v1195 = vunpack.c.l.b16 %v414
      %v1196 = vunpack.c.l.b16 %v415
      %v1197 = vunpack.c.l.b16 %v416
      %v1198 = vunpack.c.l.b16 %v417
      %v1199 = vunpack.c.l.b16 %v418
      %v1200 = vunpack.c.l.b16 %v419
      %v1201 = vunpack.c.l.b16 %v420
      %v1202 = vunpack.c.l.b16 %v421
      %v1203 = vunpack.c.l.b16 %v422
      %v1204 = vunpack.c.l.b16 %v423
      %v1205 = vunpack.c.l.b16 %v424
      %v1206 = vunpack.c.l.b16 %v425
      %v1207 = vunpack.c.l.b16 %v426
      %v1208 = vunpack.c.l.b16 %v427
      %v1209 = vunpack.c.l.b16 %v428
      %v1210 = vunpack.c.l.b16 %v429
      %v1211 = vunpack.c.l.b16 %v430
      %v1212 = vunpack.c.l.b16 %v431
      %v1213 = vunpack.c.l.b16 %v432
      %v1214 = vunpack.c.l.b16 %v433
      %v1215 = vunpack.c.l.b16 %v434
      %v1216 = vunpack.c.l.b16 %v435
      %v1217 = vunpack.c.l.b16 %v436
      %v1218 = vunpack.c.l.b16 %v437
      %v1219 = vunpack.c.l.b16 %v438
      %v1220 = vunpack.c.l.b16 %v439
      %v1221 = vunpack.c.l.b16 %v440
      %v1222 = vunpack.c.l.b16 %v441
      %v1223 = vunpack.c.l.b16 %v442
      %v1224 = vunpack.c.l.b16 %v443
      %v1225 = vunpack.c.l.b16 %v444
      %v1226 = vunpack.c.l.b16 %v445
      %v1227 = vunpack.c.l.b16 %v446
      %v1228 = vunpack.c.l.b16 %v447
      %v1229 = vunpack.c.l.b16 %v448
      %v1230 = vunpack.c.l.b16 %v449
      %v1231 = vunpack.c.l.b16 %v450
      %v1232 = vunpack.c.l.b16 %v451
      %v1233 = vunpack.c.l.b16 %v452
      %v1234 = vunpack.c.l.b16 %v453
      %v1235 = vunpack.c.l.b16 %v454
      %v1236 = vunpack.c.l.b16 %v455
      %v1237 = vunpack.c.l.b16 %v502
      %v1238 = vunpack.c.l.b16 %v503
      %v1239 = vunpack.c.l.b16 %v504
      %v1240 = vunpack.c.l.b16 %v505
      %v1241 = vpack.c.b16 %v1170, %v1169
      %v1242 = vpack.c.b16 %v1172, %v1171
      %v1243 = vpack.c.b16 %v1174, %v1173
      %v1244 = vpack.c.b16 %v1176, %v1175
      %v1245 = vpack.c.b16 %v1178, %v1177
      %v1246 = vpack.c.b16 %v1180, %v1179
      %v1247 = vpack.c.b16 %v1182, %v1181
      %v1248 = vpack.c.b16 %v1184, %v1183
      %v1249 = vpack.c.b16 %v1186, %v1185
      %v1250 = vpack.c.b16 %v1188, %v1187
      %v1251 = vpack.c.b16 %v1190, %v1189
      %v1252 = vpack.c.b16 %v1192, %v1191
      %v1253 = vpack.c.b16 %v1194, %v1193
      %v1254 = vpack.c.b16 %v1196, %v1195
      %v1255 = vpack.c.b16 %v1198, %v1197
      %v1256 = vpack.c.b16 %v1200, %v1199
      %v1257 = vpack.c.b16 %v1202, %v1201
      %v1258 = vpack.c.b16 %v1204, %v1203
      %v1259 = vpack.c.b16 %v1206, %v1205
      %v1260 = vpack.c.b16 %v1208, %v1207
      %v1261 = vpack.c.b16 %v1210, %v1209
      %v1262 = vpack.c.b16 %v1212, %v1211
      %v1263 = vpack.c.b16 %v1214, %v1213
      %v1264 = vpack.c.b16 %v1216, %v1215
      %v1265 = vpack.c.b16 %v1218, %v1217
      %v1266 = vpack.c.b16 %v1220, %v1219
      %v1267 = vpack.c.b16 %v1222, %v1221
      %v1268 = vpack.c.b16 %v1224, %v1223
      %v1269 = vpack.c.b16 %v1226, %v1225
      %v1270 = vpack.c.b16 %v1228, %v1227
      %v1271 = vpack.c.b16 %v1230, %v1229
      %v1272 = vpack.c.b16 %v1232, %v1231
      %v1273 = vpack.c.b16 %v1234, %v1233
      %v1274 = vpack.c.b16 %v1236, %v1235
      %v1275 = vpack.c.b16 %v1238, %v1237
      %v1276 = vpack.c.b16 %v1240, %v1239
      %1277 = vrot.lane.b32.xlu0 %v1241, 64
      %v1278 = vpop.permute.xlu0 %1277
      %1279 = vrot.lane.b32.xlu0 %v1242, 64
      %v1280 = vpop.permute.xlu0 %1279
      %1281 = vrot.lane.b32.xlu0 %v1243, 64
      %v1282 = vpop.permute.xlu0 %1281
      %1283 = vrot.lane.b32.xlu0 %v1244, 64
      %v1284 = vpop.permute.xlu0 %1283
      %1285 = vrot.lane.b32.xlu0 %v1245, 64
      %v1286 = vpop.permute.xlu0 %1285
      %1287 = vrot.lane.b32.xlu0 %v1246, 64
      %v1288 = vpop.permute.xlu0 %1287
      %1289 = vrot.lane.b32.xlu0 %v1247, 64
      %v1290 = vpop.permute.xlu0 %1289
      %1291 = vrot.lane.b32.xlu0 %v1248, 64
      %v1292 = vpop.permute.xlu0 %1291
      %1293 = vrot.lane.b32.xlu0 %v1249, 64
      %v1294 = vpop.permute.xlu0 %1293
      %1295 = vrot.lane.b32.xlu0 %v1250, 64
      %v1296 = vpop.permute.xlu0 %1295
      %1297 = vrot.lane.b32.xlu0 %v1251, 64
      %v1298 = vpop.permute.xlu0 %1297
      %1299 = vrot.lane.b32.xlu0 %v1252, 64
      %v1300 = vpop.permute.xlu0 %1299
      %1301 = vrot.lane.b32.xlu0 %v1253, 64
      %v1302 = vpop.permute.xlu0 %1301
      %1303 = vrot.lane.b32.xlu0 %v1254, 64
      %v1304 = vpop.permute.xlu0 %1303
      %1305 = vrot.lane.b32.xlu0 %v1255, 64
      %v1306 = vpop.permute.xlu0 %1305
      %1307 = vrot.lane.b32.xlu0 %v1256, 64
      %v1308 = vpop.permute.xlu0 %1307
      %1309 = vrot.lane.b32.xlu0 %v1257, 64
      %v1310 = vpop.permute.xlu0 %1309
      %1311 = vrot.lane.b32.xlu0 %v1258, 64
      %v1312 = vpop.permute.xlu0 %1311
      %1313 = vrot.lane.b32.xlu0 %v1259, 64
      %v1314 = vpop.permute.xlu0 %1313
      %1315 = vrot.lane.b32.xlu0 %v1260, 64
      %v1316 = vpop.permute.xlu0 %1315
      %1317 = vrot.lane.b32.xlu0 %v1261, 64
      %v1318 = vpop.permute.xlu0 %1317
      %1319 = vrot.lane.b32.xlu0 %v1262, 64
      %v1320 = vpop.permute.xlu0 %1319
      %1321 = vrot.lane.b32.xlu0 %v1263, 64
      %v1322 = vpop.permute.xlu0 %1321
      %1323 = vrot.lane.b32.xlu0 %v1264, 64
      %v1324 = vpop.permute.xlu0 %1323
      %1325 = vrot.lane.b32.xlu0 %v1265, 64
      %v1326 = vpop.permute.xlu0 %1325
      %1327 = vrot.lane.b32.xlu0 %v1266, 64
      %v1328 = vpop.permute.xlu0 %1327
      %1329 = vrot.lane.b32.xlu0 %v1267, 64
      %v1330 = vpop.permute.xlu0 %1329
      %1331 = vrot.lane.b32.xlu0 %v1268, 64
      %v1332 = vpop.permute.xlu0 %1331
      %1333 = vrot.lane.b32.xlu0 %v1269, 64
      %v1334 = vpop.permute.xlu0 %1333
      %1335 = vrot.lane.b32.xlu0 %v1270, 64
      %v1336 = vpop.permute.xlu0 %1335
      %1337 = vrot.lane.b32.xlu0 %v1271, 64
      %v1338 = vpop.permute.xlu0 %1337
      %1339 = vrot.lane.b32.xlu0 %v1272, 64
      %v1340 = vpop.permute.xlu0 %1339
      %1341 = vrot.lane.b32.xlu0 %v1273, 64
      %v1342 = vpop.permute.xlu0 %1341
      %1343 = vrot.lane.b32.xlu0 %v1274, 64
      %v1344 = vpop.permute.xlu0 %1343
      %1345 = vrot.lane.b32.xlu0 %v1275, 64
      %v1346 = vpop.permute.xlu0 %1345
      %1347 = vrot.lane.b32.xlu0 %v1276, 64
      %v1348 = vpop.permute.xlu0 %1347
      %vm1349 = vcmask 523264
      %v1352 = vsel %vm1349, %v804, %v1278
      %v1356 = vsel %vm1349, %v805, %v1280
      %v1360 = vsel %vm1349, %v806, %v1282
      %v1364 = vsel %vm1349, %v807, %v1284
      %v1368 = vsel %vm1349, %v808, %v1286
      %v1372 = vsel %vm1349, %v809, %v1288
      %v1376 = vsel %vm1349, %v810, %v1290
      %v1380 = vsel %vm1349, %v811, %v1292
      %v1384 = vsel %vm1349, %v812, %v1294
      %v1388 = vsel %vm1349, %v813, %v1296
      %v1392 = vsel %vm1349, %v814, %v1298
      %v1396 = vsel %vm1349, %v815, %v1300
      %v1400 = vsel %vm1349, %v816, %v1302
      %v1404 = vsel %vm1349, %v817, %v1304
      %v1408 = vsel %vm1349, %v818, %v1306
      %v1412 = vsel %vm1349, %v819, %v1308
      %v1416 = vsel %vm1349, %v820, %v1310
      %v1420 = vsel %vm1349, %v821, %v1312
      %v1424 = vsel %vm1349, %v822, %v1314
      %v1428 = vsel %vm1349, %v823, %v1316
      %v1432 = vsel %vm1349, %v824, %v1318
      %v1436 = vsel %vm1349, %v825, %v1320
      %v1440 = vsel %vm1349, %v826, %v1322
      %v1444 = vsel %vm1349, %v827, %v1324
      %v1448 = vsel %vm1349, %v828, %v1326
      %v1452 = vsel %vm1349, %v829, %v1328
      %v1456 = vsel %vm1349, %v830, %v1330
      %v1460 = vsel %vm1349, %v831, %v1332
      %v1464 = vsel %vm1349, %v832, %v1334
      %v1468 = vsel %vm1349, %v833, %v1336
      %v1472 = vsel %vm1349, %v834, %v1338
      %v1476 = vsel %vm1349, %v835, %v1340
      %v1480 = vsel %vm1349, %v836, %v1342
      %v1484 = vsel %vm1349, %v837, %v1344
      %v1488 = vsel %vm1349, %v838, %v1346
      %v1492 = vsel %vm1349, %v839, %v1348
      %v1494 = vld [vmem:[%s3] sm:$0xf]
      %v1495 = vld [vmem:[%s3 + $0x4] sm:$0xf]
      %v1496 = vld [vmem:[%s3 + $0x8] sm:$0xf]
      %v1497 = vld [vmem:[%s3 + $0xc] sm:$0xf]
      %v1498 = vld [vmem:[%s3 + $0x10] sm:$0xf]
      %v1499 = vld [vmem:[%s3 + $0x14] sm:$0xf]
      %v1500 = vld [vmem:[%s3 + $0x18] sm:$0xf]
      %v1501 = vld [vmem:[%s3 + $0x1c] sm:$0xf]
      %v1502 = vld [vmem:[%s3 + $0x20] sm:$0xf]
      %v1503 = vld [vmem:[%s3 + $0x24] sm:$0xf]
      %v1504 = vld [vmem:[%s3 + $0x28] sm:$0xf]
      %v1505 = vld [vmem:[%s3 + $0x2c] sm:$0xf]
      %v1506 = vld [vmem:[%s3 + $0x30] sm:$0xf]
      %v1507 = vld [vmem:[%s3 + $0x34] sm:$0xf]
      %v1508 = vld [vmem:[%s3 + $0x38] sm:$0xf]
      %v1509 = vld [vmem:[%s3 + $0x3c] sm:$0xf]
      %v1510 = vld [vmem:[%s3 + $0x40] sm:$0xf]
      %v1511 = vld [vmem:[%s3 + $0x44] sm:$0xf]
      %v1512 = vld [vmem:[%s3 + $0x48] sm:$0xf]
      %v1513 = vld [vmem:[%s3 + $0x4c] sm:$0xf]
      %v1514 = vld [vmem:[%s3 + $0x50] sm:$0xf]
      %v1515 = vld [vmem:[%s3 + $0x54] sm:$0xf]
      %v1516 = vld [vmem:[%s3 + $0x58] sm:$0xf]
      %v1517 = vld [vmem:[%s3 + $0x5c] sm:$0xf]
      %v1518 = vld [vmem:[%s3 + $0x60] sm:$0xf]
      %v1519 = vld [vmem:[%s3 + $0x64] sm:$0xf]
      %v1520 = vld [vmem:[%s3 + $0x68] sm:$0xf]
      %v1521 = vld [vmem:[%s3 + $0x6c] sm:$0xf]
      %v1522 = vld [vmem:[%s3 + $0x70] sm:$0xf]
      %v1523 = vld [vmem:[%s3 + $0x74] sm:$0xf]
      %v1524 = vld [vmem:[%s3 + $0x78] sm:$0xf]
      %v1525 = vld [vmem:[%s3 + $0x7c] sm:$0xf]
      %v1526 = vld [vmem:[%s3 + $0x80] sm:$0xf]
      %v1527 = vld [vmem:[%s3 + $0x84] sm:$0xf]
      %v1528 = vld [vmem:[%s3 + $0x88] sm:$0xf]
      %v1529 = vld [vmem:[%s3 + $0x8c] sm:$0xf]
      %v1530 = vld [vmem:[%s3 + $0x90] sm:$0xf]
      %v1531 = vld [vmem:[%s3 + $0x94] sm:$0xf]
      %v1532 = vld [vmem:[%s3 + $0x98] sm:$0xf]
      %v1533 = vld [vmem:[%s3 + $0x9c] sm:$0xf]
      %v1534 = vld [vmem:[%s3 + $0xa0] sm:$0xf]
      %v1535 = vld [vmem:[%s3 + $0xa4] sm:$0xf]
      %v1536 = vld [vmem:[%s3 + $0xa8] sm:$0xf]
      %v1537 = vld [vmem:[%s3 + $0xac] sm:$0xf]
      %v1538 = vld [vmem:[%s3 + $0xb0] sm:$0xf]
      %v1539 = vld [vmem:[%s3 + $0xb4] sm:$0xf]
      %v1540 = vld [vmem:[%s3 + $0xb8] sm:$0xf]
      %v1541 = vld [vmem:[%s3 + $0xbc] sm:$0xf]
      %v1566 = vunpack.c.l.b16 %v1518
      %v1567 = vunpack.c.l.b16 %v1519
      %v1568 = vunpack.c.l.b16 %v1520
      %v1569 = vunpack.c.l.b16 %v1521
      %v1570 = vunpack.c.l.b16 %v1522
      %v1571 = vunpack.c.l.b16 %v1523
      %v1572 = vunpack.c.l.b16 %v1524
      %v1573 = vunpack.c.l.b16 %v1525
      %v1574 = vunpack.c.l.b16 %v1526
      %v1575 = vunpack.c.l.b16 %v1527
      %v1576 = vunpack.c.l.b16 %v1528
      %v1577 = vunpack.c.l.b16 %v1529
      %v1578 = vunpack.c.l.b16 %v1530
      %v1579 = vunpack.c.l.b16 %v1531
      %v1580 = vunpack.c.l.b16 %v1532
      %v1581 = vunpack.c.l.b16 %v1533
      %v1582 = vunpack.c.l.b16 %v1534
      %v1583 = vunpack.c.l.b16 %v1535
      %v1584 = vunpack.c.l.b16 %v1536
      %v1585 = vunpack.c.l.b16 %v1537
      %v1586 = vunpack.c.l.b16 %v1538
      %v1587 = vunpack.c.l.b16 %v1539
      %v1588 = vunpack.c.l.b16 %v1540
      %v1589 = vunpack.c.l.b16 %v1541
      %v1590 = vpack.c.b16 %v1567, %v1566
      %v1591 = vpack.c.b16 %v1569, %v1568
      %v1592 = vpack.c.b16 %v1571, %v1570
      %v1593 = vpack.c.b16 %v1573, %v1572
      %v1594 = vpack.c.b16 %v1575, %v1574
      %v1595 = vpack.c.b16 %v1577, %v1576
      %v1596 = vpack.c.b16 %v1579, %v1578
      %v1597 = vpack.c.b16 %v1581, %v1580
      %v1598 = vpack.c.b16 %v1583, %v1582
      %v1599 = vpack.c.b16 %v1585, %v1584
      %v1600 = vpack.c.b16 %v1587, %v1586
      %v1601 = vpack.c.b16 %v1589, %v1588
      %v1615 = vsel %vm1349, %v1063, 0
      %v1618 = vsel %vm1349, %v1064, 0
      %v1621 = vsel %vm1349, %v1065, 0
      %v1624 = vsel %vm1349, %v1066, 0
      %v1627 = vsel %vm1349, %v1067, 0
      %v1630 = vsel %vm1349, %v1068, 0
      %v1633 = vsel %vm1349, %v1069, 0
      %v1636 = vsel %vm1349, %v1070, 0
      %v1639 = vsel %vm1349, %v1071, 0
      %v1642 = vsel %vm1349, %v1072, 0
      %v1645 = vsel %vm1349, %v1073, 0
      %v1648 = vsel %vm1349, %v1074, 0
      %v1651 = vsel %vm1349, %v1075, 0
      %v1654 = vsel %vm1349, %v1076, 0
      %v1657 = vsel %vm1349, %v1077, 0
      %v1660 = vsel %vm1349, %v1078, 0
      %v1663 = vsel %vm1349, %v1079, 0
      %v1666 = vsel %vm1349, %v1080, 0
      %v1669 = vsel %vm1349, %v1081, 0
      %v1672 = vsel %vm1349, %v1082, 0
      %v1675 = vsel %vm1349, %v1083, 0
      %v1678 = vsel %vm1349, %v1084, 0
      %v1681 = vsel %vm1349, %v1085, 0
      %v1684 = vsel %vm1349, %v1086, 0
      %v1687 = vsel %vm1349, %v1087, 0
      %v1690 = vsel %vm1349, %v1088, 0
      %v1693 = vsel %vm1349, %v1089, 0
      %v1696 = vsel %vm1349, %v1090, 0
      %v1699 = vsel %vm1349, %v1091, 0
      %v1702 = vsel %vm1349, %v1092, 0
      %v1705 = vsel %vm1349, %v1093, 0
      %v1708 = vsel %vm1349, %v1094, 0
      %1710 = vmatprep.subr.bf16.mxu0 0
      %1711 = vmatpush1.bf16.msra.mxu0 %v1590
      %1712 = vmatprep.subr.bf16.mxu0 0
      %1713 = vmatpush1.bf16.msra.mxu0 %v1591
      %1714 = vmatprep.subr.bf16.mxu0 0
      %1715 = vmatpush1.bf16.msra.mxu0 %v1592
      %1716 = vmatprep.subr.bf16.mxu0 0
      %1717 = vmatpush1.bf16.msra.mxu0 %v1593
      %1718 = vmatprep.subr.bf16.mxu0 0
      %1719 = vmatpush1.bf16.msra.mxu0 %v1594
      %1720 = vmatprep.subr.bf16.mxu0 0
      %1721 = vmatpush1.bf16.msra.mxu0 %v1595
      %1722 = vmatprep.subr.bf16.mxu0 0
      %1723 = vmatpush1.bf16.msra.mxu0 %v1596
      %1724 = vmatprep.subr.bf16.mxu0 0
      %1725 = vmatpush1.bf16.msra.mxu0 %v1597
      %1726 = vmatprep.subr.bf16.mxu0 0
      %1727 = vmatpush1.bf16.msra.mxu0 %v1598
      %1728 = vmatprep.subr.bf16.mxu0 0
      %1729 = vmatpush1.bf16.msra.mxu0 %v1599
      %1730 = vmatprep.subr.bf16.mxu0 0
      %1731 = vmatpush1.bf16.msra.mxu0 %v1600
      %1732 = vmatprep.subr.bf16.mxu0 0
      %1733 = vmatpush1.bf16.msra.mxu0 %v1601
      %1734 = vmatprep.subr.bf16.mxu0 0
      %1735 = vmatpush1.bf16.msra.mxu0 0
      %1736 = vmatprep.subr.bf16.mxu0 0
      %1737 = vmatpush1.bf16.msra.mxu0 0
      %1738 = vmatprep.subr.bf16.mxu0 0
      %1739 = vmatpush1.bf16.msra.mxu0 0
      %1740 = vmatprep.subr.bf16.mxu0 0
      %1741 = vmatpush1.bf16.msra.mxu0 0
      %1742 = vmatprep.mubr.bf16.mxu0 %v1615
      %1743 = vmatmul.mubr.bf16.gmra.mrb[0].mxu0 %v1360
      %v1744 = vpop.f32.mrb[0].mxu0
      %v1745 = vadd.f32 0.0, %v1744
      %v1746 = vpop.f32.mrb[0].mxu0
      %v1747 = vpop.f32.mrb[0].mxu0
      %v1748 = vadd.f32 0.0, %v1747
      %v1749 = vpop.f32.mrb[0].mxu0
      %1750 = vmatprep.mubr.bf16.mxu0 %v1618
      %1751 = vmatmul.mubr.bf16.gmra.mrb[0].mxu0 %v1364
      %v1752 = vpop.f32.mrb[0].mxu0
      %v1753 = vadd.f32 0.0, %v1752
      %v1754 = vpop.f32.mrb[0].mxu0
      %v1755 = vpop.f32.mrb[0].mxu0
      %v1756 = vadd.f32 0.0, %v1755
      %v1757 = vpop.f32.mrb[0].mxu0
      %1758 = vmatprep.mubr.bf16.mxu0 %v1621
      %1759 = vmatmul.mubr.bf16.gmra.mrb[0].mxu0 %v1368
      %v1760 = vpop.f32.mrb[0].mxu0
      %v1761 = vadd.f32 0.0, %v1760
      %v1762 = vpop.f32.mrb[0].mxu0
      %v1763 = vpop.f32.mrb[0].mxu0
      %v1764 = vadd.f32 0.0, %v1763
      %v1765 = vpop.f32.mrb[0].mxu0
      %1766 = vmatprep.mubr.bf16.mxu0 %v1624
      %1767 = vmatmul.mubr.bf16.gmra.mrb[0].mxu0 %v1372
      %v1768 = vpop.f32.mrb[0].mxu0
      %v1769 = vadd.f32 0.0, %v1768
      %v1770 = vpop.f32.mrb[0].mxu0
      %v1771 = vpop.f32.mrb[0].mxu0
      %v1772 = vadd.f32 0.0, %v1771
      %v1773 = vpop.f32.mrb[0].mxu0
      %1774 = vmatprep.mubr.bf16.mxu0 %v1627
      %1775 = vmatmul.mubr.bf16.gmra.mrb[0].mxu0 %v1376
      %v1776 = vpop.f32.mrb[0].mxu0
      %v1777 = vadd.f32 0.0, %v1776
      %v1778 = vpop.f32.mrb[0].mxu0
      %v1779 = vpop.f32.mrb[0].mxu0
      %v1780 = vadd.f32 0.0, %v1779
      %v1781 = vpop.f32.mrb[0].mxu0
      %1782 = vmatprep.mubr.bf16.mxu0 %v1630
      %1783 = vmatmul.mubr.bf16.gmra.mrb[0].mxu0 %v1380
      %v1784 = vpop.f32.mrb[0].mxu0
      %v1785 = vadd.f32 0.0, %v1784
      %v1786 = vpop.f32.mrb[0].mxu0
      %v1787 = vpop.f32.mrb[0].mxu0
      %v1788 = vadd.f32 0.0, %v1787
      %v1789 = vpop.f32.mrb[0].mxu0
      %1790 = vmatprep.mubr.bf16.mxu0 %v1633
      %1791 = vmatmul.mubr.bf16.gmra.mrb[0].mxu0 %v1384
      %v1792 = vpop.f32.mrb[0].mxu0
      %v1793 = vadd.f32 0.0, %v1792
      %v1794 = vpop.f32.mrb[0].mxu0
      %v1795 = vpop.f32.mrb[0].mxu0
      %v1796 = vadd.f32 0.0, %v1795
      %v1797 = vpop.f32.mrb[0].mxu0
      %1798 = vmatprep.mubr.bf16.mxu0 %v1636
      %1799 = vmatmul.mubr.bf16.gmra.mrb[0].mxu0 %v1388
      %v1800 = vpop.f32.mrb[0].mxu0
      %v1801 = vadd.f32 0.0, %v1800
      %v1802 = vpop.f32.mrb[0].mxu0
      %v1803 = vpop.f32.mrb[0].mxu0
      %v1804 = vadd.f32 0.0, %v1803
      %v1805 = vpop.f32.mrb[0].mxu0
      %1806 = vmatprep.mubr.bf16.mxu0 %v1639
      %1807 = vmatmul.mubr.bf16.gmra.mrb[0].mxu0 %v1392
      %v1808 = vpop.f32.mrb[0].mxu0
      %v1809 = vadd.f32 0.0, %v1808
      %v1810 = vpop.f32.mrb[0].mxu0
      %v1811 = vpop.f32.mrb[0].mxu0
      %v1812 = vadd.f32 0.0, %v1811
      %v1813 = vpop.f32.mrb[0].mxu0
      %1814 = vmatprep.mubr.bf16.mxu0 %v1642
      %1815 = vmatmul.mubr.bf16.gmra.mrb[0].mxu0 %v1396
      %v1816 = vpop.f32.mrb[0].mxu0
      %v1817 = vadd.f32 0.0, %v1816
      %v1818 = vpop.f32.mrb[0].mxu0
      %v1819 = vpop.f32.mrb[0].mxu0
      %v1820 = vadd.f32 0.0, %v1819
      %v1821 = vpop.f32.mrb[0].mxu0
      %1822 = vmatprep.mubr.bf16.mxu0 %v1645
      %1823 = vmatmul.mubr.bf16.gmra.mrb[0].mxu0 %v1400
      %v1824 = vpop.f32.mrb[0].mxu0
      %v1825 = vadd.f32 0.0, %v1824
      %v1826 = vpop.f32.mrb[0].mxu0
      %v1827 = vpop.f32.mrb[0].mxu0
      %v1828 = vadd.f32 0.0, %v1827
      %v1829 = vpop.f32.mrb[0].mxu0
      %1830 = vmatprep.mubr.bf16.mxu0 %v1648
      %1831 = vmatmul.mubr.bf16.gmra.mrb[0].mxu0 %v1404
      %v1832 = vpop.f32.mrb[0].mxu0
      %v1833 = vadd.f32 0.0, %v1832
      %v1834 = vpop.f32.mrb[0].mxu0
      %v1835 = vpop.f32.mrb[0].mxu0
      %v1836 = vadd.f32 0.0, %v1835
      %v1837 = vpop.f32.mrb[0].mxu0
      %1838 = vmatprep.mubr.bf16.mxu0 %v1651
      %1839 = vmatmul.mubr.bf16.gmra.mrb[0].mxu0 %v1408
      %v1840 = vpop.f32.mrb[0].mxu0
      %v1841 = vadd.f32 0.0, %v1840
      %v1842 = vpop.f32.mrb[0].mxu0
      %v1843 = vpop.f32.mrb[0].mxu0
      %v1844 = vadd.f32 0.0, %v1843
      %v1845 = vpop.f32.mrb[0].mxu0
      %1846 = vmatprep.mubr.bf16.mxu0 %v1654
      %1847 = vmatmul.mubr.bf16.gmra.mrb[0].mxu0 %v1412
      %v1848 = vpop.f32.mrb[0].mxu0
      %v1849 = vadd.f32 0.0, %v1848
      %v1850 = vpop.f32.mrb[0].mxu0
      %v1851 = vpop.f32.mrb[0].mxu0
      %v1852 = vadd.f32 0.0, %v1851
      %v1853 = vpop.f32.mrb[0].mxu0
      %1854 = vmatprep.mubr.bf16.mxu0 %v1657
      %1855 = vmatmul.mubr.bf16.gmra.mrb[0].mxu0 %v1416
      %v1856 = vpop.f32.mrb[0].mxu0
      %v1857 = vadd.f32 0.0, %v1856
      %v1858 = vpop.f32.mrb[0].mxu0
      %v1859 = vpop.f32.mrb[0].mxu0
      %v1860 = vadd.f32 0.0, %v1859
      %v1861 = vpop.f32.mrb[0].mxu0
      %1862 = vmatprep.mubr.bf16.mxu0 %v1660
      %1863 = vmatmul.mubr.bf16.gmra.mrb[0].mxu0 %v1420
      %v1864 = vpop.f32.mrb[0].mxu0
      %v1865 = vadd.f32 0.0, %v1864
      %v1866 = vpop.f32.mrb[0].mxu0
      %v1867 = vpop.f32.mrb[0].mxu0
      %v1868 = vadd.f32 0.0, %v1867
      %v1869 = vpop.f32.mrb[0].mxu0
      %1870 = vmatprep.mubr.bf16.mxu0 %v1663
      %1871 = vmatmul.mubr.bf16.gmra.mrb[0].mxu0 %v1424
      %v1872 = vpop.f32.mrb[0].mxu0
      %v1873 = vadd.f32 0.0, %v1872
      %v1874 = vpop.f32.mrb[0].mxu0
      %v1875 = vpop.f32.mrb[0].mxu0
      %v1876 = vadd.f32 0.0, %v1875
      %v1877 = vpop.f32.mrb[0].mxu0
      %1878 = vmatprep.mubr.bf16.mxu0 %v1666
      %1879 = vmatmul.mubr.bf16.gmra.mrb[0].mxu0 %v1428
      %v1880 = vpop.f32.mrb[0].mxu0
      %v1881 = vadd.f32 0.0, %v1880
      %v1882 = vpop.f32.mrb[0].mxu0
      %v1883 = vpop.f32.mrb[0].mxu0
      %v1884 = vadd.f32 0.0, %v1883
      %v1885 = vpop.f32.mrb[0].mxu0
      %1886 = vmatprep.mubr.bf16.mxu0 %v1669
      %1887 = vmatmul.mubr.bf16.gmra.mrb[0].mxu0 %v1432
      %v1888 = vpop.f32.mrb[0].mxu0
      %v1889 = vadd.f32 0.0, %v1888
      %v1890 = vpop.f32.mrb[0].mxu0
      %v1891 = vpop.f32.mrb[0].mxu0
      %v1892 = vadd.f32 0.0, %v1891
      %v1893 = vpop.f32.mrb[0].mxu0
      %1894 = vmatprep.mubr.bf16.mxu0 %v1672
      %1895 = vmatmul.mubr.bf16.gmra.mrb[0].mxu0 %v1436
      %v1896 = vpop.f32.mrb[0].mxu0
      %v1897 = vadd.f32 0.0, %v1896
      %v1898 = vpop.f32.mrb[0].mxu0
      %v1899 = vpop.f32.mrb[0].mxu0
      %v1900 = vadd.f32 0.0, %v1899
      %v1901 = vpop.f32.mrb[0].mxu0
      %1902 = vmatprep.mubr.bf16.mxu0 %v1675
      %1903 = vmatmul.mubr.bf16.gmra.mrb[0].mxu0 %v1440
      %v1904 = vpop.f32.mrb[0].mxu0
      %v1905 = vadd.f32 0.0, %v1904
      %v1906 = vpop.f32.mrb[0].mxu0
      %v1907 = vpop.f32.mrb[0].mxu0
      %v1908 = vadd.f32 0.0, %v1907
      %v1909 = vpop.f32.mrb[0].mxu0
      %1910 = vmatprep.mubr.bf16.mxu0 %v1678
      %1911 = vmatmul.mubr.bf16.gmra.mrb[0].mxu0 %v1444
      %v1912 = vpop.f32.mrb[0].mxu0
      %v1913 = vadd.f32 0.0, %v1912
      %v1914 = vpop.f32.mrb[0].mxu0
      %v1915 = vpop.f32.mrb[0].mxu0
      %v1916 = vadd.f32 0.0, %v1915
      %v1917 = vpop.f32.mrb[0].mxu0
      %1918 = vmatprep.mubr.bf16.mxu0 %v1681
      %1919 = vmatmul.mubr.bf16.gmra.mrb[0].mxu0 %v1448
      %v1920 = vpop.f32.mrb[0].mxu0
      %v1921 = vadd.f32 0.0, %v1920
      %v1922 = vpop.f32.mrb[0].mxu0
      %v1923 = vpop.f32.mrb[0].mxu0
      %v1924 = vadd.f32 0.0, %v1923
      %v1925 = vpop.f32.mrb[0].mxu0
      %1926 = vmatprep.mubr.bf16.mxu0 %v1684
      %1927 = vmatmul.mubr.bf16.gmra.mrb[0].mxu0 %v1452
      %v1928 = vpop.f32.mrb[0].mxu0
      %v1929 = vadd.f32 0.0, %v1928
      %v1930 = vpop.f32.mrb[0].mxu0
      %v1931 = vpop.f32.mrb[0].mxu0
      %v1932 = vadd.f32 0.0, %v1931
      %v1933 = vpop.f32.mrb[0].mxu0
      %1934 = vmatprep.mubr.bf16.mxu0 %v1687
      %1935 = vmatmul.mubr.bf16.gmra.mrb[0].mxu0 %v1456
      %v1936 = vpop.f32.mrb[0].mxu0
      %v1937 = vadd.f32 0.0, %v1936
      %v1938 = vpop.f32.mrb[0].mxu0
      %v1939 = vpop.f32.mrb[0].mxu0
      %v1940 = vadd.f32 0.0, %v1939
      %v1941 = vpop.f32.mrb[0].mxu0
      %1942 = vmatprep.mubr.bf16.mxu0 %v1690
      %1943 = vmatmul.mubr.bf16.gmra.mrb[0].mxu0 %v1460
      %v1944 = vpop.f32.mrb[0].mxu0
      %v1945 = vadd.f32 0.0, %v1944
      %v1946 = vpop.f32.mrb[0].mxu0
      %v1947 = vpop.f32.mrb[0].mxu0
      %v1948 = vadd.f32 0.0, %v1947
      %v1949 = vpop.f32.mrb[0].mxu0
      %1950 = vmatprep.mubr.bf16.mxu0 %v1693
      %1951 = vmatmul.mubr.bf16.gmra.mrb[0].mxu0 %v1464
      %v1952 = vpop.f32.mrb[0].mxu0
      %v1953 = vadd.f32 0.0, %v1952
      %v1954 = vpop.f32.mrb[0].mxu0
      %v1955 = vpop.f32.mrb[0].mxu0
      %v1956 = vadd.f32 0.0, %v1955
      %v1957 = vpop.f32.mrb[0].mxu0
      %1958 = vmatprep.mubr.bf16.mxu0 %v1696
      %1959 = vmatmul.mubr.bf16.gmra.mrb[0].mxu0 %v1468
      %v1960 = vpop.f32.mrb[0].mxu0
      %v1961 = vadd.f32 0.0, %v1960
      %v1962 = vpop.f32.mrb[0].mxu0
      %v1963 = vpop.f32.mrb[0].mxu0
      %v1964 = vadd.f32 0.0, %v1963
      %v1965 = vpop.f32.mrb[0].mxu0
      %1966 = vmatprep.mubr.bf16.mxu0 %v1699
      %1967 = vmatmul.mubr.bf16.gmra.mrb[0].mxu0 %v1472
      %v1968 = vpop.f32.mrb[0].mxu0
      %v1969 = vadd.f32 0.0, %v1968
      %v1970 = vpop.f32.mrb[0].mxu0
      %v1971 = vpop.f32.mrb[0].mxu0
      %v1972 = vadd.f32 0.0, %v1971
      %v1973 = vpop.f32.mrb[0].mxu0
      %1974 = vmatprep.mubr.bf16.mxu0 %v1702
      %1975 = vmatmul.mubr.bf16.gmra.mrb[0].mxu0 %v1476
      %v1976 = vpop.f32.mrb[0].mxu0
      %v1977 = vadd.f32 0.0, %v1976
      %v1978 = vpop.f32.mrb[0].mxu0
      %v1979 = vpop.f32.mrb[0].mxu0
      %v1980 = vadd.f32 0.0, %v1979
      %v1981 = vpop.f32.mrb[0].mxu0
      %1982 = vmatprep.mubr.bf16.mxu0 %v1705
      %1983 = vmatmul.mubr.bf16.gmra.mrb[0].mxu0 %v1480
      %v1984 = vpop.f32.mrb[0].mxu0
      %v1985 = vadd.f32 0.0, %v1984
      %v1986 = vpop.f32.mrb[0].mxu0
      %v1987 = vpop.f32.mrb[0].mxu0
      %v1988 = vadd.f32 0.0, %v1987
      %v1989 = vpop.f32.mrb[0].mxu0
      %1990 = vmatprep.mubr.bf16.mxu0 %v1708
      %1991 = vmatmul.mubr.bf16.gmra.mrb[0].mxu0 %v1484
      %v1992 = vpop.f32.mrb[0].mxu0
      %v1993 = vadd.f32 0.0, %v1992
      %v1994 = vpop.f32.mrb[0].mxu0
      %v1995 = vpop.f32.mrb[0].mxu0
      %v1996 = vadd.f32 0.0, %v1995
      %v1997 = vpop.f32.mrb[0].mxu0
      %1998 = vdwg.mxu0
      %v2023 = vunpack.c.l.b16 %v1494
      %v2024 = vunpack.c.l.b16 %v1495
      %v2025 = vunpack.c.l.b16 %v1496
      %v2026 = vunpack.c.l.b16 %v1497
      %v2027 = vunpack.c.l.b16 %v1498
      %v2028 = vunpack.c.l.b16 %v1499
      %v2029 = vunpack.c.l.b16 %v1500
      %v2030 = vunpack.c.l.b16 %v1501
      %v2031 = vunpack.c.l.b16 %v1502
      %v2032 = vunpack.c.l.b16 %v1503
      %v2033 = vunpack.c.l.b16 %v1504
      %v2034 = vunpack.c.l.b16 %v1505
      %v2035 = vunpack.c.l.b16 %v1506
      %v2036 = vunpack.c.l.b16 %v1507
      %v2037 = vunpack.c.l.b16 %v1508
      %v2038 = vunpack.c.l.b16 %v1509
      %v2039 = vunpack.c.l.b16 %v1510
      %v2040 = vunpack.c.l.b16 %v1511
      %v2041 = vunpack.c.l.b16 %v1512
      %v2042 = vunpack.c.l.b16 %v1513
      %v2043 = vunpack.c.l.b16 %v1514
      %v2044 = vunpack.c.l.b16 %v1515
      %v2045 = vunpack.c.l.b16 %v1516
      %v2046 = vunpack.c.l.b16 %v1517
      %v2047 = vpack.c.b16 %v2024, %v2023
      %v2048 = vpack.c.b16 %v2026, %v2025
      %v2049 = vpack.c.b16 %v2028, %v2027
      %v2050 = vpack.c.b16 %v2030, %v2029
      %v2051 = vpack.c.b16 %v2032, %v2031
      %v2052 = vpack.c.b16 %v2034, %v2033
      %v2053 = vpack.c.b16 %v2036, %v2035
      %v2054 = vpack.c.b16 %v2038, %v2037
      %v2055 = vpack.c.b16 %v2040, %v2039
      %v2056 = vpack.c.b16 %v2042, %v2041
      %v2057 = vpack.c.b16 %v2044, %v2043
      %v2058 = vpack.c.b16 %v2046, %v2045
      %v2072 = vsel %vm1349, %v1061, 0
      %v2075 = vsel %vm1349, %v1062, 0
      %2077 = vmatprep.subr.bf16.mxu0 0
      %2078 = vmatpush1.bf16.msra.mxu0 %v2047
      %2079 = vmatprep.subr.bf16.mxu0 0
      %2080 = vmatpush1.bf16.msra.mxu0 %v2048
      %2081 = vmatprep.subr.bf16.mxu0 0
      %2082 = vmatpush1.bf16.msra.mxu0 %v2049
      %2083 = vmatprep.subr.bf16.mxu0 0
      %2084 = vmatpush1.bf16.msra.mxu0 %v2050
      %2085 = vmatprep.subr.bf16.mxu0 0
      %2086 = vmatpush1.bf16.msra.mxu0 %v2051
      %2087 = vmatprep.subr.bf16.mxu0 0
      %2088 = vmatpush1.bf16.msra.mxu0 %v2052
      %2089 = vmatprep.subr.bf16.mxu0 0
      %2090 = vmatpush1.bf16.msra.mxu0 %v2053
      %2091 = vmatprep.subr.bf16.mxu0 0
      %2092 = vmatpush1.bf16.msra.mxu0 %v2054
      %2093 = vmatprep.subr.bf16.mxu0 0
      %2094 = vmatpush1.bf16.msra.mxu0 %v2055
      %2095 = vmatprep.subr.bf16.mxu0 0
      %2096 = vmatpush1.bf16.msra.mxu0 %v2056
      %2097 = vmatprep.subr.bf16.mxu0 0
      %2098 = vmatpush1.bf16.msra.mxu0 %v2057
      %2099 = vmatprep.subr.bf16.mxu0 0
      %2100 = vmatpush1.bf16.msra.mxu0 %v2058
      %2101 = vmatprep.subr.bf16.mxu0 0
      %2102 = vmatpush1.bf16.msra.mxu0 0
      %2103 = vmatprep.subr.bf16.mxu0 0
      %2104 = vmatpush1.bf16.msra.mxu0 0
      %2105 = vmatprep.subr.bf16.mxu0 0
      %2106 = vmatpush1.bf16.msra.mxu0 0
      %2107 = vmatprep.subr.bf16.mxu0 0
      %2108 = vmatpush1.bf16.msra.mxu0 0
      %2109 = vmatprep.mubr.bf16.mxu0 %v2072
      %2110 = vmatmul.mubr.bf16.gmra.mrb[0].mxu0 %v1352
      %v2111 = vpop.f32.mrb[0].mxu0
      %v2112 = vadd.f32 %v1745, %v2111
      %v2113 = vpop.f32.mrb[0].mxu0
      %v2114 = vpop.f32.mrb[0].mxu0
      %v2115 = vadd.f32 %v1748, %v2114
      %v2116 = vpop.f32.mrb[0].mxu0
      %2117 = vmatprep.mubr.bf16.mxu0 %v2075
      %2118 = vmatmul.mubr.bf16.gmra.mrb[0].mxu0 %v1356
      %v2119 = vpop.f32.mrb[0].mxu0
      %v2120 = vadd.f32 %v1753, %v2119
      %v2121 = vpop.f32.mrb[0].mxu0
      %v2122 = vpop.f32.mrb[0].mxu0
      %v2123 = vadd.f32 %v1756, %v2122
      %v2124 = vpop.f32.mrb[0].mxu0
      %2125 = vmatprep.mubr.bf16.mxu0 %v1615
      %2126 = vmatmul.mubr.bf16.gmra.mrb[0].mxu0 %v1360
      %v2127 = vpop.f32.mrb[0].mxu0
      %v2128 = vadd.f32 %v1761, %v2127
      %v2129 = vpop.f32.mrb[0].mxu0
      %v2130 = vpop.f32.mrb[0].mxu0
      %v2131 = vadd.f32 %v1764, %v2130
      %v2132 = vpop.f32.mrb[0].mxu0
      %2133 = vmatprep.mubr.bf16.mxu0 %v1618
      %2134 = vmatmul.mubr.bf16.gmra.mrb[0].mxu0 %v1364
      %v2135 = vpop.f32.mrb[0].mxu0
      %v2136 = vadd.f32 %v1769, %v2135
      %v2137 = vpop.f32.mrb[0].mxu0
      %v2138 = vpop.f32.mrb[0].mxu0
      %v2139 = vadd.f32 %v1772, %v2138
      %v2140 = vpop.f32.mrb[0].mxu0
      %2141 = vmatprep.mubr.bf16.mxu0 %v1621
      %2142 = vmatmul.mubr.bf16.gmra.mrb[0].mxu0 %v1368
      %v2143 = vpop.f32.mrb[0].mxu0
      %v2144 = vadd.f32 %v1777, %v2143
      %v2145 = vpop.f32.mrb[0].mxu0
      %v2146 = vpop.f32.mrb[0].mxu0
      %v2147 = vadd.f32 %v1780, %v2146
      %v2148 = vpop.f32.mrb[0].mxu0
      %2149 = vmatprep.mubr.bf16.mxu0 %v1624
      %2150 = vmatmul.mubr.bf16.gmra.mrb[0].mxu0 %v1372
      %v2151 = vpop.f32.mrb[0].mxu0
      %v2152 = vadd.f32 %v1785, %v2151
      %v2153 = vpop.f32.mrb[0].mxu0
      %v2154 = vpop.f32.mrb[0].mxu0
      %v2155 = vadd.f32 %v1788, %v2154
      %v2156 = vpop.f32.mrb[0].mxu0
      %2157 = vmatprep.mubr.bf16.mxu0 %v1627
      %2158 = vmatmul.mubr.bf16.gmra.mrb[0].mxu0 %v1376
      %v2159 = vpop.f32.mrb[0].mxu0
      %v2160 = vadd.f32 %v1793, %v2159
      %v2161 = vpop.f32.mrb[0].mxu0
      %v2162 = vpop.f32.mrb[0].mxu0
      %v2163 = vadd.f32 %v1796, %v2162
      %v2164 = vpop.f32.mrb[0].mxu0
      %2165 = vmatprep.mubr.bf16.mxu0 %v1630
      %2166 = vmatmul.mubr.bf16.gmra.mrb[0].mxu0 %v1380
      %v2167 = vpop.f32.mrb[0].mxu0
      %v2168 = vadd.f32 %v1801, %v2167
      %v2169 = vpop.f32.mrb[0].mxu0
      %v2170 = vpop.f32.mrb[0].mxu0
      %v2171 = vadd.f32 %v1804, %v2170
      %v2172 = vpop.f32.mrb[0].mxu0
      %2173 = vmatprep.mubr.bf16.mxu0 %v1633
      %2174 = vmatmul.mubr.bf16.gmra.mrb[0].mxu0 %v1384
      %v2175 = vpop.f32.mrb[0].mxu0
      %v2176 = vadd.f32 %v1809, %v2175
      %v2177 = vpop.f32.mrb[0].mxu0
      %v2178 = vpop.f32.mrb[0].mxu0
      %v2179 = vadd.f32 %v1812, %v2178
      %v2180 = vpop.f32.mrb[0].mxu0
      %2181 = vmatprep.mubr.bf16.mxu0 %v1636
      %2182 = vmatmul.mubr.bf16.gmra.mrb[0].mxu0 %v1388
      %v2183 = vpop.f32.mrb[0].mxu0
      %v2184 = vadd.f32 %v1817, %v2183
      %v2185 = vpop.f32.mrb[0].mxu0
      %v2186 = vpop.f32.mrb[0].mxu0
      %v2187 = vadd.f32 %v1820, %v2186
      %v2188 = vpop.f32.mrb[0].mxu0
      %2189 = vmatprep.mubr.bf16.mxu0 %v1639
      %2190 = vmatmul.mubr.bf16.gmra.mrb[0].mxu0 %v1392
      %v2191 = vpop.f32.mrb[0].mxu0
      %v2192 = vadd.f32 %v1825, %v2191
      %v2193 = vpop.f32.mrb[0].mxu0
      %v2194 = vpop.f32.mrb[0].mxu0
      %v2195 = vadd.f32 %v1828, %v2194
      %v2196 = vpop.f32.mrb[0].mxu0
      %2197 = vmatprep.mubr.bf16.mxu0 %v1642
      %2198 = vmatmul.mubr.bf16.gmra.mrb[0].mxu0 %v1396
      %v2199 = vpop.f32.mrb[0].mxu0
      %v2200 = vadd.f32 %v1833, %v2199
      %v2201 = vpop.f32.mrb[0].mxu0
      %v2202 = vpop.f32.mrb[0].mxu0
      %v2203 = vadd.f32 %v1836, %v2202
      %v2204 = vpop.f32.mrb[0].mxu0
      %2205 = vmatprep.mubr.bf16.mxu0 %v1645
      %2206 = vmatmul.mubr.bf16.gmra.mrb[0].mxu0 %v1400
      %v2207 = vpop.f32.mrb[0].mxu0
      %v2208 = vadd.f32 %v1841, %v2207
      %v2209 = vpop.f32.mrb[0].mxu0
      %v2210 = vpop.f32.mrb[0].mxu0
      %v2211 = vadd.f32 %v1844, %v2210
      %v2212 = vpop.f32.mrb[0].mxu0
      %2213 = vmatprep.mubr.bf16.mxu0 %v1648
      %2214 = vmatmul.mubr.bf16.gmra.mrb[0].mxu0 %v1404
      %v2215 = vpop.f32.mrb[0].mxu0
      %v2216 = vadd.f32 %v1849, %v2215
      %v2217 = vpop.f32.mrb[0].mxu0
      %v2218 = vpop.f32.mrb[0].mxu0
      %v2219 = vadd.f32 %v1852, %v2218
      %v2220 = vpop.f32.mrb[0].mxu0
      %2221 = vmatprep.mubr.bf16.mxu0 %v1651
      %2222 = vmatmul.mubr.bf16.gmra.mrb[0].mxu0 %v1408
      %v2223 = vpop.f32.mrb[0].mxu0
      %v2224 = vadd.f32 %v1857, %v2223
      %v2225 = vpop.f32.mrb[0].mxu0
      %v2226 = vpop.f32.mrb[0].mxu0
      %v2227 = vadd.f32 %v1860, %v2226
      %v2228 = vpop.f32.mrb[0].mxu0
      %2229 = vmatprep.mubr.bf16.mxu0 %v1654
      %2230 = vmatmul.mubr.bf16.gmra.mrb[0].mxu0 %v1412
      %v2231 = vpop.f32.mrb[0].mxu0
      %v2232 = vadd.f32 %v1865, %v2231
      %v2233 = vpop.f32.mrb[0].mxu0
      %v2234 = vpop.f32.mrb[0].mxu0
      %v2235 = vadd.f32 %v1868, %v2234
      %v2236 = vpop.f32.mrb[0].mxu0
      %2237 = vmatprep.mubr.bf16.mxu0 %v1657
      %2238 = vmatmul.mubr.bf16.gmra.mrb[0].mxu0 %v1416
      %v2239 = vpop.f32.mrb[0].mxu0
      %v2240 = vadd.f32 %v1873, %v2239
      %v2241 = vpop.f32.mrb[0].mxu0
      %v2242 = vpop.f32.mrb[0].mxu0
      %v2243 = vadd.f32 %v1876, %v2242
      %v2244 = vpop.f32.mrb[0].mxu0
      %2245 = vmatprep.mubr.bf16.mxu0 %v1660
      %2246 = vmatmul.mubr.bf16.gmra.mrb[0].mxu0 %v1420
      %v2247 = vpop.f32.mrb[0].mxu0
      %v2248 = vadd.f32 %v1881, %v2247
      %v2249 = vpop.f32.mrb[0].mxu0
      %v2250 = vpop.f32.mrb[0].mxu0
      %v2251 = vadd.f32 %v1884, %v2250
      %v2252 = vpop.f32.mrb[0].mxu0
      %2253 = vmatprep.mubr.bf16.mxu0 %v1663
      %2254 = vmatmul.mubr.bf16.gmra.mrb[0].mxu0 %v1424
      %v2255 = vpop.f32.mrb[0].mxu0
      %v2256 = vadd.f32 %v1889, %v2255
      %v2257 = vpop.f32.mrb[0].mxu0
      %v2258 = vpop.f32.mrb[0].mxu0
      %v2259 = vadd.f32 %v1892, %v2258
      %v2260 = vpop.f32.mrb[0].mxu0
      %2261 = vmatprep.mubr.bf16.mxu0 %v1666
      %2262 = vmatmul.mubr.bf16.gmra.mrb[0].mxu0 %v1428
      %v2263 = vpop.f32.mrb[0].mxu0
      %v2264 = vadd.f32 %v1897, %v2263
      %v2265 = vpop.f32.mrb[0].mxu0
      %v2266 = vpop.f32.mrb[0].mxu0
      %v2267 = vadd.f32 %v1900, %v2266
      %v2268 = vpop.f32.mrb[0].mxu0
      %2269 = vmatprep.mubr.bf16.mxu0 %v1669
      %2270 = vmatmul.mubr.bf16.gmra.mrb[0].mxu0 %v1432
      %v2271 = vpop.f32.mrb[0].mxu0
      %v2272 = vadd.f32 %v1905, %v2271
      %v2273 = vpop.f32.mrb[0].mxu0
      %v2274 = vpop.f32.mrb[0].mxu0
      %v2275 = vadd.f32 %v1908, %v2274
      %v2276 = vpop.f32.mrb[0].mxu0
      %2277 = vmatprep.mubr.bf16.mxu0 %v1672
      %2278 = vmatmul.mubr.bf16.gmra.mrb[0].mxu0 %v1436
      %v2279 = vpop.f32.mrb[0].mxu0
      %v2280 = vadd.f32 %v1913, %v2279
      %v2281 = vpop.f32.mrb[0].mxu0
      %v2282 = vpop.f32.mrb[0].mxu0
      %v2283 = vadd.f32 %v1916, %v2282
      %v2284 = vpop.f32.mrb[0].mxu0
      %2285 = vmatprep.mubr.bf16.mxu0 %v1675
      %2286 = vmatmul.mubr.bf16.gmra.mrb[0].mxu0 %v1440
      %v2287 = vpop.f32.mrb[0].mxu0
      %v2288 = vadd.f32 %v1921, %v2287
      %v2289 = vpop.f32.mrb[0].mxu0
      %v2290 = vpop.f32.mrb[0].mxu0
      %v2291 = vadd.f32 %v1924, %v2290
      %v2292 = vpop.f32.mrb[0].mxu0
      %2293 = vmatprep.mubr.bf16.mxu0 %v1678
      %2294 = vmatmul.mubr.bf16.gmra.mrb[0].mxu0 %v1444
      %v2295 = vpop.f32.mrb[0].mxu0
      %v2296 = vadd.f32 %v1929, %v2295
      %v2297 = vpop.f32.mrb[0].mxu0
      %v2298 = vpop.f32.mrb[0].mxu0
      %v2299 = vadd.f32 %v1932, %v2298
      %v2300 = vpop.f32.mrb[0].mxu0
      %2301 = vmatprep.mubr.bf16.mxu0 %v1681
      %2302 = vmatmul.mubr.bf16.gmra.mrb[0].mxu0 %v1448
      %v2303 = vpop.f32.mrb[0].mxu0
      %v2304 = vadd.f32 %v1937, %v2303
      %v2305 = vpop.f32.mrb[0].mxu0
      %v2306 = vpop.f32.mrb[0].mxu0
      %v2307 = vadd.f32 %v1940, %v2306
      %v2308 = vpop.f32.mrb[0].mxu0
      %2309 = vmatprep.mubr.bf16.mxu0 %v1684
      %2310 = vmatmul.mubr.bf16.gmra.mrb[0].mxu0 %v1452
      %v2311 = vpop.f32.mrb[0].mxu0
      %v2312 = vadd.f32 %v1945, %v2311
      %v2313 = vpop.f32.mrb[0].mxu0
      %v2314 = vpop.f32.mrb[0].mxu0
      %v2315 = vadd.f32 %v1948, %v2314
      %v2316 = vpop.f32.mrb[0].mxu0
      %2317 = vmatprep.mubr.bf16.mxu0 %v1687
      %2318 = vmatmul.mubr.bf16.gmra.mrb[0].mxu0 %v1456
      %v2319 = vpop.f32.mrb[0].mxu0
      %v2320 = vadd.f32 %v1953, %v2319
      %v2321 = vpop.f32.mrb[0].mxu0
      %v2322 = vpop.f32.mrb[0].mxu0
      %v2323 = vadd.f32 %v1956, %v2322
      %v2324 = vpop.f32.mrb[0].mxu0
      %2325 = vmatprep.mubr.bf16.mxu0 %v1690
      %2326 = vmatmul.mubr.bf16.gmra.mrb[0].mxu0 %v1460
      %v2327 = vpop.f32.mrb[0].mxu0
      %v2328 = vadd.f32 %v1961, %v2327
      %v2329 = vpop.f32.mrb[0].mxu0
      %v2330 = vpop.f32.mrb[0].mxu0
      %v2331 = vadd.f32 %v1964, %v2330
      %v2332 = vpop.f32.mrb[0].mxu0
      %2333 = vmatprep.mubr.bf16.mxu0 %v1693
      %2334 = vmatmul.mubr.bf16.gmra.mrb[0].mxu0 %v1464
      %v2335 = vpop.f32.mrb[0].mxu0
      %v2336 = vadd.f32 %v1969, %v2335
      %v2337 = vpop.f32.mrb[0].mxu0
      %v2338 = vpop.f32.mrb[0].mxu0
      %v2339 = vadd.f32 %v1972, %v2338
      %v2340 = vpop.f32.mrb[0].mxu0
      %2341 = vmatprep.mubr.bf16.mxu0 %v1696
      %2342 = vmatmul.mubr.bf16.gmra.mrb[0].mxu0 %v1468
      %v2343 = vpop.f32.mrb[0].mxu0
      %v2344 = vadd.f32 %v1977, %v2343
      %v2345 = vpop.f32.mrb[0].mxu0
      %v2346 = vpop.f32.mrb[0].mxu0
      %v2347 = vadd.f32 %v1980, %v2346
      %v2348 = vpop.f32.mrb[0].mxu0
      %2349 = vmatprep.mubr.bf16.mxu0 %v1699
      %2350 = vmatmul.mubr.bf16.gmra.mrb[0].mxu0 %v1472
      %v2351 = vpop.f32.mrb[0].mxu0
      %v2352 = vadd.f32 %v1985, %v2351
      %v2353 = vpop.f32.mrb[0].mxu0
      %v2354 = vpop.f32.mrb[0].mxu0
      %v2355 = vadd.f32 %v1988, %v2354
      %v2356 = vpop.f32.mrb[0].mxu0
      %2357 = vmatprep.mubr.bf16.mxu0 %v1702
      %2358 = vmatmul.mubr.bf16.gmra.mrb[0].mxu0 %v1476
      %v2359 = vpop.f32.mrb[0].mxu0
      %v2360 = vadd.f32 %v1993, %v2359
      %v2361 = vpop.f32.mrb[0].mxu0
      %v2362 = vpop.f32.mrb[0].mxu0
      %v2363 = vadd.f32 %v1996, %v2362
      %v2364 = vpop.f32.mrb[0].mxu0
      %2365 = vdwg.mxu0
      %v2366 = vld [vmem:[%s3 + $0xc0] sm:$0xf]
      %v2367 = vld [vmem:[%s3 + $0xc4] sm:$0xf]
      %v2368 = vld [vmem:[%s3 + $0xc8] sm:$0xf]
      %v2369 = vld [vmem:[%s3 + $0xcc] sm:$0xf]
      %v2370 = vld [vmem:[%s3 + $0xd0] sm:$0xf]
      %v2371 = vld [vmem:[%s3 + $0xd4] sm:$0xf]
      %v2372 = vld [vmem:[%s3 + $0xd8] sm:$0xf]
      %v2373 = vld [vmem:[%s3 + $0xdc] sm:$0xf]
      %v2374 = vld [vmem:[%s3 + $0xe0] sm:$0xf]
      %v2375 = vld [vmem:[%s3 + $0xe4] sm:$0xf]
      %v2376 = vld [vmem:[%s3 + $0xe8] sm:$0xf]
      %v2377 = vld [vmem:[%s3 + $0xec] sm:$0xf]
      %v2378 = vld [vmem:[%s3 + $0xf0] sm:$0xf]
      %v2379 = vld [vmem:[%s3 + $0xf4] sm:$0xf]
      %v2380 = vld [vmem:[%s3 + $0xf8] sm:$0xf]
      %v2381 = vld [vmem:[%s3 + $0xfc] sm:$0xf]
      %v2382 = vld [vmem:[%s3 + $0x100] sm:$0xf]
      %v2383 = vld [vmem:[%s3 + $0x104] sm:$0xf]
      %v2384 = vld [vmem:[%s3 + $0x108] sm:$0xf]
      %v2385 = vld [vmem:[%s3 + $0x10c] sm:$0xf]
      %v2386 = vld [vmem:[%s3 + $0x110] sm:$0xf]
      %v2387 = vld [vmem:[%s3 + $0x114] sm:$0xf]
      %v2388 = vld [vmem:[%s3 + $0x118] sm:$0xf]
      %v2389 = vld [vmem:[%s3 + $0x11c] sm:$0xf]
      %v2414 = vunpack.c.l.b16 %v2366
      %v2415 = vunpack.c.l.b16 %v2367
      %v2416 = vunpack.c.l.b16 %v2368
      %v2417 = vunpack.c.l.b16 %v2369
      %v2418 = vunpack.c.l.b16 %v2370
      %v2419 = vunpack.c.l.b16 %v2371
      %v2420 = vunpack.c.l.b16 %v2372
      %v2421 = vunpack.c.l.b16 %v2373
      %v2422 = vunpack.c.l.b16 %v2374
      %v2423 = vunpack.c.l.b16 %v2375
      %v2424 = vunpack.c.l.b16 %v2376
      %v2425 = vunpack.c.l.b16 %v2377
      %v2426 = vunpack.c.l.b16 %v2378
      %v2427 = vunpack.c.l.b16 %v2379
      %v2428 = vunpack.c.l.b16 %v2380
      %v2429 = vunpack.c.l.b16 %v2381
      %v2430 = vunpack.c.l.b16 %v2382
      %v2431 = vunpack.c.l.b16 %v2383
      %v2432 = vunpack.c.l.b16 %v2384
      %v2433 = vunpack.c.l.b16 %v2385
      %v2434 = vunpack.c.l.b16 %v2386
      %v2435 = vunpack.c.l.b16 %v2387
      %v2436 = vunpack.c.l.b16 %v2388
      %v2437 = vunpack.c.l.b16 %v2389
      %v2438 = vpack.c.b16 %v2415, %v2414
      %v2439 = vpack.c.b16 %v2417, %v2416
      %v2440 = vpack.c.b16 %v2419, %v2418
      %v2441 = vpack.c.b16 %v2421, %v2420
      %v2442 = vpack.c.b16 %v2423, %v2422
      %v2443 = vpack.c.b16 %v2425, %v2424
      %v2444 = vpack.c.b16 %v2427, %v2426
      %v2445 = vpack.c.b16 %v2429, %v2428
      %v2446 = vpack.c.b16 %v2431, %v2430
      %v2447 = vpack.c.b16 %v2433, %v2432
      %v2448 = vpack.c.b16 %v2435, %v2434
      %v2449 = vpack.c.b16 %v2437, %v2436
      %v2463 = vsel %vm1349, %v1095, 0
      %v2466 = vsel %vm1349, %v1096, 0
      %2468 = vmatprep.subr.bf16.mxu0 0
      %2469 = vmatpush1.bf16.msra.mxu0 %v2438
      %2470 = vmatprep.subr.bf16.mxu0 0
      %2471 = vmatpush1.bf16.msra.mxu0 %v2439
      %2472 = vmatprep.subr.bf16.mxu0 0
      %2473 = vmatpush1.bf16.msra.mxu0 %v2440
      %2474 = vmatprep.subr.bf16.mxu0 0
      %2475 = vmatpush1.bf16.msra.mxu0 %v2441
      %2476 = vmatprep.subr.bf16.mxu0 0
      %2477 = vmatpush1.bf16.msra.mxu0 %v2442
      %2478 = vmatprep.subr.bf16.mxu0 0
      %2479 = vmatpush1.bf16.msra.mxu0 %v2443
      %2480 = vmatprep.subr.bf16.mxu0 0
      %2481 = vmatpush1.bf16.msra.mxu0 %v2444
      %2482 = vmatprep.subr.bf16.mxu0 0
      %2483 = vmatpush1.bf16.msra.mxu0 %v2445
      %2484 = vmatprep.subr.bf16.mxu0 0
      %2485 = vmatpush1.bf16.msra.mxu0 %v2446
      %2486 = vmatprep.subr.bf16.mxu0 0
      %2487 = vmatpush1.bf16.msra.mxu0 %v2447
      %2488 = vmatprep.subr.bf16.mxu0 0
      %2489 = vmatpush1.bf16.msra.mxu0 %v2448
      %2490 = vmatprep.subr.bf16.mxu0 0
      %2491 = vmatpush1.bf16.msra.mxu0 %v2449
      %2492 = vmatprep.subr.bf16.mxu0 0
      %2493 = vmatpush1.bf16.msra.mxu0 0
      %2494 = vmatprep.subr.bf16.mxu0 0
      %2495 = vmatpush1.bf16.msra.mxu0 0
      %2496 = vmatprep.subr.bf16.mxu0 0
      %2497 = vmatpush1.bf16.msra.mxu0 0
      %2498 = vmatprep.subr.bf16.mxu0 0
      %2499 = vmatpush1.bf16.msra.mxu0 0
      %2500 = vmatprep.mubr.bf16.mxu0 %v1621
      %2501 = vmatmul.mubr.bf16.gmra.mrb[0].mxu0 %v1368
      %v2502 = vpop.f32.mrb[0].mxu0
      %v2503 = vadd.f32 0.0, %v2502
      %v2504 = vpop.f32.mrb[0].mxu0
      %v2505 = vpop.f32.mrb[0].mxu0
      %v2506 = vadd.f32 0.0, %v2505
      %v2507 = vpop.f32.mrb[0].mxu0
      %2508 = vmatprep.mubr.bf16.mxu0 %v1624
      %2509 = vmatmul.mubr.bf16.gmra.mrb[0].mxu0 %v1372
      %v2510 = vpop.f32.mrb[0].mxu0
      %v2511 = vadd.f32 0.0, %v2510
      %v2512 = vpop.f32.mrb[0].mxu0
      %v2513 = vpop.f32.mrb[0].mxu0
      %v2514 = vadd.f32 0.0, %v2513
      %v2515 = vpop.f32.mrb[0].mxu0
      %2516 = vmatprep.mubr.bf16.mxu0 %v1627
      %2517 = vmatmul.mubr.bf16.gmra.mrb[0].mxu0 %v1376
      %v2518 = vpop.f32.mrb[0].mxu0
      %v2519 = vadd.f32 0.0, %v2518
      %v2520 = vpop.f32.mrb[0].mxu0
      %v2521 = vpop.f32.mrb[0].mxu0
      %v2522 = vadd.f32 0.0, %v2521
      %v2523 = vpop.f32.mrb[0].mxu0
      %2524 = vmatprep.mubr.bf16.mxu0 %v1630
      %2525 = vmatmul.mubr.bf16.gmra.mrb[0].mxu0 %v1380
      %v2526 = vpop.f32.mrb[0].mxu0
      %v2527 = vadd.f32 0.0, %v2526
      %v2528 = vpop.f32.mrb[0].mxu0
      %v2529 = vpop.f32.mrb[0].mxu0
      %v2530 = vadd.f32 0.0, %v2529
      %v2531 = vpop.f32.mrb[0].mxu0
      %2532 = vmatprep.mubr.bf16.mxu0 %v1633
      %2533 = vmatmul.mubr.bf16.gmra.mrb[0].mxu0 %v1384
      %v2534 = vpop.f32.mrb[0].mxu0
      %v2535 = vadd.f32 0.0, %v2534
      %v2536 = vpop.f32.mrb[0].mxu0
      %v2537 = vpop.f32.mrb[0].mxu0
      %v2538 = vadd.f32 0.0, %v2537
      %v2539 = vpop.f32.mrb[0].mxu0
      %2540 = vmatprep.mubr.bf16.mxu0 %v1636
      %2541 = vmatmul.mubr.bf16.gmra.mrb[0].mxu0 %v1388
      %v2542 = vpop.f32.mrb[0].mxu0
      %v2543 = vadd.f32 0.0, %v2542
      %v2544 = vpop.f32.mrb[0].mxu0
      %v2545 = vpop.f32.mrb[0].mxu0
      %v2546 = vadd.f32 0.0, %v2545
      %v2547 = vpop.f32.mrb[0].mxu0
      %2548 = vmatprep.mubr.bf16.mxu0 %v1639
      %2549 = vmatmul.mubr.bf16.gmra.mrb[0].mxu0 %v1392
      %v2550 = vpop.f32.mrb[0].mxu0
      %v2551 = vadd.f32 0.0, %v2550
      %v2552 = vpop.f32.mrb[0].mxu0
      %v2553 = vpop.f32.mrb[0].mxu0
      %v2554 = vadd.f32 0.0, %v2553
      %v2555 = vpop.f32.mrb[0].mxu0
      %2556 = vmatprep.mubr.bf16.mxu0 %v1642
      %2557 = vmatmul.mubr.bf16.gmra.mrb[0].mxu0 %v1396
      %v2558 = vpop.f32.mrb[0].mxu0
      %v2559 = vadd.f32 0.0, %v2558
      %v2560 = vpop.f32.mrb[0].mxu0
      %v2561 = vpop.f32.mrb[0].mxu0
      %v2562 = vadd.f32 0.0, %v2561
      %v2563 = vpop.f32.mrb[0].mxu0
      %2564 = vmatprep.mubr.bf16.mxu0 %v1645
      %2565 = vmatmul.mubr.bf16.gmra.mrb[0].mxu0 %v1400
      %v2566 = vpop.f32.mrb[0].mxu0
      %v2567 = vadd.f32 0.0, %v2566
      %v2568 = vpop.f32.mrb[0].mxu0
      %v2569 = vpop.f32.mrb[0].mxu0
      %v2570 = vadd.f32 0.0, %v2569
      %v2571 = vpop.f32.mrb[0].mxu0
      %2572 = vmatprep.mubr.bf16.mxu0 %v1648
      %2573 = vmatmul.mubr.bf16.gmra.mrb[0].mxu0 %v1404
      %v2574 = vpop.f32.mrb[0].mxu0
      %v2575 = vadd.f32 0.0, %v2574
      %v2576 = vpop.f32.mrb[0].mxu0
      %v2577 = vpop.f32.mrb[0].mxu0
      %v2578 = vadd.f32 0.0, %v2577
      %v2579 = vpop.f32.mrb[0].mxu0
      %2580 = vmatprep.mubr.bf16.mxu0 %v1651
      %2581 = vmatmul.mubr.bf16.gmra.mrb[0].mxu0 %v1408
      %v2582 = vpop.f32.mrb[0].mxu0
      %v2583 = vadd.f32 0.0, %v2582
      %v2584 = vpop.f32.mrb[0].mxu0
      %v2585 = vpop.f32.mrb[0].mxu0
      %v2586 = vadd.f32 0.0, %v2585
      %v2587 = vpop.f32.mrb[0].mxu0
      %2588 = vmatprep.mubr.bf16.mxu0 %v1654
      %2589 = vmatmul.mubr.bf16.gmra.mrb[0].mxu0 %v1412
      %v2590 = vpop.f32.mrb[0].mxu0
      %v2591 = vadd.f32 0.0, %v2590
      %v2592 = vpop.f32.mrb[0].mxu0
      %v2593 = vpop.f32.mrb[0].mxu0
      %v2594 = vadd.f32 0.0, %v2593
      %v2595 = vpop.f32.mrb[0].mxu0
      %2596 = vmatprep.mubr.bf16.mxu0 %v1657
      %2597 = vmatmul.mubr.bf16.gmra.mrb[0].mxu0 %v1416
      %v2598 = vpop.f32.mrb[0].mxu0
      %v2599 = vadd.f32 0.0, %v2598
      %v2600 = vpop.f32.mrb[0].mxu0
      %v2601 = vpop.f32.mrb[0].mxu0
      %v2602 = vadd.f32 0.0, %v2601
      %v2603 = vpop.f32.mrb[0].mxu0
      %2604 = vmatprep.mubr.bf16.mxu0 %v1660
      %2605 = vmatmul.mubr.bf16.gmra.mrb[0].mxu0 %v1420
      %v2606 = vpop.f32.mrb[0].mxu0
      %v2607 = vadd.f32 0.0, %v2606
      %v2608 = vpop.f32.mrb[0].mxu0
      %v2609 = vpop.f32.mrb[0].mxu0
      %v2610 = vadd.f32 0.0, %v2609
      %v2611 = vpop.f32.mrb[0].mxu0
      %2612 = vmatprep.mubr.bf16.mxu0 %v1663
      %2613 = vmatmul.mubr.bf16.gmra.mrb[0].mxu0 %v1424
      %v2614 = vpop.f32.mrb[0].mxu0
      %v2615 = vadd.f32 0.0, %v2614
      %v2616 = vpop.f32.mrb[0].mxu0
      %v2617 = vpop.f32.mrb[0].mxu0
      %v2618 = vadd.f32 0.0, %v2617
      %v2619 = vpop.f32.mrb[0].mxu0
      %2620 = vmatprep.mubr.bf16.mxu0 %v1666
      %2621 = vmatmul.mubr.bf16.gmra.mrb[0].mxu0 %v1428
      %v2622 = vpop.f32.mrb[0].mxu0
      %v2623 = vadd.f32 0.0, %v2622
      %v2624 = vpop.f32.mrb[0].mxu0
      %v2625 = vpop.f32.mrb[0].mxu0
      %v2626 = vadd.f32 0.0, %v2625
      %v2627 = vpop.f32.mrb[0].mxu0
      %2628 = vmatprep.mubr.bf16.mxu0 %v1669
      %2629 = vmatmul.mubr.bf16.gmra.mrb[0].mxu0 %v1432
      %v2630 = vpop.f32.mrb[0].mxu0
      %v2631 = vadd.f32 0.0, %v2630
      %v2632 = vpop.f32.mrb[0].mxu0
      %v2633 = vpop.f32.mrb[0].mxu0
      %v2634 = vadd.f32 0.0, %v2633
      %v2635 = vpop.f32.mrb[0].mxu0
      %2636 = vmatprep.mubr.bf16.mxu0 %v1672
      %2637 = vmatmul.mubr.bf16.gmra.mrb[0].mxu0 %v1436
      %v2638 = vpop.f32.mrb[0].mxu0
      %v2639 = vadd.f32 0.0, %v2638
      %v2640 = vpop.f32.mrb[0].mxu0
      %v2641 = vpop.f32.mrb[0].mxu0
      %v2642 = vadd.f32 0.0, %v2641
      %v2643 = vpop.f32.mrb[0].mxu0
      %2644 = vmatprep.mubr.bf16.mxu0 %v1675
      %2645 = vmatmul.mubr.bf16.gmra.mrb[0].mxu0 %v1440
      %v2646 = vpop.f32.mrb[0].mxu0
      %v2647 = vadd.f32 0.0, %v2646
      %v2648 = vpop.f32.mrb[0].mxu0
      %v2649 = vpop.f32.mrb[0].mxu0
      %v2650 = vadd.f32 0.0, %v2649
      %v2651 = vpop.f32.mrb[0].mxu0
      %2652 = vmatprep.mubr.bf16.mxu0 %v1678
      %2653 = vmatmul.mubr.bf16.gmra.mrb[0].mxu0 %v1444
      %v2654 = vpop.f32.mrb[0].mxu0
      %v2655 = vadd.f32 0.0, %v2654
      %v2656 = vpop.f32.mrb[0].mxu0
      %v2657 = vpop.f32.mrb[0].mxu0
      %v2658 = vadd.f32 0.0, %v2657
      %v2659 = vpop.f32.mrb[0].mxu0
      %2660 = vmatprep.mubr.bf16.mxu0 %v1681
      %2661 = vmatmul.mubr.bf16.gmra.mrb[0].mxu0 %v1448
      %v2662 = vpop.f32.mrb[0].mxu0
      %v2663 = vadd.f32 0.0, %v2662
      %v2664 = vpop.f32.mrb[0].mxu0
      %v2665 = vpop.f32.mrb[0].mxu0
      %v2666 = vadd.f32 0.0, %v2665
      %v2667 = vpop.f32.mrb[0].mxu0
      %2668 = vmatprep.mubr.bf16.mxu0 %v1684
      %2669 = vmatmul.mubr.bf16.gmra.mrb[0].mxu0 %v1452
      %v2670 = vpop.f32.mrb[0].mxu0
      %v2671 = vadd.f32 0.0, %v2670
      %v2672 = vpop.f32.mrb[0].mxu0
      %v2673 = vpop.f32.mrb[0].mxu0
      %v2674 = vadd.f32 0.0, %v2673
      %v2675 = vpop.f32.mrb[0].mxu0
      %2676 = vmatprep.mubr.bf16.mxu0 %v1687
      %2677 = vmatmul.mubr.bf16.gmra.mrb[0].mxu0 %v1456
      %v2678 = vpop.f32.mrb[0].mxu0
      %v2679 = vadd.f32 0.0, %v2678
      %v2680 = vpop.f32.mrb[0].mxu0
      %v2681 = vpop.f32.mrb[0].mxu0
      %v2682 = vadd.f32 0.0, %v2681
      %v2683 = vpop.f32.mrb[0].mxu0
      %2684 = vmatprep.mubr.bf16.mxu0 %v1690
      %2685 = vmatmul.mubr.bf16.gmra.mrb[0].mxu0 %v1460
      %v2686 = vpop.f32.mrb[0].mxu0
      %v2687 = vadd.f32 0.0, %v2686
      %v2688 = vpop.f32.mrb[0].mxu0
      %v2689 = vpop.f32.mrb[0].mxu0
      %v2690 = vadd.f32 0.0, %v2689
      %v2691 = vpop.f32.mrb[0].mxu0
      %2692 = vmatprep.mubr.bf16.mxu0 %v1693
      %2693 = vmatmul.mubr.bf16.gmra.mrb[0].mxu0 %v1464
      %v2694 = vpop.f32.mrb[0].mxu0
      %v2695 = vadd.f32 0.0, %v2694
      %v2696 = vpop.f32.mrb[0].mxu0
      %v2697 = vpop.f32.mrb[0].mxu0
      %v2698 = vadd.f32 0.0, %v2697
      %v2699 = vpop.f32.mrb[0].mxu0
      %2700 = vmatprep.mubr.bf16.mxu0 %v1696
      %2701 = vmatmul.mubr.bf16.gmra.mrb[0].mxu0 %v1468
      %v2702 = vpop.f32.mrb[0].mxu0
      %v2703 = vadd.f32 0.0, %v2702
      %v2704 = vpop.f32.mrb[0].mxu0
      %v2705 = vpop.f32.mrb[0].mxu0
      %v2706 = vadd.f32 0.0, %v2705
      %v2707 = vpop.f32.mrb[0].mxu0
      %2708 = vmatprep.mubr.bf16.mxu0 %v1699
      %2709 = vmatmul.mubr.bf16.gmra.mrb[0].mxu0 %v1472
      %v2710 = vpop.f32.mrb[0].mxu0
      %v2711 = vadd.f32 0.0, %v2710
      %v2712 = vpop.f32.mrb[0].mxu0
      %v2713 = vpop.f32.mrb[0].mxu0
      %v2714 = vadd.f32 0.0, %v2713
      %v2715 = vpop.f32.mrb[0].mxu0
      %2716 = vmatprep.mubr.bf16.mxu0 %v1702
      %2717 = vmatmul.mubr.bf16.gmra.mrb[0].mxu0 %v1476
      %v2718 = vpop.f32.mrb[0].mxu0
      %v2719 = vadd.f32 0.0, %v2718
      %v2720 = vpop.f32.mrb[0].mxu0
      %v2721 = vpop.f32.mrb[0].mxu0
      %v2722 = vadd.f32 0.0, %v2721
      %v2723 = vpop.f32.mrb[0].mxu0
      %2724 = vmatprep.mubr.bf16.mxu0 %v1705
      %2725 = vmatmul.mubr.bf16.gmra.mrb[0].mxu0 %v1480
      %v2726 = vpop.f32.mrb[0].mxu0
      %v2727 = vadd.f32 0.0, %v2726
      %v2728 = vpop.f32.mrb[0].mxu0
      %v2729 = vpop.f32.mrb[0].mxu0
      %v2730 = vadd.f32 0.0, %v2729
      %v2731 = vpop.f32.mrb[0].mxu0
      %2732 = vmatprep.mubr.bf16.mxu0 %v1708
      %2733 = vmatmul.mubr.bf16.gmra.mrb[0].mxu0 %v1484
      %v2734 = vpop.f32.mrb[0].mxu0
      %v2735 = vadd.f32 0.0, %v2734
      %v2736 = vpop.f32.mrb[0].mxu0
      %v2737 = vpop.f32.mrb[0].mxu0
      %v2738 = vadd.f32 0.0, %v2737
      %v2739 = vpop.f32.mrb[0].mxu0
      %2740 = vmatprep.mubr.bf16.mxu0 %v2463
      %2741 = vmatmul.mubr.bf16.gmra.mrb[0].mxu0 %v1488
      %v2742 = vpop.f32.mrb[0].mxu0
      %v2743 = vadd.f32 0.0, %v2742
      %v2744 = vpop.f32.mrb[0].mxu0
      %v2745 = vpop.f32.mrb[0].mxu0
      %v2746 = vadd.f32 0.0, %v2745
      %v2747 = vpop.f32.mrb[0].mxu0
      %2748 = vmatprep.mubr.bf16.mxu0 %v2466
      %2749 = vmatmul.mubr.bf16.gmra.mrb[0].mxu0 %v1492
      %v2750 = vpop.f32.mrb[0].mxu0
      %v2751 = vadd.f32 0.0, %v2750
      %v2752 = vpop.f32.mrb[0].mxu0
      %v2753 = vpop.f32.mrb[0].mxu0
      %v2754 = vadd.f32 0.0, %v2753
      %v2755 = vpop.f32.mrb[0].mxu0
      %2756 = vdwg.mxu0
      %v2757 = vadd.f32 %v2112, %v2503
      %v2758 = vadd.f32 %v2115, %v2506
      %v2759 = vadd.f32 %v2120, %v2511
      %v2760 = vadd.f32 %v2123, %v2514
      %v2761 = vadd.f32 %v2128, %v2519
      %v2762 = vadd.f32 %v2131, %v2522
      %v2763 = vadd.f32 %v2136, %v2527
      %v2764 = vadd.f32 %v2139, %v2530
      %v2765 = vadd.f32 %v2144, %v2535
      %v2766 = vadd.f32 %v2147, %v2538
      %v2767 = vadd.f32 %v2152, %v2543
      %v2768 = vadd.f32 %v2155, %v2546
      %v2769 = vadd.f32 %v2160, %v2551
      %v2770 = vadd.f32 %v2163, %v2554
      %v2771 = vadd.f32 %v2168, %v2559
      %v2772 = vadd.f32 %v2171, %v2562
      %v2773 = vadd.f32 %v2176, %v2567
      %v2774 = vadd.f32 %v2179, %v2570
      %v2775 = vadd.f32 %v2184, %v2575
      %v2776 = vadd.f32 %v2187, %v2578
      %v2777 = vadd.f32 %v2192, %v2583
      %v2778 = vadd.f32 %v2195, %v2586
      %v2779 = vadd.f32 %v2200, %v2591
      %v2780 = vadd.f32 %v2203, %v2594
      %v2781 = vadd.f32 %v2208, %v2599
      %v2782 = vadd.f32 %v2211, %v2602
      %v2783 = vadd.f32 %v2216, %v2607
      %v2784 = vadd.f32 %v2219, %v2610
      %v2785 = vadd.f32 %v2224, %v2615
      %v2786 = vadd.f32 %v2227, %v2618
      %v2787 = vadd.f32 %v2232, %v2623
      %v2788 = vadd.f32 %v2235, %v2626
      %v2789 = vadd.f32 %v2240, %v2631
      %v2790 = vadd.f32 %v2243, %v2634
      %v2791 = vadd.f32 %v2248, %v2639
      %v2792 = vadd.f32 %v2251, %v2642
      %v2793 = vadd.f32 %v2256, %v2647
      %v2794 = vadd.f32 %v2259, %v2650
      %v2795 = vadd.f32 %v2264, %v2655
      %v2796 = vadd.f32 %v2267, %v2658
      %v2797 = vadd.f32 %v2272, %v2663
      %v2798 = vadd.f32 %v2275, %v2666
      %v2799 = vadd.f32 %v2280, %v2671
      %v2800 = vadd.f32 %v2283, %v2674
      %v2801 = vadd.f32 %v2288, %v2679
      %v2802 = vadd.f32 %v2291, %v2682
      %v2803 = vadd.f32 %v2296, %v2687
      %v2804 = vadd.f32 %v2299, %v2690
      %v2805 = vadd.f32 %v2304, %v2695
      %v2806 = vadd.f32 %v2307, %v2698
      %v2807 = vadd.f32 %v2312, %v2703
      %v2808 = vadd.f32 %v2315, %v2706
      %v2809 = vadd.f32 %v2320, %v2711
      %v2810 = vadd.f32 %v2323, %v2714
      %v2811 = vadd.f32 %v2328, %v2719
      %v2812 = vadd.f32 %v2331, %v2722
      %v2813 = vadd.f32 %v2336, %v2727
      %v2814 = vadd.f32 %v2339, %v2730
      %v2815 = vadd.f32 %v2344, %v2735
      %v2816 = vadd.f32 %v2347, %v2738
      %v2817 = vadd.f32 %v2352, %v2743
      %v2818 = vadd.f32 %v2355, %v2746
      %v2819 = vadd.f32 %v2360, %v2751
      %v2820 = vadd.f32 %v2363, %v2754
      %v2821 = vld [vmem:[%s4] sm:$0x1]
      %v2823 = vlaneseq
      %v2824 = vshrl.u32 %v2823, 7
      %v2825 = vsub.s32 0, %v2824
      %v2826 = vrot.slane %v2821, %v2825
      %v2828 = vadd.f32 %v2757, %v2826
      %v2829 = vadd.f32 %v2758, %v2826
      %v2830 = vadd.f32 %v2759, %v2826
      %v2831 = vadd.f32 %v2760, %v2826
      %v2832 = vadd.f32 %v2761, %v2826
      %v2833 = vadd.f32 %v2762, %v2826
      %v2834 = vadd.f32 %v2763, %v2826
      %v2835 = vadd.f32 %v2764, %v2826
      %v2836 = vadd.f32 %v2765, %v2826
      %v2837 = vadd.f32 %v2766, %v2826
      %v2838 = vadd.f32 %v2767, %v2826
      %v2839 = vadd.f32 %v2768, %v2826
      %v2840 = vadd.f32 %v2769, %v2826
      %v2841 = vadd.f32 %v2770, %v2826
      %v2842 = vadd.f32 %v2771, %v2826
      %v2843 = vadd.f32 %v2772, %v2826
      %v2844 = vadd.f32 %v2773, %v2826
      %v2845 = vadd.f32 %v2774, %v2826
      %v2846 = vadd.f32 %v2775, %v2826
      %v2847 = vadd.f32 %v2776, %v2826
      %v2848 = vadd.f32 %v2777, %v2826
      %v2849 = vadd.f32 %v2778, %v2826
      %v2850 = vadd.f32 %v2779, %v2826
      %v2851 = vadd.f32 %v2780, %v2826
      %v2852 = vadd.f32 %v2781, %v2826
      %v2853 = vadd.f32 %v2782, %v2826
      %v2854 = vadd.f32 %v2783, %v2826
      %v2855 = vadd.f32 %v2784, %v2826
      %v2856 = vadd.f32 %v2785, %v2826
      %v2857 = vadd.f32 %v2786, %v2826
      %v2858 = vadd.f32 %v2787, %v2826
      %v2859 = vadd.f32 %v2788, %v2826
      %v2860 = vadd.f32 %v2789, %v2826
      %v2861 = vadd.f32 %v2790, %v2826
      %v2862 = vadd.f32 %v2791, %v2826
      %v2863 = vadd.f32 %v2792, %v2826
      %v2864 = vadd.f32 %v2793, %v2826
      %v2865 = vadd.f32 %v2794, %v2826
      %v2866 = vadd.f32 %v2795, %v2826
      %v2867 = vadd.f32 %v2796, %v2826
      %v2868 = vadd.f32 %v2797, %v2826
      %v2869 = vadd.f32 %v2798, %v2826
      %v2870 = vadd.f32 %v2799, %v2826
      %v2871 = vadd.f32 %v2800, %v2826
      %v2872 = vadd.f32 %v2801, %v2826
      %v2873 = vadd.f32 %v2802, %v2826
      %v2874 = vadd.f32 %v2803, %v2826
      %v2875 = vadd.f32 %v2804, %v2826
      %v2876 = vadd.f32 %v2805, %v2826
      %v2877 = vadd.f32 %v2806, %v2826
      %v2878 = vadd.f32 %v2807, %v2826
      %v2879 = vadd.f32 %v2808, %v2826
      %v2880 = vadd.f32 %v2809, %v2826
      %v2881 = vadd.f32 %v2810, %v2826
      %v2882 = vadd.f32 %v2811, %v2826
      %v2883 = vadd.f32 %v2812, %v2826
      %v2884 = vadd.f32 %v2813, %v2826
      %v2885 = vadd.f32 %v2814, %v2826
      %v2886 = vadd.f32 %v2815, %v2826
      %v2887 = vadd.f32 %v2816, %v2826
      %v2888 = vadd.f32 %v2817, %v2826
      %v2889 = vadd.f32 %v2818, %v2826
      %v2890 = vadd.f32 %v2819, %v2826
      %v2891 = vadd.f32 %v2820, %v2826
      %v2892 = vmax.f32 %v2828, 0.0
      %v2893 = vmax.f32 %v2829, 0.0
      %v2894 = vmax.f32 %v2830, 0.0
      %v2895 = vmax.f32 %v2831, 0.0
      %v2896 = vmax.f32 %v2832, 0.0
      %v2897 = vmax.f32 %v2833, 0.0
      %v2898 = vmax.f32 %v2834, 0.0
      %v2899 = vmax.f32 %v2835, 0.0
      %v2900 = vmax.f32 %v2836, 0.0
      %v2901 = vmax.f32 %v2837, 0.0
      %v2902 = vmax.f32 %v2838, 0.0
      %v2903 = vmax.f32 %v2839, 0.0
      %v2904 = vmax.f32 %v2840, 0.0
      %v2905 = vmax.f32 %v2841, 0.0
      %v2906 = vmax.f32 %v2842, 0.0
      %v2907 = vmax.f32 %v2843, 0.0
      %v2908 = vmax.f32 %v2844, 0.0
      %v2909 = vmax.f32 %v2845, 0.0
      %v2910 = vmax.f32 %v2846, 0.0
      %v2911 = vmax.f32 %v2847, 0.0
      %v2912 = vmax.f32 %v2848, 0.0
      %v2913 = vmax.f32 %v2849, 0.0
      %v2914 = vmax.f32 %v2850, 0.0
      %v2915 = vmax.f32 %v2851, 0.0
      %v2916 = vmax.f32 %v2852, 0.0
      %v2917 = vmax.f32 %v2853, 0.0
      %v2918 = vmax.f32 %v2854, 0.0
      %v2919 = vmax.f32 %v2855, 0.0
      %v2920 = vmax.f32 %v2856, 0.0
      %v2921 = vmax.f32 %v2857, 0.0
      %v2922 = vmax.f32 %v2858, 0.0
      %v2923 = vmax.f32 %v2859, 0.0
      %v2924 = vmax.f32 %v2860, 0.0
      %v2925 = vmax.f32 %v2861, 0.0
      %v2926 = vmax.f32 %v2862, 0.0
      %v2927 = vmax.f32 %v2863, 0.0
      %v2928 = vmax.f32 %v2864, 0.0
      %v2929 = vmax.f32 %v2865, 0.0
      %v2930 = vmax.f32 %v2866, 0.0
      %v2931 = vmax.f32 %v2867, 0.0
      %v2932 = vmax.f32 %v2868, 0.0
      %v2933 = vmax.f32 %v2869, 0.0
      %v2934 = vmax.f32 %v2870, 0.0
      %v2935 = vmax.f32 %v2871, 0.0
      %v2936 = vmax.f32 %v2872, 0.0
      %v2937 = vmax.f32 %v2873, 0.0
      %v2938 = vmax.f32 %v2874, 0.0
      %v2939 = vmax.f32 %v2875, 0.0
      %v2940 = vmax.f32 %v2876, 0.0
      %v2941 = vmax.f32 %v2877, 0.0
      %v2942 = vmax.f32 %v2878, 0.0
      %v2943 = vmax.f32 %v2879, 0.0
      %v2944 = vmax.f32 %v2880, 0.0
      %v2945 = vmax.f32 %v2881, 0.0
      %v2946 = vmax.f32 %v2882, 0.0
      %v2947 = vmax.f32 %v2883, 0.0
      %v2948 = vmax.f32 %v2884, 0.0
      %v2949 = vmax.f32 %v2885, 0.0
      %v2950 = vmax.f32 %v2886, 0.0
      %v2951 = vmax.f32 %v2887, 0.0
      %v2952 = vmax.f32 %v2888, 0.0
      %v2953 = vmax.f32 %v2889, 0.0
      %v2954 = vmax.f32 %v2890, 0.0
      %v2955 = vmax.f32 %v2891, 0.0
      %v2956 = vmax.f32 %v2892, %v2896
      %v2957 = vmax.f32 %v2893, %v2897
      %v2958 = vmax.f32 %v2894, %v2898
      %v2959 = vmax.f32 %v2895, %v2899
      %v2960 = vmax.f32 %v2900, %v2904
      %v2961 = vmax.f32 %v2901, %v2905
      %v2962 = vmax.f32 %v2902, %v2906
      %v2963 = vmax.f32 %v2903, %v2907
      %v2964 = vmax.f32 %v2908, %v2912
      %v2965 = vmax.f32 %v2909, %v2913
      %v2966 = vmax.f32 %v2910, %v2914
      %v2967 = vmax.f32 %v2911, %v2915
      %v2968 = vmax.f32 %v2916, %v2920
      %v2969 = vmax.f32 %v2917, %v2921
      %v2970 = vmax.f32 %v2918, %v2922
      %v2971 = vmax.f32 %v2919, %v2923
      %v2972 = vmax.f32 %v2924, %v2928
      %v2973 = vmax.f32 %v2925, %v2929
      %v2974 = vmax.f32 %v2926, %v2930
      %v2975 = vmax.f32 %v2927, %v2931
      %v2976 = vmax.f32 %v2932, %v2936
      %v2977 = vmax.f32 %v2933, %v2937
      %v2978 = vmax.f32 %v2934, %v2938
      %v2979 = vmax.f32 %v2935, %v2939
      %v2980 = vmax.f32 %v2940, %v2944
      %v2981 = vmax.f32 %v2941, %v2945
      %v2982 = vmax.f32 %v2942, %v2946
      %v2983 = vmax.f32 %v2943, %v2947
      %v2984 = vmax.f32 %v2948, %v2952
      %v2985 = vmax.f32 %v2949, %v2953
      %v2986 = vmax.f32 %v2950, %v2954
      %v2987 = vmax.f32 %v2951, %v2955
      %2988 = vst.msk [vmem:[#allocation2] sm:$0xff] %vm1349, %v2956
      %2989 = vst.msk [vmem:[#allocation2 + $0x8] sm:$0xff] %vm1349, %v2957
      %2990 = vst.msk [vmem:[#allocation2 + $0x10] sm:$0xff] %vm1349, %v2958
      %2991 = vst.msk [vmem:[#allocation2 + $0x18] sm:$0xff] %vm1349, %v2959
      %2992 = vst.msk [vmem:[#allocation2 + $0x20] sm:$0xff] %vm1349, %v2960
      %2993 = vst.msk [vmem:[#allocation2 + $0x28] sm:$0xff] %vm1349, %v2961
      %2994 = vst.msk [vmem:[#allocation2 + $0x30] sm:$0xff] %vm1349, %v2962
      %2995 = vst.msk [vmem:[#allocation2 + $0x38] sm:$0xff] %vm1349, %v2963
      %2996 = vst.msk [vmem:[#allocation2 + $0x40] sm:$0xff] %vm1349, %v2964
      %2997 = vst.msk [vmem:[#allocation2 + $0x48] sm:$0xff] %vm1349, %v2965
      %2998 = vst.msk [vmem:[#allocation2 + $0x50] sm:$0xff] %vm1349, %v2966
      %2999 = vst.msk [vmem:[#allocation2 + $0x58] sm:$0xff] %vm1349, %v2967
      %3000 = vst.msk [vmem:[#allocation2 + $0x60] sm:$0xff] %vm1349, %v2968
      %3001 = vst.msk [vmem:[#allocation2 + $0x68] sm:$0xff] %vm1349, %v2969
      %3002 = vst.msk [vmem:[#allocation2 + $0x70] sm:$0xff] %vm1349, %v2970
      %3003 = vst.msk [vmem:[#allocation2 + $0x78] sm:$0xff] %vm1349, %v2971
      %3004 = vst.msk [vmem:[#allocation2 + $0x80] sm:$0xff] %vm1349, %v2972
      %3005 = vst.msk [vmem:[#allocation2 + $0x88] sm:$0xff] %vm1349, %v2973
      %3006 = vst.msk [vmem:[#allocation2 + $0x90] sm:$0xff] %vm1349, %v2974
      %3007 = vst.msk [vmem:[#allocation2 + $0x98] sm:$0xff] %vm1349, %v2975
      %3008 = vst.msk [vmem:[#allocation2 + $0xa0] sm:$0xff] %vm1349, %v2976
      %3009 = vst.msk [vmem:[#allocation2 + $0xa8] sm:$0xff] %vm1349, %v2977
      %3010 = vst.msk [vmem:[#allocation2 + $0xb0] sm:$0xff] %vm1349, %v2978
      %3011 = vst.msk [vmem:[#allocation2 + $0xb8] sm:$0xff] %vm1349, %v2979
      %3012 = vst.msk [vmem:[#allocation2 + $0xc0] sm:$0xff] %vm1349, %v2980
      %3013 = vst.msk [vmem:[#allocation2 + $0xc8] sm:$0xff] %vm1349, %v2981
      %3014 = vst.msk [vmem:[#allocation2 + $0xd0] sm:$0xff] %vm1349, %v2982
      %3015 = vst.msk [vmem:[#allocation2 + $0xd8] sm:$0xff] %vm1349, %v2983
      %3016 = vst.msk [vmem:[#allocation2 + $0xe0] sm:$0xff] %vm1349, %v2984
      %3017 = vst.msk [vmem:[#allocation2 + $0xe8] sm:$0xff] %vm1349, %v2985
      %3018 = vst.msk [vmem:[#allocation2 + $0xf0] sm:$0xff] %vm1349, %v2986
      %3019 = vst.msk [vmem:[#allocation2 + $0xf8] sm:$0xff] %vm1349, %v2987
      %v3020 = vld [vmem:[#allocation2] ss:$4 sm:$0xff]
      %s3021 = scalar_lea.vmem [#allocation2], 32
      %v3022 = vld [vmem:[%s3021] ss:$4 sm:$0xff]
      %s3023 = scalar_lea.vmem [#allocation2], 64
      %v3024 = vld [vmem:[%s3023] ss:$4 sm:$0xff]
      %s3025 = scalar_lea.vmem [#allocation2], 96
      %v3026 = vld [vmem:[%s3025] ss:$4 sm:$0xff]
      %s3027 = scalar_lea.vmem [#allocation2], 128
      %v3028 = vld [vmem:[%s3027] ss:$4 sm:$0xff]
      %s3029 = scalar_lea.vmem [#allocation2], 160
      %v3030 = vld [vmem:[%s3029] ss:$4 sm:$0xff]
      %s3031 = scalar_lea.vmem [#allocation2], 192
      %v3032 = vld [vmem:[%s3031] ss:$4 sm:$0xff]
      %s3033 = scalar_lea.vmem [#allocation2], 224
      %v3034 = vld [vmem:[%s3033] ss:$4 sm:$0xff]
      %s3035 = scalar_lea.vmem [#allocation2], 1
      %v3036 = vld [vmem:[%s3035] ss:$4 sm:$0xff]
      %s3037 = scalar_lea.vmem [#allocation2], 33
      %v3038 = vld [vmem:[%s3037] ss:$4 sm:$0xff]
      %s3039 = scalar_lea.vmem [#allocation2], 65
      %v3040 = vld [vmem:[%s3039] ss:$4 sm:$0xff]
      %s3041 = scalar_lea.vmem [#allocation2], 97
      %v3042 = vld [vmem:[%s3041] ss:$4 sm:$0xff]
      %s3043 = scalar_lea.vmem [#allocation2], 129
      %v3044 = vld [vmem:[%s3043] ss:$4 sm:$0xff]
      %s3045 = scalar_lea.vmem [#allocation2], 161
      %v3046 = vld [vmem:[%s3045] ss:$4 sm:$0xff]
      %s3047 = scalar_lea.vmem [#allocation2], 193
      %v3048 = vld [vmem:[%s3047] ss:$4 sm:$0xff]
      %s3049 = scalar_lea.vmem [#allocation2], 225
      %v3050 = vld [vmem:[%s3049] ss:$4 sm:$0xff]
      %s3051 = scalar_lea.vmem [#allocation2], 2
      %v3052 = vld [vmem:[%s3051] ss:$4 sm:$0xff]
      %s3053 = scalar_lea.vmem [#allocation2], 34
      %v3054 = vld [vmem:[%s3053] ss:$4 sm:$0xff]
      %s3055 = scalar_lea.vmem [#allocation2], 66
      %v3056 = vld [vmem:[%s3055] ss:$4 sm:$0xff]
      %s3057 = scalar_lea.vmem [#allocation2], 98
      %v3058 = vld [vmem:[%s3057] ss:$4 sm:$0xff]
      %s3059 = scalar_lea.vmem [#allocation2], 130
      %v3060 = vld [vmem:[%s3059] ss:$4 sm:$0xff]
      %s3061 = scalar_lea.vmem [#allocation2], 162
      %v3062 = vld [vmem:[%s3061] ss:$4 sm:$0xff]
      %s3063 = scalar_lea.vmem [#allocation2], 194
      %v3064 = vld [vmem:[%s3063] ss:$4 sm:$0xff]
      %s3065 = scalar_lea.vmem [#allocation2], 226
      %v3066 = vld [vmem:[%s3065] ss:$4 sm:$0xff]
      %s3067 = scalar_lea.vmem [#allocation2], 3
      %v3068 = vld [vmem:[%s3067] ss:$4 sm:$0xff]
      %s3069 = scalar_lea.vmem [#allocation2], 35
      %v3070 = vld [vmem:[%s3069] ss:$4 sm:$0xff]
      %s3071 = scalar_lea.vmem [#allocation2], 67
      %v3072 = vld [vmem:[%s3071] ss:$4 sm:$0xff]
      %s3073 = scalar_lea.vmem [#allocation2], 99
      %v3074 = vld [vmem:[%s3073] ss:$4 sm:$0xff]
      %s3075 = scalar_lea.vmem [#allocation2], 131
      %v3076 = vld [vmem:[%s3075] ss:$4 sm:$0xff]
      %s3077 = scalar_lea.vmem [#allocation2], 163
      %v3078 = vld [vmem:[%s3077] ss:$4 sm:$0xff]
      %s3079 = scalar_lea.vmem [#allocation2], 195
      %v3080 = vld [vmem:[%s3079] ss:$4 sm:$0xff]
      %s3081 = scalar_lea.vmem [#allocation2], 227
      %v3082 = vld [vmem:[%s3081] ss:$4 sm:$0xff]
      %v3083 = vmax.f32 %v3020, %v3036
      %v3084 = vmax.f32 %v3022, %v3038
      %v3085 = vmax.f32 %v3024, %v3040
      %v3086 = vmax.f32 %v3026, %v3042
      %v3087 = vmax.f32 %v3028, %v3044
      %v3088 = vmax.f32 %v3030, %v3046
      %v3089 = vmax.f32 %v3032, %v3048
      %v3090 = vmax.f32 %v3034, %v3050
      %v3091 = vmax.f32 %v3052, %v3068
      %v3092 = vmax.f32 %v3054, %v3070
      %v3093 = vmax.f32 %v3056, %v3072
      %v3094 = vmax.f32 %v3058, %v3074
      %v3095 = vmax.f32 %v3060, %v3076
      %v3096 = vmax.f32 %v3062, %v3078
      %v3097 = vmax.f32 %v3064, %v3080
      %v3098 = vmax.f32 %v3066, %v3082
      %3107 = vrot.lane.b32.xlu0 %v3091, 64
      %v3108 = vpop.permute.xlu0 %3107
      %3109 = vrot.lane.b32.xlu0 %v3092, 64
      %v3110 = vpop.permute.xlu0 %3109
      %3111 = vrot.lane.b32.xlu0 %v3093, 64
      %v3112 = vpop.permute.xlu0 %3111
      %3113 = vrot.lane.b32.xlu0 %v3094, 64
      %v3114 = vpop.permute.xlu0 %3113
      %3115 = vrot.lane.b32.xlu0 %v3095, 64
      %v3116 = vpop.permute.xlu0 %3115
      %3117 = vrot.lane.b32.xlu0 %v3096, 64
      %v3118 = vpop.permute.xlu0 %3117
      %3119 = vrot.lane.b32.xlu0 %v3097, 64
      %v3120 = vpop.permute.xlu0 %3119
      %3121 = vrot.lane.b32.xlu0 %v3098, 64
      %v3122 = vpop.permute.xlu0 %3121
      %v3131 = vsel %vm1349, %v3083, %v3108
      %v3132 = vsel %vm1349, %v3084, %v3110
      %v3133 = vsel %vm1349, %v3085, %v3112
      %v3134 = vsel %vm1349, %v3086, %v3114
      %v3135 = vsel %vm1349, %v3087, %v3116
      %v3136 = vsel %vm1349, %v3088, %v3118
      %v3137 = vsel %vm1349, %v3089, %v3120
      %v3138 = vsel %vm1349, %v3090, %v3122
      %v3139 = vpack.c.bf16 %v3131, %v3131
      %v3140 = vpack.c.bf16 %v3132, %v3132
      %v3141 = vpack.c.bf16 %v3133, %v3133
      %v3142 = vpack.c.bf16 %v3134, %v3134
      %v3143 = vpack.c.bf16 %v3135, %v3135
      %v3144 = vpack.c.bf16 %v3136, %v3136
      %v3145 = vpack.c.bf16 %v3137, %v3137
      %v3146 = vpack.c.bf16 %v3138, %v3138
      %3147 = vst [vmem:[%s389] sm:$0xf] %v3139
      %3148 = vst [vmem:[%s389 + $0x4] sm:$0xf] %v3140
      %3149 = vst [vmem:[%s389 + $0x8] sm:$0xf] %v3141
      %3150 = vst [vmem:[%s389 + $0xc] sm:$0xf] %v3142
      %3151 = vst [vmem:[%s389 + $0x10] sm:$0xf] %v3143
      %3152 = vst [vmem:[%s389 + $0x14] sm:$0xf] %v3144
      %3153 = vst [vmem:[%s389 + $0x18] sm:$0xf] %v3145
      %3154 = vst [vmem:[%s389 + $0x1c] sm:$0xf] %v3146
      %s3155 = smul.u32 8, %s21
      %p3156 = scmp.lt.s32.totalorder %s20, 1
      %s3157 = scalar_select %p3156, %s20, 1
      %p3158 = scmp.lt.s32.totalorder %s3155, 15
      %s3159 = scalar_select %p3158, %s3155, 15
      %s3160 = smul.addr %s3157, 16
      %s3161 = sadd.s32 %s3159, %s3160
      %s3162 = smul.addr %s3161, 4
      %s3163 = scalar_lea.vmem %s5, %s3162
      // Predicated region
      $region41: #{vgg19_slice1.6} parent=39 // pred_check
        %p3164 = pneg %p190
      $region42: #{vgg19_slice1.6} parent=39 // pred_check_branch
        %3166 = sbr.rel (%p3164) target = $region44
      $region43: #{vgg19_slice1.6} parent=39 // pred_region
        %s3167 = smul.u32 8, %s21
      $region44: #{vgg19_slice1.6} parent=39 // pred_fallthru
        _
    $region40: #{vgg19_slice1.6} parent=5 // pred_fallthru
      _
    %p3168 = scmp.le.s32.totalorder 2, %s11
    // Predicated region
    $region45: #{vgg19_slice1.6} parent=5 // pred_check
      %p3169 = pneg %p3168
    $region46: #{vgg19_slice1.6} parent=5 // pred_check_branch
      %3171 = sbr.rel (%p3169) target = $region48
    $region47: #{vgg19_slice1.6} parent=5 // pred_region
      %s3172 = ssub.s32 %s11, 2
      // Predicated region
      $region49: #{vgg19_slice1.6} parent=47 // pred_check
        %p3173 = pneg %p196
      $region50: #{vgg19_slice1.6} parent=47 // pred_check_branch
        %3175 = sbr.rel (%p3173) target = $region52
      $region51: #{vgg19_slice1.6} parent=47 // pred_region
        %s3176 = smul.u32 8, %s23
        %p3177 = scmp.lt.s32.totalorder %s22, 1
        %s3178 = scalar_select %p3177, %s22, 1
        %p3179 = scmp.lt.s32.totalorder %s3176, 15
        %s3180 = scalar_select %p3179, %s3176, 15
        %s3181 = smul.addr %s3178, 16
        %s3182 = sadd.s32 %s3180, %s3181
        %s3183 = smul.addr %s3182, 4
        %s3184 = scalar_lea.vmem %s5, %s3183
      $region52: #{vgg19_slice1.6} parent=47 // pred_fallthru
        _
    $region48: #{vgg19_slice1.6} parent=5 // pred_fallthru
      _
  $region6: #{vgg19_slice1.6} parent=0 // loop_footer
    %s15 = sadd.s32 1, %s11
  $region7: #{vgg19_slice1.6} parent=0 // loop_footer_branch
    %10 = sbr.rel target = $region3
  $region8: #{vgg19_slice1.6} parent=0 // loop_exit
    _

// kernel: vgg19_slice1.7
$region0: #{vgg19_slice1.7}
  #allocation0 [shape = 'u32[]', space=smem, size = 0x4, offset = 0x4, fixed_abs, tag = 'smem constant byte address 0x4 - core index']
  #allocation1 [shape = 'u32[144,128]{1,0:T(1,128)}', space=vmem, size = 0x12000, scoped, tag = 'internal scratch']
  %s0 = inlined_call_operand.vmem [shape: bf16[2,16,16,64], index: 0, kind: input, shape index: {}, may-alias: {0,1,2}]
  %s1 = inlined_call_operand.vmem [shape: bf16[2,16,16,64], index: 1, kind: input, shape index: {}, may-alias: {0,1,2}]
  %s2 = inlined_call_operand.vmem [shape: bf16[2,16,16,64], index: 2, kind: input, shape index: {}, may-alias: {0,1,2}]
  %s3 = inlined_call_operand.vmem [shape: bf16[576,128], index: 3, kind: input, shape index: {}]
  %s4 = inlined_call_operand.vmem [shape: f32[1,128], index: 4, kind: input, shape index: {}]
  %s5 = inlined_call_operand.vmem [shape: bf16[2,16,16,128], index: 5, kind: output, shape index: {}]
  %s6 = sld [smem:[#allocation0]]
  $region53: #{vgg19_slice1.7} parent=0
    _
  %s8 = ssub.s32 1, %s6
  %s9 = scalar_select 0, %s8, %s6
  loop: start=0, step=1, limit=6
  $region2: #{vgg19_slice1.7} parent=0 // loop_pre_header
    _
  $region3: #{vgg19_slice1.7} parent=0 // loop_header
    %s11 = sphi 0, %s15
    %p12 = scmp.ge.s32.totalorder %s11, 6
    %s18 = sphi 0, %s30
    %s19 = sphi 0, %s26
    %s20 = sphi 0, %s18
    %s21 = sphi 0, %s19
    %s22 = sphi 0, %s20
    %s23 = sphi 0, %s21
    %s35 = sphi 0, %s37
    %s38 = sphi 0, %s35
    %s39 = sphi 0, %s38
    %s55 = sphi 0, %s39
    %s71 = sphi 0, %s73
    %s74 = sphi 0, %s71
    %s75 = sphi 0, %s74
    %s91 = sphi 0, %s75
    %s107 = sphi 0, %s109
    %s110 = sphi 0, %s107
    %s111 = sphi 0, %s110
    %s127 = sphi 0, %s111
    %s131 = sphi 0, %s131
    %s133 = sphi 0, %s131
    %s134 = sphi 0, %s133
    %s148 = sphi 0, %s134
    %s152 = sphi 0, %s152
    %s154 = sphi 0, %s152
    %s155 = sphi 0, %s154
    %s169 = sphi 0, %s155
    %s177 = sphi 0, %s179
    %s180 = sphi 0, %s177
    %s181 = sphi 0, %s180
    %s197 = sphi 0, %s181
  $region4: #{vgg19_slice1.7} parent=0 // loop_header_branch
    %14 = sbr.rel (%p12) target = $region8
  $region5: #{vgg19_slice1.7} parent=0 // loop_body
    %s16 = ssub.s32 %s11, 1
    %s17 = ssub.s32 %s11, 2
    %s24 = sadd.s32 1, %s19
    %p25 = scmp.ge.s32.totalorder %s24, 2
    %s26 = scalar_select %p25, 0, %s24
    %s27 = sadd.s32 1, %s18
    %s28 = scalar_select %p25, %s27, %s18
    %p29 = scmp.ge.s32.totalorder %s28, 2
    %s30 = scalar_select %p29, 0, %s28
    %s31 = ssub.s32 %s18, %s30
    %s32 = ssub.s32 %s19, %s26
    %s33 = sor.u32 %s31, %s32
    %p34 = scmp.eq.s32.totalorder %s33, 0
    %s36 = sadd.s32 %s35, 1
    %s37 = scalar_select %p34, %s35, %s36
    %p40 = pneg %p34
    %p41 = scmp.eq.s32.totalorder %s11, 3
    %p42 = por %p40, %p41
    %p43 = scmp.ne.s32.totalorder %s35, %s38
    %p44 = scmp.eq.s32.totalorder %s11, 0
    %p45 = por %p43, %p44
    %p46 = scmp.ne.s32.totalorder %s35, %s38
    %p47 = scmp.eq.s32.totalorder %s16, 3
    %p48 = por %p46, %p47
    %p49 = scmp.ne.s32.totalorder %s38, %s39
    %p50 = scmp.eq.s32.totalorder %s16, 0
    %p51 = por %p49, %p50
    %p52 = scmp.ne.s32.totalorder %s38, %s39
    %p53 = scmp.eq.s32.totalorder %s17, 3
    %p54 = por %p52, %p53
    %p56 = scmp.ne.s32.totalorder %s39, %s55
    %p57 = scmp.eq.s32.totalorder %s17, 0
    %p58 = por %p56, %p57
    %s59 = smul.u32 %s19, 8
    %s60 = ssub.s32 %s59, 1
    %p61 = scmp.gt.s32.totalorder %s60, 0
    %s62 = scalar_select %p61, %s60, 0
    %s63 = smul.u32 %s26, 8
    %s64 = ssub.s32 %s63, 1
    %p65 = scmp.gt.s32.totalorder %s64, 0
    %s66 = scalar_select %p65, %s64, 0
    %s67 = ssub.s32 %s18, %s30
    %s68 = ssub.s32 %s62, %s66
    %s69 = sor.u32 %s67, %s68
    %p70 = scmp.eq.s32.totalorder %s69, 0
    %s72 = sadd.s32 %s71, 1
    %s73 = scalar_select %p70, %s71, %s72
    %p76 = pneg %p70
    %p77 = scmp.eq.s32.totalorder %s11, 3
    %p78 = por %p76, %p77
    %p79 = scmp.ne.s32.totalorder %s71, %s74
    %p80 = scmp.eq.s32.totalorder %s11, 0
    %p81 = por %p79, %p80
    %p82 = scmp.ne.s32.totalorder %s71, %s74
    %p83 = scmp.eq.s32.totalorder %s16, 3
    %p84 = por %p82, %p83
    %p85 = scmp.ne.s32.totalorder %s74, %s75
    %p86 = scmp.eq.s32.totalorder %s16, 0
    %p87 = por %p85, %p86
    %p88 = scmp.ne.s32.totalorder %s74, %s75
    %p89 = scmp.eq.s32.totalorder %s17, 3
    %p90 = por %p88, %p89
    %p92 = scmp.ne.s32.totalorder %s75, %s91
    %p93 = scmp.eq.s32.totalorder %s17, 0
    %p94 = por %p92, %p93
    %s95 = smul.u32 %s19, 8
    %s96 = sadd.s32 %s95, 8
    %p97 = scmp.lt.s32.totalorder %s96, 15
    %s98 = scalar_select %p97, %s96, 15
    %s99 = smul.u32 %s26, 8
    %s100 = sadd.s32 %s99, 8
    %p101 = scmp.lt.s32.totalorder %s100, 15
    %s102 = scalar_select %p101, %s100, 15
    %s103 = ssub.s32 %s18, %s30
    %s104 = ssub.s32 %s98, %s102
    %s105 = sor.u32 %s103, %s104
    %p106 = scmp.eq.s32.totalorder %s105, 0
    %s108 = sadd.s32 %s107, 1
    %s109 = scalar_select %p106, %s107, %s108
    %p112 = pneg %p106
    %p113 = scmp.eq.s32.totalorder %s11, 3
    %p114 = por %p112, %p113
    %p115 = scmp.ne.s32.totalorder %s107, %s110
    %p116 = scmp.eq.s32.totalorder %s11, 0
    %p117 = por %p115, %p116
    %p118 = scmp.ne.s32.totalorder %s107, %s110
    %p119 = scmp.eq.s32.totalorder %s16, 3
    %p120 = por %p118, %p119
    %p121 = scmp.ne.s32.totalorder %s110, %s111
    %p122 = scmp.eq.s32.totalorder %s16, 0
    %p123 = por %p121, %p122
    %p124 = scmp.ne.s32.totalorder %s110, %s111
    %p125 = scmp.eq.s32.totalorder %s17, 3
    %p126 = por %p124, %p125
    %p128 = scmp.ne.s32.totalorder %s111, %s127
    %p129 = scmp.eq.s32.totalorder %s17, 0
    %p130 = por %p128, %p129
    %s132 = sadd.s32 %s131, 1
    %p135 = scmp.eq.s32.totalorder %s11, 3
    %p136 = scmp.ne.s32.totalorder %s131, %s133
    %p137 = scmp.eq.s32.totalorder %s11, 0
    %p138 = por %p136, %p137
    %p139 = scmp.ne.s32.totalorder %s131, %s133
    %p140 = scmp.eq.s32.totalorder %s16, 3
    %p141 = por %p139, %p140
    %p142 = scmp.ne.s32.totalorder %s133, %s134
    %p143 = scmp.eq.s32.totalorder %s16, 0
    %p144 = por %p142, %p143
    %p145 = scmp.ne.s32.totalorder %s133, %s134
    %p146 = scmp.eq.s32.totalorder %s17, 3
    %p147 = por %p145, %p146
    %p149 = scmp.ne.s32.totalorder %s134, %s148
    %p150 = scmp.eq.s32.totalorder %s17, 0
    %p151 = por %p149, %p150
    %s153 = sadd.s32 %s152, 1
    %p156 = scmp.eq.s32.totalorder %s11, 3
    %p157 = scmp.ne.s32.totalorder %s152, %s154
    %p158 = scmp.eq.s32.totalorder %s11, 0
    %p159 = por %p157, %p158
    %p160 = scmp.ne.s32.totalorder %s152, %s154
    %p161 = scmp.eq.s32.totalorder %s16, 3
    %p162 = por %p160, %p161
    %p163 = scmp.ne.s32.totalorder %s154, %s155
    %p164 = scmp.eq.s32.totalorder %s16, 0
    %p165 = por %p163, %p164
    %p166 = scmp.ne.s32.totalorder %s154, %s155
    %p167 = scmp.eq.s32.totalorder %s17, 3
    %p168 = por %p166, %p167
    %p170 = scmp.ne.s32.totalorder %s155, %s169
    %p171 = scmp.eq.s32.totalorder %s17, 0
    %p172 = por %p170, %p171
    %s173 = ssub.s32 %s18, %s30
    %s174 = ssub.s32 %s19, %s26
    %s175 = sor.u32 %s173, %s174
    %p176 = scmp.eq.s32.totalorder %s175, 0
    %s178 = sadd.s32 %s177, 1
    %s179 = scalar_select %p176, %s177, %s178
    %p182 = pneg %p176
    %p183 = scmp.eq.s32.totalorder %s11, 3
    %p184 = por %p182, %p183
    %p185 = scmp.ne.s32.totalorder %s177, %s180
    %p186 = scmp.eq.s32.totalorder %s11, 0
    %p187 = por %p185, %p186
    %p188 = scmp.ne.s32.totalorder %s177, %s180
    %p189 = scmp.eq.s32.totalorder %s16, 3
    %p190 = por %p188, %p189
    %p191 = scmp.ne.s32.totalorder %s180, %s181
    %p192 = scmp.eq.s32.totalorder %s16, 0
    %p193 = por %p191, %p192
    %p194 = scmp.ne.s32.totalorder %s180, %s181
    %p195 = scmp.eq.s32.totalorder %s17, 3
    %p196 = por %p194, %p195
    %p198 = scmp.ne.s32.totalorder %s181, %s197
    %p199 = scmp.eq.s32.totalorder %s17, 0
    %p200 = por %p198, %p199
    %p201 = scmp.le.s32.totalorder 1, %s11
    %p202 = scmp.lt.s32.totalorder %s11, 5
    %p203 = pnand %p201, %p202
    %p204 = pneg %p203
    // Predicated region
    $region9: #{vgg19_slice1.7} parent=5 // pred_check
      _
    $region10: #{vgg19_slice1.7} parent=5 // pred_check_branch
      %206 = sbr.rel (%p203) target = $region12
    $region11: #{vgg19_slice1.7} parent=5 // pred_region
      %s207 = ssub.s32 %s11, 1
      // Predicated region
      $region13: #{vgg19_slice1.7} parent=11 // pred_check
        %p208 = pneg %p144
      $region14: #{vgg19_slice1.7} parent=11 // pred_check_branch
        %210 = sbr.rel (%p208) target = $region16
      $region15: #{vgg19_slice1.7} parent=11 // pred_region
        _
      $region16: #{vgg19_slice1.7} parent=11 // pred_fallthru
        _
      // Predicated region
      $region17: #{vgg19_slice1.7} parent=11 // pred_check
        %p211 = pneg %p165
      $region18: #{vgg19_slice1.7} parent=11 // pred_check_branch
        %213 = sbr.rel (%p211) target = $region20
      $region19: #{vgg19_slice1.7} parent=11 // pred_region
        _
      $region20: #{vgg19_slice1.7} parent=11 // pred_fallthru
        _
    $region12: #{vgg19_slice1.7} parent=5 // pred_fallthru
      _
    %p214 = scmp.lt.s32.totalorder %s11, 4
    // Predicated region
    $region21: #{vgg19_slice1.7} parent=5 // pred_check
      %p215 = pneg %p214
    $region22: #{vgg19_slice1.7} parent=5 // pred_check_branch
      %217 = sbr.rel (%p215) target = $region24
    $region23: #{vgg19_slice1.7} parent=5 // pred_region
      // Predicated region
      $region25: #{vgg19_slice1.7} parent=23 // pred_check
        %p218 = pneg %p45
      $region26: #{vgg19_slice1.7} parent=23 // pred_check_branch
        %220 = sbr.rel (%p218) target = $region28
      $region27: #{vgg19_slice1.7} parent=23 // pred_region
        %s221 = smul.u32 8, %s19
        %p222 = scmp.lt.s32.totalorder %s18, 1
        %s223 = scalar_select %p222, %s18, 1
        %p224 = scmp.lt.s32.totalorder %s221, 15
        %s225 = scalar_select %p224, %s221, 15
        %s226 = smul.addr %s225, 2
        %s227 = smul.addr %s223, 32
        %s228 = sadd.s32 %s226, %s227
        %s229 = smul.addr %s228, 4
        %s230 = scalar_lea.vmem %s0, %s229
        %s231 = smul.u32 8, %s19
      $region28: #{vgg19_slice1.7} parent=23 // pred_fallthru
        _
      // Predicated region
      $region29: #{vgg19_slice1.7} parent=23 // pred_check
        %p232 = pneg %p81
      $region30: #{vgg19_slice1.7} parent=23 // pred_check_branch
        %234 = sbr.rel (%p232) target = $region32
      $region31: #{vgg19_slice1.7} parent=23 // pred_region
        %s235 = smul.u32 %s19, 8
        %s236 = ssub.s32 %s235, 1
        %p237 = scmp.gt.s32.totalorder %s236, 0
        %s238 = scalar_select %p237, %s236, 0
        %p239 = scmp.lt.s32.totalorder %s18, 1
        %s240 = scalar_select %p239, %s18, 1
        %p241 = scmp.lt.s32.totalorder %s238, 15
        %s242 = scalar_select %p241, %s238, 15
        %s243 = smul.addr %s242, 2
        %s244 = smul.addr %s240, 32
        %s245 = sadd.s32 %s243, %s244
        %s246 = smul.addr %s245, 4
        %s247 = scalar_lea.vmem %s1, %s246
        %s248 = smul.u32 %s19, 8
        %s249 = ssub.s32 %s248, 1
        %p250 = scmp.gt.s32.totalorder %s249, 0
        %s251 = scalar_select %p250, %s249, 0
      $region32: #{vgg19_slice1.7} parent=23 // pred_fallthru
        _
      // Predicated region
      $region33: #{vgg19_slice1.7} parent=23 // pred_check
        %p252 = pneg %p117
      $region34: #{vgg19_slice1.7} parent=23 // pred_check_branch
        %254 = sbr.rel (%p252) target = $region36
      $region35: #{vgg19_slice1.7} parent=23 // pred_region
        %s255 = smul.u32 %s19, 8
        %s256 = sadd.s32 %s255, 8
        %p257 = scmp.lt.s32.totalorder %s256, 15
        %s258 = scalar_select %p257, %s256, 15
        %p259 = scmp.lt.s32.totalorder %s18, 1
        %s260 = scalar_select %p259, %s18, 1
        %p261 = scmp.lt.s32.totalorder %s258, 15
        %s262 = scalar_select %p261, %s258, 15
        %s263 = smul.addr %s262, 2
        %s264 = smul.addr %s260, 32
        %s265 = sadd.s32 %s263, %s264
        %s266 = smul.addr %s265, 4
        %s267 = scalar_lea.vmem %s2, %s266
        %s268 = smul.u32 %s19, 8
        %s269 = sadd.s32 %s268, 8
        %p270 = scmp.lt.s32.totalorder %s269, 15
        %s271 = scalar_select %p270, %s269, 15
      $region36: #{vgg19_slice1.7} parent=23 // pred_fallthru
        _
    $region24: #{vgg19_slice1.7} parent=5 // pred_fallthru
      _
    %p272 = scmp.le.s32.totalorder 1, %s11
    %p273 = scmp.lt.s32.totalorder %s11, 5
    %p274 = pnand %p272, %p273
    %p275 = pneg %p274
    // Predicated region
    $region37: #{vgg19_slice1.7} parent=5 // pred_check
      _
    $region38: #{vgg19_slice1.7} parent=5 // pred_check_branch
      %277 = sbr.rel (%p274) target = $region40
    $region39: #{vgg19_slice1.7} parent=5 // pred_region
      %s278 = ssub.s32 %s11, 1
      %s279 = smul.u32 8, %s21
      %p280 = scmp.lt.s32.totalorder %s20, 1
      %s281 = scalar_select %p280, %s20, 1
      %p282 = scmp.lt.s32.totalorder %s279, 15
      %s283 = scalar_select %p282, %s279, 15
      %s284 = smul.addr %s283, 2
      %s285 = smul.addr %s281, 32
      %s286 = sadd.s32 %s284, %s285
      %s287 = smul.addr %s286, 4
      %s288 = scalar_lea.vmem %s0, %s287
      %p289 = pneg %p51
      %p290 = pneg %p48
      %s291 = smul.u32 %s21, 8
      %s292 = ssub.s32 %s291, 1
      %p293 = scmp.gt.s32.totalorder %s292, 0
      %s294 = scalar_select %p293, %s292, 0
      %p295 = scmp.lt.s32.totalorder %s20, 1
      %s296 = scalar_select %p295, %s20, 1
      %p297 = scmp.lt.s32.totalorder %s294, 15
      %s298 = scalar_select %p297, %s294, 15
      %s299 = smul.addr %s298, 2
      %s300 = smul.addr %s296, 32
      %s301 = sadd.s32 %s299, %s300
      %s302 = smul.addr %s301, 4
      %s303 = scalar_lea.vmem %s1, %s302
      %p304 = pneg %p87
      %p305 = pneg %p84
      %s306 = smul.u32 %s21, 8
      %s307 = sadd.s32 %s306, 8
      %p308 = scmp.lt.s32.totalorder %s307, 15
      %s309 = scalar_select %p308, %s307, 15
      %p310 = scmp.lt.s32.totalorder %s20, 1
      %s311 = scalar_select %p310, %s20, 1
      %p312 = scmp.lt.s32.totalorder %s309, 15
      %s313 = scalar_select %p312, %s309, 15
      %s314 = smul.addr %s313, 2
      %s315 = smul.addr %s311, 32
      %s316 = sadd.s32 %s314, %s315
      %s317 = smul.addr %s316, 4
      %s318 = scalar_lea.vmem %s2, %s317
      %p319 = pneg %p123
      %p320 = pneg %p120
      %p321 = pneg %p144
      %p322 = pneg %p141
      %p323 = pneg %p165
      %p324 = pneg %p162
      %p325 = pneg %p193
      %p326 = pneg %p190
      %s327 = smul.u32 8, %s21
      %p328 = scmp.lt.s32.totalorder %s20, 1
      %s329 = scalar_select %p328, %s20, 1
      %p330 = scmp.lt.s32.totalorder %s327, 15
      %s331 = scalar_select %p330, %s327, 15
      %s332 = smul.addr %s331, 2
      %s333 = smul.addr %s329, 32
      %s334 = sadd.s32 %s332, %s333
      %s335 = smul.addr %s334, 4
      %s336 = scalar_lea.vmem %s5, %s335
      %s337 = smul.u32 8, %s21
      %p338 = scmp.lt.s32.totalorder %s20, 1
      %s339 = scalar_select %p338, %s20, 1
      %p340 = scmp.lt.s32.totalorder %s337, 15
      %s341 = scalar_select %p340, %s337, 15
      %s342 = smul.addr %s341, 2
      %s343 = smul.addr %s339, 32
      %s344 = sadd.s32 %s342, %s343
      %s345 = smul.addr %s344, 4
      %s346 = scalar_lea.vmem %s0, %s345
      %s347 = smul.u32 8, %s21
      %s348 = smul.u32 %s21, 8
      %s349 = ssub.s32 %s348, 1
      %p350 = scmp.gt.s32.totalorder %s349, 0
      %s351 = scalar_select %p350, %s349, 0
      %p352 = scmp.lt.s32.totalorder %s20, 1
      %s353 = scalar_select %p352, %s20, 1
      %p354 = scmp.lt.s32.totalorder %s351, 15
      %s355 = scalar_select %p354, %s351, 15
      %s356 = smul.addr %s355, 2
      %s357 = smul.addr %s353, 32
      %s358 = sadd.s32 %s356, %s357
      %s359 = smul.addr %s358, 4
      %s360 = scalar_lea.vmem %s1, %s359
      %s361 = smul.u32 %s21, 8
      %s362 = ssub.s32 %s361, 1
      %p363 = scmp.gt.s32.totalorder %s362, 0
      %s364 = scalar_select %p363, %s362, 0
      %s365 = smul.u32 %s21, 8
      %s366 = sadd.s32 %s365, 8
      %p367 = scmp.lt.s32.totalorder %s366, 15
      %s368 = scalar_select %p367, %s366, 15
      %p369 = scmp.lt.s32.totalorder %s20, 1
      %s370 = scalar_select %p369, %s20, 1
      %p371 = scmp.lt.s32.totalorder %s368, 15
      %s372 = scalar_select %p371, %s368, 15
      %s373 = smul.addr %s372, 2
      %s374 = smul.addr %s370, 32
      %s375 = sadd.s32 %s373, %s374
      %s376 = smul.addr %s375, 4
      %s377 = scalar_lea.vmem %s2, %s376
      %s378 = smul.u32 %s21, 8
      %s379 = sadd.s32 %s378, 8
      %p380 = scmp.lt.s32.totalorder %s379, 15
      %s381 = scalar_select %p380, %s379, 15
      %s382 = smul.u32 8, %s21
      %p383 = scmp.lt.s32.totalorder %s20, 1
      %s384 = scalar_select %p383, %s20, 1
      %p385 = scmp.lt.s32.totalorder %s382, 15
      %s386 = scalar_select %p385, %s382, 15
      %s387 = smul.addr %s386, 2
      %s388 = smul.addr %s384, 32
      %s389 = sadd.s32 %s387, %s388
      %s390 = smul.addr %s389, 4
      %s391 = scalar_lea.vmem %s5, %s390
      %s392 = smul.u32 8, %s21
      %v394 = vld [vmem:[%s346] sm:$0xf]
      %v395 = vld [vmem:[%s346 + $0x4] sm:$0xf]
      %v396 = vld [vmem:[%s346 + $0x8] sm:$0xf]
      %v397 = vld [vmem:[%s346 + $0xc] sm:$0xf]
      %v398 = vld [vmem:[%s346 + $0x10] sm:$0xf]
      %v399 = vld [vmem:[%s346 + $0x14] sm:$0xf]
      %v400 = vld [vmem:[%s346 + $0x18] sm:$0xf]
      %v401 = vld [vmem:[%s346 + $0x1c] sm:$0xf]
      %v402 = vld [vmem:[%s346 + $0x20] sm:$0xf]
      %v403 = vld [vmem:[%s346 + $0x24] sm:$0xf]
      %v404 = vld [vmem:[%s346 + $0x28] sm:$0xf]
      %v405 = vld [vmem:[%s346 + $0x2c] sm:$0xf]
      %v406 = vld [vmem:[%s346 + $0x30] sm:$0xf]
      %v407 = vld [vmem:[%s346 + $0x34] sm:$0xf]
      %v408 = vld [vmem:[%s346 + $0x38] sm:$0xf]
      %v409 = vld [vmem:[%s346 + $0x3c] sm:$0xf]
      %v410 = vld [vmem:[%s360] sm:$0xf]
      %v411 = vld [vmem:[%s360 + $0x4] sm:$0xf]
      %v412 = vld [vmem:[%s377] sm:$0xf]
      %v413 = vld [vmem:[%s377 + $0x4] sm:$0xf]
      %p414 = scmp.gt.s32.totalorder %s21, 0
      %s415 = scalar_select %p414, 1, 0
      %s416 = scvt.s32.f32 %s415
      %p418 = scmp.ne.f32.partialorder %s416, %s416
      %s419 = sshrl.u32 %s416, 16
      %s420 = sand.u32 %s419, 1
      %s421 = sadd.s32 32767, %s420
      %s422 = sadd.s32 %s416, %s421
      %s423 = sand.u32 %s422, 4294901760
      %s424 = scalar_select %p418, 2143289344, %s423
      %s426 = sshrl.u32 %s424, 16
      %p427 = scmp.lt.s32.totalorder %s21, 1
      %s428 = scalar_select %p427, 1, 0
      %s429 = scvt.s32.f32 %s428
      %p431 = scmp.ne.f32.partialorder %s429, %s429
      %s432 = sshrl.u32 %s429, 16
      %s433 = sand.u32 %s432, 1
      %s434 = sadd.s32 32767, %s433
      %s435 = sadd.s32 %s429, %s434
      %s436 = sand.u32 %s435, 4294901760
      %s437 = scalar_select %p431, 2143289344, %s436
      %s439 = sshrl.u32 %s437, 16
      %s440 = sshll.u32 %s426, 16
      %s441 = sor.u32 %s426, %s440
      %v442 = vstv %s441
      %v444 = vmul.bf16 %v410, %v442
      %v445 = vmul.bf16 %v411, %v442
      %s446 = sshll.u32 %s439, 16
      %s447 = sor.u32 %s439, %s446
      %v448 = vstv %s447
      %v450 = vmul.bf16 %v412, %v448
      %v451 = vmul.bf16 %v413, %v448
      %v452 = vunpack.c.l.bf16 %v444
      %v453 = vunpack.c.l.bf16 %v445
      %v454 = vunpack.c.l.bf16 %v394
      %v455 = vunpack.c.l.bf16 %v395
      %v456 = vunpack.c.l.bf16 %v396
      %v457 = vunpack.c.l.bf16 %v397
      %v458 = vunpack.c.l.bf16 %v398
      %v459 = vunpack.c.l.bf16 %v399
      %v460 = vunpack.c.l.bf16 %v400
      %v461 = vunpack.c.l.bf16 %v401
      %v462 = vunpack.c.l.bf16 %v402
      %v463 = vunpack.c.l.bf16 %v403
      %v464 = vunpack.c.l.bf16 %v404
      %v465 = vunpack.c.l.bf16 %v405
      %v466 = vunpack.c.l.bf16 %v406
      %v467 = vunpack.c.l.bf16 %v407
      %v468 = vunpack.c.l.bf16 %v408
      %v469 = vunpack.c.l.bf16 %v409
      %v470 = vunpack.c.l.bf16 %v450
      %v471 = vunpack.c.l.bf16 %v451
      %v472 = vlaneseq
      %v473 = vshrl.u32 %v472, 7
      %v474 = vadd.s32 %v473, 8
      %vm475 = vcmp.eq.s32.totalorder %v473, 0
      %vm476 = vcmp.eq.s32.totalorder %v474, 0
      %v477 = vrot.slane %v452, 7
      %v478 = vrot.slane %v454, 7
      %v479 = vrot.slane %v456, 7
      %v480 = vrot.slane %v458, 7
      %v481 = vrot.slane %v460, 7
      %v482 = vrot.slane %v462, 7
      %v483 = vrot.slane %v464, 7
      %v484 = vrot.slane %v466, 7
      %v485 = vrot.slane %v468, 7
      %v486 = vrot.slane %v470, 7
      %v487 = vrot.slane %v453, 7
      %v488 = vrot.slane %v455, 7
      %v489 = vrot.slane %v457, 7
      %v490 = vrot.slane %v459, 7
      %v491 = vrot.slane %v461, 7
      %v492 = vrot.slane %v463, 7
      %v493 = vrot.slane %v465, 7
      %v494 = vrot.slane %v467, 7
      %v495 = vrot.slane %v469, 7
      %v496 = vrot.slane %v471, 7
      %vm497 = vcmp.lt.s32.totalorder %v473, 1
      %v498 = vsel %vm497, %v477, %v487
      %v499 = vsel %vm497, %v478, %v488
      %v500 = vsel %vm497, %v479, %v489
      %v501 = vsel %vm497, %v480, %v490
      %v502 = vsel %vm497, %v481, %v491
      %v503 = vsel %vm497, %v482, %v492
      %v504 = vsel %vm497, %v483, %v493
      %v505 = vsel %vm497, %v484, %v494
      %v506 = vsel %vm497, %v485, %v495
      %v507 = vsel %vm497, %v486, %v496
      %v508 = vsel %vm497, %v487, %v477
      %v509 = vsel %vm497, %v488, %v478
      %v510 = vsel %vm497, %v489, %v479
      %v511 = vsel %vm497, %v490, %v480
      %v512 = vsel %vm497, %v491, %v481
      %v513 = vsel %vm497, %v492, %v482
      %v514 = vsel %vm497, %v493, %v483
      %v515 = vsel %vm497, %v494, %v484
      %v516 = vsel %vm497, %v495, %v485
      %v517 = vsel %vm497, %v496, %v486
      %v518 = vsel %vm475, 0.0, %v508
      %v519 = vsel %vm476, 0.0, %v498
      %v520 = vsel %vm475, 0.0, %v509
      %v521 = vsel %vm476, 0.0, %v499
      %v522 = vsel %vm475, 0.0, %v510
      %v523 = vsel %vm476, 0.0, %v500
      %v524 = vsel %vm475, 0.0, %v511
      %v525 = vsel %vm476, 0.0, %v501
      %v526 = vsel %vm475, 0.0, %v512
      %v527 = vsel %vm476, 0.0, %v502
      %v528 = vsel %vm475, 0.0, %v513
      %v529 = vsel %vm476, 0.0, %v503
      %v530 = vsel %vm475, 0.0, %v514
      %v531 = vsel %vm476, 0.0, %v504
      %v532 = vsel %vm475, 0.0, %v515
      %v533 = vsel %vm476, 0.0, %v505
      %v534 = vsel %vm475, 0.0, %v516
      %v535 = vsel %vm476, 0.0, %v506
      %v536 = vsel %vm475, 0.0, %v517
      %v537 = vsel %vm476, 0.0, %v507
      %v538 = vpack.c.bf16 %v519, %v518
      %v539 = vpack.c.bf16 %v521, %v520
      %v540 = vpack.c.bf16 %v523, %v522
      %v541 = vpack.c.bf16 %v525, %v524
      %v542 = vpack.c.bf16 %v527, %v526
      %v543 = vpack.c.bf16 %v529, %v528
      %v544 = vpack.c.bf16 %v531, %v530
      %v545 = vpack.c.bf16 %v533, %v532
      %v546 = vpack.c.bf16 %v535, %v534
      %v547 = vpack.c.bf16 %v537, %v536
      %vm548 = vcmp.eq.s32.totalorder %v473, 15
      %vm549 = vcmp.eq.s32.totalorder %v474, 15
      %v550 = vrot.slane %v452, 1
      %v551 = vrot.slane %v454, 1
      %v552 = vrot.slane %v456, 1
      %v553 = vrot.slane %v458, 1
      %v554 = vrot.slane %v460, 1
      %v555 = vrot.slane %v462, 1
      %v556 = vrot.slane %v464, 1
      %v557 = vrot.slane %v466, 1
      %v558 = vrot.slane %v468, 1
      %v559 = vrot.slane %v470, 1
      %v560 = vrot.slane %v453, 1
      %v561 = vrot.slane %v455, 1
      %v562 = vrot.slane %v457, 1
      %v563 = vrot.slane %v459, 1
      %v564 = vrot.slane %v461, 1
      %v565 = vrot.slane %v463, 1
      %v566 = vrot.slane %v465, 1
      %v567 = vrot.slane %v467, 1
      %v568 = vrot.slane %v469, 1
      %v569 = vrot.slane %v471, 1
      %vm570 = vcmp.lt.s32.totalorder %v473, 7
      %v571 = vsel %vm570, %v550, %v560
      %v572 = vsel %vm570, %v551, %v561
      %v573 = vsel %vm570, %v552, %v562
      %v574 = vsel %vm570, %v553, %v563
      %v575 = vsel %vm570, %v554, %v564
      %v576 = vsel %vm570, %v555, %v565
      %v577 = vsel %vm570, %v556, %v566
      %v578 = vsel %vm570, %v557, %v567
      %v579 = vsel %vm570, %v558, %v568
      %v580 = vsel %vm570, %v559, %v569
      %v581 = vsel %vm570, %v560, %v550
      %v582 = vsel %vm570, %v561, %v551
      %v583 = vsel %vm570, %v562, %v552
      %v584 = vsel %vm570, %v563, %v553
      %v585 = vsel %vm570, %v564, %v554
      %v586 = vsel %vm570, %v565, %v555
      %v587 = vsel %vm570, %v566, %v556
      %v588 = vsel %vm570, %v567, %v557
      %v589 = vsel %vm570, %v568, %v558
      %v590 = vsel %vm570, %v569, %v559
      %v591 = vsel %vm548, 0.0, %v571
      %v592 = vsel %vm549, 0.0, %v581
      %v593 = vsel %vm548, 0.0, %v572
      %v594 = vsel %vm549, 0.0, %v582
      %v595 = vsel %vm548, 0.0, %v573
      %v596 = vsel %vm549, 0.0, %v583
      %v597 = vsel %vm548, 0.0, %v574
      %v598 = vsel %vm549, 0.0, %v584
      %v599 = vsel %vm548, 0.0, %v575
      %v600 = vsel %vm549, 0.0, %v585
      %v601 = vsel %vm548, 0.0, %v576
      %v602 = vsel %vm549, 0.0, %v586
      %v603 = vsel %vm548, 0.0, %v577
      %v604 = vsel %vm549, 0.0, %v587
      %v605 = vsel %vm548, 0.0, %v578
      %v606 = vsel %vm549, 0.0, %v588
      %v607 = vsel %vm548, 0.0, %v579
      %v608 = vsel %vm549, 0.0, %v589
      %v609 = vsel %vm548, 0.0, %v580
      %v610 = vsel %vm549, 0.0, %v590
      %v611 = vpack.c.bf16 %v592, %v591
      %v612 = vpack.c.bf16 %v594, %v593
      %v613 = vpack.c.bf16 %v596, %v595
      %v614 = vpack.c.bf16 %v598, %v597
      %v615 = vpack.c.bf16 %v600, %v599
      %v616 = vpack.c.bf16 %v602, %v601
      %v617 = vpack.c.bf16 %v604, %v603
      %v618 = vpack.c.bf16 %v606, %v605
      %v619 = vpack.c.bf16 %v608, %v607
      %v620 = vpack.c.bf16 %v610, %v609
      %v641 = vunpack.c.l.b16 %v444
      %v642 = vunpack.c.l.b16 %v445
      %v643 = vunpack.c.l.b16 %v394
      %v644 = vunpack.c.l.b16 %v395
      %v645 = vunpack.c.l.b16 %v396
      %v646 = vunpack.c.l.b16 %v397
      %v647 = vunpack.c.l.b16 %v398
      %v648 = vunpack.c.l.b16 %v399
      %v649 = vunpack.c.l.b16 %v400
      %v650 = vunpack.c.l.b16 %v401
      %v651 = vunpack.c.l.b16 %v402
      %v652 = vunpack.c.l.b16 %v403
      %v653 = vunpack.c.l.b16 %v404
      %v654 = vunpack.c.l.b16 %v405
      %v655 = vunpack.c.l.b16 %v406
      %v656 = vunpack.c.l.b16 %v407
      %v657 = vunpack.c.l.b16 %v408
      %v658 = vunpack.c.l.b16 %v409
      %v659 = vunpack.c.l.b16 %v450
      %v660 = vunpack.c.l.b16 %v451
      %v661 = vpack.c.b16 %v642, %v641
      %v662 = vpack.c.b16 %v644, %v643
      %v663 = vpack.c.b16 %v646, %v645
      %v664 = vpack.c.b16 %v648, %v647
      %v665 = vpack.c.b16 %v650, %v649
      %v666 = vpack.c.b16 %v652, %v651
      %v667 = vpack.c.b16 %v654, %v653
      %v668 = vpack.c.b16 %v656, %v655
      %v669 = vpack.c.b16 %v658, %v657
      %v670 = vpack.c.b16 %v660, %v659
      %671 = vrot.lane.b32.xlu0 %v661, 64
      %v672 = vpop.permute.xlu0 %671
      %673 = vrot.lane.b32.xlu0 %v662, 64
      %v674 = vpop.permute.xlu0 %673
      %675 = vrot.lane.b32.xlu0 %v663, 64
      %v676 = vpop.permute.xlu0 %675
      %677 = vrot.lane.b32.xlu0 %v664, 64
      %v678 = vpop.permute.xlu0 %677
      %679 = vrot.lane.b32.xlu0 %v665, 64
      %v680 = vpop.permute.xlu0 %679
      %681 = vrot.lane.b32.xlu0 %v666, 64
      %v682 = vpop.permute.xlu0 %681
      %683 = vrot.lane.b32.xlu0 %v667, 64
      %v684 = vpop.permute.xlu0 %683
      %685 = vrot.lane.b32.xlu0 %v668, 64
      %v686 = vpop.permute.xlu0 %685
      %687 = vrot.lane.b32.xlu0 %v669, 64
      %v688 = vpop.permute.xlu0 %687
      %689 = vrot.lane.b32.xlu0 %v670, 64
      %v690 = vpop.permute.xlu0 %689
      %vm691 = vcmask 523264
      %v694 = vsel %vm691, %v538, %v672
      %v698 = vsel %vm691, %v539, %v674
      %v702 = vsel %vm691, %v540, %v676
      %v706 = vsel %vm691, %v541, %v678
      %v710 = vsel %vm691, %v542, %v680
      %v714 = vsel %vm691, %v543, %v682
      %v718 = vsel %vm691, %v544, %v684
      %v722 = vsel %vm691, %v545, %v686
      %v726 = vsel %vm691, %v546, %v688
      %v730 = vsel %vm691, %v547, %v690
      %v732 = vld [vmem:[%s3] sm:$0xf]
      %v733 = vld [vmem:[%s3 + $0x4] sm:$0xf]
      %v734 = vld [vmem:[%s3 + $0x8] sm:$0xf]
      %v735 = vld [vmem:[%s3 + $0xc] sm:$0xf]
      %v736 = vld [vmem:[%s3 + $0x10] sm:$0xf]
      %v737 = vld [vmem:[%s3 + $0x14] sm:$0xf]
      %v738 = vld [vmem:[%s3 + $0x18] sm:$0xf]
      %v739 = vld [vmem:[%s3 + $0x1c] sm:$0xf]
      %v740 = vld [vmem:[%s3 + $0x20] sm:$0xf]
      %v741 = vld [vmem:[%s3 + $0x24] sm:$0xf]
      %v742 = vld [vmem:[%s3 + $0x28] sm:$0xf]
      %v743 = vld [vmem:[%s3 + $0x2c] sm:$0xf]
      %v744 = vld [vmem:[%s3 + $0x30] sm:$0xf]
      %v745 = vld [vmem:[%s3 + $0x34] sm:$0xf]
      %v746 = vld [vmem:[%s3 + $0x38] sm:$0xf]
      %v747 = vld [vmem:[%s3 + $0x3c] sm:$0xf]
      %v748 = vld [vmem:[%s3 + $0x40] sm:$0xf]
      %v749 = vld [vmem:[%s3 + $0x44] sm:$0xf]
      %v750 = vld [vmem:[%s3 + $0x48] sm:$0xf]
      %v751 = vld [vmem:[%s3 + $0x4c] sm:$0xf]
      %v752 = vld [vmem:[%s3 + $0x50] sm:$0xf]
      %v753 = vld [vmem:[%s3 + $0x54] sm:$0xf]
      %v754 = vld [vmem:[%s3 + $0x58] sm:$0xf]
      %v755 = vld [vmem:[%s3 + $0x5c] sm:$0xf]
      %v756 = vld [vmem:[%s3 + $0x60] sm:$0xf]
      %v757 = vld [vmem:[%s3 + $0x64] sm:$0xf]
      %v758 = vld [vmem:[%s3 + $0x68] sm:$0xf]
      %v759 = vld [vmem:[%s3 + $0x6c] sm:$0xf]
      %v760 = vld [vmem:[%s3 + $0x70] sm:$0xf]
      %v761 = vld [vmem:[%s3 + $0x74] sm:$0xf]
      %v762 = vld [vmem:[%s3 + $0x78] sm:$0xf]
      %v763 = vld [vmem:[%s3 + $0x7c] sm:$0xf]
      %v764 = vld [vmem:[%s3 + $0x80] sm:$0xf]
      %v765 = vld [vmem:[%s3 + $0x84] sm:$0xf]
      %v766 = vld [vmem:[%s3 + $0x88] sm:$0xf]
      %v767 = vld [vmem:[%s3 + $0x8c] sm:$0xf]
      %v768 = vld [vmem:[%s3 + $0x90] sm:$0xf]
      %v769 = vld [vmem:[%s3 + $0x94] sm:$0xf]
      %v770 = vld [vmem:[%s3 + $0x98] sm:$0xf]
      %v771 = vld [vmem:[%s3 + $0x9c] sm:$0xf]
      %v772 = vld [vmem:[%s3 + $0xa0] sm:$0xf]
      %v773 = vld [vmem:[%s3 + $0xa4] sm:$0xf]
      %v774 = vld [vmem:[%s3 + $0xa8] sm:$0xf]
      %v775 = vld [vmem:[%s3 + $0xac] sm:$0xf]
      %v776 = vld [vmem:[%s3 + $0xb0] sm:$0xf]
      %v777 = vld [vmem:[%s3 + $0xb4] sm:$0xf]
      %v778 = vld [vmem:[%s3 + $0xb8] sm:$0xf]
      %v779 = vld [vmem:[%s3 + $0xbc] sm:$0xf]
      %v804 = vunpack.c.l.b16 %v756
      %v805 = vunpack.c.l.b16 %v757
      %v806 = vunpack.c.l.b16 %v758
      %v807 = vunpack.c.l.b16 %v759
      %v808 = vunpack.c.l.b16 %v760
      %v809 = vunpack.c.l.b16 %v761
      %v810 = vunpack.c.l.b16 %v762
      %v811 = vunpack.c.l.b16 %v763
      %v812 = vunpack.c.l.b16 %v764
      %v813 = vunpack.c.l.b16 %v765
      %v814 = vunpack.c.l.b16 %v766
      %v815 = vunpack.c.l.b16 %v767
      %v816 = vunpack.c.l.b16 %v768
      %v817 = vunpack.c.l.b16 %v769
      %v818 = vunpack.c.l.b16 %v770
      %v819 = vunpack.c.l.b16 %v771
      %v820 = vunpack.c.l.b16 %v772
      %v821 = vunpack.c.l.b16 %v773
      %v822 = vunpack.c.l.b16 %v774
      %v823 = vunpack.c.l.b16 %v775
      %v824 = vunpack.c.l.b16 %v776
      %v825 = vunpack.c.l.b16 %v777
      %v826 = vunpack.c.l.b16 %v778
      %v827 = vunpack.c.l.b16 %v779
      %v828 = vpack.c.b16 %v805, %v804
      %v829 = vpack.c.b16 %v807, %v806
      %v830 = vpack.c.b16 %v809, %v808
      %v831 = vpack.c.b16 %v811, %v810
      %v832 = vpack.c.b16 %v813, %v812
      %v833 = vpack.c.b16 %v815, %v814
      %v834 = vpack.c.b16 %v817, %v816
      %v835 = vpack.c.b16 %v819, %v818
      %v836 = vpack.c.b16 %v821, %v820
      %v837 = vpack.c.b16 %v823, %v822
      %v838 = vpack.c.b16 %v825, %v824
      %v839 = vpack.c.b16 %v827, %v826
      %v853 = vsel %vm691, %v612, 0
      %v856 = vsel %vm691, %v613, 0
      %v859 = vsel %vm691, %v614, 0
      %v862 = vsel %vm691, %v615, 0
      %v865 = vsel %vm691, %v616, 0
      %v868 = vsel %vm691, %v617, 0
      %v871 = vsel %vm691, %v618, 0
      %v874 = vsel %vm691, %v619, 0
      %876 = vmatprep.subr.bf16.mxu0 0
      %877 = vmatpush1.bf16.msra.mxu0 %v828
      %878 = vmatprep.subr.bf16.mxu0 0
      %879 = vmatpush1.bf16.msra.mxu0 %v829
      %880 = vmatprep.subr.bf16.mxu0 0
      %881 = vmatpush1.bf16.msra.mxu0 %v830
      %882 = vmatprep.subr.bf16.mxu0 0
      %883 = vmatpush1.bf16.msra.mxu0 %v831
      %884 = vmatprep.subr.bf16.mxu0 0
      %885 = vmatpush1.bf16.msra.mxu0 %v832
      %886 = vmatprep.subr.bf16.mxu0 0
      %887 = vmatpush1.bf16.msra.mxu0 %v833
      %888 = vmatprep.subr.bf16.mxu0 0
      %889 = vmatpush1.bf16.msra.mxu0 %v834
      %890 = vmatprep.subr.bf16.mxu0 0
      %891 = vmatpush1.bf16.msra.mxu0 %v835
      %892 = vmatprep.subr.bf16.mxu0 0
      %893 = vmatpush1.bf16.msra.mxu0 %v836
      %894 = vmatprep.subr.bf16.mxu0 0
      %895 = vmatpush1.bf16.msra.mxu0 %v837
      %896 = vmatprep.subr.bf16.mxu0 0
      %897 = vmatpush1.bf16.msra.mxu0 %v838
      %898 = vmatprep.subr.bf16.mxu0 0
      %899 = vmatpush1.bf16.msra.mxu0 %v839
      %900 = vmatprep.subr.bf16.mxu0 0
      %901 = vmatpush1.bf16.msra.mxu0 0
      %902 = vmatprep.subr.bf16.mxu0 0
      %903 = vmatpush1.bf16.msra.mxu0 0
      %904 = vmatprep.subr.bf16.mxu0 0
      %905 = vmatpush1.bf16.msra.mxu0 0
      %906 = vmatprep.subr.bf16.mxu0 0
      %907 = vmatpush1.bf16.msra.mxu0 0
      %908 = vmatprep.mubr.bf16.mxu0 %v853
      %909 = vmatmul.mubr.bf16.gmra.mrb[0].mxu0 %v698
      %v910 = vpop.f32.mrb[0].mxu0
      %v911 = vadd.f32 0.0, %v910
      %v912 = vpop.f32.mrb[0].mxu0
      %v913 = vpop.f32.mrb[0].mxu0
      %v914 = vadd.f32 0.0, %v913
      %v915 = vpop.f32.mrb[0].mxu0
      %916 = vmatprep.mubr.bf16.mxu0 %v856
      %917 = vmatmul.mubr.bf16.gmra.mrb[0].mxu0 %v702
      %v918 = vpop.f32.mrb[0].mxu0
      %v919 = vadd.f32 0.0, %v918
      %v920 = vpop.f32.mrb[0].mxu0
      %v921 = vpop.f32.mrb[0].mxu0
      %v922 = vadd.f32 0.0, %v921
      %v923 = vpop.f32.mrb[0].mxu0
      %924 = vmatprep.mubr.bf16.mxu0 %v859
      %925 = vmatmul.mubr.bf16.gmra.mrb[0].mxu0 %v706
      %v926 = vpop.f32.mrb[0].mxu0
      %v927 = vadd.f32 0.0, %v926
      %v928 = vpop.f32.mrb[0].mxu0
      %v929 = vpop.f32.mrb[0].mxu0
      %v930 = vadd.f32 0.0, %v929
      %v931 = vpop.f32.mrb[0].mxu0
      %932 = vmatprep.mubr.bf16.mxu0 %v862
      %933 = vmatmul.mubr.bf16.gmra.mrb[0].mxu0 %v710
      %v934 = vpop.f32.mrb[0].mxu0
      %v935 = vadd.f32 0.0, %v934
      %v936 = vpop.f32.mrb[0].mxu0
      %v937 = vpop.f32.mrb[0].mxu0
      %v938 = vadd.f32 0.0, %v937
      %v939 = vpop.f32.mrb[0].mxu0
      %940 = vmatprep.mubr.bf16.mxu0 %v865
      %941 = vmatmul.mubr.bf16.gmra.mrb[0].mxu0 %v714
      %v942 = vpop.f32.mrb[0].mxu0
      %v943 = vadd.f32 0.0, %v942
      %v944 = vpop.f32.mrb[0].mxu0
      %v945 = vpop.f32.mrb[0].mxu0
      %v946 = vadd.f32 0.0, %v945
      %v947 = vpop.f32.mrb[0].mxu0
      %948 = vmatprep.mubr.bf16.mxu0 %v868
      %949 = vmatmul.mubr.bf16.gmra.mrb[0].mxu0 %v718
      %v950 = vpop.f32.mrb[0].mxu0
      %v951 = vadd.f32 0.0, %v950
      %v952 = vpop.f32.mrb[0].mxu0
      %v953 = vpop.f32.mrb[0].mxu0
      %v954 = vadd.f32 0.0, %v953
      %v955 = vpop.f32.mrb[0].mxu0
      %956 = vmatprep.mubr.bf16.mxu0 %v871
      %957 = vmatmul.mubr.bf16.gmra.mrb[0].mxu0 %v722
      %v958 = vpop.f32.mrb[0].mxu0
      %v959 = vadd.f32 0.0, %v958
      %v960 = vpop.f32.mrb[0].mxu0
      %v961 = vpop.f32.mrb[0].mxu0
      %v962 = vadd.f32 0.0, %v961
      %v963 = vpop.f32.mrb[0].mxu0
      %964 = vmatprep.mubr.bf16.mxu0 %v874
      %965 = vmatmul.mubr.bf16.gmra.mrb[0].mxu0 %v726
      %v966 = vpop.f32.mrb[0].mxu0
      %v967 = vadd.f32 0.0, %v966
      %v968 = vpop.f32.mrb[0].mxu0
      %v969 = vpop.f32.mrb[0].mxu0
      %v970 = vadd.f32 0.0, %v969
      %v971 = vpop.f32.mrb[0].mxu0
      %972 = vdwg.mxu0
      %v997 = vunpack.c.l.b16 %v732
      %v998 = vunpack.c.l.b16 %v733
      %v999 = vunpack.c.l.b16 %v734
      %v1000 = vunpack.c.l.b16 %v735
      %v1001 = vunpack.c.l.b16 %v736
      %v1002 = vunpack.c.l.b16 %v737
      %v1003 = vunpack.c.l.b16 %v738
      %v1004 = vunpack.c.l.b16 %v739
      %v1005 = vunpack.c.l.b16 %v740
      %v1006 = vunpack.c.l.b16 %v741
      %v1007 = vunpack.c.l.b16 %v742
      %v1008 = vunpack.c.l.b16 %v743
      %v1009 = vunpack.c.l.b16 %v744
      %v1010 = vunpack.c.l.b16 %v745
      %v1011 = vunpack.c.l.b16 %v746
      %v1012 = vunpack.c.l.b16 %v747
      %v1013 = vunpack.c.l.b16 %v748
      %v1014 = vunpack.c.l.b16 %v749
      %v1015 = vunpack.c.l.b16 %v750
      %v1016 = vunpack.c.l.b16 %v751
      %v1017 = vunpack.c.l.b16 %v752
      %v1018 = vunpack.c.l.b16 %v753
      %v1019 = vunpack.c.l.b16 %v754
      %v1020 = vunpack.c.l.b16 %v755
      %v1021 = vpack.c.b16 %v998, %v997
      %v1022 = vpack.c.b16 %v1000, %v999
      %v1023 = vpack.c.b16 %v1002, %v1001
      %v1024 = vpack.c.b16 %v1004, %v1003
      %v1025 = vpack.c.b16 %v1006, %v1005
      %v1026 = vpack.c.b16 %v1008, %v1007
      %v1027 = vpack.c.b16 %v1010, %v1009
      %v1028 = vpack.c.b16 %v1012, %v1011
      %v1029 = vpack.c.b16 %v1014, %v1013
      %v1030 = vpack.c.b16 %v1016, %v1015
      %v1031 = vpack.c.b16 %v1018, %v1017
      %v1032 = vpack.c.b16 %v1020, %v1019
      %v1046 = vsel %vm691, %v611, 0
      %1048 = vmatprep.subr.bf16.mxu0 0
      %1049 = vmatpush1.bf16.msra.mxu0 %v1021
      %1050 = vmatprep.subr.bf16.mxu0 0
      %1051 = vmatpush1.bf16.msra.mxu0 %v1022
      %1052 = vmatprep.subr.bf16.mxu0 0
      %1053 = vmatpush1.bf16.msra.mxu0 %v1023
      %1054 = vmatprep.subr.bf16.mxu0 0
      %1055 = vmatpush1.bf16.msra.mxu0 %v1024
      %1056 = vmatprep.subr.bf16.mxu0 0
      %1057 = vmatpush1.bf16.msra.mxu0 %v1025
      %1058 = vmatprep.subr.bf16.mxu0 0
      %1059 = vmatpush1.bf16.msra.mxu0 %v1026
      %1060 = vmatprep.subr.bf16.mxu0 0
      %1061 = vmatpush1.bf16.msra.mxu0 %v1027
      %1062 = vmatprep.subr.bf16.mxu0 0
      %1063 = vmatpush1.bf16.msra.mxu0 %v1028
      %1064 = vmatprep.subr.bf16.mxu0 0
      %1065 = vmatpush1.bf16.msra.mxu0 %v1029
      %1066 = vmatprep.subr.bf16.mxu0 0
      %1067 = vmatpush1.bf16.msra.mxu0 %v1030
      %1068 = vmatprep.subr.bf16.mxu0 0
      %1069 = vmatpush1.bf16.msra.mxu0 %v1031
      %1070 = vmatprep.subr.bf16.mxu0 0
      %1071 = vmatpush1.bf16.msra.mxu0 %v1032
      %1072 = vmatprep.subr.bf16.mxu0 0
      %1073 = vmatpush1.bf16.msra.mxu0 0
      %1074 = vmatprep.subr.bf16.mxu0 0
      %1075 = vmatpush1.bf16.msra.mxu0 0
      %1076 = vmatprep.subr.bf16.mxu0 0
      %1077 = vmatpush1.bf16.msra.mxu0 0
      %1078 = vmatprep.subr.bf16.mxu0 0
      %1079 = vmatpush1.bf16.msra.mxu0 0
      %1080 = vmatprep.mubr.bf16.mxu0 %v1046
      %1081 = vmatmul.mubr.bf16.gmra.mrb[0].mxu0 %v694
      %v1082 = vpop.f32.mrb[0].mxu0
      %v1083 = vadd.f32 %v911, %v1082
      %v1084 = vpop.f32.mrb[0].mxu0
      %v1085 = vpop.f32.mrb[0].mxu0
      %v1086 = vadd.f32 %v914, %v1085
      %v1087 = vpop.f32.mrb[0].mxu0
      %1088 = vmatprep.mubr.bf16.mxu0 %v853
      %1089 = vmatmul.mubr.bf16.gmra.mrb[0].mxu0 %v698
      %v1090 = vpop.f32.mrb[0].mxu0
      %v1091 = vadd.f32 %v919, %v1090
      %v1092 = vpop.f32.mrb[0].mxu0
      %v1093 = vpop.f32.mrb[0].mxu0
      %v1094 = vadd.f32 %v922, %v1093
      %v1095 = vpop.f32.mrb[0].mxu0
      %1096 = vmatprep.mubr.bf16.mxu0 %v856
      %1097 = vmatmul.mubr.bf16.gmra.mrb[0].mxu0 %v702
      %v1098 = vpop.f32.mrb[0].mxu0
      %v1099 = vadd.f32 %v927, %v1098
      %v1100 = vpop.f32.mrb[0].mxu0
      %v1101 = vpop.f32.mrb[0].mxu0
      %v1102 = vadd.f32 %v930, %v1101
      %v1103 = vpop.f32.mrb[0].mxu0
      %1104 = vmatprep.mubr.bf16.mxu0 %v859
      %1105 = vmatmul.mubr.bf16.gmra.mrb[0].mxu0 %v706
      %v1106 = vpop.f32.mrb[0].mxu0
      %v1107 = vadd.f32 %v935, %v1106
      %v1108 = vpop.f32.mrb[0].mxu0
      %v1109 = vpop.f32.mrb[0].mxu0
      %v1110 = vadd.f32 %v938, %v1109
      %v1111 = vpop.f32.mrb[0].mxu0
      %1112 = vmatprep.mubr.bf16.mxu0 %v862
      %1113 = vmatmul.mubr.bf16.gmra.mrb[0].mxu0 %v710
      %v1114 = vpop.f32.mrb[0].mxu0
      %v1115 = vadd.f32 %v943, %v1114
      %v1116 = vpop.f32.mrb[0].mxu0
      %v1117 = vpop.f32.mrb[0].mxu0
      %v1118 = vadd.f32 %v946, %v1117
      %v1119 = vpop.f32.mrb[0].mxu0
      %1120 = vmatprep.mubr.bf16.mxu0 %v865
      %1121 = vmatmul.mubr.bf16.gmra.mrb[0].mxu0 %v714
      %v1122 = vpop.f32.mrb[0].mxu0
      %v1123 = vadd.f32 %v951, %v1122
      %v1124 = vpop.f32.mrb[0].mxu0
      %v1125 = vpop.f32.mrb[0].mxu0
      %v1126 = vadd.f32 %v954, %v1125
      %v1127 = vpop.f32.mrb[0].mxu0
      %1128 = vmatprep.mubr.bf16.mxu0 %v868
      %1129 = vmatmul.mubr.bf16.gmra.mrb[0].mxu0 %v718
      %v1130 = vpop.f32.mrb[0].mxu0
      %v1131 = vadd.f32 %v959, %v1130
      %v1132 = vpop.f32.mrb[0].mxu0
      %v1133 = vpop.f32.mrb[0].mxu0
      %v1134 = vadd.f32 %v962, %v1133
      %v1135 = vpop.f32.mrb[0].mxu0
      %1136 = vmatprep.mubr.bf16.mxu0 %v871
      %1137 = vmatmul.mubr.bf16.gmra.mrb[0].mxu0 %v722
      %v1138 = vpop.f32.mrb[0].mxu0
      %v1139 = vadd.f32 %v967, %v1138
      %v1140 = vpop.f32.mrb[0].mxu0
      %v1141 = vpop.f32.mrb[0].mxu0
      %v1142 = vadd.f32 %v970, %v1141
      %v1143 = vpop.f32.mrb[0].mxu0
      %1144 = vdwg.mxu0
      %v1145 = vld [vmem:[%s3 + $0xc0] sm:$0xf]
      %v1146 = vld [vmem:[%s3 + $0xc4] sm:$0xf]
      %v1147 = vld [vmem:[%s3 + $0xc8] sm:$0xf]
      %v1148 = vld [vmem:[%s3 + $0xcc] sm:$0xf]
      %v1149 = vld [vmem:[%s3 + $0xd0] sm:$0xf]
      %v1150 = vld [vmem:[%s3 + $0xd4] sm:$0xf]
      %v1151 = vld [vmem:[%s3 + $0xd8] sm:$0xf]
      %v1152 = vld [vmem:[%s3 + $0xdc] sm:$0xf]
      %v1153 = vld [vmem:[%s3 + $0xe0] sm:$0xf]
      %v1154 = vld [vmem:[%s3 + $0xe4] sm:$0xf]
      %v1155 = vld [vmem:[%s3 + $0xe8] sm:$0xf]
      %v1156 = vld [vmem:[%s3 + $0xec] sm:$0xf]
      %v1157 = vld [vmem:[%s3 + $0xf0] sm:$0xf]
      %v1158 = vld [vmem:[%s3 + $0xf4] sm:$0xf]
      %v1159 = vld [vmem:[%s3 + $0xf8] sm:$0xf]
      %v1160 = vld [vmem:[%s3 + $0xfc] sm:$0xf]
      %v1161 = vld [vmem:[%s3 + $0x100] sm:$0xf]
      %v1162 = vld [vmem:[%s3 + $0x104] sm:$0xf]
      %v1163 = vld [vmem:[%s3 + $0x108] sm:$0xf]
      %v1164 = vld [vmem:[%s3 + $0x10c] sm:$0xf]
      %v1165 = vld [vmem:[%s3 + $0x110] sm:$0xf]
      %v1166 = vld [vmem:[%s3 + $0x114] sm:$0xf]
      %v1167 = vld [vmem:[%s3 + $0x118] sm:$0xf]
      %v1168 = vld [vmem:[%s3 + $0x11c] sm:$0xf]
      %v1193 = vunpack.c.l.b16 %v1145
      %v1194 = vunpack.c.l.b16 %v1146
      %v1195 = vunpack.c.l.b16 %v1147
      %v1196 = vunpack.c.l.b16 %v1148
      %v1197 = vunpack.c.l.b16 %v1149
      %v1198 = vunpack.c.l.b16 %v1150
      %v1199 = vunpack.c.l.b16 %v1151
      %v1200 = vunpack.c.l.b16 %v1152
      %v1201 = vunpack.c.l.b16 %v1153
      %v1202 = vunpack.c.l.b16 %v1154
      %v1203 = vunpack.c.l.b16 %v1155
      %v1204 = vunpack.c.l.b16 %v1156
      %v1205 = vunpack.c.l.b16 %v1157
      %v1206 = vunpack.c.l.b16 %v1158
      %v1207 = vunpack.c.l.b16 %v1159
      %v1208 = vunpack.c.l.b16 %v1160
      %v1209 = vunpack.c.l.b16 %v1161
      %v1210 = vunpack.c.l.b16 %v1162
      %v1211 = vunpack.c.l.b16 %v1163
      %v1212 = vunpack.c.l.b16 %v1164
      %v1213 = vunpack.c.l.b16 %v1165
      %v1214 = vunpack.c.l.b16 %v1166
      %v1215 = vunpack.c.l.b16 %v1167
      %v1216 = vunpack.c.l.b16 %v1168
      %v1217 = vpack.c.b16 %v1194, %v1193
      %v1218 = vpack.c.b16 %v1196, %v1195
      %v1219 = vpack.c.b16 %v1198, %v1197
      %v1220 = vpack.c.b16 %v1200, %v1199
      %v1221 = vpack.c.b16 %v1202, %v1201
      %v1222 = vpack.c.b16 %v1204, %v1203
      %v1223 = vpack.c.b16 %v1206, %v1205
      %v1224 = vpack.c.b16 %v1208, %v1207
      %v1225 = vpack.c.b16 %v1210, %v1209
      %v1226 = vpack.c.b16 %v1212, %v1211
      %v1227 = vpack.c.b16 %v1214, %v1213
      %v1228 = vpack.c.b16 %v1216, %v1215
      %v1242 = vsel %vm691, %v620, 0
      %1244 = vmatprep.subr.bf16.mxu0 0
      %1245 = vmatpush1.bf16.msra.mxu0 %v1217
      %1246 = vmatprep.subr.bf16.mxu0 0
      %1247 = vmatpush1.bf16.msra.mxu0 %v1218
      %1248 = vmatprep.subr.bf16.mxu0 0
      %1249 = vmatpush1.bf16.msra.mxu0 %v1219
      %1250 = vmatprep.subr.bf16.mxu0 0
      %1251 = vmatpush1.bf16.msra.mxu0 %v1220
      %1252 = vmatprep.subr.bf16.mxu0 0
      %1253 = vmatpush1.bf16.msra.mxu0 %v1221
      %1254 = vmatprep.subr.bf16.mxu0 0
      %1255 = vmatpush1.bf16.msra.mxu0 %v1222
      %1256 = vmatprep.subr.bf16.mxu0 0
      %1257 = vmatpush1.bf16.msra.mxu0 %v1223
      %1258 = vmatprep.subr.bf16.mxu0 0
      %1259 = vmatpush1.bf16.msra.mxu0 %v1224
      %1260 = vmatprep.subr.bf16.mxu0 0
      %1261 = vmatpush1.bf16.msra.mxu0 %v1225
      %1262 = vmatprep.subr.bf16.mxu0 0
      %1263 = vmatpush1.bf16.msra.mxu0 %v1226
      %1264 = vmatprep.subr.bf16.mxu0 0
      %1265 = vmatpush1.bf16.msra.mxu0 %v1227
      %1266 = vmatprep.subr.bf16.mxu0 0
      %1267 = vmatpush1.bf16.msra.mxu0 %v1228
      %1268 = vmatprep.subr.bf16.mxu0 0
      %1269 = vmatpush1.bf16.msra.mxu0 0
      %1270 = vmatprep.subr.bf16.mxu0 0
      %1271 = vmatpush1.bf16.msra.mxu0 0
      %1272 = vmatprep.subr.bf16.mxu0 0
      %1273 = vmatpush1.bf16.msra.mxu0 0
      %1274 = vmatprep.subr.bf16.mxu0 0
      %1275 = vmatpush1.bf16.msra.mxu0 0
      %1276 = vmatprep.mubr.bf16.mxu0 %v856
      %1277 = vmatmul.mubr.bf16.gmra.mrb[0].mxu0 %v702
      %v1278 = vpop.f32.mrb[0].mxu0
      %v1279 = vadd.f32 0.0, %v1278
      %v1280 = vpop.f32.mrb[0].mxu0
      %v1281 = vpop.f32.mrb[0].mxu0
      %v1282 = vadd.f32 0.0, %v1281
      %v1283 = vpop.f32.mrb[0].mxu0
      %1284 = vmatprep.mubr.bf16.mxu0 %v859
      %1285 = vmatmul.mubr.bf16.gmra.mrb[0].mxu0 %v706
      %v1286 = vpop.f32.mrb[0].mxu0
      %v1287 = vadd.f32 0.0, %v1286
      %v1288 = vpop.f32.mrb[0].mxu0
      %v1289 = vpop.f32.mrb[0].mxu0
      %v1290 = vadd.f32 0.0, %v1289
      %v1291 = vpop.f32.mrb[0].mxu0
      %1292 = vmatprep.mubr.bf16.mxu0 %v862
      %1293 = vmatmul.mubr.bf16.gmra.mrb[0].mxu0 %v710
      %v1294 = vpop.f32.mrb[0].mxu0
      %v1295 = vadd.f32 0.0, %v1294
      %v1296 = vpop.f32.mrb[0].mxu0
      %v1297 = vpop.f32.mrb[0].mxu0
      %v1298 = vadd.f32 0.0, %v1297
      %v1299 = vpop.f32.mrb[0].mxu0
      %1300 = vmatprep.mubr.bf16.mxu0 %v865
      %1301 = vmatmul.mubr.bf16.gmra.mrb[0].mxu0 %v714
      %v1302 = vpop.f32.mrb[0].mxu0
      %v1303 = vadd.f32 0.0, %v1302
      %v1304 = vpop.f32.mrb[0].mxu0
      %v1305 = vpop.f32.mrb[0].mxu0
      %v1306 = vadd.f32 0.0, %v1305
      %v1307 = vpop.f32.mrb[0].mxu0
      %1308 = vmatprep.mubr.bf16.mxu0 %v868
      %1309 = vmatmul.mubr.bf16.gmra.mrb[0].mxu0 %v718
      %v1310 = vpop.f32.mrb[0].mxu0
      %v1311 = vadd.f32 0.0, %v1310
      %v1312 = vpop.f32.mrb[0].mxu0
      %v1313 = vpop.f32.mrb[0].mxu0
      %v1314 = vadd.f32 0.0, %v1313
      %v1315 = vpop.f32.mrb[0].mxu0
      %1316 = vmatprep.mubr.bf16.mxu0 %v871
      %1317 = vmatmul.mubr.bf16.gmra.mrb[0].mxu0 %v722
      %v1318 = vpop.f32.mrb[0].mxu0
      %v1319 = vadd.f32 0.0, %v1318
      %v1320 = vpop.f32.mrb[0].mxu0
      %v1321 = vpop.f32.mrb[0].mxu0
      %v1322 = vadd.f32 0.0, %v1321
      %v1323 = vpop.f32.mrb[0].mxu0
      %1324 = vmatprep.mubr.bf16.mxu0 %v874
      %1325 = vmatmul.mubr.bf16.gmra.mrb[0].mxu0 %v726
      %v1326 = vpop.f32.mrb[0].mxu0
      %v1327 = vadd.f32 0.0, %v1326
      %v1328 = vpop.f32.mrb[0].mxu0
      %v1329 = vpop.f32.mrb[0].mxu0
      %v1330 = vadd.f32 0.0, %v1329
      %v1331 = vpop.f32.mrb[0].mxu0
      %1332 = vmatprep.mubr.bf16.mxu0 %v1242
      %1333 = vmatmul.mubr.bf16.gmra.mrb[0].mxu0 %v730
      %v1334 = vpop.f32.mrb[0].mxu0
      %v1335 = vadd.f32 0.0, %v1334
      %v1336 = vpop.f32.mrb[0].mxu0
      %v1337 = vpop.f32.mrb[0].mxu0
      %v1338 = vadd.f32 0.0, %v1337
      %v1339 = vpop.f32.mrb[0].mxu0
      %1340 = vdwg.mxu0
      %v1341 = vadd.f32 %v1083, %v1279
      %v1342 = vadd.f32 %v1086, %v1282
      %v1343 = vadd.f32 %v1091, %v1287
      %v1344 = vadd.f32 %v1094, %v1290
      %v1345 = vadd.f32 %v1099, %v1295
      %v1346 = vadd.f32 %v1102, %v1298
      %v1347 = vadd.f32 %v1107, %v1303
      %v1348 = vadd.f32 %v1110, %v1306
      %v1349 = vadd.f32 %v1115, %v1311
      %v1350 = vadd.f32 %v1118, %v1314
      %v1351 = vadd.f32 %v1123, %v1319
      %v1352 = vadd.f32 %v1126, %v1322
      %v1353 = vadd.f32 %v1131, %v1327
      %v1354 = vadd.f32 %v1134, %v1330
      %v1355 = vadd.f32 %v1139, %v1335
      %v1356 = vadd.f32 %v1142, %v1338
      %v1357 = vld [vmem:[%s4] sm:$0x1]
      %v1359 = vlaneseq
      %v1360 = vshrl.u32 %v1359, 7
      %v1361 = vsub.s32 0, %v1360
      %v1362 = vrot.slane %v1357, %v1361
      %v1364 = vadd.f32 %v1341, %v1362
      %v1365 = vadd.f32 %v1342, %v1362
      %v1366 = vadd.f32 %v1343, %v1362
      %v1367 = vadd.f32 %v1344, %v1362
      %v1368 = vadd.f32 %v1345, %v1362
      %v1369 = vadd.f32 %v1346, %v1362
      %v1370 = vadd.f32 %v1347, %v1362
      %v1371 = vadd.f32 %v1348, %v1362
      %v1372 = vadd.f32 %v1349, %v1362
      %v1373 = vadd.f32 %v1350, %v1362
      %v1374 = vadd.f32 %v1351, %v1362
      %v1375 = vadd.f32 %v1352, %v1362
      %v1376 = vadd.f32 %v1353, %v1362
      %v1377 = vadd.f32 %v1354, %v1362
      %v1378 = vadd.f32 %v1355, %v1362
      %v1379 = vadd.f32 %v1356, %v1362
      %v1380 = vmax.f32 %v1364, 0.0
      %v1381 = vmax.f32 %v1365, 0.0
      %v1382 = vmax.f32 %v1366, 0.0
      %v1383 = vmax.f32 %v1367, 0.0
      %v1384 = vmax.f32 %v1368, 0.0
      %v1385 = vmax.f32 %v1369, 0.0
      %v1386 = vmax.f32 %v1370, 0.0
      %v1387 = vmax.f32 %v1371, 0.0
      %v1388 = vmax.f32 %v1372, 0.0
      %v1389 = vmax.f32 %v1373, 0.0
      %v1390 = vmax.f32 %v1374, 0.0
      %v1391 = vmax.f32 %v1375, 0.0
      %v1392 = vmax.f32 %v1376, 0.0
      %v1393 = vmax.f32 %v1377, 0.0
      %v1394 = vmax.f32 %v1378, 0.0
      %v1395 = vmax.f32 %v1379, 0.0
      %v1396 = vpack.c.bf16 %v1381, %v1380
      %v1397 = vpack.c.bf16 %v1383, %v1382
      %v1398 = vpack.c.bf16 %v1385, %v1384
      %v1399 = vpack.c.bf16 %v1387, %v1386
      %v1400 = vpack.c.bf16 %v1389, %v1388
      %v1401 = vpack.c.bf16 %v1391, %v1390
      %v1402 = vpack.c.bf16 %v1393, %v1392
      %v1403 = vpack.c.bf16 %v1395, %v1394
      %v1412 = vunpack.c.l.b16 %v1396
      %v1413 = vunpack.c.h.b16 %v1396
      %v1414 = vunpack.c.l.b16 %v1397
      %v1415 = vunpack.c.h.b16 %v1397
      %v1416 = vunpack.c.l.b16 %v1398
      %v1417 = vunpack.c.h.b16 %v1398
      %v1418 = vunpack.c.l.b16 %v1399
      %v1419 = vunpack.c.h.b16 %v1399
      %v1420 = vunpack.c.l.b16 %v1400
      %v1421 = vunpack.c.h.b16 %v1400
      %v1422 = vunpack.c.l.b16 %v1401
      %v1423 = vunpack.c.h.b16 %v1401
      %v1424 = vunpack.c.l.b16 %v1402
      %v1425 = vunpack.c.h.b16 %v1402
      %v1426 = vunpack.c.l.b16 %v1403
      %v1427 = vunpack.c.h.b16 %v1403
      %v1428 = vpack.c.b16 %v1412, %v1412
      %v1429 = vpack.c.b16 %v1413, %v1413
      %v1430 = vpack.c.b16 %v1414, %v1414
      %v1431 = vpack.c.b16 %v1415, %v1415
      %v1432 = vpack.c.b16 %v1416, %v1416
      %v1433 = vpack.c.b16 %v1417, %v1417
      %v1434 = vpack.c.b16 %v1418, %v1418
      %v1435 = vpack.c.b16 %v1419, %v1419
      %v1436 = vpack.c.b16 %v1420, %v1420
      %v1437 = vpack.c.b16 %v1421, %v1421
      %v1438 = vpack.c.b16 %v1422, %v1422
      %v1439 = vpack.c.b16 %v1423, %v1423
      %v1440 = vpack.c.b16 %v1424, %v1424
      %v1441 = vpack.c.b16 %v1425, %v1425
      %v1442 = vpack.c.b16 %v1426, %v1426
      %v1443 = vpack.c.b16 %v1427, %v1427
      %1460 = vst [vmem:[%s391] sm:$0xf] %v1428
      %1461 = vst [vmem:[%s391 + $0x4] sm:$0xf] %v1429
      %1462 = vst [vmem:[%s391 + $0x8] sm:$0xf] %v1430
      %1463 = vst [vmem:[%s391 + $0xc] sm:$0xf] %v1431
      %1464 = vst [vmem:[%s391 + $0x10] sm:$0xf] %v1432
      %1465 = vst [vmem:[%s391 + $0x14] sm:$0xf] %v1433
      %1466 = vst [vmem:[%s391 + $0x18] sm:$0xf] %v1434
      %1467 = vst [vmem:[%s391 + $0x1c] sm:$0xf] %v1435
      %1468 = vst [vmem:[%s391 + $0x20] sm:$0xf] %v1436
      %1469 = vst [vmem:[%s391 + $0x24] sm:$0xf] %v1437
      %1470 = vst [vmem:[%s391 + $0x28] sm:$0xf] %v1438
      %1471 = vst [vmem:[%s391 + $0x2c] sm:$0xf] %v1439
      %1472 = vst [vmem:[%s391 + $0x30] sm:$0xf] %v1440
      %1473 = vst [vmem:[%s391 + $0x34] sm:$0xf] %v1441
      %1474 = vst [vmem:[%s391 + $0x38] sm:$0xf] %v1442
      %1475 = vst [vmem:[%s391 + $0x3c] sm:$0xf] %v1443
      %s1476 = smul.u32 8, %s21
      %p1477 = scmp.lt.s32.totalorder %s20, 1
      %s1478 = scalar_select %p1477, %s20, 1
      %p1479 = scmp.lt.s32.totalorder %s1476, 15
      %s1480 = scalar_select %p1479, %s1476, 15
      %s1481 = smul.addr %s1480, 2
      %s1482 = smul.addr %s1478, 32
      %s1483 = sadd.s32 %s1481, %s1482
      %s1484 = smul.addr %s1483, 4
      %s1485 = scalar_lea.vmem %s5, %s1484
      // Predicated region
      $region41: #{vgg19_slice1.7} parent=39 // pred_check
        %p1486 = pneg %p190
      $region42: #{vgg19_slice1.7} parent=39 // pred_check_branch
        %1488 = sbr.rel (%p1486) target = $region44
      $region43: #{vgg19_slice1.7} parent=39 // pred_region
        %s1489 = smul.u32 8, %s21
      $region44: #{vgg19_slice1.7} parent=39 // pred_fallthru
        _
    $region40: #{vgg19_slice1.7} parent=5 // pred_fallthru
      _
    %p1490 = scmp.le.s32.totalorder 2, %s11
    // Predicated region
    $region45: #{vgg19_slice1.7} parent=5 // pred_check
      %p1491 = pneg %p1490
    $region46: #{vgg19_slice1.7} parent=5 // pred_check_branch
      %1493 = sbr.rel (%p1491) target = $region48
    $region47: #{vgg19_slice1.7} parent=5 // pred_region
      %s1494 = ssub.s32 %s11, 2
      // Predicated region
      $region49: #{vgg19_slice1.7} parent=47 // pred_check
        %p1495 = pneg %p196
      $region50: #{vgg19_slice1.7} parent=47 // pred_check_branch
        %1497 = sbr.rel (%p1495) target = $region52
      $region51: #{vgg19_slice1.7} parent=47 // pred_region
        %s1498 = smul.u32 8, %s23
        %p1499 = scmp.lt.s32.totalorder %s22, 1
        %s1500 = scalar_select %p1499, %s22, 1
        %p1501 = scmp.lt.s32.totalorder %s1498, 15
        %s1502 = scalar_select %p1501, %s1498, 15
        %s1503 = smul.addr %s1502, 2
        %s1504 = smul.addr %s1500, 32
        %s1505 = sadd.s32 %s1503, %s1504
        %s1506 = smul.addr %s1505, 4
        %s1507 = scalar_lea.vmem %s5, %s1506
      $region52: #{vgg19_slice1.7} parent=47 // pred_fallthru
        _
    $region48: #{vgg19_slice1.7} parent=5 // pred_fallthru
      _
  $region6: #{vgg19_slice1.7} parent=0 // loop_footer
    %s15 = sadd.s32 1, %s11
  $region7: #{vgg19_slice1.7} parent=0 // loop_footer_branch
    %10 = sbr.rel target = $region3
  $region8: #{vgg19_slice1.7} parent=0 // loop_exit
    _

// kernel: vgg19_slice1.8
$region0: #{vgg19_slice1.8}
  #allocation0 [shape = 'u32[]', space=smem, size = 0x4, offset = 0x4, fixed_abs, tag = 'smem constant byte address 0x4 - core index']
  #allocation1 [shape = 'u32[144,128]{1,0:T(1,128)}', space=vmem, size = 0x12000, scoped, tag = 'internal scratch']
  #allocation2 [shape = 'f32[4,16,128]{2,1,0:T(8,128)}', space=vmem, size = 0x8000, scoped, tag = 'scratch operand']
  %s0 = inlined_call_operand.vmem [shape: bf16[2,16,16,128], index: 0, kind: input, shape index: {}, may-alias: {0,1,2}]
  %s1 = inlined_call_operand.vmem [shape: bf16[2,16,16,128], index: 1, kind: input, shape index: {}, may-alias: {0,1,2}]
  %s2 = inlined_call_operand.vmem [shape: bf16[2,16,16,128], index: 2, kind: input, shape index: {}, may-alias: {0,1,2}]
  %s3 = inlined_call_operand.vmem [shape: bf16[1152,128], index: 3, kind: input, shape index: {}]
  %s4 = inlined_call_operand.vmem [shape: f32[1,128], index: 4, kind: input, shape index: {}]
  %s5 = inlined_call_operand.vmem [shape: bf16[2,8,8,128], index: 5, kind: output, shape index: {}]
  %s6 = sld [smem:[#allocation0]]
  $region53: #{vgg19_slice1.8} parent=0
    _
  %s8 = ssub.s32 1, %s6
  %s9 = scalar_select 0, %s8, %s6
  loop: start=0, step=1, limit=6
  $region2: #{vgg19_slice1.8} parent=0 // loop_pre_header
    _
  $region3: #{vgg19_slice1.8} parent=0 // loop_header
    %s11 = sphi 0, %s15
    %p12 = scmp.ge.s32.totalorder %s11, 6
    %s18 = sphi 0, %s30
    %s19 = sphi 0, %s26
    %s20 = sphi 0, %s18
    %s21 = sphi 0, %s19
    %s22 = sphi 0, %s20
    %s23 = sphi 0, %s21
    %s35 = sphi 0, %s37
    %s38 = sphi 0, %s35
    %s39 = sphi 0, %s38
    %s55 = sphi 0, %s39
    %s71 = sphi 0, %s73
    %s74 = sphi 0, %s71
    %s75 = sphi 0, %s74
    %s91 = sphi 0, %s75
    %s107 = sphi 0, %s109
    %s110 = sphi 0, %s107
    %s111 = sphi 0, %s110
    %s127 = sphi 0, %s111
    %s131 = sphi 0, %s131
    %s133 = sphi 0, %s131
    %s134 = sphi 0, %s133
    %s148 = sphi 0, %s134
    %s152 = sphi 0, %s152
    %s154 = sphi 0, %s152
    %s155 = sphi 0, %s154
    %s169 = sphi 0, %s155
    %s177 = sphi 0, %s179
    %s180 = sphi 0, %s177
    %s181 = sphi 0, %s180
    %s197 = sphi 0, %s181
  $region4: #{vgg19_slice1.8} parent=0 // loop_header_branch
    %14 = sbr.rel (%p12) target = $region8
  $region5: #{vgg19_slice1.8} parent=0 // loop_body
    %s16 = ssub.s32 %s11, 1
    %s17 = ssub.s32 %s11, 2
    %s24 = sadd.s32 1, %s19
    %p25 = scmp.ge.s32.totalorder %s24, 2
    %s26 = scalar_select %p25, 0, %s24
    %s27 = sadd.s32 1, %s18
    %s28 = scalar_select %p25, %s27, %s18
    %p29 = scmp.ge.s32.totalorder %s28, 2
    %s30 = scalar_select %p29, 0, %s28
    %s31 = ssub.s32 %s18, %s30
    %s32 = ssub.s32 %s19, %s26
    %s33 = sor.u32 %s31, %s32
    %p34 = scmp.eq.s32.totalorder %s33, 0
    %s36 = sadd.s32 %s35, 1
    %s37 = scalar_select %p34, %s35, %s36
    %p40 = pneg %p34
    %p41 = scmp.eq.s32.totalorder %s11, 3
    %p42 = por %p40, %p41
    %p43 = scmp.ne.s32.totalorder %s35, %s38
    %p44 = scmp.eq.s32.totalorder %s11, 0
    %p45 = por %p43, %p44
    %p46 = scmp.ne.s32.totalorder %s35, %s38
    %p47 = scmp.eq.s32.totalorder %s16, 3
    %p48 = por %p46, %p47
    %p49 = scmp.ne.s32.totalorder %s38, %s39
    %p50 = scmp.eq.s32.totalorder %s16, 0
    %p51 = por %p49, %p50
    %p52 = scmp.ne.s32.totalorder %s38, %s39
    %p53 = scmp.eq.s32.totalorder %s17, 3
    %p54 = por %p52, %p53
    %p56 = scmp.ne.s32.totalorder %s39, %s55
    %p57 = scmp.eq.s32.totalorder %s17, 0
    %p58 = por %p56, %p57
    %s59 = smul.u32 %s19, 8
    %s60 = ssub.s32 %s59, 1
    %p61 = scmp.gt.s32.totalorder %s60, 0
    %s62 = scalar_select %p61, %s60, 0
    %s63 = smul.u32 %s26, 8
    %s64 = ssub.s32 %s63, 1
    %p65 = scmp.gt.s32.totalorder %s64, 0
    %s66 = scalar_select %p65, %s64, 0
    %s67 = ssub.s32 %s18, %s30
    %s68 = ssub.s32 %s62, %s66
    %s69 = sor.u32 %s67, %s68
    %p70 = scmp.eq.s32.totalorder %s69, 0
    %s72 = sadd.s32 %s71, 1
    %s73 = scalar_select %p70, %s71, %s72
    %p76 = pneg %p70
    %p77 = scmp.eq.s32.totalorder %s11, 3
    %p78 = por %p76, %p77
    %p79 = scmp.ne.s32.totalorder %s71, %s74
    %p80 = scmp.eq.s32.totalorder %s11, 0
    %p81 = por %p79, %p80
    %p82 = scmp.ne.s32.totalorder %s71, %s74
    %p83 = scmp.eq.s32.totalorder %s16, 3
    %p84 = por %p82, %p83
    %p85 = scmp.ne.s32.totalorder %s74, %s75
    %p86 = scmp.eq.s32.totalorder %s16, 0
    %p87 = por %p85, %p86
    %p88 = scmp.ne.s32.totalorder %s74, %s75
    %p89 = scmp.eq.s32.totalorder %s17, 3
    %p90 = por %p88, %p89
    %p92 = scmp.ne.s32.totalorder %s75, %s91
    %p93 = scmp.eq.s32.totalorder %s17, 0
    %p94 = por %p92, %p93
    %s95 = smul.u32 %s19, 8
    %s96 = sadd.s32 %s95, 8
    %p97 = scmp.lt.s32.totalorder %s96, 15
    %s98 = scalar_select %p97, %s96, 15
    %s99 = smul.u32 %s26, 8
    %s100 = sadd.s32 %s99, 8
    %p101 = scmp.lt.s32.totalorder %s100, 15
    %s102 = scalar_select %p101, %s100, 15
    %s103 = ssub.s32 %s18, %s30
    %s104 = ssub.s32 %s98, %s102
    %s105 = sor.u32 %s103, %s104
    %p106 = scmp.eq.s32.totalorder %s105, 0
    %s108 = sadd.s32 %s107, 1
    %s109 = scalar_select %p106, %s107, %s108
    %p112 = pneg %p106
    %p113 = scmp.eq.s32.totalorder %s11, 3
    %p114 = por %p112, %p113
    %p115 = scmp.ne.s32.totalorder %s107, %s110
    %p116 = scmp.eq.s32.totalorder %s11, 0
    %p117 = por %p115, %p116
    %p118 = scmp.ne.s32.totalorder %s107, %s110
    %p119 = scmp.eq.s32.totalorder %s16, 3
    %p120 = por %p118, %p119
    %p121 = scmp.ne.s32.totalorder %s110, %s111
    %p122 = scmp.eq.s32.totalorder %s16, 0
    %p123 = por %p121, %p122
    %p124 = scmp.ne.s32.totalorder %s110, %s111
    %p125 = scmp.eq.s32.totalorder %s17, 3
    %p126 = por %p124, %p125
    %p128 = scmp.ne.s32.totalorder %s111, %s127
    %p129 = scmp.eq.s32.totalorder %s17, 0
    %p130 = por %p128, %p129
    %s132 = sadd.s32 %s131, 1
    %p135 = scmp.eq.s32.totalorder %s11, 3
    %p136 = scmp.ne.s32.totalorder %s131, %s133
    %p137 = scmp.eq.s32.totalorder %s11, 0
    %p138 = por %p136, %p137
    %p139 = scmp.ne.s32.totalorder %s131, %s133
    %p140 = scmp.eq.s32.totalorder %s16, 3
    %p141 = por %p139, %p140
    %p142 = scmp.ne.s32.totalorder %s133, %s134
    %p143 = scmp.eq.s32.totalorder %s16, 0
    %p144 = por %p142, %p143
    %p145 = scmp.ne.s32.totalorder %s133, %s134
    %p146 = scmp.eq.s32.totalorder %s17, 3
    %p147 = por %p145, %p146
    %p149 = scmp.ne.s32.totalorder %s134, %s148
    %p150 = scmp.eq.s32.totalorder %s17, 0
    %p151 = por %p149, %p150
    %s153 = sadd.s32 %s152, 1
    %p156 = scmp.eq.s32.totalorder %s11, 3
    %p157 = scmp.ne.s32.totalorder %s152, %s154
    %p158 = scmp.eq.s32.totalorder %s11, 0
    %p159 = por %p157, %p158
    %p160 = scmp.ne.s32.totalorder %s152, %s154
    %p161 = scmp.eq.s32.totalorder %s16, 3
    %p162 = por %p160, %p161
    %p163 = scmp.ne.s32.totalorder %s154, %s155
    %p164 = scmp.eq.s32.totalorder %s16, 0
    %p165 = por %p163, %p164
    %p166 = scmp.ne.s32.totalorder %s154, %s155
    %p167 = scmp.eq.s32.totalorder %s17, 3
    %p168 = por %p166, %p167
    %p170 = scmp.ne.s32.totalorder %s155, %s169
    %p171 = scmp.eq.s32.totalorder %s17, 0
    %p172 = por %p170, %p171
    %s173 = ssub.s32 %s18, %s30
    %s174 = ssub.s32 %s19, %s26
    %s175 = sor.u32 %s173, %s174
    %p176 = scmp.eq.s32.totalorder %s175, 0
    %s178 = sadd.s32 %s177, 1
    %s179 = scalar_select %p176, %s177, %s178
    %p182 = pneg %p176
    %p183 = scmp.eq.s32.totalorder %s11, 3
    %p184 = por %p182, %p183
    %p185 = scmp.ne.s32.totalorder %s177, %s180
    %p186 = scmp.eq.s32.totalorder %s11, 0
    %p187 = por %p185, %p186
    %p188 = scmp.ne.s32.totalorder %s177, %s180
    %p189 = scmp.eq.s32.totalorder %s16, 3
    %p190 = por %p188, %p189
    %p191 = scmp.ne.s32.totalorder %s180, %s181
    %p192 = scmp.eq.s32.totalorder %s16, 0
    %p193 = por %p191, %p192
    %p194 = scmp.ne.s32.totalorder %s180, %s181
    %p195 = scmp.eq.s32.totalorder %s17, 3
    %p196 = por %p194, %p195
    %p198 = scmp.ne.s32.totalorder %s181, %s197
    %p199 = scmp.eq.s32.totalorder %s17, 0
    %p200 = por %p198, %p199
    %p201 = scmp.le.s32.totalorder 1, %s11
    %p202 = scmp.lt.s32.totalorder %s11, 5
    %p203 = pnand %p201, %p202
    %p204 = pneg %p203
    // Predicated region
    $region9: #{vgg19_slice1.8} parent=5 // pred_check
      _
    $region10: #{vgg19_slice1.8} parent=5 // pred_check_branch
      %206 = sbr.rel (%p203) target = $region12
    $region11: #{vgg19_slice1.8} parent=5 // pred_region
      %s207 = ssub.s32 %s11, 1
      // Predicated region
      $region13: #{vgg19_slice1.8} parent=11 // pred_check
        %p208 = pneg %p144
      $region14: #{vgg19_slice1.8} parent=11 // pred_check_branch
        %210 = sbr.rel (%p208) target = $region16
      $region15: #{vgg19_slice1.8} parent=11 // pred_region
        _
      $region16: #{vgg19_slice1.8} parent=11 // pred_fallthru
        _
      // Predicated region
      $region17: #{vgg19_slice1.8} parent=11 // pred_check
        %p211 = pneg %p165
      $region18: #{vgg19_slice1.8} parent=11 // pred_check_branch
        %213 = sbr.rel (%p211) target = $region20
      $region19: #{vgg19_slice1.8} parent=11 // pred_region
        _
      $region20: #{vgg19_slice1.8} parent=11 // pred_fallthru
        _
    $region12: #{vgg19_slice1.8} parent=5 // pred_fallthru
      _
    %p214 = scmp.lt.s32.totalorder %s11, 4
    // Predicated region
    $region21: #{vgg19_slice1.8} parent=5 // pred_check
      %p215 = pneg %p214
    $region22: #{vgg19_slice1.8} parent=5 // pred_check_branch
      %217 = sbr.rel (%p215) target = $region24
    $region23: #{vgg19_slice1.8} parent=5 // pred_region
      // Predicated region
      $region25: #{vgg19_slice1.8} parent=23 // pred_check
        %p218 = pneg %p45
      $region26: #{vgg19_slice1.8} parent=23 // pred_check_branch
        %220 = sbr.rel (%p218) target = $region28
      $region27: #{vgg19_slice1.8} parent=23 // pred_region
        %s221 = smul.u32 8, %s19
        %p222 = scmp.lt.s32.totalorder %s18, 1
        %s223 = scalar_select %p222, %s18, 1
        %p224 = scmp.lt.s32.totalorder %s221, 15
        %s225 = scalar_select %p224, %s221, 15
        %s226 = smul.addr %s225, 2
        %s227 = smul.addr %s223, 32
        %s228 = sadd.s32 %s226, %s227
        %s229 = smul.addr %s228, 4
        %s230 = scalar_lea.vmem %s0, %s229
        %s231 = smul.u32 8, %s19
      $region28: #{vgg19_slice1.8} parent=23 // pred_fallthru
        _
      // Predicated region
      $region29: #{vgg19_slice1.8} parent=23 // pred_check
        %p232 = pneg %p81
      $region30: #{vgg19_slice1.8} parent=23 // pred_check_branch
        %234 = sbr.rel (%p232) target = $region32
      $region31: #{vgg19_slice1.8} parent=23 // pred_region
        %s235 = smul.u32 %s19, 8
        %s236 = ssub.s32 %s235, 1
        %p237 = scmp.gt.s32.totalorder %s236, 0
        %s238 = scalar_select %p237, %s236, 0
        %p239 = scmp.lt.s32.totalorder %s18, 1
        %s240 = scalar_select %p239, %s18, 1
        %p241 = scmp.lt.s32.totalorder %s238, 15
        %s242 = scalar_select %p241, %s238, 15
        %s243 = smul.addr %s242, 2
        %s244 = smul.addr %s240, 32
        %s245 = sadd.s32 %s243, %s244
        %s246 = smul.addr %s245, 4
        %s247 = scalar_lea.vmem %s1, %s246
        %s248 = smul.u32 %s19, 8
        %s249 = ssub.s32 %s248, 1
        %p250 = scmp.gt.s32.totalorder %s249, 0
        %s251 = scalar_select %p250, %s249, 0
      $region32: #{vgg19_slice1.8} parent=23 // pred_fallthru
        _
      // Predicated region
      $region33: #{vgg19_slice1.8} parent=23 // pred_check
        %p252 = pneg %p117
      $region34: #{vgg19_slice1.8} parent=23 // pred_check_branch
        %254 = sbr.rel (%p252) target = $region36
      $region35: #{vgg19_slice1.8} parent=23 // pred_region
        %s255 = smul.u32 %s19, 8
        %s256 = sadd.s32 %s255, 8
        %p257 = scmp.lt.s32.totalorder %s256, 15
        %s258 = scalar_select %p257, %s256, 15
        %p259 = scmp.lt.s32.totalorder %s18, 1
        %s260 = scalar_select %p259, %s18, 1
        %p261 = scmp.lt.s32.totalorder %s258, 15
        %s262 = scalar_select %p261, %s258, 15
        %s263 = smul.addr %s262, 2
        %s264 = smul.addr %s260, 32
        %s265 = sadd.s32 %s263, %s264
        %s266 = smul.addr %s265, 4
        %s267 = scalar_lea.vmem %s2, %s266
        %s268 = smul.u32 %s19, 8
        %s269 = sadd.s32 %s268, 8
        %p270 = scmp.lt.s32.totalorder %s269, 15
        %s271 = scalar_select %p270, %s269, 15
      $region36: #{vgg19_slice1.8} parent=23 // pred_fallthru
        _
    $region24: #{vgg19_slice1.8} parent=5 // pred_fallthru
      _
    %p272 = scmp.le.s32.totalorder 1, %s11
    %p273 = scmp.lt.s32.totalorder %s11, 5
    %p274 = pnand %p272, %p273
    %p275 = pneg %p274
    // Predicated region
    $region37: #{vgg19_slice1.8} parent=5 // pred_check
      _
    $region38: #{vgg19_slice1.8} parent=5 // pred_check_branch
      %277 = sbr.rel (%p274) target = $region40
    $region39: #{vgg19_slice1.8} parent=5 // pred_region
      %s278 = ssub.s32 %s11, 1
      %s279 = smul.u32 8, %s21
      %p280 = scmp.lt.s32.totalorder %s20, 1
      %s281 = scalar_select %p280, %s20, 1
      %p282 = scmp.lt.s32.totalorder %s279, 15
      %s283 = scalar_select %p282, %s279, 15
      %s284 = smul.addr %s283, 2
      %s285 = smul.addr %s281, 32
      %s286 = sadd.s32 %s284, %s285
      %s287 = smul.addr %s286, 4
      %s288 = scalar_lea.vmem %s0, %s287
      %p289 = pneg %p51
      %p290 = pneg %p48
      %s291 = smul.u32 %s21, 8
      %s292 = ssub.s32 %s291, 1
      %p293 = scmp.gt.s32.totalorder %s292, 0
      %s294 = scalar_select %p293, %s292, 0
      %p295 = scmp.lt.s32.totalorder %s20, 1
      %s296 = scalar_select %p295, %s20, 1
      %p297 = scmp.lt.s32.totalorder %s294, 15
      %s298 = scalar_select %p297, %s294, 15
      %s299 = smul.addr %s298, 2
      %s300 = smul.addr %s296, 32
      %s301 = sadd.s32 %s299, %s300
      %s302 = smul.addr %s301, 4
      %s303 = scalar_lea.vmem %s1, %s302
      %p304 = pneg %p87
      %p305 = pneg %p84
      %s306 = smul.u32 %s21, 8
      %s307 = sadd.s32 %s306, 8
      %p308 = scmp.lt.s32.totalorder %s307, 15
      %s309 = scalar_select %p308, %s307, 15
      %p310 = scmp.lt.s32.totalorder %s20, 1
      %s311 = scalar_select %p310, %s20, 1
      %p312 = scmp.lt.s32.totalorder %s309, 15
      %s313 = scalar_select %p312, %s309, 15
      %s314 = smul.addr %s313, 2
      %s315 = smul.addr %s311, 32
      %s316 = sadd.s32 %s314, %s315
      %s317 = smul.addr %s316, 4
      %s318 = scalar_lea.vmem %s2, %s317
      %p319 = pneg %p123
      %p320 = pneg %p120
      %p321 = pneg %p144
      %p322 = pneg %p141
      %p323 = pneg %p165
      %p324 = pneg %p162
      %p325 = pneg %p193
      %p326 = pneg %p190
      %s327 = smul.u32 4, %s21
      %p328 = scmp.lt.s32.totalorder %s20, 1
      %s329 = scalar_select %p328, %s20, 1
      %p330 = scmp.lt.s32.totalorder %s327, 7
      %s331 = scalar_select %p330, %s327, 7
      %s332 = smul.addr %s329, 8
      %s333 = sadd.s32 %s331, %s332
      %s334 = smul.addr %s333, 4
      %s335 = scalar_lea.vmem %s5, %s334
      %s336 = smul.u32 8, %s21
      %p337 = scmp.lt.s32.totalorder %s20, 1
      %s338 = scalar_select %p337, %s20, 1
      %p339 = scmp.lt.s32.totalorder %s336, 15
      %s340 = scalar_select %p339, %s336, 15
      %s341 = smul.addr %s340, 2
      %s342 = smul.addr %s338, 32
      %s343 = sadd.s32 %s341, %s342
      %s344 = smul.addr %s343, 4
      %s345 = scalar_lea.vmem %s0, %s344
      %s346 = smul.u32 8, %s21
      %s347 = smul.u32 %s21, 8
      %s348 = ssub.s32 %s347, 1
      %p349 = scmp.gt.s32.totalorder %s348, 0
      %s350 = scalar_select %p349, %s348, 0
      %p351 = scmp.lt.s32.totalorder %s20, 1
      %s352 = scalar_select %p351, %s20, 1
      %p353 = scmp.lt.s32.totalorder %s350, 15
      %s354 = scalar_select %p353, %s350, 15
      %s355 = smul.addr %s354, 2
      %s356 = smul.addr %s352, 32
      %s357 = sadd.s32 %s355, %s356
      %s358 = smul.addr %s357, 4
      %s359 = scalar_lea.vmem %s1, %s358
      %s360 = smul.u32 %s21, 8
      %s361 = ssub.s32 %s360, 1
      %p362 = scmp.gt.s32.totalorder %s361, 0
      %s363 = scalar_select %p362, %s361, 0
      %s364 = smul.u32 %s21, 8
      %s365 = sadd.s32 %s364, 8
      %p366 = scmp.lt.s32.totalorder %s365, 15
      %s367 = scalar_select %p366, %s365, 15
      %p368 = scmp.lt.s32.totalorder %s20, 1
      %s369 = scalar_select %p368, %s20, 1
      %p370 = scmp.lt.s32.totalorder %s367, 15
      %s371 = scalar_select %p370, %s367, 15
      %s372 = smul.addr %s371, 2
      %s373 = smul.addr %s369, 32
      %s374 = sadd.s32 %s372, %s373
      %s375 = smul.addr %s374, 4
      %s376 = scalar_lea.vmem %s2, %s375
      %s377 = smul.u32 %s21, 8
      %s378 = sadd.s32 %s377, 8
      %p379 = scmp.lt.s32.totalorder %s378, 15
      %s380 = scalar_select %p379, %s378, 15
      %s381 = smul.u32 4, %s21
      %p382 = scmp.lt.s32.totalorder %s20, 1
      %s383 = scalar_select %p382, %s20, 1
      %p384 = scmp.lt.s32.totalorder %s381, 7
      %s385 = scalar_select %p384, %s381, 7
      %s386 = smul.addr %s383, 8
      %s387 = sadd.s32 %s385, %s386
      %s388 = smul.addr %s387, 4
      %s389 = scalar_lea.vmem %s5, %s388
      %s390 = smul.u32 4, %s21
      %v392 = vld [vmem:[%s345] sm:$0xf]
      %v393 = vld [vmem:[%s345 + $0x4] sm:$0xf]
      %v394 = vld [vmem:[%s345 + $0x8] sm:$0xf]
      %v395 = vld [vmem:[%s345 + $0xc] sm:$0xf]
      %v396 = vld [vmem:[%s345 + $0x10] sm:$0xf]
      %v397 = vld [vmem:[%s345 + $0x14] sm:$0xf]
      %v398 = vld [vmem:[%s345 + $0x18] sm:$0xf]
      %v399 = vld [vmem:[%s345 + $0x1c] sm:$0xf]
      %v400 = vld [vmem:[%s345 + $0x20] sm:$0xf]
      %v401 = vld [vmem:[%s345 + $0x24] sm:$0xf]
      %v402 = vld [vmem:[%s345 + $0x28] sm:$0xf]
      %v403 = vld [vmem:[%s345 + $0x2c] sm:$0xf]
      %v404 = vld [vmem:[%s345 + $0x30] sm:$0xf]
      %v405 = vld [vmem:[%s345 + $0x34] sm:$0xf]
      %v406 = vld [vmem:[%s345 + $0x38] sm:$0xf]
      %v407 = vld [vmem:[%s345 + $0x3c] sm:$0xf]
      %v408 = vld [vmem:[%s359] sm:$0xf]
      %v409 = vld [vmem:[%s359 + $0x4] sm:$0xf]
      %v410 = vld [vmem:[%s376] sm:$0xf]
      %v411 = vld [vmem:[%s376 + $0x4] sm:$0xf]
      %p412 = scmp.gt.s32.totalorder %s21, 0
      %s413 = scalar_select %p412, 1, 0
      %s414 = scvt.s32.f32 %s413
      %p416 = scmp.ne.f32.partialorder %s414, %s414
      %s417 = sshrl.u32 %s414, 16
      %s418 = sand.u32 %s417, 1
      %s419 = sadd.s32 32767, %s418
      %s420 = sadd.s32 %s414, %s419
      %s421 = sand.u32 %s420, 4294901760
      %s422 = scalar_select %p416, 2143289344, %s421
      %s424 = sshrl.u32 %s422, 16
      %p425 = scmp.lt.s32.totalorder %s21, 1
      %s426 = scalar_select %p425, 1, 0
      %s427 = scvt.s32.f32 %s426
      %p429 = scmp.ne.f32.partialorder %s427, %s427
      %s430 = sshrl.u32 %s427, 16
      %s431 = sand.u32 %s430, 1
      %s432 = sadd.s32 32767, %s431
      %s433 = sadd.s32 %s427, %s432
      %s434 = sand.u32 %s433, 4294901760
      %s435 = scalar_select %p429, 2143289344, %s434
      %s437 = sshrl.u32 %s435, 16
      %s438 = sshll.u32 %s424, 16
      %s439 = sor.u32 %s424, %s438
      %v440 = vstv %s439
      %v442 = vmul.bf16 %v408, %v440
      %v443 = vmul.bf16 %v409, %v440
      %s444 = sshll.u32 %s437, 16
      %s445 = sor.u32 %s437, %s444
      %v446 = vstv %s445
      %v448 = vmul.bf16 %v410, %v446
      %v449 = vmul.bf16 %v411, %v446
      %v450 = vunpack.c.l.bf16 %v442
      %v451 = vunpack.c.l.bf16 %v443
      %v452 = vunpack.c.l.bf16 %v392
      %v453 = vunpack.c.l.bf16 %v393
      %v454 = vunpack.c.l.bf16 %v394
      %v455 = vunpack.c.l.bf16 %v395
      %v456 = vunpack.c.l.bf16 %v396
      %v457 = vunpack.c.l.bf16 %v397
      %v458 = vunpack.c.l.bf16 %v398
      %v459 = vunpack.c.l.bf16 %v399
      %v460 = vunpack.c.l.bf16 %v400
      %v461 = vunpack.c.l.bf16 %v401
      %v462 = vunpack.c.l.bf16 %v402
      %v463 = vunpack.c.l.bf16 %v403
      %v464 = vunpack.c.l.bf16 %v404
      %v465 = vunpack.c.l.bf16 %v405
      %v466 = vunpack.c.l.bf16 %v406
      %v467 = vunpack.c.l.bf16 %v407
      %v468 = vunpack.c.l.bf16 %v448
      %v469 = vunpack.c.l.bf16 %v449
      %v470 = vlaneseq
      %v471 = vshrl.u32 %v470, 7
      %v472 = vadd.s32 %v471, 8
      %vm473 = vcmp.eq.s32.totalorder %v471, 0
      %vm474 = vcmp.eq.s32.totalorder %v472, 0
      %v475 = vrot.slane %v450, 7
      %v476 = vrot.slane %v452, 7
      %v477 = vrot.slane %v454, 7
      %v478 = vrot.slane %v456, 7
      %v479 = vrot.slane %v458, 7
      %v480 = vrot.slane %v460, 7
      %v481 = vrot.slane %v462, 7
      %v482 = vrot.slane %v464, 7
      %v483 = vrot.slane %v466, 7
      %v484 = vrot.slane %v468, 7
      %v485 = vrot.slane %v451, 7
      %v486 = vrot.slane %v453, 7
      %v487 = vrot.slane %v455, 7
      %v488 = vrot.slane %v457, 7
      %v489 = vrot.slane %v459, 7
      %v490 = vrot.slane %v461, 7
      %v491 = vrot.slane %v463, 7
      %v492 = vrot.slane %v465, 7
      %v493 = vrot.slane %v467, 7
      %v494 = vrot.slane %v469, 7
      %vm495 = vcmp.lt.s32.totalorder %v471, 1
      %v496 = vsel %vm495, %v475, %v485
      %v497 = vsel %vm495, %v476, %v486
      %v498 = vsel %vm495, %v477, %v487
      %v499 = vsel %vm495, %v478, %v488
      %v500 = vsel %vm495, %v479, %v489
      %v501 = vsel %vm495, %v480, %v490
      %v502 = vsel %vm495, %v481, %v491
      %v503 = vsel %vm495, %v482, %v492
      %v504 = vsel %vm495, %v483, %v493
      %v505 = vsel %vm495, %v484, %v494
      %v506 = vsel %vm495, %v485, %v475
      %v507 = vsel %vm495, %v486, %v476
      %v508 = vsel %vm495, %v487, %v477
      %v509 = vsel %vm495, %v488, %v478
      %v510 = vsel %vm495, %v489, %v479
      %v511 = vsel %vm495, %v490, %v480
      %v512 = vsel %vm495, %v491, %v481
      %v513 = vsel %vm495, %v492, %v482
      %v514 = vsel %vm495, %v493, %v483
      %v515 = vsel %vm495, %v494, %v484
      %v516 = vsel %vm473, 0.0, %v506
      %v517 = vsel %vm474, 0.0, %v496
      %v518 = vsel %vm473, 0.0, %v507
      %v519 = vsel %vm474, 0.0, %v497
      %v520 = vsel %vm473, 0.0, %v508
      %v521 = vsel %vm474, 0.0, %v498
      %v522 = vsel %vm473, 0.0, %v509
      %v523 = vsel %vm474, 0.0, %v499
      %v524 = vsel %vm473, 0.0, %v510
      %v525 = vsel %vm474, 0.0, %v500
      %v526 = vsel %vm473, 0.0, %v511
      %v527 = vsel %vm474, 0.0, %v501
      %v528 = vsel %vm473, 0.0, %v512
      %v529 = vsel %vm474, 0.0, %v502
      %v530 = vsel %vm473, 0.0, %v513
      %v531 = vsel %vm474, 0.0, %v503
      %v532 = vsel %vm473, 0.0, %v514
      %v533 = vsel %vm474, 0.0, %v504
      %v534 = vsel %vm473, 0.0, %v515
      %v535 = vsel %vm474, 0.0, %v505
      %v536 = vpack.c.bf16 %v517, %v516
      %v537 = vpack.c.bf16 %v519, %v518
      %v538 = vpack.c.bf16 %v521, %v520
      %v539 = vpack.c.bf16 %v523, %v522
      %v540 = vpack.c.bf16 %v525, %v524
      %v541 = vpack.c.bf16 %v527, %v526
      %v542 = vpack.c.bf16 %v529, %v528
      %v543 = vpack.c.bf16 %v531, %v530
      %v544 = vpack.c.bf16 %v533, %v532
      %v545 = vpack.c.bf16 %v535, %v534
      %vm546 = vcmp.eq.s32.totalorder %v471, 15
      %vm547 = vcmp.eq.s32.totalorder %v472, 15
      %v548 = vrot.slane %v450, 1
      %v549 = vrot.slane %v452, 1
      %v550 = vrot.slane %v454, 1
      %v551 = vrot.slane %v456, 1
      %v552 = vrot.slane %v458, 1
      %v553 = vrot.slane %v460, 1
      %v554 = vrot.slane %v462, 1
      %v555 = vrot.slane %v464, 1
      %v556 = vrot.slane %v466, 1
      %v557 = vrot.slane %v468, 1
      %v558 = vrot.slane %v451, 1
      %v559 = vrot.slane %v453, 1
      %v560 = vrot.slane %v455, 1
      %v561 = vrot.slane %v457, 1
      %v562 = vrot.slane %v459, 1
      %v563 = vrot.slane %v461, 1
      %v564 = vrot.slane %v463, 1
      %v565 = vrot.slane %v465, 1
      %v566 = vrot.slane %v467, 1
      %v567 = vrot.slane %v469, 1
      %vm568 = vcmp.lt.s32.totalorder %v471, 7
      %v569 = vsel %vm568, %v548, %v558
      %v570 = vsel %vm568, %v549, %v559
      %v571 = vsel %vm568, %v550, %v560
      %v572 = vsel %vm568, %v551, %v561
      %v573 = vsel %vm568, %v552, %v562
      %v574 = vsel %vm568, %v553, %v563
      %v575 = vsel %vm568, %v554, %v564
      %v576 = vsel %vm568, %v555, %v565
      %v577 = vsel %vm568, %v556, %v566
      %v578 = vsel %vm568, %v557, %v567
      %v579 = vsel %vm568, %v558, %v548
      %v580 = vsel %vm568, %v559, %v549
      %v581 = vsel %vm568, %v560, %v550
      %v582 = vsel %vm568, %v561, %v551
      %v583 = vsel %vm568, %v562, %v552
      %v584 = vsel %vm568, %v563, %v553
      %v585 = vsel %vm568, %v564, %v554
      %v586 = vsel %vm568, %v565, %v555
      %v587 = vsel %vm568, %v566, %v556
      %v588 = vsel %vm568, %v567, %v557
      %v589 = vsel %vm546, 0.0, %v569
      %v590 = vsel %vm547, 0.0, %v579
      %v591 = vsel %vm546, 0.0, %v570
      %v592 = vsel %vm547, 0.0, %v580
      %v593 = vsel %vm546, 0.0, %v571
      %v594 = vsel %vm547, 0.0, %v581
      %v595 = vsel %vm546, 0.0, %v572
      %v596 = vsel %vm547, 0.0, %v582
      %v597 = vsel %vm546, 0.0, %v573
      %v598 = vsel %vm547, 0.0, %v583
      %v599 = vsel %vm546, 0.0, %v574
      %v600 = vsel %vm547, 0.0, %v584
      %v601 = vsel %vm546, 0.0, %v575
      %v602 = vsel %vm547, 0.0, %v585
      %v603 = vsel %vm546, 0.0, %v576
      %v604 = vsel %vm547, 0.0, %v586
      %v605 = vsel %vm546, 0.0, %v577
      %v606 = vsel %vm547, 0.0, %v587
      %v607 = vsel %vm546, 0.0, %v578
      %v608 = vsel %vm547, 0.0, %v588
      %v609 = vpack.c.bf16 %v590, %v589
      %v610 = vpack.c.bf16 %v592, %v591
      %v611 = vpack.c.bf16 %v594, %v593
      %v612 = vpack.c.bf16 %v596, %v595
      %v613 = vpack.c.bf16 %v598, %v597
      %v614 = vpack.c.bf16 %v600, %v599
      %v615 = vpack.c.bf16 %v602, %v601
      %v616 = vpack.c.bf16 %v604, %v603
      %v617 = vpack.c.bf16 %v606, %v605
      %v618 = vpack.c.bf16 %v608, %v607
      %v639 = vunpack.c.l.b16 %v442
      %v640 = vunpack.c.l.b16 %v443
      %v641 = vunpack.c.l.b16 %v392
      %v642 = vunpack.c.l.b16 %v393
      %v643 = vunpack.c.l.b16 %v394
      %v644 = vunpack.c.l.b16 %v395
      %v645 = vunpack.c.l.b16 %v396
      %v646 = vunpack.c.l.b16 %v397
      %v647 = vunpack.c.l.b16 %v398
      %v648 = vunpack.c.l.b16 %v399
      %v649 = vunpack.c.l.b16 %v400
      %v650 = vunpack.c.l.b16 %v401
      %v651 = vunpack.c.l.b16 %v402
      %v652 = vunpack.c.l.b16 %v403
      %v653 = vunpack.c.l.b16 %v404
      %v654 = vunpack.c.l.b16 %v405
      %v655 = vunpack.c.l.b16 %v406
      %v656 = vunpack.c.l.b16 %v407
      %v657 = vunpack.c.l.b16 %v448
      %v658 = vunpack.c.l.b16 %v449
      %v659 = vpack.c.b16 %v640, %v639
      %v660 = vpack.c.b16 %v642, %v641
      %v661 = vpack.c.b16 %v644, %v643
      %v662 = vpack.c.b16 %v646, %v645
      %v663 = vpack.c.b16 %v648, %v647
      %v664 = vpack.c.b16 %v650, %v649
      %v665 = vpack.c.b16 %v652, %v651
      %v666 = vpack.c.b16 %v654, %v653
      %v667 = vpack.c.b16 %v656, %v655
      %v668 = vpack.c.b16 %v658, %v657
      %v679 = vld [vmem:[%s3] sm:$0xf]
      %v680 = vld [vmem:[%s3 + $0x4] sm:$0xf]
      %v681 = vld [vmem:[%s3 + $0x8] sm:$0xf]
      %v682 = vld [vmem:[%s3 + $0xc] sm:$0xf]
      %v683 = vld [vmem:[%s3 + $0x10] sm:$0xf]
      %v684 = vld [vmem:[%s3 + $0x14] sm:$0xf]
      %v685 = vld [vmem:[%s3 + $0x18] sm:$0xf]
      %v686 = vld [vmem:[%s3 + $0x1c] sm:$0xf]
      %v687 = vld [vmem:[%s3 + $0x20] sm:$0xf]
      %v688 = vld [vmem:[%s3 + $0x24] sm:$0xf]
      %v689 = vld [vmem:[%s3 + $0x28] sm:$0xf]
      %v690 = vld [vmem:[%s3 + $0x2c] sm:$0xf]
      %v691 = vld [vmem:[%s3 + $0x30] sm:$0xf]
      %v692 = vld [vmem:[%s3 + $0x34] sm:$0xf]
      %v693 = vld [vmem:[%s3 + $0x38] sm:$0xf]
      %v694 = vld [vmem:[%s3 + $0x3c] sm:$0xf]
      %v695 = vld [vmem:[%s3 + $0x40] sm:$0xf]
      %v696 = vld [vmem:[%s3 + $0x44] sm:$0xf]
      %v697 = vld [vmem:[%s3 + $0x48] sm:$0xf]
      %v698 = vld [vmem:[%s3 + $0x4c] sm:$0xf]
      %v699 = vld [vmem:[%s3 + $0x50] sm:$0xf]
      %v700 = vld [vmem:[%s3 + $0x54] sm:$0xf]
      %v701 = vld [vmem:[%s3 + $0x58] sm:$0xf]
      %v702 = vld [vmem:[%s3 + $0x5c] sm:$0xf]
      %v703 = vld [vmem:[%s3 + $0x60] sm:$0xf]
      %v704 = vld [vmem:[%s3 + $0x64] sm:$0xf]
      %v705 = vld [vmem:[%s3 + $0x68] sm:$0xf]
      %v706 = vld [vmem:[%s3 + $0x6c] sm:$0xf]
      %v707 = vld [vmem:[%s3 + $0x70] sm:$0xf]
      %v708 = vld [vmem:[%s3 + $0x74] sm:$0xf]
      %v709 = vld [vmem:[%s3 + $0x78] sm:$0xf]
      %v710 = vld [vmem:[%s3 + $0x7c] sm:$0xf]
      %v711 = vld [vmem:[%s3 + $0x80] sm:$0xf]
      %v712 = vld [vmem:[%s3 + $0x84] sm:$0xf]
      %v713 = vld [vmem:[%s3 + $0x88] sm:$0xf]
      %v714 = vld [vmem:[%s3 + $0x8c] sm:$0xf]
      %v715 = vld [vmem:[%s3 + $0x90] sm:$0xf]
      %v716 = vld [vmem:[%s3 + $0x94] sm:$0xf]
      %v717 = vld [vmem:[%s3 + $0x98] sm:$0xf]
      %v718 = vld [vmem:[%s3 + $0x9c] sm:$0xf]
      %v719 = vld [vmem:[%s3 + $0xa0] sm:$0xf]
      %v720 = vld [vmem:[%s3 + $0xa4] sm:$0xf]
      %v721 = vld [vmem:[%s3 + $0xa8] sm:$0xf]
      %v722 = vld [vmem:[%s3 + $0xac] sm:$0xf]
      %v723 = vld [vmem:[%s3 + $0xb0] sm:$0xf]
      %v724 = vld [vmem:[%s3 + $0xb4] sm:$0xf]
      %v725 = vld [vmem:[%s3 + $0xb8] sm:$0xf]
      %v726 = vld [vmem:[%s3 + $0xbc] sm:$0xf]
      %v727 = vld [vmem:[%s3 + $0xc0] sm:$0xf]
      %v728 = vld [vmem:[%s3 + $0xc4] sm:$0xf]
      %v729 = vld [vmem:[%s3 + $0xc8] sm:$0xf]
      %v730 = vld [vmem:[%s3 + $0xcc] sm:$0xf]
      %v731 = vld [vmem:[%s3 + $0xd0] sm:$0xf]
      %v732 = vld [vmem:[%s3 + $0xd4] sm:$0xf]
      %v733 = vld [vmem:[%s3 + $0xd8] sm:$0xf]
      %v734 = vld [vmem:[%s3 + $0xdc] sm:$0xf]
      %v735 = vld [vmem:[%s3 + $0xe0] sm:$0xf]
      %v736 = vld [vmem:[%s3 + $0xe4] sm:$0xf]
      %v737 = vld [vmem:[%s3 + $0xe8] sm:$0xf]
      %v738 = vld [vmem:[%s3 + $0xec] sm:$0xf]
      %v739 = vld [vmem:[%s3 + $0xf0] sm:$0xf]
      %v740 = vld [vmem:[%s3 + $0xf4] sm:$0xf]
      %v741 = vld [vmem:[%s3 + $0xf8] sm:$0xf]
      %v742 = vld [vmem:[%s3 + $0xfc] sm:$0xf]
      %v743 = vld [vmem:[%s3 + $0x100] sm:$0xf]
      %v744 = vld [vmem:[%s3 + $0x104] sm:$0xf]
      %v745 = vld [vmem:[%s3 + $0x108] sm:$0xf]
      %v746 = vld [vmem:[%s3 + $0x10c] sm:$0xf]
      %v747 = vld [vmem:[%s3 + $0x110] sm:$0xf]
      %v748 = vld [vmem:[%s3 + $0x114] sm:$0xf]
      %v749 = vld [vmem:[%s3 + $0x118] sm:$0xf]
      %v750 = vld [vmem:[%s3 + $0x11c] sm:$0xf]
      %v751 = vld [vmem:[%s3 + $0x120] sm:$0xf]
      %v752 = vld [vmem:[%s3 + $0x124] sm:$0xf]
      %v753 = vld [vmem:[%s3 + $0x128] sm:$0xf]
      %v754 = vld [vmem:[%s3 + $0x12c] sm:$0xf]
      %v755 = vld [vmem:[%s3 + $0x130] sm:$0xf]
      %v756 = vld [vmem:[%s3 + $0x134] sm:$0xf]
      %v757 = vld [vmem:[%s3 + $0x138] sm:$0xf]
      %v758 = vld [vmem:[%s3 + $0x13c] sm:$0xf]
      %v759 = vld [vmem:[%s3 + $0x140] sm:$0xf]
      %v760 = vld [vmem:[%s3 + $0x144] sm:$0xf]
      %v761 = vld [vmem:[%s3 + $0x148] sm:$0xf]
      %v762 = vld [vmem:[%s3 + $0x14c] sm:$0xf]
      %v763 = vld [vmem:[%s3 + $0x150] sm:$0xf]
      %v764 = vld [vmem:[%s3 + $0x154] sm:$0xf]
      %v765 = vld [vmem:[%s3 + $0x158] sm:$0xf]
      %v766 = vld [vmem:[%s3 + $0x15c] sm:$0xf]
      %v767 = vld [vmem:[%s3 + $0x160] sm:$0xf]
      %v768 = vld [vmem:[%s3 + $0x164] sm:$0xf]
      %v769 = vld [vmem:[%s3 + $0x168] sm:$0xf]
      %v770 = vld [vmem:[%s3 + $0x16c] sm:$0xf]
      %v771 = vld [vmem:[%s3 + $0x170] sm:$0xf]
      %v772 = vld [vmem:[%s3 + $0x174] sm:$0xf]
      %v773 = vld [vmem:[%s3 + $0x178] sm:$0xf]
      %v774 = vld [vmem:[%s3 + $0x17c] sm:$0xf]
      %v823 = vunpack.c.l.b16 %v727
      %v824 = vunpack.c.l.b16 %v728
      %v825 = vunpack.c.l.b16 %v729
      %v826 = vunpack.c.l.b16 %v730
      %v827 = vunpack.c.l.b16 %v731
      %v828 = vunpack.c.l.b16 %v732
      %v829 = vunpack.c.l.b16 %v733
      %v830 = vunpack.c.l.b16 %v734
      %v831 = vunpack.c.l.b16 %v735
      %v832 = vunpack.c.l.b16 %v736
      %v833 = vunpack.c.l.b16 %v737
      %v834 = vunpack.c.l.b16 %v738
      %v835 = vunpack.c.l.b16 %v739
      %v836 = vunpack.c.l.b16 %v740
      %v837 = vunpack.c.l.b16 %v741
      %v838 = vunpack.c.l.b16 %v742
      %v839 = vunpack.c.l.b16 %v743
      %v840 = vunpack.c.l.b16 %v744
      %v841 = vunpack.c.l.b16 %v745
      %v842 = vunpack.c.l.b16 %v746
      %v843 = vunpack.c.l.b16 %v747
      %v844 = vunpack.c.l.b16 %v748
      %v845 = vunpack.c.l.b16 %v749
      %v846 = vunpack.c.l.b16 %v750
      %v847 = vunpack.c.l.b16 %v751
      %v848 = vunpack.c.l.b16 %v752
      %v849 = vunpack.c.l.b16 %v753
      %v850 = vunpack.c.l.b16 %v754
      %v851 = vunpack.c.l.b16 %v755
      %v852 = vunpack.c.l.b16 %v756
      %v853 = vunpack.c.l.b16 %v757
      %v854 = vunpack.c.l.b16 %v758
      %v855 = vunpack.c.l.b16 %v759
      %v856 = vunpack.c.l.b16 %v760
      %v857 = vunpack.c.l.b16 %v761
      %v858 = vunpack.c.l.b16 %v762
      %v859 = vunpack.c.l.b16 %v763
      %v860 = vunpack.c.l.b16 %v764
      %v861 = vunpack.c.l.b16 %v765
      %v862 = vunpack.c.l.b16 %v766
      %v863 = vunpack.c.l.b16 %v767
      %v864 = vunpack.c.l.b16 %v768
      %v865 = vunpack.c.l.b16 %v769
      %v866 = vunpack.c.l.b16 %v770
      %v867 = vunpack.c.l.b16 %v771
      %v868 = vunpack.c.l.b16 %v772
      %v869 = vunpack.c.l.b16 %v773
      %v870 = vunpack.c.l.b16 %v774
      %v871 = vpack.c.b16 %v824, %v823
      %v872 = vpack.c.b16 %v826, %v825
      %v873 = vpack.c.b16 %v828, %v827
      %v874 = vpack.c.b16 %v830, %v829
      %v875 = vpack.c.b16 %v832, %v831
      %v876 = vpack.c.b16 %v834, %v833
      %v877 = vpack.c.b16 %v836, %v835
      %v878 = vpack.c.b16 %v838, %v837
      %v879 = vpack.c.b16 %v840, %v839
      %v880 = vpack.c.b16 %v842, %v841
      %v881 = vpack.c.b16 %v844, %v843
      %v882 = vpack.c.b16 %v846, %v845
      %v883 = vpack.c.b16 %v848, %v847
      %v884 = vpack.c.b16 %v850, %v849
      %v885 = vpack.c.b16 %v852, %v851
      %v886 = vpack.c.b16 %v854, %v853
      %v887 = vpack.c.b16 %v856, %v855
      %v888 = vpack.c.b16 %v858, %v857
      %v889 = vpack.c.b16 %v860, %v859
      %v890 = vpack.c.b16 %v862, %v861
      %v891 = vpack.c.b16 %v864, %v863
      %v892 = vpack.c.b16 %v866, %v865
      %v893 = vpack.c.b16 %v868, %v867
      %v894 = vpack.c.b16 %v870, %v869
      %919 = vmatprep.subr.bf16.mxu0 0
      %920 = vmatpush1.bf16.msra.mxu0 %v871
      %921 = vmatprep.subr.bf16.mxu0 0
      %922 = vmatpush1.bf16.msra.mxu0 %v872
      %923 = vmatprep.subr.bf16.mxu0 0
      %924 = vmatpush1.bf16.msra.mxu0 %v873
      %925 = vmatprep.subr.bf16.mxu0 0
      %926 = vmatpush1.bf16.msra.mxu0 %v874
      %927 = vmatprep.subr.bf16.mxu0 0
      %928 = vmatpush1.bf16.msra.mxu0 %v875
      %929 = vmatprep.subr.bf16.mxu0 0
      %930 = vmatpush1.bf16.msra.mxu0 %v876
      %931 = vmatprep.subr.bf16.mxu0 0
      %932 = vmatpush1.bf16.msra.mxu0 %v877
      %933 = vmatprep.subr.bf16.mxu0 0
      %934 = vmatpush1.bf16.msra.mxu0 %v878
      %935 = vmatprep.subr.bf16.mxu0 0
      %936 = vmatpush1.bf16.msra.mxu0 %v879
      %937 = vmatprep.subr.bf16.mxu0 0
      %938 = vmatpush1.bf16.msra.mxu0 %v880
      %939 = vmatprep.subr.bf16.mxu0 0
      %940 = vmatpush1.bf16.msra.mxu0 %v881
      %941 = vmatprep.subr.bf16.mxu0 0
      %942 = vmatpush1.bf16.msra.mxu0 %v882
      %943 = vmatprep.subr.bf16.mxu0 0
      %944 = vmatpush1.bf16.msra.mxu0 %v883
      %945 = vmatprep.subr.bf16.mxu0 0
      %946 = vmatpush1.bf16.msra.mxu0 %v884
      %947 = vmatprep.subr.bf16.mxu0 0
      %948 = vmatpush1.bf16.msra.mxu0 %v885
      %949 = vmatprep.subr.bf16.mxu0 0
      %950 = vmatpush1.bf16.msra.mxu0 %v886
      %951 = vmatprep.mubr.bf16.mxu0 %v660
      %952 = vmatmul.mubr.bf16.gmra.mrb[0].mxu0 %v537
      %v953 = vpop.f32.mrb[0].mxu0
      %v954 = vadd.f32 0.0, %v953
      %v955 = vpop.f32.mrb[0].mxu0
      %v956 = vpop.f32.mrb[0].mxu0
      %v957 = vadd.f32 0.0, %v956
      %v958 = vpop.f32.mrb[0].mxu0
      %959 = vmatprep.mubr.bf16.mxu0 %v661
      %960 = vmatmul.mubr.bf16.gmra.mrb[0].mxu0 %v538
      %v961 = vpop.f32.mrb[0].mxu0
      %v962 = vadd.f32 0.0, %v961
      %v963 = vpop.f32.mrb[0].mxu0
      %v964 = vpop.f32.mrb[0].mxu0
      %v965 = vadd.f32 0.0, %v964
      %v966 = vpop.f32.mrb[0].mxu0
      %967 = vmatprep.mubr.bf16.mxu0 %v662
      %968 = vmatmul.mubr.bf16.gmra.mrb[0].mxu0 %v539
      %v969 = vpop.f32.mrb[0].mxu0
      %v970 = vadd.f32 0.0, %v969
      %v971 = vpop.f32.mrb[0].mxu0
      %v972 = vpop.f32.mrb[0].mxu0
      %v973 = vadd.f32 0.0, %v972
      %v974 = vpop.f32.mrb[0].mxu0
      %975 = vmatprep.mubr.bf16.mxu0 %v663
      %976 = vmatmul.mubr.bf16.gmra.mrb[0].mxu0 %v540
      %v977 = vpop.f32.mrb[0].mxu0
      %v978 = vadd.f32 0.0, %v977
      %v979 = vpop.f32.mrb[0].mxu0
      %v980 = vpop.f32.mrb[0].mxu0
      %v981 = vadd.f32 0.0, %v980
      %v982 = vpop.f32.mrb[0].mxu0
      %983 = vmatprep.mubr.bf16.mxu0 %v664
      %984 = vmatmul.mubr.bf16.gmra.mrb[0].mxu0 %v541
      %v985 = vpop.f32.mrb[0].mxu0
      %v986 = vadd.f32 0.0, %v985
      %v987 = vpop.f32.mrb[0].mxu0
      %v988 = vpop.f32.mrb[0].mxu0
      %v989 = vadd.f32 0.0, %v988
      %v990 = vpop.f32.mrb[0].mxu0
      %991 = vmatprep.mubr.bf16.mxu0 %v665
      %992 = vmatmul.mubr.bf16.gmra.mrb[0].mxu0 %v542
      %v993 = vpop.f32.mrb[0].mxu0
      %v994 = vadd.f32 0.0, %v993
      %v995 = vpop.f32.mrb[0].mxu0
      %v996 = vpop.f32.mrb[0].mxu0
      %v997 = vadd.f32 0.0, %v996
      %v998 = vpop.f32.mrb[0].mxu0
      %999 = vmatprep.mubr.bf16.mxu0 %v666
      %1000 = vmatmul.mubr.bf16.gmra.mrb[0].mxu0 %v543
      %v1001 = vpop.f32.mrb[0].mxu0
      %v1002 = vadd.f32 0.0, %v1001
      %v1003 = vpop.f32.mrb[0].mxu0
      %v1004 = vpop.f32.mrb[0].mxu0
      %v1005 = vadd.f32 0.0, %v1004
      %v1006 = vpop.f32.mrb[0].mxu0
      %1007 = vmatprep.mubr.bf16.mxu0 %v667
      %1008 = vmatmul.mubr.bf16.gmra.mrb[0].mxu0 %v544
      %v1009 = vpop.f32.mrb[0].mxu0
      %v1010 = vadd.f32 0.0, %v1009
      %v1011 = vpop.f32.mrb[0].mxu0
      %v1012 = vpop.f32.mrb[0].mxu0
      %v1013 = vadd.f32 0.0, %v1012
      %v1014 = vpop.f32.mrb[0].mxu0
      %1015 = vdwg.mxu0
      %1016 = vmatprep.subr.bf16.mxu0 0
      %1017 = vmatpush1.bf16.msra.mxu0 %v887
      %1018 = vmatprep.subr.bf16.mxu0 0
      %1019 = vmatpush1.bf16.msra.mxu0 %v888
      %1020 = vmatprep.subr.bf16.mxu0 0
      %1021 = vmatpush1.bf16.msra.mxu0 %v889
      %1022 = vmatprep.subr.bf16.mxu0 0
      %1023 = vmatpush1.bf16.msra.mxu0 %v890
      %1024 = vmatprep.subr.bf16.mxu0 0
      %1025 = vmatpush1.bf16.msra.mxu0 %v891
      %1026 = vmatprep.subr.bf16.mxu0 0
      %1027 = vmatpush1.bf16.msra.mxu0 %v892
      %1028 = vmatprep.subr.bf16.mxu0 0
      %1029 = vmatpush1.bf16.msra.mxu0 %v893
      %1030 = vmatprep.subr.bf16.mxu0 0
      %1031 = vmatpush1.bf16.msra.mxu0 %v894
      %1032 = vmatprep.subr.bf16.mxu0 0
      %1033 = vmatpush1.bf16.msra.mxu0 0
      %1034 = vmatprep.subr.bf16.mxu0 0
      %1035 = vmatpush1.bf16.msra.mxu0 0
      %1036 = vmatprep.subr.bf16.mxu0 0
      %1037 = vmatpush1.bf16.msra.mxu0 0
      %1038 = vmatprep.subr.bf16.mxu0 0
      %1039 = vmatpush1.bf16.msra.mxu0 0
      %1040 = vmatprep.subr.bf16.mxu0 0
      %1041 = vmatpush1.bf16.msra.mxu0 0
      %1042 = vmatprep.subr.bf16.mxu0 0
      %1043 = vmatpush1.bf16.msra.mxu0 0
      %1044 = vmatprep.subr.bf16.mxu0 0
      %1045 = vmatpush1.bf16.msra.mxu0 0
      %1046 = vmatprep.subr.bf16.mxu0 0
      %1047 = vmatpush1.bf16.msra.mxu0 0
      %1048 = vmatprep.mubr.bf16.mxu0 0
      %1049 = vmatmul.mubr.bf16.gmra.mrb[0].mxu0 %v610
      %v1050 = vpop.f32.mrb[0].mxu0
      %v1051 = vadd.f32 %v954, %v1050
      %v1052 = vpop.f32.mrb[0].mxu0
      %v1053 = vpop.f32.mrb[0].mxu0
      %v1054 = vadd.f32 %v957, %v1053
      %v1055 = vpop.f32.mrb[0].mxu0
      %1056 = vmatprep.mubr.bf16.mxu0 0
      %1057 = vmatmul.mubr.bf16.gmra.mrb[0].mxu0 %v611
      %v1058 = vpop.f32.mrb[0].mxu0
      %v1059 = vadd.f32 %v962, %v1058
      %v1060 = vpop.f32.mrb[0].mxu0
      %v1061 = vpop.f32.mrb[0].mxu0
      %v1062 = vadd.f32 %v965, %v1061
      %v1063 = vpop.f32.mrb[0].mxu0
      %1064 = vmatprep.mubr.bf16.mxu0 0
      %1065 = vmatmul.mubr.bf16.gmra.mrb[0].mxu0 %v612
      %v1066 = vpop.f32.mrb[0].mxu0
      %v1067 = vadd.f32 %v970, %v1066
      %v1068 = vpop.f32.mrb[0].mxu0
      %v1069 = vpop.f32.mrb[0].mxu0
      %v1070 = vadd.f32 %v973, %v1069
      %v1071 = vpop.f32.mrb[0].mxu0
      %1072 = vmatprep.mubr.bf16.mxu0 0
      %1073 = vmatmul.mubr.bf16.gmra.mrb[0].mxu0 %v613
      %v1074 = vpop.f32.mrb[0].mxu0
      %v1075 = vadd.f32 %v978, %v1074
      %v1076 = vpop.f32.mrb[0].mxu0
      %v1077 = vpop.f32.mrb[0].mxu0
      %v1078 = vadd.f32 %v981, %v1077
      %v1079 = vpop.f32.mrb[0].mxu0
      %1080 = vmatprep.mubr.bf16.mxu0 0
      %1081 = vmatmul.mubr.bf16.gmra.mrb[0].mxu0 %v614
      %v1082 = vpop.f32.mrb[0].mxu0
      %v1083 = vadd.f32 %v986, %v1082
      %v1084 = vpop.f32.mrb[0].mxu0
      %v1085 = vpop.f32.mrb[0].mxu0
      %v1086 = vadd.f32 %v989, %v1085
      %v1087 = vpop.f32.mrb[0].mxu0
      %1088 = vmatprep.mubr.bf16.mxu0 0
      %1089 = vmatmul.mubr.bf16.gmra.mrb[0].mxu0 %v615
      %v1090 = vpop.f32.mrb[0].mxu0
      %v1091 = vadd.f32 %v994, %v1090
      %v1092 = vpop.f32.mrb[0].mxu0
      %v1093 = vpop.f32.mrb[0].mxu0
      %v1094 = vadd.f32 %v997, %v1093
      %v1095 = vpop.f32.mrb[0].mxu0
      %1096 = vmatprep.mubr.bf16.mxu0 0
      %1097 = vmatmul.mubr.bf16.gmra.mrb[0].mxu0 %v616
      %v1098 = vpop.f32.mrb[0].mxu0
      %v1099 = vadd.f32 %v1002, %v1098
      %v1100 = vpop.f32.mrb[0].mxu0
      %v1101 = vpop.f32.mrb[0].mxu0
      %v1102 = vadd.f32 %v1005, %v1101
      %v1103 = vpop.f32.mrb[0].mxu0
      %1104 = vmatprep.mubr.bf16.mxu0 0
      %1105 = vmatmul.mubr.bf16.gmra.mrb[0].mxu0 %v617
      %v1106 = vpop.f32.mrb[0].mxu0
      %v1107 = vadd.f32 %v1010, %v1106
      %v1108 = vpop.f32.mrb[0].mxu0
      %v1109 = vpop.f32.mrb[0].mxu0
      %v1110 = vadd.f32 %v1013, %v1109
      %v1111 = vpop.f32.mrb[0].mxu0
      %1112 = vdwg.mxu0
      %v1161 = vunpack.c.l.b16 %v679
      %v1162 = vunpack.c.l.b16 %v680
      %v1163 = vunpack.c.l.b16 %v681
      %v1164 = vunpack.c.l.b16 %v682
      %v1165 = vunpack.c.l.b16 %v683
      %v1166 = vunpack.c.l.b16 %v684
      %v1167 = vunpack.c.l.b16 %v685
      %v1168 = vunpack.c.l.b16 %v686
      %v1169 = vunpack.c.l.b16 %v687
      %v1170 = vunpack.c.l.b16 %v688
      %v1171 = vunpack.c.l.b16 %v689
      %v1172 = vunpack.c.l.b16 %v690
      %v1173 = vunpack.c.l.b16 %v691
      %v1174 = vunpack.c.l.b16 %v692
      %v1175 = vunpack.c.l.b16 %v693
      %v1176 = vunpack.c.l.b16 %v694
      %v1177 = vunpack.c.l.b16 %v695
      %v1178 = vunpack.c.l.b16 %v696
      %v1179 = vunpack.c.l.b16 %v697
      %v1180 = vunpack.c.l.b16 %v698
      %v1181 = vunpack.c.l.b16 %v699
      %v1182 = vunpack.c.l.b16 %v700
      %v1183 = vunpack.c.l.b16 %v701
      %v1184 = vunpack.c.l.b16 %v702
      %v1185 = vunpack.c.l.b16 %v703
      %v1186 = vunpack.c.l.b16 %v704
      %v1187 = vunpack.c.l.b16 %v705
      %v1188 = vunpack.c.l.b16 %v706
      %v1189 = vunpack.c.l.b16 %v707
      %v1190 = vunpack.c.l.b16 %v708
      %v1191 = vunpack.c.l.b16 %v709
      %v1192 = vunpack.c.l.b16 %v710
      %v1193 = vunpack.c.l.b16 %v711
      %v1194 = vunpack.c.l.b16 %v712
      %v1195 = vunpack.c.l.b16 %v713
      %v1196 = vunpack.c.l.b16 %v714
      %v1197 = vunpack.c.l.b16 %v715
      %v1198 = vunpack.c.l.b16 %v716
      %v1199 = vunpack.c.l.b16 %v717
      %v1200 = vunpack.c.l.b16 %v718
      %v1201 = vunpack.c.l.b16 %v719
      %v1202 = vunpack.c.l.b16 %v720
      %v1203 = vunpack.c.l.b16 %v721
      %v1204 = vunpack.c.l.b16 %v722
      %v1205 = vunpack.c.l.b16 %v723
      %v1206 = vunpack.c.l.b16 %v724
      %v1207 = vunpack.c.l.b16 %v725
      %v1208 = vunpack.c.l.b16 %v726
      %v1209 = vpack.c.b16 %v1162, %v1161
      %v1210 = vpack.c.b16 %v1164, %v1163
      %v1211 = vpack.c.b16 %v1166, %v1165
      %v1212 = vpack.c.b16 %v1168, %v1167
      %v1213 = vpack.c.b16 %v1170, %v1169
      %v1214 = vpack.c.b16 %v1172, %v1171
      %v1215 = vpack.c.b16 %v1174, %v1173
      %v1216 = vpack.c.b16 %v1176, %v1175
      %v1217 = vpack.c.b16 %v1178, %v1177
      %v1218 = vpack.c.b16 %v1180, %v1179
      %v1219 = vpack.c.b16 %v1182, %v1181
      %v1220 = vpack.c.b16 %v1184, %v1183
      %v1221 = vpack.c.b16 %v1186, %v1185
      %v1222 = vpack.c.b16 %v1188, %v1187
      %v1223 = vpack.c.b16 %v1190, %v1189
      %v1224 = vpack.c.b16 %v1192, %v1191
      %v1225 = vpack.c.b16 %v1194, %v1193
      %v1226 = vpack.c.b16 %v1196, %v1195
      %v1227 = vpack.c.b16 %v1198, %v1197
      %v1228 = vpack.c.b16 %v1200, %v1199
      %v1229 = vpack.c.b16 %v1202, %v1201
      %v1230 = vpack.c.b16 %v1204, %v1203
      %v1231 = vpack.c.b16 %v1206, %v1205
      %v1232 = vpack.c.b16 %v1208, %v1207
      %1257 = vmatprep.subr.bf16.mxu0 0
      %1258 = vmatpush1.bf16.msra.mxu0 %v1209
      %1259 = vmatprep.subr.bf16.mxu0 0
      %1260 = vmatpush1.bf16.msra.mxu0 %v1210
      %1261 = vmatprep.subr.bf16.mxu0 0
      %1262 = vmatpush1.bf16.msra.mxu0 %v1211
      %1263 = vmatprep.subr.bf16.mxu0 0
      %1264 = vmatpush1.bf16.msra.mxu0 %v1212
      %1265 = vmatprep.subr.bf16.mxu0 0
      %1266 = vmatpush1.bf16.msra.mxu0 %v1213
      %1267 = vmatprep.subr.bf16.mxu0 0
      %1268 = vmatpush1.bf16.msra.mxu0 %v1214
      %1269 = vmatprep.subr.bf16.mxu0 0
      %1270 = vmatpush1.bf16.msra.mxu0 %v1215
      %1271 = vmatprep.subr.bf16.mxu0 0
      %1272 = vmatpush1.bf16.msra.mxu0 %v1216
      %1273 = vmatprep.subr.bf16.mxu0 0
      %1274 = vmatpush1.bf16.msra.mxu0 %v1217
      %1275 = vmatprep.subr.bf16.mxu0 0
      %1276 = vmatpush1.bf16.msra.mxu0 %v1218
      %1277 = vmatprep.subr.bf16.mxu0 0
      %1278 = vmatpush1.bf16.msra.mxu0 %v1219
      %1279 = vmatprep.subr.bf16.mxu0 0
      %1280 = vmatpush1.bf16.msra.mxu0 %v1220
      %1281 = vmatprep.subr.bf16.mxu0 0
      %1282 = vmatpush1.bf16.msra.mxu0 %v1221
      %1283 = vmatprep.subr.bf16.mxu0 0
      %1284 = vmatpush1.bf16.msra.mxu0 %v1222
      %1285 = vmatprep.subr.bf16.mxu0 0
      %1286 = vmatpush1.bf16.msra.mxu0 %v1223
      %1287 = vmatprep.subr.bf16.mxu0 0
      %1288 = vmatpush1.bf16.msra.mxu0 %v1224
      %1289 = vmatprep.mubr.bf16.mxu0 %v659
      %1290 = vmatmul.mubr.bf16.gmra.mrb[0].mxu0 %v536
      %v1291 = vpop.f32.mrb[0].mxu0
      %v1292 = vadd.f32 %v1051, %v1291
      %v1293 = vpop.f32.mrb[0].mxu0
      %v1294 = vpop.f32.mrb[0].mxu0
      %v1295 = vadd.f32 %v1054, %v1294
      %v1296 = vpop.f32.mrb[0].mxu0
      %1297 = vmatprep.mubr.bf16.mxu0 %v660
      %1298 = vmatmul.mubr.bf16.gmra.mrb[0].mxu0 %v537
      %v1299 = vpop.f32.mrb[0].mxu0
      %v1300 = vadd.f32 %v1059, %v1299
      %v1301 = vpop.f32.mrb[0].mxu0
      %v1302 = vpop.f32.mrb[0].mxu0
      %v1303 = vadd.f32 %v1062, %v1302
      %v1304 = vpop.f32.mrb[0].mxu0
      %1305 = vmatprep.mubr.bf16.mxu0 %v661
      %1306 = vmatmul.mubr.bf16.gmra.mrb[0].mxu0 %v538
      %v1307 = vpop.f32.mrb[0].mxu0
      %v1308 = vadd.f32 %v1067, %v1307
      %v1309 = vpop.f32.mrb[0].mxu0
      %v1310 = vpop.f32.mrb[0].mxu0
      %v1311 = vadd.f32 %v1070, %v1310
      %v1312 = vpop.f32.mrb[0].mxu0
      %1313 = vmatprep.mubr.bf16.mxu0 %v662
      %1314 = vmatmul.mubr.bf16.gmra.mrb[0].mxu0 %v539
      %v1315 = vpop.f32.mrb[0].mxu0
      %v1316 = vadd.f32 %v1075, %v1315
      %v1317 = vpop.f32.mrb[0].mxu0
      %v1318 = vpop.f32.mrb[0].mxu0
      %v1319 = vadd.f32 %v1078, %v1318
      %v1320 = vpop.f32.mrb[0].mxu0
      %1321 = vmatprep.mubr.bf16.mxu0 %v663
      %1322 = vmatmul.mubr.bf16.gmra.mrb[0].mxu0 %v540
      %v1323 = vpop.f32.mrb[0].mxu0
      %v1324 = vadd.f32 %v1083, %v1323
      %v1325 = vpop.f32.mrb[0].mxu0
      %v1326 = vpop.f32.mrb[0].mxu0
      %v1327 = vadd.f32 %v1086, %v1326
      %v1328 = vpop.f32.mrb[0].mxu0
      %1329 = vmatprep.mubr.bf16.mxu0 %v664
      %1330 = vmatmul.mubr.bf16.gmra.mrb[0].mxu0 %v541
      %v1331 = vpop.f32.mrb[0].mxu0
      %v1332 = vadd.f32 %v1091, %v1331
      %v1333 = vpop.f32.mrb[0].mxu0
      %v1334 = vpop.f32.mrb[0].mxu0
      %v1335 = vadd.f32 %v1094, %v1334
      %v1336 = vpop.f32.mrb[0].mxu0
      %1337 = vmatprep.mubr.bf16.mxu0 %v665
      %1338 = vmatmul.mubr.bf16.gmra.mrb[0].mxu0 %v542
      %v1339 = vpop.f32.mrb[0].mxu0
      %v1340 = vadd.f32 %v1099, %v1339
      %v1341 = vpop.f32.mrb[0].mxu0
      %v1342 = vpop.f32.mrb[0].mxu0
      %v1343 = vadd.f32 %v1102, %v1342
      %v1344 = vpop.f32.mrb[0].mxu0
      %1345 = vmatprep.mubr.bf16.mxu0 %v666
      %1346 = vmatmul.mubr.bf16.gmra.mrb[0].mxu0 %v543
      %v1347 = vpop.f32.mrb[0].mxu0
      %v1348 = vadd.f32 %v1107, %v1347
      %v1349 = vpop.f32.mrb[0].mxu0
      %v1350 = vpop.f32.mrb[0].mxu0
      %v1351 = vadd.f32 %v1110, %v1350
      %v1352 = vpop.f32.mrb[0].mxu0
      %1353 = vdwg.mxu0
      %1354 = vmatprep.subr.bf16.mxu0 0
      %1355 = vmatpush1.bf16.msra.mxu0 %v1225
      %1356 = vmatprep.subr.bf16.mxu0 0
      %1357 = vmatpush1.bf16.msra.mxu0 %v1226
      %1358 = vmatprep.subr.bf16.mxu0 0
      %1359 = vmatpush1.bf16.msra.mxu0 %v1227
      %1360 = vmatprep.subr.bf16.mxu0 0
      %1361 = vmatpush1.bf16.msra.mxu0 %v1228
      %1362 = vmatprep.subr.bf16.mxu0 0
      %1363 = vmatpush1.bf16.msra.mxu0 %v1229
      %1364 = vmatprep.subr.bf16.mxu0 0
      %1365 = vmatpush1.bf16.msra.mxu0 %v1230
      %1366 = vmatprep.subr.bf16.mxu0 0
      %1367 = vmatpush1.bf16.msra.mxu0 %v1231
      %1368 = vmatprep.subr.bf16.mxu0 0
      %1369 = vmatpush1.bf16.msra.mxu0 %v1232
      %1370 = vmatprep.subr.bf16.mxu0 0
      %1371 = vmatpush1.bf16.msra.mxu0 0
      %1372 = vmatprep.subr.bf16.mxu0 0
      %1373 = vmatpush1.bf16.msra.mxu0 0
      %1374 = vmatprep.subr.bf16.mxu0 0
      %1375 = vmatpush1.bf16.msra.mxu0 0
      %1376 = vmatprep.subr.bf16.mxu0 0
      %1377 = vmatpush1.bf16.msra.mxu0 0
      %1378 = vmatprep.subr.bf16.mxu0 0
      %1379 = vmatpush1.bf16.msra.mxu0 0
      %1380 = vmatprep.subr.bf16.mxu0 0
      %1381 = vmatpush1.bf16.msra.mxu0 0
      %1382 = vmatprep.subr.bf16.mxu0 0
      %1383 = vmatpush1.bf16.msra.mxu0 0
      %1384 = vmatprep.subr.bf16.mxu0 0
      %1385 = vmatpush1.bf16.msra.mxu0 0
      %1386 = vmatprep.mubr.bf16.mxu0 0
      %1387 = vmatmul.mubr.bf16.gmra.mrb[0].mxu0 %v609
      %v1388 = vpop.f32.mrb[0].mxu0
      %v1389 = vadd.f32 %v1292, %v1388
      %v1390 = vpop.f32.mrb[0].mxu0
      %v1391 = vpop.f32.mrb[0].mxu0
      %v1392 = vadd.f32 %v1295, %v1391
      %v1393 = vpop.f32.mrb[0].mxu0
      %1394 = vmatprep.mubr.bf16.mxu0 0
      %1395 = vmatmul.mubr.bf16.gmra.mrb[0].mxu0 %v610
      %v1396 = vpop.f32.mrb[0].mxu0
      %v1397 = vadd.f32 %v1300, %v1396
      %v1398 = vpop.f32.mrb[0].mxu0
      %v1399 = vpop.f32.mrb[0].mxu0
      %v1400 = vadd.f32 %v1303, %v1399
      %v1401 = vpop.f32.mrb[0].mxu0
      %1402 = vmatprep.mubr.bf16.mxu0 0
      %1403 = vmatmul.mubr.bf16.gmra.mrb[0].mxu0 %v611
      %v1404 = vpop.f32.mrb[0].mxu0
      %v1405 = vadd.f32 %v1308, %v1404
      %v1406 = vpop.f32.mrb[0].mxu0
      %v1407 = vpop.f32.mrb[0].mxu0
      %v1408 = vadd.f32 %v1311, %v1407
      %v1409 = vpop.f32.mrb[0].mxu0
      %1410 = vmatprep.mubr.bf16.mxu0 0
      %1411 = vmatmul.mubr.bf16.gmra.mrb[0].mxu0 %v612
      %v1412 = vpop.f32.mrb[0].mxu0
      %v1413 = vadd.f32 %v1316, %v1412
      %v1414 = vpop.f32.mrb[0].mxu0
      %v1415 = vpop.f32.mrb[0].mxu0
      %v1416 = vadd.f32 %v1319, %v1415
      %v1417 = vpop.f32.mrb[0].mxu0
      %1418 = vmatprep.mubr.bf16.mxu0 0
      %1419 = vmatmul.mubr.bf16.gmra.mrb[0].mxu0 %v613
      %v1420 = vpop.f32.mrb[0].mxu0
      %v1421 = vadd.f32 %v1324, %v1420
      %v1422 = vpop.f32.mrb[0].mxu0
      %v1423 = vpop.f32.mrb[0].mxu0
      %v1424 = vadd.f32 %v1327, %v1423
      %v1425 = vpop.f32.mrb[0].mxu0
      %1426 = vmatprep.mubr.bf16.mxu0 0
      %1427 = vmatmul.mubr.bf16.gmra.mrb[0].mxu0 %v614
      %v1428 = vpop.f32.mrb[0].mxu0
      %v1429 = vadd.f32 %v1332, %v1428
      %v1430 = vpop.f32.mrb[0].mxu0
      %v1431 = vpop.f32.mrb[0].mxu0
      %v1432 = vadd.f32 %v1335, %v1431
      %v1433 = vpop.f32.mrb[0].mxu0
      %1434 = vmatprep.mubr.bf16.mxu0 0
      %1435 = vmatmul.mubr.bf16.gmra.mrb[0].mxu0 %v615
      %v1436 = vpop.f32.mrb[0].mxu0
      %v1437 = vadd.f32 %v1340, %v1436
      %v1438 = vpop.f32.mrb[0].mxu0
      %v1439 = vpop.f32.mrb[0].mxu0
      %v1440 = vadd.f32 %v1343, %v1439
      %v1441 = vpop.f32.mrb[0].mxu0
      %1442 = vmatprep.mubr.bf16.mxu0 0
      %1443 = vmatmul.mubr.bf16.gmra.mrb[0].mxu0 %v616
      %v1444 = vpop.f32.mrb[0].mxu0
      %v1445 = vadd.f32 %v1348, %v1444
      %v1446 = vpop.f32.mrb[0].mxu0
      %v1447 = vpop.f32.mrb[0].mxu0
      %v1448 = vadd.f32 %v1351, %v1447
      %v1449 = vpop.f32.mrb[0].mxu0
      %1450 = vdwg.mxu0
      %v1451 = vld [vmem:[%s3 + $0x180] sm:$0xf]
      %v1452 = vld [vmem:[%s3 + $0x184] sm:$0xf]
      %v1453 = vld [vmem:[%s3 + $0x188] sm:$0xf]
      %v1454 = vld [vmem:[%s3 + $0x18c] sm:$0xf]
      %v1455 = vld [vmem:[%s3 + $0x190] sm:$0xf]
      %v1456 = vld [vmem:[%s3 + $0x194] sm:$0xf]
      %v1457 = vld [vmem:[%s3 + $0x198] sm:$0xf]
      %v1458 = vld [vmem:[%s3 + $0x19c] sm:$0xf]
      %v1459 = vld [vmem:[%s3 + $0x1a0] sm:$0xf]
      %v1460 = vld [vmem:[%s3 + $0x1a4] sm:$0xf]
      %v1461 = vld [vmem:[%s3 + $0x1a8] sm:$0xf]
      %v1462 = vld [vmem:[%s3 + $0x1ac] sm:$0xf]
      %v1463 = vld [vmem:[%s3 + $0x1b0] sm:$0xf]
      %v1464 = vld [vmem:[%s3 + $0x1b4] sm:$0xf]
      %v1465 = vld [vmem:[%s3 + $0x1b8] sm:$0xf]
      %v1466 = vld [vmem:[%s3 + $0x1bc] sm:$0xf]
      %v1467 = vld [vmem:[%s3 + $0x1c0] sm:$0xf]
      %v1468 = vld [vmem:[%s3 + $0x1c4] sm:$0xf]
      %v1469 = vld [vmem:[%s3 + $0x1c8] sm:$0xf]
      %v1470 = vld [vmem:[%s3 + $0x1cc] sm:$0xf]
      %v1471 = vld [vmem:[%s3 + $0x1d0] sm:$0xf]
      %v1472 = vld [vmem:[%s3 + $0x1d4] sm:$0xf]
      %v1473 = vld [vmem:[%s3 + $0x1d8] sm:$0xf]
      %v1474 = vld [vmem:[%s3 + $0x1dc] sm:$0xf]
      %v1475 = vld [vmem:[%s3 + $0x1e0] sm:$0xf]
      %v1476 = vld [vmem:[%s3 + $0x1e4] sm:$0xf]
      %v1477 = vld [vmem:[%s3 + $0x1e8] sm:$0xf]
      %v1478 = vld [vmem:[%s3 + $0x1ec] sm:$0xf]
      %v1479 = vld [vmem:[%s3 + $0x1f0] sm:$0xf]
      %v1480 = vld [vmem:[%s3 + $0x1f4] sm:$0xf]
      %v1481 = vld [vmem:[%s3 + $0x1f8] sm:$0xf]
      %v1482 = vld [vmem:[%s3 + $0x1fc] sm:$0xf]
      %v1483 = vld [vmem:[%s3 + $0x200] sm:$0xf]
      %v1484 = vld [vmem:[%s3 + $0x204] sm:$0xf]
      %v1485 = vld [vmem:[%s3 + $0x208] sm:$0xf]
      %v1486 = vld [vmem:[%s3 + $0x20c] sm:$0xf]
      %v1487 = vld [vmem:[%s3 + $0x210] sm:$0xf]
      %v1488 = vld [vmem:[%s3 + $0x214] sm:$0xf]
      %v1489 = vld [vmem:[%s3 + $0x218] sm:$0xf]
      %v1490 = vld [vmem:[%s3 + $0x21c] sm:$0xf]
      %v1491 = vld [vmem:[%s3 + $0x220] sm:$0xf]
      %v1492 = vld [vmem:[%s3 + $0x224] sm:$0xf]
      %v1493 = vld [vmem:[%s3 + $0x228] sm:$0xf]
      %v1494 = vld [vmem:[%s3 + $0x22c] sm:$0xf]
      %v1495 = vld [vmem:[%s3 + $0x230] sm:$0xf]
      %v1496 = vld [vmem:[%s3 + $0x234] sm:$0xf]
      %v1497 = vld [vmem:[%s3 + $0x238] sm:$0xf]
      %v1498 = vld [vmem:[%s3 + $0x23c] sm:$0xf]
      %v1547 = vunpack.c.l.b16 %v1451
      %v1548 = vunpack.c.l.b16 %v1452
      %v1549 = vunpack.c.l.b16 %v1453
      %v1550 = vunpack.c.l.b16 %v1454
      %v1551 = vunpack.c.l.b16 %v1455
      %v1552 = vunpack.c.l.b16 %v1456
      %v1553 = vunpack.c.l.b16 %v1457
      %v1554 = vunpack.c.l.b16 %v1458
      %v1555 = vunpack.c.l.b16 %v1459
      %v1556 = vunpack.c.l.b16 %v1460
      %v1557 = vunpack.c.l.b16 %v1461
      %v1558 = vunpack.c.l.b16 %v1462
      %v1559 = vunpack.c.l.b16 %v1463
      %v1560 = vunpack.c.l.b16 %v1464
      %v1561 = vunpack.c.l.b16 %v1465
      %v1562 = vunpack.c.l.b16 %v1466
      %v1563 = vunpack.c.l.b16 %v1467
      %v1564 = vunpack.c.l.b16 %v1468
      %v1565 = vunpack.c.l.b16 %v1469
      %v1566 = vunpack.c.l.b16 %v1470
      %v1567 = vunpack.c.l.b16 %v1471
      %v1568 = vunpack.c.l.b16 %v1472
      %v1569 = vunpack.c.l.b16 %v1473
      %v1570 = vunpack.c.l.b16 %v1474
      %v1571 = vunpack.c.l.b16 %v1475
      %v1572 = vunpack.c.l.b16 %v1476
      %v1573 = vunpack.c.l.b16 %v1477
      %v1574 = vunpack.c.l.b16 %v1478
      %v1575 = vunpack.c.l.b16 %v1479
      %v1576 = vunpack.c.l.b16 %v1480
      %v1577 = vunpack.c.l.b16 %v1481
      %v1578 = vunpack.c.l.b16 %v1482
      %v1579 = vunpack.c.l.b16 %v1483
      %v1580 = vunpack.c.l.b16 %v1484
      %v1581 = vunpack.c.l.b16 %v1485
      %v1582 = vunpack.c.l.b16 %v1486
      %v1583 = vunpack.c.l.b16 %v1487
      %v1584 = vunpack.c.l.b16 %v1488
      %v1585 = vunpack.c.l.b16 %v1489
      %v1586 = vunpack.c.l.b16 %v1490
      %v1587 = vunpack.c.l.b16 %v1491
      %v1588 = vunpack.c.l.b16 %v1492
      %v1589 = vunpack.c.l.b16 %v1493
      %v1590 = vunpack.c.l.b16 %v1494
      %v1591 = vunpack.c.l.b16 %v1495
      %v1592 = vunpack.c.l.b16 %v1496
      %v1593 = vunpack.c.l.b16 %v1497
      %v1594 = vunpack.c.l.b16 %v1498
      %v1595 = vpack.c.b16 %v1548, %v1547
      %v1596 = vpack.c.b16 %v1550, %v1549
      %v1597 = vpack.c.b16 %v1552, %v1551
      %v1598 = vpack.c.b16 %v1554, %v1553
      %v1599 = vpack.c.b16 %v1556, %v1555
      %v1600 = vpack.c.b16 %v1558, %v1557
      %v1601 = vpack.c.b16 %v1560, %v1559
      %v1602 = vpack.c.b16 %v1562, %v1561
      %v1603 = vpack.c.b16 %v1564, %v1563
      %v1604 = vpack.c.b16 %v1566, %v1565
      %v1605 = vpack.c.b16 %v1568, %v1567
      %v1606 = vpack.c.b16 %v1570, %v1569
      %v1607 = vpack.c.b16 %v1572, %v1571
      %v1608 = vpack.c.b16 %v1574, %v1573
      %v1609 = vpack.c.b16 %v1576, %v1575
      %v1610 = vpack.c.b16 %v1578, %v1577
      %v1611 = vpack.c.b16 %v1580, %v1579
      %v1612 = vpack.c.b16 %v1582, %v1581
      %v1613 = vpack.c.b16 %v1584, %v1583
      %v1614 = vpack.c.b16 %v1586, %v1585
      %v1615 = vpack.c.b16 %v1588, %v1587
      %v1616 = vpack.c.b16 %v1590, %v1589
      %v1617 = vpack.c.b16 %v1592, %v1591
      %v1618 = vpack.c.b16 %v1594, %v1593
      %1643 = vmatprep.subr.bf16.mxu0 0
      %1644 = vmatpush1.bf16.msra.mxu0 %v1595
      %1645 = vmatprep.subr.bf16.mxu0 0
      %1646 = vmatpush1.bf16.msra.mxu0 %v1596
      %1647 = vmatprep.subr.bf16.mxu0 0
      %1648 = vmatpush1.bf16.msra.mxu0 %v1597
      %1649 = vmatprep.subr.bf16.mxu0 0
      %1650 = vmatpush1.bf16.msra.mxu0 %v1598
      %1651 = vmatprep.subr.bf16.mxu0 0
      %1652 = vmatpush1.bf16.msra.mxu0 %v1599
      %1653 = vmatprep.subr.bf16.mxu0 0
      %1654 = vmatpush1.bf16.msra.mxu0 %v1600
      %1655 = vmatprep.subr.bf16.mxu0 0
      %1656 = vmatpush1.bf16.msra.mxu0 %v1601
      %1657 = vmatprep.subr.bf16.mxu0 0
      %1658 = vmatpush1.bf16.msra.mxu0 %v1602
      %1659 = vmatprep.subr.bf16.mxu0 0
      %1660 = vmatpush1.bf16.msra.mxu0 %v1603
      %1661 = vmatprep.subr.bf16.mxu0 0
      %1662 = vmatpush1.bf16.msra.mxu0 %v1604
      %1663 = vmatprep.subr.bf16.mxu0 0
      %1664 = vmatpush1.bf16.msra.mxu0 %v1605
      %1665 = vmatprep.subr.bf16.mxu0 0
      %1666 = vmatpush1.bf16.msra.mxu0 %v1606
      %1667 = vmatprep.subr.bf16.mxu0 0
      %1668 = vmatpush1.bf16.msra.mxu0 %v1607
      %1669 = vmatprep.subr.bf16.mxu0 0
      %1670 = vmatpush1.bf16.msra.mxu0 %v1608
      %1671 = vmatprep.subr.bf16.mxu0 0
      %1672 = vmatpush1.bf16.msra.mxu0 %v1609
      %1673 = vmatprep.subr.bf16.mxu0 0
      %1674 = vmatpush1.bf16.msra.mxu0 %v1610
      %1675 = vmatprep.mubr.bf16.mxu0 %v661
      %1676 = vmatmul.mubr.bf16.gmra.mrb[0].mxu0 %v538
      %v1677 = vpop.f32.mrb[0].mxu0
      %v1678 = vadd.f32 0.0, %v1677
      %v1679 = vpop.f32.mrb[0].mxu0
      %v1680 = vpop.f32.mrb[0].mxu0
      %v1681 = vadd.f32 0.0, %v1680
      %v1682 = vpop.f32.mrb[0].mxu0
      %1683 = vmatprep.mubr.bf16.mxu0 %v662
      %1684 = vmatmul.mubr.bf16.gmra.mrb[0].mxu0 %v539
      %v1685 = vpop.f32.mrb[0].mxu0
      %v1686 = vadd.f32 0.0, %v1685
      %v1687 = vpop.f32.mrb[0].mxu0
      %v1688 = vpop.f32.mrb[0].mxu0
      %v1689 = vadd.f32 0.0, %v1688
      %v1690 = vpop.f32.mrb[0].mxu0
      %1691 = vmatprep.mubr.bf16.mxu0 %v663
      %1692 = vmatmul.mubr.bf16.gmra.mrb[0].mxu0 %v540
      %v1693 = vpop.f32.mrb[0].mxu0
      %v1694 = vadd.f32 0.0, %v1693
      %v1695 = vpop.f32.mrb[0].mxu0
      %v1696 = vpop.f32.mrb[0].mxu0
      %v1697 = vadd.f32 0.0, %v1696
      %v1698 = vpop.f32.mrb[0].mxu0
      %1699 = vmatprep.mubr.bf16.mxu0 %v664
      %1700 = vmatmul.mubr.bf16.gmra.mrb[0].mxu0 %v541
      %v1701 = vpop.f32.mrb[0].mxu0
      %v1702 = vadd.f32 0.0, %v1701
      %v1703 = vpop.f32.mrb[0].mxu0
      %v1704 = vpop.f32.mrb[0].mxu0
      %v1705 = vadd.f32 0.0, %v1704
      %v1706 = vpop.f32.mrb[0].mxu0
      %1707 = vmatprep.mubr.bf16.mxu0 %v665
      %1708 = vmatmul.mubr.bf16.gmra.mrb[0].mxu0 %v542
      %v1709 = vpop.f32.mrb[0].mxu0
      %v1710 = vadd.f32 0.0, %v1709
      %v1711 = vpop.f32.mrb[0].mxu0
      %v1712 = vpop.f32.mrb[0].mxu0
      %v1713 = vadd.f32 0.0, %v1712
      %v1714 = vpop.f32.mrb[0].mxu0
      %1715 = vmatprep.mubr.bf16.mxu0 %v666
      %1716 = vmatmul.mubr.bf16.gmra.mrb[0].mxu0 %v543
      %v1717 = vpop.f32.mrb[0].mxu0
      %v1718 = vadd.f32 0.0, %v1717
      %v1719 = vpop.f32.mrb[0].mxu0
      %v1720 = vpop.f32.mrb[0].mxu0
      %v1721 = vadd.f32 0.0, %v1720
      %v1722 = vpop.f32.mrb[0].mxu0
      %1723 = vmatprep.mubr.bf16.mxu0 %v667
      %1724 = vmatmul.mubr.bf16.gmra.mrb[0].mxu0 %v544
      %v1725 = vpop.f32.mrb[0].mxu0
      %v1726 = vadd.f32 0.0, %v1725
      %v1727 = vpop.f32.mrb[0].mxu0
      %v1728 = vpop.f32.mrb[0].mxu0
      %v1729 = vadd.f32 0.0, %v1728
      %v1730 = vpop.f32.mrb[0].mxu0
      %1731 = vmatprep.mubr.bf16.mxu0 %v668
      %1732 = vmatmul.mubr.bf16.gmra.mrb[0].mxu0 %v545
      %v1733 = vpop.f32.mrb[0].mxu0
      %v1734 = vadd.f32 0.0, %v1733
      %v1735 = vpop.f32.mrb[0].mxu0
      %v1736 = vpop.f32.mrb[0].mxu0
      %v1737 = vadd.f32 0.0, %v1736
      %v1738 = vpop.f32.mrb[0].mxu0
      %1739 = vdwg.mxu0
      %1740 = vmatprep.subr.bf16.mxu0 0
      %1741 = vmatpush1.bf16.msra.mxu0 %v1611
      %1742 = vmatprep.subr.bf16.mxu0 0
      %1743 = vmatpush1.bf16.msra.mxu0 %v1612
      %1744 = vmatprep.subr.bf16.mxu0 0
      %1745 = vmatpush1.bf16.msra.mxu0 %v1613
      %1746 = vmatprep.subr.bf16.mxu0 0
      %1747 = vmatpush1.bf16.msra.mxu0 %v1614
      %1748 = vmatprep.subr.bf16.mxu0 0
      %1749 = vmatpush1.bf16.msra.mxu0 %v1615
      %1750 = vmatprep.subr.bf16.mxu0 0
      %1751 = vmatpush1.bf16.msra.mxu0 %v1616
      %1752 = vmatprep.subr.bf16.mxu0 0
      %1753 = vmatpush1.bf16.msra.mxu0 %v1617
      %1754 = vmatprep.subr.bf16.mxu0 0
      %1755 = vmatpush1.bf16.msra.mxu0 %v1618
      %1756 = vmatprep.subr.bf16.mxu0 0
      %1757 = vmatpush1.bf16.msra.mxu0 0
      %1758 = vmatprep.subr.bf16.mxu0 0
      %1759 = vmatpush1.bf16.msra.mxu0 0
      %1760 = vmatprep.subr.bf16.mxu0 0
      %1761 = vmatpush1.bf16.msra.mxu0 0
      %1762 = vmatprep.subr.bf16.mxu0 0
      %1763 = vmatpush1.bf16.msra.mxu0 0
      %1764 = vmatprep.subr.bf16.mxu0 0
      %1765 = vmatpush1.bf16.msra.mxu0 0
      %1766 = vmatprep.subr.bf16.mxu0 0
      %1767 = vmatpush1.bf16.msra.mxu0 0
      %1768 = vmatprep.subr.bf16.mxu0 0
      %1769 = vmatpush1.bf16.msra.mxu0 0
      %1770 = vmatprep.subr.bf16.mxu0 0
      %1771 = vmatpush1.bf16.msra.mxu0 0
      %1772 = vmatprep.mubr.bf16.mxu0 0
      %1773 = vmatmul.mubr.bf16.gmra.mrb[0].mxu0 %v611
      %v1774 = vpop.f32.mrb[0].mxu0
      %v1775 = vadd.f32 %v1678, %v1774
      %v1776 = vpop.f32.mrb[0].mxu0
      %v1777 = vpop.f32.mrb[0].mxu0
      %v1778 = vadd.f32 %v1681, %v1777
      %v1779 = vpop.f32.mrb[0].mxu0
      %1780 = vmatprep.mubr.bf16.mxu0 0
      %1781 = vmatmul.mubr.bf16.gmra.mrb[0].mxu0 %v612
      %v1782 = vpop.f32.mrb[0].mxu0
      %v1783 = vadd.f32 %v1686, %v1782
      %v1784 = vpop.f32.mrb[0].mxu0
      %v1785 = vpop.f32.mrb[0].mxu0
      %v1786 = vadd.f32 %v1689, %v1785
      %v1787 = vpop.f32.mrb[0].mxu0
      %1788 = vmatprep.mubr.bf16.mxu0 0
      %1789 = vmatmul.mubr.bf16.gmra.mrb[0].mxu0 %v613
      %v1790 = vpop.f32.mrb[0].mxu0
      %v1791 = vadd.f32 %v1694, %v1790
      %v1792 = vpop.f32.mrb[0].mxu0
      %v1793 = vpop.f32.mrb[0].mxu0
      %v1794 = vadd.f32 %v1697, %v1793
      %v1795 = vpop.f32.mrb[0].mxu0
      %1796 = vmatprep.mubr.bf16.mxu0 0
      %1797 = vmatmul.mubr.bf16.gmra.mrb[0].mxu0 %v614
      %v1798 = vpop.f32.mrb[0].mxu0
      %v1799 = vadd.f32 %v1702, %v1798
      %v1800 = vpop.f32.mrb[0].mxu0
      %v1801 = vpop.f32.mrb[0].mxu0
      %v1802 = vadd.f32 %v1705, %v1801
      %v1803 = vpop.f32.mrb[0].mxu0
      %1804 = vmatprep.mubr.bf16.mxu0 0
      %1805 = vmatmul.mubr.bf16.gmra.mrb[0].mxu0 %v615
      %v1806 = vpop.f32.mrb[0].mxu0
      %v1807 = vadd.f32 %v1710, %v1806
      %v1808 = vpop.f32.mrb[0].mxu0
      %v1809 = vpop.f32.mrb[0].mxu0
      %v1810 = vadd.f32 %v1713, %v1809
      %v1811 = vpop.f32.mrb[0].mxu0
      %1812 = vmatprep.mubr.bf16.mxu0 0
      %1813 = vmatmul.mubr.bf16.gmra.mrb[0].mxu0 %v616
      %v1814 = vpop.f32.mrb[0].mxu0
      %v1815 = vadd.f32 %v1718, %v1814
      %v1816 = vpop.f32.mrb[0].mxu0
      %v1817 = vpop.f32.mrb[0].mxu0
      %v1818 = vadd.f32 %v1721, %v1817
      %v1819 = vpop.f32.mrb[0].mxu0
      %1820 = vmatprep.mubr.bf16.mxu0 0
      %1821 = vmatmul.mubr.bf16.gmra.mrb[0].mxu0 %v617
      %v1822 = vpop.f32.mrb[0].mxu0
      %v1823 = vadd.f32 %v1726, %v1822
      %v1824 = vpop.f32.mrb[0].mxu0
      %v1825 = vpop.f32.mrb[0].mxu0
      %v1826 = vadd.f32 %v1729, %v1825
      %v1827 = vpop.f32.mrb[0].mxu0
      %1828 = vmatprep.mubr.bf16.mxu0 0
      %1829 = vmatmul.mubr.bf16.gmra.mrb[0].mxu0 %v618
      %v1830 = vpop.f32.mrb[0].mxu0
      %v1831 = vadd.f32 %v1734, %v1830
      %v1832 = vpop.f32.mrb[0].mxu0
      %v1833 = vpop.f32.mrb[0].mxu0
      %v1834 = vadd.f32 %v1737, %v1833
      %v1835 = vpop.f32.mrb[0].mxu0
      %1836 = vdwg.mxu0
      %v1837 = vadd.f32 %v1389, %v1775
      %v1838 = vadd.f32 %v1392, %v1778
      %v1839 = vadd.f32 %v1397, %v1783
      %v1840 = vadd.f32 %v1400, %v1786
      %v1841 = vadd.f32 %v1405, %v1791
      %v1842 = vadd.f32 %v1408, %v1794
      %v1843 = vadd.f32 %v1413, %v1799
      %v1844 = vadd.f32 %v1416, %v1802
      %v1845 = vadd.f32 %v1421, %v1807
      %v1846 = vadd.f32 %v1424, %v1810
      %v1847 = vadd.f32 %v1429, %v1815
      %v1848 = vadd.f32 %v1432, %v1818
      %v1849 = vadd.f32 %v1437, %v1823
      %v1850 = vadd.f32 %v1440, %v1826
      %v1851 = vadd.f32 %v1445, %v1831
      %v1852 = vadd.f32 %v1448, %v1834
      %v1853 = vld [vmem:[%s4] sm:$0x1]
      %v1855 = vlaneseq
      %v1856 = vshrl.u32 %v1855, 7
      %v1857 = vsub.s32 0, %v1856
      %v1858 = vrot.slane %v1853, %v1857
      %v1860 = vadd.f32 %v1837, %v1858
      %v1861 = vadd.f32 %v1838, %v1858
      %v1862 = vadd.f32 %v1839, %v1858
      %v1863 = vadd.f32 %v1840, %v1858
      %v1864 = vadd.f32 %v1841, %v1858
      %v1865 = vadd.f32 %v1842, %v1858
      %v1866 = vadd.f32 %v1843, %v1858
      %v1867 = vadd.f32 %v1844, %v1858
      %v1868 = vadd.f32 %v1845, %v1858
      %v1869 = vadd.f32 %v1846, %v1858
      %v1870 = vadd.f32 %v1847, %v1858
      %v1871 = vadd.f32 %v1848, %v1858
      %v1872 = vadd.f32 %v1849, %v1858
      %v1873 = vadd.f32 %v1850, %v1858
      %v1874 = vadd.f32 %v1851, %v1858
      %v1875 = vadd.f32 %v1852, %v1858
      %v1876 = vmax.f32 %v1860, 0.0
      %v1877 = vmax.f32 %v1861, 0.0
      %v1878 = vmax.f32 %v1862, 0.0
      %v1879 = vmax.f32 %v1863, 0.0
      %v1880 = vmax.f32 %v1864, 0.0
      %v1881 = vmax.f32 %v1865, 0.0
      %v1882 = vmax.f32 %v1866, 0.0
      %v1883 = vmax.f32 %v1867, 0.0
      %v1884 = vmax.f32 %v1868, 0.0
      %v1885 = vmax.f32 %v1869, 0.0
      %v1886 = vmax.f32 %v1870, 0.0
      %v1887 = vmax.f32 %v1871, 0.0
      %v1888 = vmax.f32 %v1872, 0.0
      %v1889 = vmax.f32 %v1873, 0.0
      %v1890 = vmax.f32 %v1874, 0.0
      %v1891 = vmax.f32 %v1875, 0.0
      %v1892 = vmax.f32 %v1876, %v1878
      %v1893 = vmax.f32 %v1877, %v1879
      %v1894 = vmax.f32 %v1880, %v1882
      %v1895 = vmax.f32 %v1881, %v1883
      %v1896 = vmax.f32 %v1884, %v1886
      %v1897 = vmax.f32 %v1885, %v1887
      %v1898 = vmax.f32 %v1888, %v1890
      %v1899 = vmax.f32 %v1889, %v1891
      %1900 = vst [vmem:[#allocation2] sm:$0xff] %v1892
      %1901 = vst [vmem:[#allocation2 + $0x8] sm:$0xff] %v1893
      %1902 = vst [vmem:[#allocation2 + $0x10] sm:$0xff] %v1894
      %1903 = vst [vmem:[#allocation2 + $0x18] sm:$0xff] %v1895
      %1904 = vst [vmem:[#allocation2 + $0x20] sm:$0xff] %v1896
      %1905 = vst [vmem:[#allocation2 + $0x28] sm:$0xff] %v1897
      %1906 = vst [vmem:[#allocation2 + $0x30] sm:$0xff] %v1898
      %1907 = vst [vmem:[#allocation2 + $0x38] sm:$0xff] %v1899
      %v1908 = vld [vmem:[#allocation2] ss:$2 sm:$0xff]
      %s1909 = scalar_lea.vmem [#allocation2], 16
      %v1910 = vld [vmem:[%s1909] ss:$2 sm:$0xff]
      %s1911 = scalar_lea.vmem [#allocation2], 32
      %v1912 = vld [vmem:[%s1911] ss:$2 sm:$0xff]
      %s1913 = scalar_lea.vmem [#allocation2], 48
      %v1914 = vld [vmem:[%s1913] ss:$2 sm:$0xff]
      %s1915 = scalar_lea.vmem [#allocation2], 1
      %v1916 = vld [vmem:[%s1915] ss:$2 sm:$0xff]
      %s1917 = scalar_lea.vmem [#allocation2], 17
      %v1918 = vld [vmem:[%s1917] ss:$2 sm:$0xff]
      %s1919 = scalar_lea.vmem [#allocation2], 33
      %v1920 = vld [vmem:[%s1919] ss:$2 sm:$0xff]
      %s1921 = scalar_lea.vmem [#allocation2], 49
      %v1922 = vld [vmem:[%s1921] ss:$2 sm:$0xff]
      %v1923 = vmax.f32 %v1908, %v1916
      %v1924 = vmax.f32 %v1910, %v1918
      %v1925 = vmax.f32 %v1912, %v1920
      %v1926 = vmax.f32 %v1914, %v1922
      %v1927 = vpack.c.bf16 %v1923, %v1923
      %v1928 = vpack.c.bf16 %v1924, %v1924
      %v1929 = vpack.c.bf16 %v1925, %v1925
      %v1930 = vpack.c.bf16 %v1926, %v1926
      %1931 = vst [vmem:[%s389] sm:$0xf] %v1927
      %1932 = vst [vmem:[%s389 + $0x4] sm:$0xf] %v1928
      %1933 = vst [vmem:[%s389 + $0x8] sm:$0xf] %v1929
      %1934 = vst [vmem:[%s389 + $0xc] sm:$0xf] %v1930
      %s1935 = smul.u32 4, %s21
      %p1936 = scmp.lt.s32.totalorder %s20, 1
      %s1937 = scalar_select %p1936, %s20, 1
      %p1938 = scmp.lt.s32.totalorder %s1935, 7
      %s1939 = scalar_select %p1938, %s1935, 7
      %s1940 = smul.addr %s1937, 8
      %s1941 = sadd.s32 %s1939, %s1940
      %s1942 = smul.addr %s1941, 4
      %s1943 = scalar_lea.vmem %s5, %s1942
      // Predicated region
      $region41: #{vgg19_slice1.8} parent=39 // pred_check
        %p1944 = pneg %p190
      $region42: #{vgg19_slice1.8} parent=39 // pred_check_branch
        %1946 = sbr.rel (%p1944) target = $region44
      $region43: #{vgg19_slice1.8} parent=39 // pred_region
        %s1947 = smul.u32 4, %s21
      $region44: #{vgg19_slice1.8} parent=39 // pred_fallthru
        _
    $region40: #{vgg19_slice1.8} parent=5 // pred_fallthru
      _
    %p1948 = scmp.le.s32.totalorder 2, %s11
    // Predicated region
    $region45: #{vgg19_slice1.8} parent=5 // pred_check
      %p1949 = pneg %p1948
    $region46: #{vgg19_slice1.8} parent=5 // pred_check_branch
      %1951 = sbr.rel (%p1949) target = $region48
    $region47: #{vgg19_slice1.8} parent=5 // pred_region
      %s1952 = ssub.s32 %s11, 2
      // Predicated region
      $region49: #{vgg19_slice1.8} parent=47 // pred_check
        %p1953 = pneg %p196
      $region50: #{vgg19_slice1.8} parent=47 // pred_check_branch
        %1955 = sbr.rel (%p1953) target = $region52
      $region51: #{vgg19_slice1.8} parent=47 // pred_region
        %s1956 = smul.u32 4, %s23
        %p1957 = scmp.lt.s32.totalorder %s22, 1
        %s1958 = scalar_select %p1957, %s22, 1
        %p1959 = scmp.lt.s32.totalorder %s1956, 7
        %s1960 = scalar_select %p1959, %s1956, 7
        %s1961 = smul.addr %s1958, 8
        %s1962 = sadd.s32 %s1960, %s1961
        %s1963 = smul.addr %s1962, 4
        %s1964 = scalar_lea.vmem %s5, %s1963
      $region52: #{vgg19_slice1.8} parent=47 // pred_fallthru
        _
    $region48: #{vgg19_slice1.8} parent=5 // pred_fallthru
      _
  $region6: #{vgg19_slice1.8} parent=0 // loop_footer
    %s15 = sadd.s32 1, %s11
  $region7: #{vgg19_slice1.8} parent=0 // loop_footer_branch
    %10 = sbr.rel target = $region3
  $region8: #{vgg19_slice1.8} parent=0 // loop_exit
    _

// kernel: vgg19_slice1.9
$region0: #{vgg19_slice1.9}
  #allocation0 [shape = 'u32[]', space=smem, size = 0x4, offset = 0x4, fixed_abs, tag = 'smem constant byte address 0x4 - core index']
  #allocation1 [shape = 'u32[144,128]{1,0:T(1,128)}', space=vmem, size = 0x12000, scoped, tag = 'internal scratch']
  %s0 = inlined_call_operand.vmem [shape: bf16[2,8,8,128], index: 0, kind: input, shape index: {}, may-alias: {0,1,2}]
  %s1 = inlined_call_operand.vmem [shape: bf16[2,8,8,128], index: 1, kind: input, shape index: {}, may-alias: {0,1,2}]
  %s2 = inlined_call_operand.vmem [shape: bf16[2,8,8,128], index: 2, kind: input, shape index: {}, may-alias: {0,1,2}]
  %s3 = inlined_call_operand.vmem [shape: bf16[1152,256], index: 3, kind: input, shape index: {}]
  %s4 = inlined_call_operand.vmem [shape: f32[1,256], index: 4, kind: input, shape index: {}]
  %s5 = inlined_call_operand.vmem [shape: bf16[2,8,8,256], index: 5, kind: output, shape index: {}]
  %s6 = sld [smem:[#allocation0]]
  $region53: #{vgg19_slice1.9} parent=0
    _
  %s8 = ssub.s32 1, %s6
  %s9 = scalar_select 0, %s8, %s6
  loop: start=0, step=1, limit=6
  $region2: #{vgg19_slice1.9} parent=0 // loop_pre_header
    _
  $region3: #{vgg19_slice1.9} parent=0 // loop_header
    %s11 = sphi 0, %s15
    %p12 = scmp.ge.s32.totalorder %s11, 6
    %s18 = sphi 0, %s30
    %s19 = sphi 0, %s26
    %s20 = sphi 0, %s18
    %s21 = sphi 0, %s19
    %s22 = sphi 0, %s20
    %s23 = sphi 0, %s21
    %s35 = sphi 0, %s37
    %s38 = sphi 0, %s35
    %s39 = sphi 0, %s38
    %s55 = sphi 0, %s39
    %s71 = sphi 0, %s73
    %s74 = sphi 0, %s71
    %s75 = sphi 0, %s74
    %s91 = sphi 0, %s75
    %s107 = sphi 0, %s109
    %s110 = sphi 0, %s107
    %s111 = sphi 0, %s110
    %s127 = sphi 0, %s111
    %s131 = sphi 0, %s131
    %s133 = sphi 0, %s131
    %s134 = sphi 0, %s133
    %s148 = sphi 0, %s134
    %s152 = sphi 0, %s152
    %s154 = sphi 0, %s152
    %s155 = sphi 0, %s154
    %s169 = sphi 0, %s155
    %s177 = sphi 0, %s179
    %s180 = sphi 0, %s177
    %s181 = sphi 0, %s180
    %s197 = sphi 0, %s181
  $region4: #{vgg19_slice1.9} parent=0 // loop_header_branch
    %14 = sbr.rel (%p12) target = $region8
  $region5: #{vgg19_slice1.9} parent=0 // loop_body
    %s16 = ssub.s32 %s11, 1
    %s17 = ssub.s32 %s11, 2
    %s24 = sadd.s32 1, %s19
    %p25 = scmp.ge.s32.totalorder %s24, 2
    %s26 = scalar_select %p25, 0, %s24
    %s27 = sadd.s32 1, %s18
    %s28 = scalar_select %p25, %s27, %s18
    %p29 = scmp.ge.s32.totalorder %s28, 2
    %s30 = scalar_select %p29, 0, %s28
    %s31 = ssub.s32 %s18, %s30
    %s32 = ssub.s32 %s19, %s26
    %s33 = sor.u32 %s31, %s32
    %p34 = scmp.eq.s32.totalorder %s33, 0
    %s36 = sadd.s32 %s35, 1
    %s37 = scalar_select %p34, %s35, %s36
    %p40 = pneg %p34
    %p41 = scmp.eq.s32.totalorder %s11, 3
    %p42 = por %p40, %p41
    %p43 = scmp.ne.s32.totalorder %s35, %s38
    %p44 = scmp.eq.s32.totalorder %s11, 0
    %p45 = por %p43, %p44
    %p46 = scmp.ne.s32.totalorder %s35, %s38
    %p47 = scmp.eq.s32.totalorder %s16, 3
    %p48 = por %p46, %p47
    %p49 = scmp.ne.s32.totalorder %s38, %s39
    %p50 = scmp.eq.s32.totalorder %s16, 0
    %p51 = por %p49, %p50
    %p52 = scmp.ne.s32.totalorder %s38, %s39
    %p53 = scmp.eq.s32.totalorder %s17, 3
    %p54 = por %p52, %p53
    %p56 = scmp.ne.s32.totalorder %s39, %s55
    %p57 = scmp.eq.s32.totalorder %s17, 0
    %p58 = por %p56, %p57
    %s59 = smul.u32 %s19, 4
    %s60 = ssub.s32 %s59, 1
    %p61 = scmp.gt.s32.totalorder %s60, 0
    %s62 = scalar_select %p61, %s60, 0
    %s63 = smul.u32 %s26, 4
    %s64 = ssub.s32 %s63, 1
    %p65 = scmp.gt.s32.totalorder %s64, 0
    %s66 = scalar_select %p65, %s64, 0
    %s67 = ssub.s32 %s18, %s30
    %s68 = ssub.s32 %s62, %s66
    %s69 = sor.u32 %s67, %s68
    %p70 = scmp.eq.s32.totalorder %s69, 0
    %s72 = sadd.s32 %s71, 1
    %s73 = scalar_select %p70, %s71, %s72
    %p76 = pneg %p70
    %p77 = scmp.eq.s32.totalorder %s11, 3
    %p78 = por %p76, %p77
    %p79 = scmp.ne.s32.totalorder %s71, %s74
    %p80 = scmp.eq.s32.totalorder %s11, 0
    %p81 = por %p79, %p80
    %p82 = scmp.ne.s32.totalorder %s71, %s74
    %p83 = scmp.eq.s32.totalorder %s16, 3
    %p84 = por %p82, %p83
    %p85 = scmp.ne.s32.totalorder %s74, %s75
    %p86 = scmp.eq.s32.totalorder %s16, 0
    %p87 = por %p85, %p86
    %p88 = scmp.ne.s32.totalorder %s74, %s75
    %p89 = scmp.eq.s32.totalorder %s17, 3
    %p90 = por %p88, %p89
    %p92 = scmp.ne.s32.totalorder %s75, %s91
    %p93 = scmp.eq.s32.totalorder %s17, 0
    %p94 = por %p92, %p93
    %s95 = smul.u32 %s19, 4
    %s96 = sadd.s32 %s95, 4
    %p97 = scmp.lt.s32.totalorder %s96, 7
    %s98 = scalar_select %p97, %s96, 7
    %s99 = smul.u32 %s26, 4
    %s100 = sadd.s32 %s99, 4
    %p101 = scmp.lt.s32.totalorder %s100, 7
    %s102 = scalar_select %p101, %s100, 7
    %s103 = ssub.s32 %s18, %s30
    %s104 = ssub.s32 %s98, %s102
    %s105 = sor.u32 %s103, %s104
    %p106 = scmp.eq.s32.totalorder %s105, 0
    %s108 = sadd.s32 %s107, 1
    %s109 = scalar_select %p106, %s107, %s108
    %p112 = pneg %p106
    %p113 = scmp.eq.s32.totalorder %s11, 3
    %p114 = por %p112, %p113
    %p115 = scmp.ne.s32.totalorder %s107, %s110
    %p116 = scmp.eq.s32.totalorder %s11, 0
    %p117 = por %p115, %p116
    %p118 = scmp.ne.s32.totalorder %s107, %s110
    %p119 = scmp.eq.s32.totalorder %s16, 3
    %p120 = por %p118, %p119
    %p121 = scmp.ne.s32.totalorder %s110, %s111
    %p122 = scmp.eq.s32.totalorder %s16, 0
    %p123 = por %p121, %p122
    %p124 = scmp.ne.s32.totalorder %s110, %s111
    %p125 = scmp.eq.s32.totalorder %s17, 3
    %p126 = por %p124, %p125
    %p128 = scmp.ne.s32.totalorder %s111, %s127
    %p129 = scmp.eq.s32.totalorder %s17, 0
    %p130 = por %p128, %p129
    %s132 = sadd.s32 %s131, 1
    %p135 = scmp.eq.s32.totalorder %s11, 3
    %p136 = scmp.ne.s32.totalorder %s131, %s133
    %p137 = scmp.eq.s32.totalorder %s11, 0
    %p138 = por %p136, %p137
    %p139 = scmp.ne.s32.totalorder %s131, %s133
    %p140 = scmp.eq.s32.totalorder %s16, 3
    %p141 = por %p139, %p140
    %p142 = scmp.ne.s32.totalorder %s133, %s134
    %p143 = scmp.eq.s32.totalorder %s16, 0
    %p144 = por %p142, %p143
    %p145 = scmp.ne.s32.totalorder %s133, %s134
    %p146 = scmp.eq.s32.totalorder %s17, 3
    %p147 = por %p145, %p146
    %p149 = scmp.ne.s32.totalorder %s134, %s148
    %p150 = scmp.eq.s32.totalorder %s17, 0
    %p151 = por %p149, %p150
    %s153 = sadd.s32 %s152, 1
    %p156 = scmp.eq.s32.totalorder %s11, 3
    %p157 = scmp.ne.s32.totalorder %s152, %s154
    %p158 = scmp.eq.s32.totalorder %s11, 0
    %p159 = por %p157, %p158
    %p160 = scmp.ne.s32.totalorder %s152, %s154
    %p161 = scmp.eq.s32.totalorder %s16, 3
    %p162 = por %p160, %p161
    %p163 = scmp.ne.s32.totalorder %s154, %s155
    %p164 = scmp.eq.s32.totalorder %s16, 0
    %p165 = por %p163, %p164
    %p166 = scmp.ne.s32.totalorder %s154, %s155
    %p167 = scmp.eq.s32.totalorder %s17, 3
    %p168 = por %p166, %p167
    %p170 = scmp.ne.s32.totalorder %s155, %s169
    %p171 = scmp.eq.s32.totalorder %s17, 0
    %p172 = por %p170, %p171
    %s173 = ssub.s32 %s18, %s30
    %s174 = ssub.s32 %s19, %s26
    %s175 = sor.u32 %s173, %s174
    %p176 = scmp.eq.s32.totalorder %s175, 0
    %s178 = sadd.s32 %s177, 1
    %s179 = scalar_select %p176, %s177, %s178
    %p182 = pneg %p176
    %p183 = scmp.eq.s32.totalorder %s11, 3
    %p184 = por %p182, %p183
    %p185 = scmp.ne.s32.totalorder %s177, %s180
    %p186 = scmp.eq.s32.totalorder %s11, 0
    %p187 = por %p185, %p186
    %p188 = scmp.ne.s32.totalorder %s177, %s180
    %p189 = scmp.eq.s32.totalorder %s16, 3
    %p190 = por %p188, %p189
    %p191 = scmp.ne.s32.totalorder %s180, %s181
    %p192 = scmp.eq.s32.totalorder %s16, 0
    %p193 = por %p191, %p192
    %p194 = scmp.ne.s32.totalorder %s180, %s181
    %p195 = scmp.eq.s32.totalorder %s17, 3
    %p196 = por %p194, %p195
    %p198 = scmp.ne.s32.totalorder %s181, %s197
    %p199 = scmp.eq.s32.totalorder %s17, 0
    %p200 = por %p198, %p199
    %p201 = scmp.le.s32.totalorder 1, %s11
    %p202 = scmp.lt.s32.totalorder %s11, 5
    %p203 = pnand %p201, %p202
    %p204 = pneg %p203
    // Predicated region
    $region9: #{vgg19_slice1.9} parent=5 // pred_check
      _
    $region10: #{vgg19_slice1.9} parent=5 // pred_check_branch
      %206 = sbr.rel (%p203) target = $region12
    $region11: #{vgg19_slice1.9} parent=5 // pred_region
      %s207 = ssub.s32 %s11, 1
      // Predicated region
      $region13: #{vgg19_slice1.9} parent=11 // pred_check
        %p208 = pneg %p144
      $region14: #{vgg19_slice1.9} parent=11 // pred_check_branch
        %210 = sbr.rel (%p208) target = $region16
      $region15: #{vgg19_slice1.9} parent=11 // pred_region
        _
      $region16: #{vgg19_slice1.9} parent=11 // pred_fallthru
        _
      // Predicated region
      $region17: #{vgg19_slice1.9} parent=11 // pred_check
        %p211 = pneg %p165
      $region18: #{vgg19_slice1.9} parent=11 // pred_check_branch
        %213 = sbr.rel (%p211) target = $region20
      $region19: #{vgg19_slice1.9} parent=11 // pred_region
        _
      $region20: #{vgg19_slice1.9} parent=11 // pred_fallthru
        _
    $region12: #{vgg19_slice1.9} parent=5 // pred_fallthru
      _
    %p214 = scmp.lt.s32.totalorder %s11, 4
    // Predicated region
    $region21: #{vgg19_slice1.9} parent=5 // pred_check
      %p215 = pneg %p214
    $region22: #{vgg19_slice1.9} parent=5 // pred_check_branch
      %217 = sbr.rel (%p215) target = $region24
    $region23: #{vgg19_slice1.9} parent=5 // pred_region
      // Predicated region
      $region25: #{vgg19_slice1.9} parent=23 // pred_check
        %p218 = pneg %p45
      $region26: #{vgg19_slice1.9} parent=23 // pred_check_branch
        %220 = sbr.rel (%p218) target = $region28
      $region27: #{vgg19_slice1.9} parent=23 // pred_region
        %s221 = smul.u32 4, %s19
        %p222 = scmp.lt.s32.totalorder %s18, 1
        %s223 = scalar_select %p222, %s18, 1
        %p224 = scmp.lt.s32.totalorder %s221, 7
        %s225 = scalar_select %p224, %s221, 7
        %s226 = smul.addr %s223, 8
        %s227 = sadd.s32 %s225, %s226
        %s228 = smul.addr %s227, 4
        %s229 = scalar_lea.vmem %s0, %s228
        %s230 = smul.u32 4, %s19
      $region28: #{vgg19_slice1.9} parent=23 // pred_fallthru
        _
      // Predicated region
      $region29: #{vgg19_slice1.9} parent=23 // pred_check
        %p231 = pneg %p81
      $region30: #{vgg19_slice1.9} parent=23 // pred_check_branch
        %233 = sbr.rel (%p231) target = $region32
      $region31: #{vgg19_slice1.9} parent=23 // pred_region
        %s234 = smul.u32 %s19, 4
        %s235 = ssub.s32 %s234, 1
        %p236 = scmp.gt.s32.totalorder %s235, 0
        %s237 = scalar_select %p236, %s235, 0
        %p238 = scmp.lt.s32.totalorder %s18, 1
        %s239 = scalar_select %p238, %s18, 1
        %p240 = scmp.lt.s32.totalorder %s237, 7
        %s241 = scalar_select %p240, %s237, 7
        %s242 = smul.addr %s239, 8
        %s243 = sadd.s32 %s241, %s242
        %s244 = smul.addr %s243, 4
        %s245 = scalar_lea.vmem %s1, %s244
        %s246 = smul.u32 %s19, 4
        %s247 = ssub.s32 %s246, 1
        %p248 = scmp.gt.s32.totalorder %s247, 0
        %s249 = scalar_select %p248, %s247, 0
      $region32: #{vgg19_slice1.9} parent=23 // pred_fallthru
        _
      // Predicated region
      $region33: #{vgg19_slice1.9} parent=23 // pred_check
        %p250 = pneg %p117
      $region34: #{vgg19_slice1.9} parent=23 // pred_check_branch
        %252 = sbr.rel (%p250) target = $region36
      $region35: #{vgg19_slice1.9} parent=23 // pred_region
        %s253 = smul.u32 %s19, 4
        %s254 = sadd.s32 %s253, 4
        %p255 = scmp.lt.s32.totalorder %s254, 7
        %s256 = scalar_select %p255, %s254, 7
        %p257 = scmp.lt.s32.totalorder %s18, 1
        %s258 = scalar_select %p257, %s18, 1
        %p259 = scmp.lt.s32.totalorder %s256, 7
        %s260 = scalar_select %p259, %s256, 7
        %s261 = smul.addr %s258, 8
        %s262 = sadd.s32 %s260, %s261
        %s263 = smul.addr %s262, 4
        %s264 = scalar_lea.vmem %s2, %s263
        %s265 = smul.u32 %s19, 4
        %s266 = sadd.s32 %s265, 4
        %p267 = scmp.lt.s32.totalorder %s266, 7
        %s268 = scalar_select %p267, %s266, 7
      $region36: #{vgg19_slice1.9} parent=23 // pred_fallthru
        _
    $region24: #{vgg19_slice1.9} parent=5 // pred_fallthru
      _
    %p269 = scmp.le.s32.totalorder 1, %s11
    %p270 = scmp.lt.s32.totalorder %s11, 5
    %p271 = pnand %p269, %p270
    %p272 = pneg %p271
    // Predicated region
    $region37: #{vgg19_slice1.9} parent=5 // pred_check
      _
    $region38: #{vgg19_slice1.9} parent=5 // pred_check_branch
      %274 = sbr.rel (%p271) target = $region40
    $region39: #{vgg19_slice1.9} parent=5 // pred_region
      %s275 = ssub.s32 %s11, 1
      %s276 = smul.u32 4, %s21
      %p277 = scmp.lt.s32.totalorder %s20, 1
      %s278 = scalar_select %p277, %s20, 1
      %p279 = scmp.lt.s32.totalorder %s276, 7
      %s280 = scalar_select %p279, %s276, 7
      %s281 = smul.addr %s278, 8
      %s282 = sadd.s32 %s280, %s281
      %s283 = smul.addr %s282, 4
      %s284 = scalar_lea.vmem %s0, %s283
      %p285 = pneg %p51
      %p286 = pneg %p48
      %s287 = smul.u32 %s21, 4
      %s288 = ssub.s32 %s287, 1
      %p289 = scmp.gt.s32.totalorder %s288, 0
      %s290 = scalar_select %p289, %s288, 0
      %p291 = scmp.lt.s32.totalorder %s20, 1
      %s292 = scalar_select %p291, %s20, 1
      %p293 = scmp.lt.s32.totalorder %s290, 7
      %s294 = scalar_select %p293, %s290, 7
      %s295 = smul.addr %s292, 8
      %s296 = sadd.s32 %s294, %s295
      %s297 = smul.addr %s296, 4
      %s298 = scalar_lea.vmem %s1, %s297
      %p299 = pneg %p87
      %p300 = pneg %p84
      %s301 = smul.u32 %s21, 4
      %s302 = sadd.s32 %s301, 4
      %p303 = scmp.lt.s32.totalorder %s302, 7
      %s304 = scalar_select %p303, %s302, 7
      %p305 = scmp.lt.s32.totalorder %s20, 1
      %s306 = scalar_select %p305, %s20, 1
      %p307 = scmp.lt.s32.totalorder %s304, 7
      %s308 = scalar_select %p307, %s304, 7
      %s309 = smul.addr %s306, 8
      %s310 = sadd.s32 %s308, %s309
      %s311 = smul.addr %s310, 4
      %s312 = scalar_lea.vmem %s2, %s311
      %p313 = pneg %p123
      %p314 = pneg %p120
      %p315 = pneg %p144
      %p316 = pneg %p141
      %p317 = pneg %p165
      %p318 = pneg %p162
      %p319 = pneg %p193
      %p320 = pneg %p190
      %s321 = smul.u32 4, %s21
      %p322 = scmp.lt.s32.totalorder %s20, 1
      %s323 = scalar_select %p322, %s20, 1
      %p324 = scmp.lt.s32.totalorder %s321, 7
      %s325 = scalar_select %p324, %s321, 7
      %s326 = smul.addr %s325, 2
      %s327 = smul.addr %s323, 16
      %s328 = sadd.s32 %s326, %s327
      %s329 = smul.addr %s328, 4
      %s330 = scalar_lea.vmem %s5, %s329
      %s331 = smul.u32 4, %s21
      %p332 = scmp.lt.s32.totalorder %s20, 1
      %s333 = scalar_select %p332, %s20, 1
      %p334 = scmp.lt.s32.totalorder %s331, 7
      %s335 = scalar_select %p334, %s331, 7
      %s336 = smul.addr %s333, 8
      %s337 = sadd.s32 %s335, %s336
      %s338 = smul.addr %s337, 4
      %s339 = scalar_lea.vmem %s0, %s338
      %s340 = smul.u32 4, %s21
      %s341 = smul.u32 %s21, 4
      %s342 = ssub.s32 %s341, 1
      %p343 = scmp.gt.s32.totalorder %s342, 0
      %s344 = scalar_select %p343, %s342, 0
      %p345 = scmp.lt.s32.totalorder %s20, 1
      %s346 = scalar_select %p345, %s20, 1
      %p347 = scmp.lt.s32.totalorder %s344, 7
      %s348 = scalar_select %p347, %s344, 7
      %s349 = smul.addr %s346, 8
      %s350 = sadd.s32 %s348, %s349
      %s351 = smul.addr %s350, 4
      %s352 = scalar_lea.vmem %s1, %s351
      %s353 = smul.u32 %s21, 4
      %s354 = ssub.s32 %s353, 1
      %p355 = scmp.gt.s32.totalorder %s354, 0
      %s356 = scalar_select %p355, %s354, 0
      %s357 = smul.u32 %s21, 4
      %s358 = sadd.s32 %s357, 4
      %p359 = scmp.lt.s32.totalorder %s358, 7
      %s360 = scalar_select %p359, %s358, 7
      %p361 = scmp.lt.s32.totalorder %s20, 1
      %s362 = scalar_select %p361, %s20, 1
      %p363 = scmp.lt.s32.totalorder %s360, 7
      %s364 = scalar_select %p363, %s360, 7
      %s365 = smul.addr %s362, 8
      %s366 = sadd.s32 %s364, %s365
      %s367 = smul.addr %s366, 4
      %s368 = scalar_lea.vmem %s2, %s367
      %s369 = smul.u32 %s21, 4
      %s370 = sadd.s32 %s369, 4
      %p371 = scmp.lt.s32.totalorder %s370, 7
      %s372 = scalar_select %p371, %s370, 7
      %s373 = smul.u32 4, %s21
      %p374 = scmp.lt.s32.totalorder %s20, 1
      %s375 = scalar_select %p374, %s20, 1
      %p376 = scmp.lt.s32.totalorder %s373, 7
      %s377 = scalar_select %p376, %s373, 7
      %s378 = smul.addr %s377, 2
      %s379 = smul.addr %s375, 16
      %s380 = sadd.s32 %s378, %s379
      %s381 = smul.addr %s380, 4
      %s382 = scalar_lea.vmem %s5, %s381
      %s383 = smul.u32 4, %s21
      %v385 = vld [vmem:[%s339] sm:$0xf]
      %v386 = vld [vmem:[%s339 + $0x4] sm:$0xf]
      %v387 = vld [vmem:[%s339 + $0x8] sm:$0xf]
      %v388 = vld [vmem:[%s339 + $0xc] sm:$0xf]
      %v389 = vld [vmem:[%s352] sm:$0xf]
      %v390 = vld [vmem:[%s368] sm:$0xf]
      %p391 = scmp.gt.s32.totalorder %s21, 0
      %s392 = scalar_select %p391, 1, 0
      %s393 = scvt.s32.f32 %s392
      %p395 = scmp.ne.f32.partialorder %s393, %s393
      %s396 = sshrl.u32 %s393, 16
      %s397 = sand.u32 %s396, 1
      %s398 = sadd.s32 32767, %s397
      %s399 = sadd.s32 %s393, %s398
      %s400 = sand.u32 %s399, 4294901760
      %s401 = scalar_select %p395, 2143289344, %s400
      %s403 = sshrl.u32 %s401, 16
      %p404 = scmp.lt.s32.totalorder %s21, 1
      %s405 = scalar_select %p404, 1, 0
      %s406 = scvt.s32.f32 %s405
      %p408 = scmp.ne.f32.partialorder %s406, %s406
      %s409 = sshrl.u32 %s406, 16
      %s410 = sand.u32 %s409, 1
      %s411 = sadd.s32 32767, %s410
      %s412 = sadd.s32 %s406, %s411
      %s413 = sand.u32 %s412, 4294901760
      %s414 = scalar_select %p408, 2143289344, %s413
      %s416 = sshrl.u32 %s414, 16
      %s417 = sshll.u32 %s403, 16
      %s418 = sor.u32 %s403, %s417
      %v419 = vstv %s418
      %v421 = vmul.bf16 %v389, %v419
      %s422 = sshll.u32 %s416, 16
      %s423 = sor.u32 %s416, %s422
      %v424 = vstv %s423
      %v426 = vmul.bf16 %v390, %v424
      %v427 = vunpack.c.l.bf16 %v421
      %v428 = vunpack.c.l.bf16 %v385
      %v429 = vunpack.c.l.bf16 %v386
      %v430 = vunpack.c.l.bf16 %v387
      %v431 = vunpack.c.l.bf16 %v388
      %v432 = vunpack.c.l.bf16 %v426
      %v433 = vlaneseq
      %v434 = vshrl.u32 %v433, 7
      %vm435 = vcmp.eq.s32.totalorder %v434, 0
      %v436 = vrot.slane %v427, 7
      %v437 = vrot.slane %v428, 7
      %v438 = vrot.slane %v429, 7
      %v439 = vrot.slane %v430, 7
      %v440 = vrot.slane %v431, 7
      %v441 = vrot.slane %v432, 7
      %v442 = vsel %vm435, 0.0, %v436
      %v443 = vsel %vm435, 0.0, %v437
      %v444 = vsel %vm435, 0.0, %v438
      %v445 = vsel %vm435, 0.0, %v439
      %v446 = vsel %vm435, 0.0, %v440
      %v447 = vsel %vm435, 0.0, %v441
      %v448 = vpack.c.bf16 %v442, %v442
      %v449 = vpack.c.bf16 %v443, %v443
      %v450 = vpack.c.bf16 %v444, %v444
      %v451 = vpack.c.bf16 %v445, %v445
      %v452 = vpack.c.bf16 %v446, %v446
      %v453 = vpack.c.bf16 %v447, %v447
      %vm454 = vcmp.eq.s32.totalorder %v434, 7
      %v455 = vrot.slane %v427, 1
      %v456 = vrot.slane %v428, 1
      %v457 = vrot.slane %v429, 1
      %v458 = vrot.slane %v430, 1
      %v459 = vrot.slane %v431, 1
      %v460 = vrot.slane %v432, 1
      %v461 = vsel %vm454, 0.0, %v455
      %v462 = vsel %vm454, 0.0, %v456
      %v463 = vsel %vm454, 0.0, %v457
      %v464 = vsel %vm454, 0.0, %v458
      %v465 = vsel %vm454, 0.0, %v459
      %v466 = vsel %vm454, 0.0, %v460
      %v467 = vpack.c.bf16 %v461, %v461
      %v468 = vpack.c.bf16 %v462, %v462
      %v469 = vpack.c.bf16 %v463, %v463
      %v470 = vpack.c.bf16 %v464, %v464
      %v471 = vpack.c.bf16 %v465, %v465
      %v472 = vpack.c.bf16 %v466, %v466
      %v485 = vunpack.c.l.b16 %v448
      %v486 = vunpack.c.l.b16 %v421
      %v487 = vunpack.c.l.b16 %v467
      %v488 = vunpack.c.l.b16 %v449
      %v489 = vunpack.c.l.b16 %v385
      %v490 = vunpack.c.l.b16 %v468
      %v491 = vunpack.c.l.b16 %v450
      %v492 = vunpack.c.l.b16 %v386
      %v493 = vunpack.c.l.b16 %v469
      %v494 = vunpack.c.l.b16 %v451
      %v495 = vunpack.c.l.b16 %v387
      %v496 = vunpack.c.l.b16 %v470
      %v497 = vld [vmem:[%s3] sm:$0xff]
      %v498 = vld [vmem:[%s3 + $0x8] sm:$0xff]
      %v499 = vld [vmem:[%s3 + $0x10] sm:$0xff]
      %v500 = vld [vmem:[%s3 + $0x18] sm:$0xff]
      %v501 = vld [vmem:[%s3 + $0x20] sm:$0xff]
      %v502 = vld [vmem:[%s3 + $0x28] sm:$0xff]
      %v503 = vld [vmem:[%s3 + $0x30] sm:$0xff]
      %v504 = vld [vmem:[%s3 + $0x38] sm:$0xff]
      %v505 = vld [vmem:[%s3 + $0x40] sm:$0xff]
      %v506 = vld [vmem:[%s3 + $0x48] sm:$0xff]
      %v507 = vld [vmem:[%s3 + $0x50] sm:$0xff]
      %v508 = vld [vmem:[%s3 + $0x58] sm:$0xff]
      %v509 = vld [vmem:[%s3 + $0x60] sm:$0xff]
      %v510 = vld [vmem:[%s3 + $0x68] sm:$0xff]
      %v511 = vld [vmem:[%s3 + $0x70] sm:$0xff]
      %v512 = vld [vmem:[%s3 + $0x78] sm:$0xff]
      %v513 = vld [vmem:[%s3 + $0x80] sm:$0xff]
      %v514 = vld [vmem:[%s3 + $0x88] sm:$0xff]
      %v515 = vld [vmem:[%s3 + $0x90] sm:$0xff]
      %v516 = vld [vmem:[%s3 + $0x98] sm:$0xff]
      %v517 = vld [vmem:[%s3 + $0xa0] sm:$0xff]
      %v518 = vld [vmem:[%s3 + $0xa8] sm:$0xff]
      %v519 = vld [vmem:[%s3 + $0xb0] sm:$0xff]
      %v520 = vld [vmem:[%s3 + $0xb8] sm:$0xff]
      %v521 = vld [vmem:[%s3 + $0xc0] sm:$0xff]
      %v522 = vld [vmem:[%s3 + $0xc8] sm:$0xff]
      %v523 = vld [vmem:[%s3 + $0xd0] sm:$0xff]
      %v524 = vld [vmem:[%s3 + $0xd8] sm:$0xff]
      %v525 = vld [vmem:[%s3 + $0xe0] sm:$0xff]
      %v526 = vld [vmem:[%s3 + $0xe8] sm:$0xff]
      %v527 = vld [vmem:[%s3 + $0xf0] sm:$0xff]
      %v528 = vld [vmem:[%s3 + $0xf8] sm:$0xff]
      %v529 = vld [vmem:[%s3 + $0x100] sm:$0xff]
      %v530 = vld [vmem:[%s3 + $0x108] sm:$0xff]
      %v531 = vld [vmem:[%s3 + $0x110] sm:$0xff]
      %v532 = vld [vmem:[%s3 + $0x118] sm:$0xff]
      %v533 = vld [vmem:[%s3 + $0x120] sm:$0xff]
      %v534 = vld [vmem:[%s3 + $0x128] sm:$0xff]
      %v535 = vld [vmem:[%s3 + $0x130] sm:$0xff]
      %v536 = vld [vmem:[%s3 + $0x138] sm:$0xff]
      %v537 = vld [vmem:[%s3 + $0x140] sm:$0xff]
      %v538 = vld [vmem:[%s3 + $0x148] sm:$0xff]
      %v539 = vld [vmem:[%s3 + $0x150] sm:$0xff]
      %v540 = vld [vmem:[%s3 + $0x158] sm:$0xff]
      %v541 = vld [vmem:[%s3 + $0x160] sm:$0xff]
      %v542 = vld [vmem:[%s3 + $0x168] sm:$0xff]
      %v543 = vld [vmem:[%s3 + $0x170] sm:$0xff]
      %v544 = vld [vmem:[%s3 + $0x178] sm:$0xff]
      %v548 = vunpack.c.l.b16 %v452
      %v549 = vunpack.c.l.b16 %v388
      %v550 = vunpack.c.l.b16 %v471
      %v551 = vld [vmem:[%s3 + $0x180] sm:$0xff]
      %v552 = vld [vmem:[%s3 + $0x188] sm:$0xff]
      %v553 = vld [vmem:[%s3 + $0x190] sm:$0xff]
      %v554 = vld [vmem:[%s3 + $0x198] sm:$0xff]
      %v555 = vld [vmem:[%s3 + $0x1a0] sm:$0xff]
      %v556 = vld [vmem:[%s3 + $0x1a8] sm:$0xff]
      %v557 = vld [vmem:[%s3 + $0x1b0] sm:$0xff]
      %v558 = vld [vmem:[%s3 + $0x1b8] sm:$0xff]
      %v559 = vld [vmem:[%s3 + $0x1c0] sm:$0xff]
      %v560 = vld [vmem:[%s3 + $0x1c8] sm:$0xff]
      %v561 = vld [vmem:[%s3 + $0x1d0] sm:$0xff]
      %v562 = vld [vmem:[%s3 + $0x1d8] sm:$0xff]
      %v563 = vld [vmem:[%s3 + $0x1e0] sm:$0xff]
      %v564 = vld [vmem:[%s3 + $0x1e8] sm:$0xff]
      %v565 = vld [vmem:[%s3 + $0x1f0] sm:$0xff]
      %v566 = vld [vmem:[%s3 + $0x1f8] sm:$0xff]
      %v567 = vld [vmem:[%s3 + $0x200] sm:$0xff]
      %v568 = vld [vmem:[%s3 + $0x208] sm:$0xff]
      %v569 = vld [vmem:[%s3 + $0x210] sm:$0xff]
      %v570 = vld [vmem:[%s3 + $0x218] sm:$0xff]
      %v571 = vld [vmem:[%s3 + $0x220] sm:$0xff]
      %v572 = vld [vmem:[%s3 + $0x228] sm:$0xff]
      %v573 = vld [vmem:[%s3 + $0x230] sm:$0xff]
      %v574 = vld [vmem:[%s3 + $0x238] sm:$0xff]
      %v575 = vld [vmem:[%s3 + $0x240] sm:$0xff]
      %v576 = vld [vmem:[%s3 + $0x248] sm:$0xff]
      %v577 = vld [vmem:[%s3 + $0x250] sm:$0xff]
      %v578 = vld [vmem:[%s3 + $0x258] sm:$0xff]
      %v579 = vld [vmem:[%s3 + $0x260] sm:$0xff]
      %v580 = vld [vmem:[%s3 + $0x268] sm:$0xff]
      %v581 = vld [vmem:[%s3 + $0x270] sm:$0xff]
      %v582 = vld [vmem:[%s3 + $0x278] sm:$0xff]
      %v583 = vld [vmem:[%s3 + $0x280] sm:$0xff]
      %v584 = vld [vmem:[%s3 + $0x288] sm:$0xff]
      %v585 = vld [vmem:[%s3 + $0x290] sm:$0xff]
      %v586 = vld [vmem:[%s3 + $0x298] sm:$0xff]
      %v587 = vld [vmem:[%s3 + $0x2a0] sm:$0xff]
      %v588 = vld [vmem:[%s3 + $0x2a8] sm:$0xff]
      %v589 = vld [vmem:[%s3 + $0x2b0] sm:$0xff]
      %v590 = vld [vmem:[%s3 + $0x2b8] sm:$0xff]
      %v591 = vld [vmem:[%s3 + $0x2c0] sm:$0xff]
      %v592 = vld [vmem:[%s3 + $0x2c8] sm:$0xff]
      %v593 = vld [vmem:[%s3 + $0x2d0] sm:$0xff]
      %v594 = vld [vmem:[%s3 + $0x2d8] sm:$0xff]
      %v595 = vld [vmem:[%s3 + $0x2e0] sm:$0xff]
      %v596 = vld [vmem:[%s3 + $0x2e8] sm:$0xff]
      %v597 = vld [vmem:[%s3 + $0x2f0] sm:$0xff]
      %v598 = vld [vmem:[%s3 + $0x2f8] sm:$0xff]
      %v599 = vpack.c.b16 %v491, %v488
      %v600 = vpack.c.b16 %v492, %v489
      %v601 = vpack.c.b16 %v493, %v490
      %v602 = vpack.c.b16 %v548, %v494
      %v603 = vpack.c.b16 %v549, %v495
      %v604 = vpack.c.b16 %v550, %v496
      %v659 = vunpack.c.l.b16 %v551
      %v660 = vunpack.c.h.b16 %v551
      %v661 = vunpack.c.l.b16 %v552
      %v662 = vunpack.c.h.b16 %v552
      %v663 = vunpack.c.l.b16 %v553
      %v664 = vunpack.c.h.b16 %v553
      %v665 = vunpack.c.l.b16 %v554
      %v666 = vunpack.c.h.b16 %v554
      %v667 = vunpack.c.l.b16 %v555
      %v668 = vunpack.c.h.b16 %v555
      %v669 = vunpack.c.l.b16 %v556
      %v670 = vunpack.c.h.b16 %v556
      %v671 = vunpack.c.l.b16 %v557
      %v672 = vunpack.c.h.b16 %v557
      %v673 = vunpack.c.l.b16 %v558
      %v674 = vunpack.c.h.b16 %v558
      %v675 = vunpack.c.l.b16 %v559
      %v676 = vunpack.c.h.b16 %v559
      %v677 = vunpack.c.l.b16 %v560
      %v678 = vunpack.c.h.b16 %v560
      %v679 = vunpack.c.l.b16 %v561
      %v680 = vunpack.c.h.b16 %v561
      %v681 = vunpack.c.l.b16 %v562
      %v682 = vunpack.c.h.b16 %v562
      %v683 = vunpack.c.l.b16 %v563
      %v684 = vunpack.c.h.b16 %v563
      %v685 = vunpack.c.l.b16 %v564
      %v686 = vunpack.c.h.b16 %v564
      %v687 = vunpack.c.l.b16 %v565
      %v688 = vunpack.c.h.b16 %v565
      %v689 = vunpack.c.l.b16 %v566
      %v690 = vunpack.c.h.b16 %v566
      %v691 = vunpack.c.l.b16 %v567
      %v692 = vunpack.c.h.b16 %v567
      %v693 = vunpack.c.l.b16 %v568
      %v694 = vunpack.c.h.b16 %v568
      %v695 = vunpack.c.l.b16 %v569
      %v696 = vunpack.c.h.b16 %v569
      %v697 = vunpack.c.l.b16 %v570
      %v698 = vunpack.c.h.b16 %v570
      %v699 = vunpack.c.l.b16 %v571
      %v700 = vunpack.c.h.b16 %v571
      %v701 = vunpack.c.l.b16 %v572
      %v702 = vunpack.c.h.b16 %v572
      %v703 = vunpack.c.l.b16 %v573
      %v704 = vunpack.c.h.b16 %v573
      %v705 = vunpack.c.l.b16 %v574
      %v706 = vunpack.c.h.b16 %v574
      %v707 = vunpack.c.l.b16 %v575
      %v708 = vunpack.c.h.b16 %v575
      %v709 = vunpack.c.l.b16 %v576
      %v710 = vunpack.c.h.b16 %v576
      %v711 = vunpack.c.l.b16 %v577
      %v712 = vunpack.c.h.b16 %v577
      %v713 = vunpack.c.l.b16 %v578
      %v714 = vunpack.c.h.b16 %v578
      %v715 = vunpack.c.l.b16 %v579
      %v716 = vunpack.c.h.b16 %v579
      %v717 = vunpack.c.l.b16 %v580
      %v718 = vunpack.c.h.b16 %v580
      %v719 = vunpack.c.l.b16 %v581
      %v720 = vunpack.c.h.b16 %v581
      %v721 = vunpack.c.l.b16 %v582
      %v722 = vunpack.c.h.b16 %v582
      %v723 = vunpack.c.l.b16 %v583
      %v724 = vunpack.c.h.b16 %v583
      %v725 = vunpack.c.l.b16 %v584
      %v726 = vunpack.c.h.b16 %v584
      %v727 = vunpack.c.l.b16 %v585
      %v728 = vunpack.c.h.b16 %v585
      %v729 = vunpack.c.l.b16 %v586
      %v730 = vunpack.c.h.b16 %v586
      %v731 = vunpack.c.l.b16 %v587
      %v732 = vunpack.c.h.b16 %v587
      %v733 = vunpack.c.l.b16 %v588
      %v734 = vunpack.c.h.b16 %v588
      %v735 = vunpack.c.l.b16 %v589
      %v736 = vunpack.c.h.b16 %v589
      %v737 = vunpack.c.l.b16 %v590
      %v738 = vunpack.c.h.b16 %v590
      %v739 = vunpack.c.l.b16 %v591
      %v740 = vunpack.c.h.b16 %v591
      %v741 = vunpack.c.l.b16 %v592
      %v742 = vunpack.c.h.b16 %v592
      %v743 = vunpack.c.l.b16 %v593
      %v744 = vunpack.c.h.b16 %v593
      %v745 = vunpack.c.l.b16 %v594
      %v746 = vunpack.c.h.b16 %v594
      %v747 = vunpack.c.l.b16 %v595
      %v748 = vunpack.c.h.b16 %v595
      %v749 = vunpack.c.l.b16 %v596
      %v750 = vunpack.c.h.b16 %v596
      %v751 = vunpack.c.l.b16 %v597
      %v752 = vunpack.c.h.b16 %v597
      %v753 = vunpack.c.l.b16 %v598
      %v754 = vunpack.c.h.b16 %v598
      %v755 = vpack.c.b16 %v661, %v659
      %v756 = vpack.c.b16 %v662, %v660
      %v757 = vpack.c.b16 %v665, %v663
      %v758 = vpack.c.b16 %v666, %v664
      %v759 = vpack.c.b16 %v669, %v667
      %v760 = vpack.c.b16 %v670, %v668
      %v761 = vpack.c.b16 %v673, %v671
      %v762 = vpack.c.b16 %v674, %v672
      %v763 = vpack.c.b16 %v677, %v675
      %v764 = vpack.c.b16 %v678, %v676
      %v765 = vpack.c.b16 %v681, %v679
      %v766 = vpack.c.b16 %v682, %v680
      %v767 = vpack.c.b16 %v685, %v683
      %v768 = vpack.c.b16 %v686, %v684
      %v769 = vpack.c.b16 %v689, %v687
      %v770 = vpack.c.b16 %v690, %v688
      %v771 = vpack.c.b16 %v693, %v691
      %v772 = vpack.c.b16 %v694, %v692
      %v773 = vpack.c.b16 %v697, %v695
      %v774 = vpack.c.b16 %v698, %v696
      %v775 = vpack.c.b16 %v701, %v699
      %v776 = vpack.c.b16 %v702, %v700
      %v777 = vpack.c.b16 %v705, %v703
      %v778 = vpack.c.b16 %v706, %v704
      %v779 = vpack.c.b16 %v709, %v707
      %v780 = vpack.c.b16 %v710, %v708
      %v781 = vpack.c.b16 %v713, %v711
      %v782 = vpack.c.b16 %v714, %v712
      %v783 = vpack.c.b16 %v717, %v715
      %v784 = vpack.c.b16 %v718, %v716
      %v785 = vpack.c.b16 %v721, %v719
      %v786 = vpack.c.b16 %v722, %v720
      %v787 = vpack.c.b16 %v725, %v723
      %v788 = vpack.c.b16 %v726, %v724
      %v789 = vpack.c.b16 %v729, %v727
      %v790 = vpack.c.b16 %v730, %v728
      %v791 = vpack.c.b16 %v733, %v731
      %v792 = vpack.c.b16 %v734, %v732
      %v793 = vpack.c.b16 %v737, %v735
      %v794 = vpack.c.b16 %v738, %v736
      %v795 = vpack.c.b16 %v741, %v739
      %v796 = vpack.c.b16 %v742, %v740
      %v797 = vpack.c.b16 %v745, %v743
      %v798 = vpack.c.b16 %v746, %v744
      %v799 = vpack.c.b16 %v749, %v747
      %v800 = vpack.c.b16 %v750, %v748
      %v801 = vpack.c.b16 %v753, %v751
      %v802 = vpack.c.b16 %v754, %v752
      %851 = vmatprep.subr.bf16.mxu0 %v756
      %852 = vmatpush1.bf16.msra.mxu0 %v755
      %853 = vmatprep.subr.bf16.mxu0 %v758
      %854 = vmatpush1.bf16.msra.mxu0 %v757
      %855 = vmatprep.subr.bf16.mxu0 %v760
      %856 = vmatpush1.bf16.msra.mxu0 %v759
      %857 = vmatprep.subr.bf16.mxu0 %v762
      %858 = vmatpush1.bf16.msra.mxu0 %v761
      %859 = vmatprep.subr.bf16.mxu0 %v764
      %860 = vmatpush1.bf16.msra.mxu0 %v763
      %861 = vmatprep.subr.bf16.mxu0 %v766
      %862 = vmatpush1.bf16.msra.mxu0 %v765
      %863 = vmatprep.subr.bf16.mxu0 %v768
      %864 = vmatpush1.bf16.msra.mxu0 %v767
      %865 = vmatprep.subr.bf16.mxu0 %v770
      %866 = vmatpush1.bf16.msra.mxu0 %v769
      %867 = vmatprep.subr.bf16.mxu0 %v772
      %868 = vmatpush1.bf16.msra.mxu0 %v771
      %869 = vmatprep.subr.bf16.mxu0 %v774
      %870 = vmatpush1.bf16.msra.mxu0 %v773
      %871 = vmatprep.subr.bf16.mxu0 %v776
      %872 = vmatpush1.bf16.msra.mxu0 %v775
      %873 = vmatprep.subr.bf16.mxu0 %v778
      %874 = vmatpush1.bf16.msra.mxu0 %v777
      %875 = vmatprep.subr.bf16.mxu0 %v780
      %876 = vmatpush1.bf16.msra.mxu0 %v779
      %877 = vmatprep.subr.bf16.mxu0 %v782
      %878 = vmatpush1.bf16.msra.mxu0 %v781
      %879 = vmatprep.subr.bf16.mxu0 %v784
      %880 = vmatpush1.bf16.msra.mxu0 %v783
      %881 = vmatprep.subr.bf16.mxu0 %v786
      %882 = vmatpush1.bf16.msra.mxu0 %v785
      %883 = vmatprep.mubr.bf16.mxu0 %v600
      %884 = vmatmul.mubr.bf16.gmra.mrb[0].mxu0 %v599
      %v885 = vpop.f32.mrb[0].mxu0
      %v886 = vadd.f32 0.0, %v885
      %v887 = vpop.f32.mrb[0].mxu0
      %v888 = vadd.f32 0.0, %v887
      %v889 = vpop.f32.mrb[0].mxu0
      %v890 = vadd.f32 0.0, %v889
      %v891 = vpop.f32.mrb[0].mxu0
      %v892 = vadd.f32 0.0, %v891
      %893 = vmatprep.mubr.bf16.mxu0 %v603
      %894 = vmatmul.mubr.bf16.gmra.mrb[0].mxu0 %v602
      %v895 = vpop.f32.mrb[0].mxu0
      %v896 = vadd.f32 0.0, %v895
      %v897 = vpop.f32.mrb[0].mxu0
      %v898 = vadd.f32 0.0, %v897
      %v899 = vpop.f32.mrb[0].mxu0
      %v900 = vadd.f32 0.0, %v899
      %v901 = vpop.f32.mrb[0].mxu0
      %v902 = vadd.f32 0.0, %v901
      %903 = vdwg.mxu0
      %904 = vmatprep.subr.bf16.mxu0 %v788
      %905 = vmatpush1.bf16.msra.mxu0 %v787
      %906 = vmatprep.subr.bf16.mxu0 %v790
      %907 = vmatpush1.bf16.msra.mxu0 %v789
      %908 = vmatprep.subr.bf16.mxu0 %v792
      %909 = vmatpush1.bf16.msra.mxu0 %v791
      %910 = vmatprep.subr.bf16.mxu0 %v794
      %911 = vmatpush1.bf16.msra.mxu0 %v793
      %912 = vmatprep.subr.bf16.mxu0 %v796
      %913 = vmatpush1.bf16.msra.mxu0 %v795
      %914 = vmatprep.subr.bf16.mxu0 %v798
      %915 = vmatpush1.bf16.msra.mxu0 %v797
      %916 = vmatprep.subr.bf16.mxu0 %v800
      %917 = vmatpush1.bf16.msra.mxu0 %v799
      %918 = vmatprep.subr.bf16.mxu0 %v802
      %919 = vmatpush1.bf16.msra.mxu0 %v801
      %920 = vmatprep.subr.bf16.mxu0 0
      %921 = vmatpush1.bf16.msra.mxu0 0
      %922 = vmatprep.subr.bf16.mxu0 0
      %923 = vmatpush1.bf16.msra.mxu0 0
      %924 = vmatprep.subr.bf16.mxu0 0
      %925 = vmatpush1.bf16.msra.mxu0 0
      %926 = vmatprep.subr.bf16.mxu0 0
      %927 = vmatpush1.bf16.msra.mxu0 0
      %928 = vmatprep.subr.bf16.mxu0 0
      %929 = vmatpush1.bf16.msra.mxu0 0
      %930 = vmatprep.subr.bf16.mxu0 0
      %931 = vmatpush1.bf16.msra.mxu0 0
      %932 = vmatprep.subr.bf16.mxu0 0
      %933 = vmatpush1.bf16.msra.mxu0 0
      %934 = vmatprep.subr.bf16.mxu0 0
      %935 = vmatpush1.bf16.msra.mxu0 0
      %936 = vmatprep.mubr.bf16.mxu0 0
      %937 = vmatmul.mubr.bf16.gmra.mrb[0].mxu0 %v601
      %v938 = vpop.f32.mrb[0].mxu0
      %v939 = vadd.f32 %v886, %v938
      %v940 = vpop.f32.mrb[0].mxu0
      %v941 = vadd.f32 %v888, %v940
      %v942 = vpop.f32.mrb[0].mxu0
      %v943 = vadd.f32 %v890, %v942
      %v944 = vpop.f32.mrb[0].mxu0
      %v945 = vadd.f32 %v892, %v944
      %946 = vmatprep.mubr.bf16.mxu0 0
      %947 = vmatmul.mubr.bf16.gmra.mrb[0].mxu0 %v604
      %v948 = vpop.f32.mrb[0].mxu0
      %v949 = vadd.f32 %v896, %v948
      %v950 = vpop.f32.mrb[0].mxu0
      %v951 = vadd.f32 %v898, %v950
      %v952 = vpop.f32.mrb[0].mxu0
      %v953 = vadd.f32 %v900, %v952
      %v954 = vpop.f32.mrb[0].mxu0
      %v955 = vadd.f32 %v902, %v954
      %956 = vdwg.mxu0
      %v957 = vpack.c.b16 %v488, %v485
      %v958 = vpack.c.b16 %v489, %v486
      %v959 = vpack.c.b16 %v490, %v487
      %v960 = vpack.c.b16 %v494, %v491
      %v961 = vpack.c.b16 %v495, %v492
      %v962 = vpack.c.b16 %v496, %v493
      %v1017 = vunpack.c.l.b16 %v497
      %v1018 = vunpack.c.h.b16 %v497
      %v1019 = vunpack.c.l.b16 %v498
      %v1020 = vunpack.c.h.b16 %v498
      %v1021 = vunpack.c.l.b16 %v499
      %v1022 = vunpack.c.h.b16 %v499
      %v1023 = vunpack.c.l.b16 %v500
      %v1024 = vunpack.c.h.b16 %v500
      %v1025 = vunpack.c.l.b16 %v501
      %v1026 = vunpack.c.h.b16 %v501
      %v1027 = vunpack.c.l.b16 %v502
      %v1028 = vunpack.c.h.b16 %v502
      %v1029 = vunpack.c.l.b16 %v503
      %v1030 = vunpack.c.h.b16 %v503
      %v1031 = vunpack.c.l.b16 %v504
      %v1032 = vunpack.c.h.b16 %v504
      %v1033 = vunpack.c.l.b16 %v505
      %v1034 = vunpack.c.h.b16 %v505
      %v1035 = vunpack.c.l.b16 %v506
      %v1036 = vunpack.c.h.b16 %v506
      %v1037 = vunpack.c.l.b16 %v507
      %v1038 = vunpack.c.h.b16 %v507
      %v1039 = vunpack.c.l.b16 %v508
      %v1040 = vunpack.c.h.b16 %v508
      %v1041 = vunpack.c.l.b16 %v509
      %v1042 = vunpack.c.h.b16 %v509
      %v1043 = vunpack.c.l.b16 %v510
      %v1044 = vunpack.c.h.b16 %v510
      %v1045 = vunpack.c.l.b16 %v511
      %v1046 = vunpack.c.h.b16 %v511
      %v1047 = vunpack.c.l.b16 %v512
      %v1048 = vunpack.c.h.b16 %v512
      %v1049 = vunpack.c.l.b16 %v513
      %v1050 = vunpack.c.h.b16 %v513
      %v1051 = vunpack.c.l.b16 %v514
      %v1052 = vunpack.c.h.b16 %v514
      %v1053 = vunpack.c.l.b16 %v515
      %v1054 = vunpack.c.h.b16 %v515
      %v1055 = vunpack.c.l.b16 %v516
      %v1056 = vunpack.c.h.b16 %v516
      %v1057 = vunpack.c.l.b16 %v517
      %v1058 = vunpack.c.h.b16 %v517
      %v1059 = vunpack.c.l.b16 %v518
      %v1060 = vunpack.c.h.b16 %v518
      %v1061 = vunpack.c.l.b16 %v519
      %v1062 = vunpack.c.h.b16 %v519
      %v1063 = vunpack.c.l.b16 %v520
      %v1064 = vunpack.c.h.b16 %v520
      %v1065 = vunpack.c.l.b16 %v521
      %v1066 = vunpack.c.h.b16 %v521
      %v1067 = vunpack.c.l.b16 %v522
      %v1068 = vunpack.c.h.b16 %v522
      %v1069 = vunpack.c.l.b16 %v523
      %v1070 = vunpack.c.h.b16 %v523
      %v1071 = vunpack.c.l.b16 %v524
      %v1072 = vunpack.c.h.b16 %v524
      %v1073 = vunpack.c.l.b16 %v525
      %v1074 = vunpack.c.h.b16 %v525
      %v1075 = vunpack.c.l.b16 %v526
      %v1076 = vunpack.c.h.b16 %v526
      %v1077 = vunpack.c.l.b16 %v527
      %v1078 = vunpack.c.h.b16 %v527
      %v1079 = vunpack.c.l.b16 %v528
      %v1080 = vunpack.c.h.b16 %v528
      %v1081 = vunpack.c.l.b16 %v529
      %v1082 = vunpack.c.h.b16 %v529
      %v1083 = vunpack.c.l.b16 %v530
      %v1084 = vunpack.c.h.b16 %v530
      %v1085 = vunpack.c.l.b16 %v531
      %v1086 = vunpack.c.h.b16 %v531
      %v1087 = vunpack.c.l.b16 %v532
      %v1088 = vunpack.c.h.b16 %v532
      %v1089 = vunpack.c.l.b16 %v533
      %v1090 = vunpack.c.h.b16 %v533
      %v1091 = vunpack.c.l.b16 %v534
      %v1092 = vunpack.c.h.b16 %v534
      %v1093 = vunpack.c.l.b16 %v535
      %v1094 = vunpack.c.h.b16 %v535
      %v1095 = vunpack.c.l.b16 %v536
      %v1096 = vunpack.c.h.b16 %v536
      %v1097 = vunpack.c.l.b16 %v537
      %v1098 = vunpack.c.h.b16 %v537
      %v1099 = vunpack.c.l.b16 %v538
      %v1100 = vunpack.c.h.b16 %v538
      %v1101 = vunpack.c.l.b16 %v539
      %v1102 = vunpack.c.h.b16 %v539
      %v1103 = vunpack.c.l.b16 %v540
      %v1104 = vunpack.c.h.b16 %v540
      %v1105 = vunpack.c.l.b16 %v541
      %v1106 = vunpack.c.h.b16 %v541
      %v1107 = vunpack.c.l.b16 %v542
      %v1108 = vunpack.c.h.b16 %v542
      %v1109 = vunpack.c.l.b16 %v543
      %v1110 = vunpack.c.h.b16 %v543
      %v1111 = vunpack.c.l.b16 %v544
      %v1112 = vunpack.c.h.b16 %v544
      %v1113 = vpack.c.b16 %v1019, %v1017
      %v1114 = vpack.c.b16 %v1020, %v1018
      %v1115 = vpack.c.b16 %v1023, %v1021
      %v1116 = vpack.c.b16 %v1024, %v1022
      %v1117 = vpack.c.b16 %v1027, %v1025
      %v1118 = vpack.c.b16 %v1028, %v1026
      %v1119 = vpack.c.b16 %v1031, %v1029
      %v1120 = vpack.c.b16 %v1032, %v1030
      %v1121 = vpack.c.b16 %v1035, %v1033
      %v1122 = vpack.c.b16 %v1036, %v1034
      %v1123 = vpack.c.b16 %v1039, %v1037
      %v1124 = vpack.c.b16 %v1040, %v1038
      %v1125 = vpack.c.b16 %v1043, %v1041
      %v1126 = vpack.c.b16 %v1044, %v1042
      %v1127 = vpack.c.b16 %v1047, %v1045
      %v1128 = vpack.c.b16 %v1048, %v1046
      %v1129 = vpack.c.b16 %v1051, %v1049
      %v1130 = vpack.c.b16 %v1052, %v1050
      %v1131 = vpack.c.b16 %v1055, %v1053
      %v1132 = vpack.c.b16 %v1056, %v1054
      %v1133 = vpack.c.b16 %v1059, %v1057
      %v1134 = vpack.c.b16 %v1060, %v1058
      %v1135 = vpack.c.b16 %v1063, %v1061
      %v1136 = vpack.c.b16 %v1064, %v1062
      %v1137 = vpack.c.b16 %v1067, %v1065
      %v1138 = vpack.c.b16 %v1068, %v1066
      %v1139 = vpack.c.b16 %v1071, %v1069
      %v1140 = vpack.c.b16 %v1072, %v1070
      %v1141 = vpack.c.b16 %v1075, %v1073
      %v1142 = vpack.c.b16 %v1076, %v1074
      %v1143 = vpack.c.b16 %v1079, %v1077
      %v1144 = vpack.c.b16 %v1080, %v1078
      %v1145 = vpack.c.b16 %v1083, %v1081
      %v1146 = vpack.c.b16 %v1084, %v1082
      %v1147 = vpack.c.b16 %v1087, %v1085
      %v1148 = vpack.c.b16 %v1088, %v1086
      %v1149 = vpack.c.b16 %v1091, %v1089
      %v1150 = vpack.c.b16 %v1092, %v1090
      %v1151 = vpack.c.b16 %v1095, %v1093
      %v1152 = vpack.c.b16 %v1096, %v1094
      %v1153 = vpack.c.b16 %v1099, %v1097
      %v1154 = vpack.c.b16 %v1100, %v1098
      %v1155 = vpack.c.b16 %v1103, %v1101
      %v1156 = vpack.c.b16 %v1104, %v1102
      %v1157 = vpack.c.b16 %v1107, %v1105
      %v1158 = vpack.c.b16 %v1108, %v1106
      %v1159 = vpack.c.b16 %v1111, %v1109
      %v1160 = vpack.c.b16 %v1112, %v1110
      %1209 = vmatprep.subr.bf16.mxu0 %v1114
      %1210 = vmatpush1.bf16.msra.mxu0 %v1113
      %1211 = vmatprep.subr.bf16.mxu0 %v1116
      %1212 = vmatpush1.bf16.msra.mxu0 %v1115
      %1213 = vmatprep.subr.bf16.mxu0 %v1118
      %1214 = vmatpush1.bf16.msra.mxu0 %v1117
      %1215 = vmatprep.subr.bf16.mxu0 %v1120
      %1216 = vmatpush1.bf16.msra.mxu0 %v1119
      %1217 = vmatprep.subr.bf16.mxu0 %v1122
      %1218 = vmatpush1.bf16.msra.mxu0 %v1121
      %1219 = vmatprep.subr.bf16.mxu0 %v1124
      %1220 = vmatpush1.bf16.msra.mxu0 %v1123
      %1221 = vmatprep.subr.bf16.mxu0 %v1126
      %1222 = vmatpush1.bf16.msra.mxu0 %v1125
      %1223 = vmatprep.subr.bf16.mxu0 %v1128
      %1224 = vmatpush1.bf16.msra.mxu0 %v1127
      %1225 = vmatprep.subr.bf16.mxu0 %v1130
      %1226 = vmatpush1.bf16.msra.mxu0 %v1129
      %1227 = vmatprep.subr.bf16.mxu0 %v1132
      %1228 = vmatpush1.bf16.msra.mxu0 %v1131
      %1229 = vmatprep.subr.bf16.mxu0 %v1134
      %1230 = vmatpush1.bf16.msra.mxu0 %v1133
      %1231 = vmatprep.subr.bf16.mxu0 %v1136
      %1232 = vmatpush1.bf16.msra.mxu0 %v1135
      %1233 = vmatprep.subr.bf16.mxu0 %v1138
      %1234 = vmatpush1.bf16.msra.mxu0 %v1137
      %1235 = vmatprep.subr.bf16.mxu0 %v1140
      %1236 = vmatpush1.bf16.msra.mxu0 %v1139
      %1237 = vmatprep.subr.bf16.mxu0 %v1142
      %1238 = vmatpush1.bf16.msra.mxu0 %v1141
      %1239 = vmatprep.subr.bf16.mxu0 %v1144
      %1240 = vmatpush1.bf16.msra.mxu0 %v1143
      %1241 = vmatprep.mubr.bf16.mxu0 %v958
      %1242 = vmatmul.mubr.bf16.gmra.mrb[0].mxu0 %v957
      %v1243 = vpop.f32.mrb[0].mxu0
      %v1244 = vadd.f32 %v939, %v1243
      %v1245 = vpop.f32.mrb[0].mxu0
      %v1246 = vadd.f32 %v941, %v1245
      %v1247 = vpop.f32.mrb[0].mxu0
      %v1248 = vadd.f32 %v943, %v1247
      %v1249 = vpop.f32.mrb[0].mxu0
      %v1250 = vadd.f32 %v945, %v1249
      %1251 = vmatprep.mubr.bf16.mxu0 %v961
      %1252 = vmatmul.mubr.bf16.gmra.mrb[0].mxu0 %v960
      %v1253 = vpop.f32.mrb[0].mxu0
      %v1254 = vadd.f32 %v949, %v1253
      %v1255 = vpop.f32.mrb[0].mxu0
      %v1256 = vadd.f32 %v951, %v1255
      %v1257 = vpop.f32.mrb[0].mxu0
      %v1258 = vadd.f32 %v953, %v1257
      %v1259 = vpop.f32.mrb[0].mxu0
      %v1260 = vadd.f32 %v955, %v1259
      %1261 = vdwg.mxu0
      %1262 = vmatprep.subr.bf16.mxu0 %v1146
      %1263 = vmatpush1.bf16.msra.mxu0 %v1145
      %1264 = vmatprep.subr.bf16.mxu0 %v1148
      %1265 = vmatpush1.bf16.msra.mxu0 %v1147
      %1266 = vmatprep.subr.bf16.mxu0 %v1150
      %1267 = vmatpush1.bf16.msra.mxu0 %v1149
      %1268 = vmatprep.subr.bf16.mxu0 %v1152
      %1269 = vmatpush1.bf16.msra.mxu0 %v1151
      %1270 = vmatprep.subr.bf16.mxu0 %v1154
      %1271 = vmatpush1.bf16.msra.mxu0 %v1153
      %1272 = vmatprep.subr.bf16.mxu0 %v1156
      %1273 = vmatpush1.bf16.msra.mxu0 %v1155
      %1274 = vmatprep.subr.bf16.mxu0 %v1158
      %1275 = vmatpush1.bf16.msra.mxu0 %v1157
      %1276 = vmatprep.subr.bf16.mxu0 %v1160
      %1277 = vmatpush1.bf16.msra.mxu0 %v1159
      %1278 = vmatprep.subr.bf16.mxu0 0
      %1279 = vmatpush1.bf16.msra.mxu0 0
      %1280 = vmatprep.subr.bf16.mxu0 0
      %1281 = vmatpush1.bf16.msra.mxu0 0
      %1282 = vmatprep.subr.bf16.mxu0 0
      %1283 = vmatpush1.bf16.msra.mxu0 0
      %1284 = vmatprep.subr.bf16.mxu0 0
      %1285 = vmatpush1.bf16.msra.mxu0 0
      %1286 = vmatprep.subr.bf16.mxu0 0
      %1287 = vmatpush1.bf16.msra.mxu0 0
      %1288 = vmatprep.subr.bf16.mxu0 0
      %1289 = vmatpush1.bf16.msra.mxu0 0
      %1290 = vmatprep.subr.bf16.mxu0 0
      %1291 = vmatpush1.bf16.msra.mxu0 0
      %1292 = vmatprep.subr.bf16.mxu0 0
      %1293 = vmatpush1.bf16.msra.mxu0 0
      %1294 = vmatprep.mubr.bf16.mxu0 0
      %1295 = vmatmul.mubr.bf16.gmra.mrb[0].mxu0 %v959
      %v1296 = vpop.f32.mrb[0].mxu0
      %v1297 = vadd.f32 %v1244, %v1296
      %v1298 = vpop.f32.mrb[0].mxu0
      %v1299 = vadd.f32 %v1246, %v1298
      %v1300 = vpop.f32.mrb[0].mxu0
      %v1301 = vadd.f32 %v1248, %v1300
      %v1302 = vpop.f32.mrb[0].mxu0
      %v1303 = vadd.f32 %v1250, %v1302
      %1304 = vmatprep.mubr.bf16.mxu0 0
      %1305 = vmatmul.mubr.bf16.gmra.mrb[0].mxu0 %v962
      %v1306 = vpop.f32.mrb[0].mxu0
      %v1307 = vadd.f32 %v1254, %v1306
      %v1308 = vpop.f32.mrb[0].mxu0
      %v1309 = vadd.f32 %v1256, %v1308
      %v1310 = vpop.f32.mrb[0].mxu0
      %v1311 = vadd.f32 %v1258, %v1310
      %v1312 = vpop.f32.mrb[0].mxu0
      %v1313 = vadd.f32 %v1260, %v1312
      %1314 = vdwg.mxu0
      %v1318 = vunpack.c.l.b16 %v453
      %v1319 = vunpack.c.l.b16 %v426
      %v1320 = vunpack.c.l.b16 %v472
      %v1321 = vld [vmem:[%s3 + $0x300] sm:$0xff]
      %v1322 = vld [vmem:[%s3 + $0x308] sm:$0xff]
      %v1323 = vld [vmem:[%s3 + $0x310] sm:$0xff]
      %v1324 = vld [vmem:[%s3 + $0x318] sm:$0xff]
      %v1325 = vld [vmem:[%s3 + $0x320] sm:$0xff]
      %v1326 = vld [vmem:[%s3 + $0x328] sm:$0xff]
      %v1327 = vld [vmem:[%s3 + $0x330] sm:$0xff]
      %v1328 = vld [vmem:[%s3 + $0x338] sm:$0xff]
      %v1329 = vld [vmem:[%s3 + $0x340] sm:$0xff]
      %v1330 = vld [vmem:[%s3 + $0x348] sm:$0xff]
      %v1331 = vld [vmem:[%s3 + $0x350] sm:$0xff]
      %v1332 = vld [vmem:[%s3 + $0x358] sm:$0xff]
      %v1333 = vld [vmem:[%s3 + $0x360] sm:$0xff]
      %v1334 = vld [vmem:[%s3 + $0x368] sm:$0xff]
      %v1335 = vld [vmem:[%s3 + $0x370] sm:$0xff]
      %v1336 = vld [vmem:[%s3 + $0x378] sm:$0xff]
      %v1337 = vld [vmem:[%s3 + $0x380] sm:$0xff]
      %v1338 = vld [vmem:[%s3 + $0x388] sm:$0xff]
      %v1339 = vld [vmem:[%s3 + $0x390] sm:$0xff]
      %v1340 = vld [vmem:[%s3 + $0x398] sm:$0xff]
      %v1341 = vld [vmem:[%s3 + $0x3a0] sm:$0xff]
      %v1342 = vld [vmem:[%s3 + $0x3a8] sm:$0xff]
      %v1343 = vld [vmem:[%s3 + $0x3b0] sm:$0xff]
      %v1344 = vld [vmem:[%s3 + $0x3b8] sm:$0xff]
      %v1345 = vld [vmem:[%s3 + $0x3c0] sm:$0xff]
      %v1346 = vld [vmem:[%s3 + $0x3c8] sm:$0xff]
      %v1347 = vld [vmem:[%s3 + $0x3d0] sm:$0xff]
      %v1348 = vld [vmem:[%s3 + $0x3d8] sm:$0xff]
      %v1349 = vld [vmem:[%s3 + $0x3e0] sm:$0xff]
      %v1350 = vld [vmem:[%s3 + $0x3e8] sm:$0xff]
      %v1351 = vld [vmem:[%s3 + $0x3f0] sm:$0xff]
      %v1352 = vld [vmem:[%s3 + $0x3f8] sm:$0xff]
      %v1353 = vld [vmem:[%s3 + $0x400] sm:$0xff]
      %v1354 = vld [vmem:[%s3 + $0x408] sm:$0xff]
      %v1355 = vld [vmem:[%s3 + $0x410] sm:$0xff]
      %v1356 = vld [vmem:[%s3 + $0x418] sm:$0xff]
      %v1357 = vld [vmem:[%s3 + $0x420] sm:$0xff]
      %v1358 = vld [vmem:[%s3 + $0x428] sm:$0xff]
      %v1359 = vld [vmem:[%s3 + $0x430] sm:$0xff]
      %v1360 = vld [vmem:[%s3 + $0x438] sm:$0xff]
      %v1361 = vld [vmem:[%s3 + $0x440] sm:$0xff]
      %v1362 = vld [vmem:[%s3 + $0x448] sm:$0xff]
      %v1363 = vld [vmem:[%s3 + $0x450] sm:$0xff]
      %v1364 = vld [vmem:[%s3 + $0x458] sm:$0xff]
      %v1365 = vld [vmem:[%s3 + $0x460] sm:$0xff]
      %v1366 = vld [vmem:[%s3 + $0x468] sm:$0xff]
      %v1367 = vld [vmem:[%s3 + $0x470] sm:$0xff]
      %v1368 = vld [vmem:[%s3 + $0x478] sm:$0xff]
      %v1369 = vpack.c.b16 %v1318, %v548
      %v1370 = vpack.c.b16 %v1319, %v549
      %v1371 = vpack.c.b16 %v1320, %v550
      %v1423 = vunpack.c.l.b16 %v1321
      %v1424 = vunpack.c.h.b16 %v1321
      %v1425 = vunpack.c.l.b16 %v1322
      %v1426 = vunpack.c.h.b16 %v1322
      %v1427 = vunpack.c.l.b16 %v1323
      %v1428 = vunpack.c.h.b16 %v1323
      %v1429 = vunpack.c.l.b16 %v1324
      %v1430 = vunpack.c.h.b16 %v1324
      %v1431 = vunpack.c.l.b16 %v1325
      %v1432 = vunpack.c.h.b16 %v1325
      %v1433 = vunpack.c.l.b16 %v1326
      %v1434 = vunpack.c.h.b16 %v1326
      %v1435 = vunpack.c.l.b16 %v1327
      %v1436 = vunpack.c.h.b16 %v1327
      %v1437 = vunpack.c.l.b16 %v1328
      %v1438 = vunpack.c.h.b16 %v1328
      %v1439 = vunpack.c.l.b16 %v1329
      %v1440 = vunpack.c.h.b16 %v1329
      %v1441 = vunpack.c.l.b16 %v1330
      %v1442 = vunpack.c.h.b16 %v1330
      %v1443 = vunpack.c.l.b16 %v1331
      %v1444 = vunpack.c.h.b16 %v1331
      %v1445 = vunpack.c.l.b16 %v1332
      %v1446 = vunpack.c.h.b16 %v1332
      %v1447 = vunpack.c.l.b16 %v1333
      %v1448 = vunpack.c.h.b16 %v1333
      %v1449 = vunpack.c.l.b16 %v1334
      %v1450 = vunpack.c.h.b16 %v1334
      %v1451 = vunpack.c.l.b16 %v1335
      %v1452 = vunpack.c.h.b16 %v1335
      %v1453 = vunpack.c.l.b16 %v1336
      %v1454 = vunpack.c.h.b16 %v1336
      %v1455 = vunpack.c.l.b16 %v1337
      %v1456 = vunpack.c.h.b16 %v1337
      %v1457 = vunpack.c.l.b16 %v1338
      %v1458 = vunpack.c.h.b16 %v1338
      %v1459 = vunpack.c.l.b16 %v1339
      %v1460 = vunpack.c.h.b16 %v1339
      %v1461 = vunpack.c.l.b16 %v1340
      %v1462 = vunpack.c.h.b16 %v1340
      %v1463 = vunpack.c.l.b16 %v1341
      %v1464 = vunpack.c.h.b16 %v1341
      %v1465 = vunpack.c.l.b16 %v1342
      %v1466 = vunpack.c.h.b16 %v1342
      %v1467 = vunpack.c.l.b16 %v1343
      %v1468 = vunpack.c.h.b16 %v1343
      %v1469 = vunpack.c.l.b16 %v1344
      %v1470 = vunpack.c.h.b16 %v1344
      %v1471 = vunpack.c.l.b16 %v1345
      %v1472 = vunpack.c.h.b16 %v1345
      %v1473 = vunpack.c.l.b16 %v1346
      %v1474 = vunpack.c.h.b16 %v1346
      %v1475 = vunpack.c.l.b16 %v1347
      %v1476 = vunpack.c.h.b16 %v1347
      %v1477 = vunpack.c.l.b16 %v1348
      %v1478 = vunpack.c.h.b16 %v1348
      %v1479 = vunpack.c.l.b16 %v1349
      %v1480 = vunpack.c.h.b16 %v1349
      %v1481 = vunpack.c.l.b16 %v1350
      %v1482 = vunpack.c.h.b16 %v1350
      %v1483 = vunpack.c.l.b16 %v1351
      %v1484 = vunpack.c.h.b16 %v1351
      %v1485 = vunpack.c.l.b16 %v1352
      %v1486 = vunpack.c.h.b16 %v1352
      %v1487 = vunpack.c.l.b16 %v1353
      %v1488 = vunpack.c.h.b16 %v1353
      %v1489 = vunpack.c.l.b16 %v1354
      %v1490 = vunpack.c.h.b16 %v1354
      %v1491 = vunpack.c.l.b16 %v1355
      %v1492 = vunpack.c.h.b16 %v1355
      %v1493 = vunpack.c.l.b16 %v1356
      %v1494 = vunpack.c.h.b16 %v1356
      %v1495 = vunpack.c.l.b16 %v1357
      %v1496 = vunpack.c.h.b16 %v1357
      %v1497 = vunpack.c.l.b16 %v1358
      %v1498 = vunpack.c.h.b16 %v1358
      %v1499 = vunpack.c.l.b16 %v1359
      %v1500 = vunpack.c.h.b16 %v1359
      %v1501 = vunpack.c.l.b16 %v1360
      %v1502 = vunpack.c.h.b16 %v1360
      %v1503 = vunpack.c.l.b16 %v1361
      %v1504 = vunpack.c.h.b16 %v1361
      %v1505 = vunpack.c.l.b16 %v1362
      %v1506 = vunpack.c.h.b16 %v1362
      %v1507 = vunpack.c.l.b16 %v1363
      %v1508 = vunpack.c.h.b16 %v1363
      %v1509 = vunpack.c.l.b16 %v1364
      %v1510 = vunpack.c.h.b16 %v1364
      %v1511 = vunpack.c.l.b16 %v1365
      %v1512 = vunpack.c.h.b16 %v1365
      %v1513 = vunpack.c.l.b16 %v1366
      %v1514 = vunpack.c.h.b16 %v1366
      %v1515 = vunpack.c.l.b16 %v1367
      %v1516 = vunpack.c.h.b16 %v1367
      %v1517 = vunpack.c.l.b16 %v1368
      %v1518 = vunpack.c.h.b16 %v1368
      %v1519 = vpack.c.b16 %v1425, %v1423
      %v1520 = vpack.c.b16 %v1426, %v1424
      %v1521 = vpack.c.b16 %v1429, %v1427
      %v1522 = vpack.c.b16 %v1430, %v1428
      %v1523 = vpack.c.b16 %v1433, %v1431
      %v1524 = vpack.c.b16 %v1434, %v1432
      %v1525 = vpack.c.b16 %v1437, %v1435
      %v1526 = vpack.c.b16 %v1438, %v1436
      %v1527 = vpack.c.b16 %v1441, %v1439
      %v1528 = vpack.c.b16 %v1442, %v1440
      %v1529 = vpack.c.b16 %v1445, %v1443
      %v1530 = vpack.c.b16 %v1446, %v1444
      %v1531 = vpack.c.b16 %v1449, %v1447
      %v1532 = vpack.c.b16 %v1450, %v1448
      %v1533 = vpack.c.b16 %v1453, %v1451
      %v1534 = vpack.c.b16 %v1454, %v1452
      %v1535 = vpack.c.b16 %v1457, %v1455
      %v1536 = vpack.c.b16 %v1458, %v1456
      %v1537 = vpack.c.b16 %v1461, %v1459
      %v1538 = vpack.c.b16 %v1462, %v1460
      %v1539 = vpack.c.b16 %v1465, %v1463
      %v1540 = vpack.c.b16 %v1466, %v1464
      %v1541 = vpack.c.b16 %v1469, %v1467
      %v1542 = vpack.c.b16 %v1470, %v1468
      %v1543 = vpack.c.b16 %v1473, %v1471
      %v1544 = vpack.c.b16 %v1474, %v1472
      %v1545 = vpack.c.b16 %v1477, %v1475
      %v1546 = vpack.c.b16 %v1478, %v1476
      %v1547 = vpack.c.b16 %v1481, %v1479
      %v1548 = vpack.c.b16 %v1482, %v1480
      %v1549 = vpack.c.b16 %v1485, %v1483
      %v1550 = vpack.c.b16 %v1486, %v1484
      %v1551 = vpack.c.b16 %v1489, %v1487
      %v1552 = vpack.c.b16 %v1490, %v1488
      %v1553 = vpack.c.b16 %v1493, %v1491
      %v1554 = vpack.c.b16 %v1494, %v1492
      %v1555 = vpack.c.b16 %v1497, %v1495
      %v1556 = vpack.c.b16 %v1498, %v1496
      %v1557 = vpack.c.b16 %v1501, %v1499
      %v1558 = vpack.c.b16 %v1502, %v1500
      %v1559 = vpack.c.b16 %v1505, %v1503
      %v1560 = vpack.c.b16 %v1506, %v1504
      %v1561 = vpack.c.b16 %v1509, %v1507
      %v1562 = vpack.c.b16 %v1510, %v1508
      %v1563 = vpack.c.b16 %v1513, %v1511
      %v1564 = vpack.c.b16 %v1514, %v1512
      %v1565 = vpack.c.b16 %v1517, %v1515
      %v1566 = vpack.c.b16 %v1518, %v1516
      %1615 = vmatprep.subr.bf16.mxu0 %v1520
      %1616 = vmatpush1.bf16.msra.mxu0 %v1519
      %1617 = vmatprep.subr.bf16.mxu0 %v1522
      %1618 = vmatpush1.bf16.msra.mxu0 %v1521
      %1619 = vmatprep.subr.bf16.mxu0 %v1524
      %1620 = vmatpush1.bf16.msra.mxu0 %v1523
      %1621 = vmatprep.subr.bf16.mxu0 %v1526
      %1622 = vmatpush1.bf16.msra.mxu0 %v1525
      %1623 = vmatprep.subr.bf16.mxu0 %v1528
      %1624 = vmatpush1.bf16.msra.mxu0 %v1527
      %1625 = vmatprep.subr.bf16.mxu0 %v1530
      %1626 = vmatpush1.bf16.msra.mxu0 %v1529
      %1627 = vmatprep.subr.bf16.mxu0 %v1532
      %1628 = vmatpush1.bf16.msra.mxu0 %v1531
      %1629 = vmatprep.subr.bf16.mxu0 %v1534
      %1630 = vmatpush1.bf16.msra.mxu0 %v1533
      %1631 = vmatprep.subr.bf16.mxu0 %v1536
      %1632 = vmatpush1.bf16.msra.mxu0 %v1535
      %1633 = vmatprep.subr.bf16.mxu0 %v1538
      %1634 = vmatpush1.bf16.msra.mxu0 %v1537
      %1635 = vmatprep.subr.bf16.mxu0 %v1540
      %1636 = vmatpush1.bf16.msra.mxu0 %v1539
      %1637 = vmatprep.subr.bf16.mxu0 %v1542
      %1638 = vmatpush1.bf16.msra.mxu0 %v1541
      %1639 = vmatprep.subr.bf16.mxu0 %v1544
      %1640 = vmatpush1.bf16.msra.mxu0 %v1543
      %1641 = vmatprep.subr.bf16.mxu0 %v1546
      %1642 = vmatpush1.bf16.msra.mxu0 %v1545
      %1643 = vmatprep.subr.bf16.mxu0 %v1548
      %1644 = vmatpush1.bf16.msra.mxu0 %v1547
      %1645 = vmatprep.subr.bf16.mxu0 %v1550
      %1646 = vmatpush1.bf16.msra.mxu0 %v1549
      %1647 = vmatprep.mubr.bf16.mxu0 %v961
      %1648 = vmatmul.mubr.bf16.gmra.mrb[0].mxu0 %v960
      %v1649 = vpop.f32.mrb[0].mxu0
      %v1650 = vadd.f32 0.0, %v1649
      %v1651 = vpop.f32.mrb[0].mxu0
      %v1652 = vadd.f32 0.0, %v1651
      %v1653 = vpop.f32.mrb[0].mxu0
      %v1654 = vadd.f32 0.0, %v1653
      %v1655 = vpop.f32.mrb[0].mxu0
      %v1656 = vadd.f32 0.0, %v1655
      %1657 = vmatprep.mubr.bf16.mxu0 %v1370
      %1658 = vmatmul.mubr.bf16.gmra.mrb[0].mxu0 %v1369
      %v1659 = vpop.f32.mrb[0].mxu0
      %v1660 = vadd.f32 0.0, %v1659
      %v1661 = vpop.f32.mrb[0].mxu0
      %v1662 = vadd.f32 0.0, %v1661
      %v1663 = vpop.f32.mrb[0].mxu0
      %v1664 = vadd.f32 0.0, %v1663
      %v1665 = vpop.f32.mrb[0].mxu0
      %v1666 = vadd.f32 0.0, %v1665
      %1667 = vdwg.mxu0
      %1668 = vmatprep.subr.bf16.mxu0 %v1552
      %1669 = vmatpush1.bf16.msra.mxu0 %v1551
      %1670 = vmatprep.subr.bf16.mxu0 %v1554
      %1671 = vmatpush1.bf16.msra.mxu0 %v1553
      %1672 = vmatprep.subr.bf16.mxu0 %v1556
      %1673 = vmatpush1.bf16.msra.mxu0 %v1555
      %1674 = vmatprep.subr.bf16.mxu0 %v1558
      %1675 = vmatpush1.bf16.msra.mxu0 %v1557
      %1676 = vmatprep.subr.bf16.mxu0 %v1560
      %1677 = vmatpush1.bf16.msra.mxu0 %v1559
      %1678 = vmatprep.subr.bf16.mxu0 %v1562
      %1679 = vmatpush1.bf16.msra.mxu0 %v1561
      %1680 = vmatprep.subr.bf16.mxu0 %v1564
      %1681 = vmatpush1.bf16.msra.mxu0 %v1563
      %1682 = vmatprep.subr.bf16.mxu0 %v1566
      %1683 = vmatpush1.bf16.msra.mxu0 %v1565
      %1684 = vmatprep.subr.bf16.mxu0 0
      %1685 = vmatpush1.bf16.msra.mxu0 0
      %1686 = vmatprep.subr.bf16.mxu0 0
      %1687 = vmatpush1.bf16.msra.mxu0 0
      %1688 = vmatprep.subr.bf16.mxu0 0
      %1689 = vmatpush1.bf16.msra.mxu0 0
      %1690 = vmatprep.subr.bf16.mxu0 0
      %1691 = vmatpush1.bf16.msra.mxu0 0
      %1692 = vmatprep.subr.bf16.mxu0 0
      %1693 = vmatpush1.bf16.msra.mxu0 0
      %1694 = vmatprep.subr.bf16.mxu0 0
      %1695 = vmatpush1.bf16.msra.mxu0 0
      %1696 = vmatprep.subr.bf16.mxu0 0
      %1697 = vmatpush1.bf16.msra.mxu0 0
      %1698 = vmatprep.subr.bf16.mxu0 0
      %1699 = vmatpush1.bf16.msra.mxu0 0
      %1700 = vmatprep.mubr.bf16.mxu0 0
      %1701 = vmatmul.mubr.bf16.gmra.mrb[0].mxu0 %v962
      %v1702 = vpop.f32.mrb[0].mxu0
      %v1703 = vadd.f32 %v1650, %v1702
      %v1704 = vpop.f32.mrb[0].mxu0
      %v1705 = vadd.f32 %v1652, %v1704
      %v1706 = vpop.f32.mrb[0].mxu0
      %v1707 = vadd.f32 %v1654, %v1706
      %v1708 = vpop.f32.mrb[0].mxu0
      %v1709 = vadd.f32 %v1656, %v1708
      %1710 = vmatprep.mubr.bf16.mxu0 0
      %1711 = vmatmul.mubr.bf16.gmra.mrb[0].mxu0 %v1371
      %v1712 = vpop.f32.mrb[0].mxu0
      %v1713 = vadd.f32 %v1660, %v1712
      %v1714 = vpop.f32.mrb[0].mxu0
      %v1715 = vadd.f32 %v1662, %v1714
      %v1716 = vpop.f32.mrb[0].mxu0
      %v1717 = vadd.f32 %v1664, %v1716
      %v1718 = vpop.f32.mrb[0].mxu0
      %v1719 = vadd.f32 %v1666, %v1718
      %1720 = vdwg.mxu0
      %v1721 = vadd.f32 %v1297, %v1703
      %v1722 = vadd.f32 %v1299, %v1705
      %v1723 = vadd.f32 %v1301, %v1707
      %v1724 = vadd.f32 %v1303, %v1709
      %v1725 = vadd.f32 %v1307, %v1713
      %v1726 = vadd.f32 %v1309, %v1715
      %v1727 = vadd.f32 %v1311, %v1717
      %v1728 = vadd.f32 %v1313, %v1719
      %v1729 = vld [vmem:[%s4] sm:$0x3]
      %v1731 = vlaneseq
      %v1732 = vshrl.u32 %v1731, 7
      %v1733 = vsub.s32 0, %v1732
      %v1734 = vrot.slane %v1729, %v1733
      %v1735 = vlaneseq
      %v1736 = vshrl.u32 %v1735, 7
      %v1737 = vsub.s32 1, %v1736
      %v1738 = vrot.slane %v1729, %v1737
      %v1741 = vadd.f32 %v1721, %v1734
      %v1742 = vadd.f32 %v1722, %v1738
      %v1743 = vadd.f32 %v1723, %v1734
      %v1744 = vadd.f32 %v1724, %v1738
      %v1745 = vadd.f32 %v1725, %v1734
      %v1746 = vadd.f32 %v1726, %v1738
      %v1747 = vadd.f32 %v1727, %v1734
      %v1748 = vadd.f32 %v1728, %v1738
      %v1749 = vmax.f32 %v1741, 0.0
      %v1750 = vmax.f32 %v1742, 0.0
      %v1751 = vmax.f32 %v1743, 0.0
      %v1752 = vmax.f32 %v1744, 0.0
      %v1753 = vmax.f32 %v1745, 0.0
      %v1754 = vmax.f32 %v1746, 0.0
      %v1755 = vmax.f32 %v1747, 0.0
      %v1756 = vmax.f32 %v1748, 0.0
      %v1757 = vpack.c.bf16 %v1749, %v1749
      %v1758 = vpack.c.bf16 %v1750, %v1750
      %v1759 = vpack.c.bf16 %v1751, %v1751
      %v1760 = vpack.c.bf16 %v1752, %v1752
      %v1761 = vpack.c.bf16 %v1753, %v1753
      %v1762 = vpack.c.bf16 %v1754, %v1754
      %v1763 = vpack.c.bf16 %v1755, %v1755
      %v1764 = vpack.c.bf16 %v1756, %v1756
      %v1773 = vunpack.c.l.b16 %v1757
      %v1774 = vunpack.c.l.b16 %v1758
      %v1775 = vunpack.c.l.b16 %v1759
      %v1776 = vunpack.c.l.b16 %v1760
      %v1777 = vunpack.c.l.b16 %v1761
      %v1778 = vunpack.c.l.b16 %v1762
      %v1779 = vunpack.c.l.b16 %v1763
      %v1780 = vunpack.c.l.b16 %v1764
      %v1781 = vpack.c.b16 %v1774, %v1773
      %v1782 = vpack.c.b16 %v1776, %v1775
      %v1783 = vpack.c.b16 %v1778, %v1777
      %v1784 = vpack.c.b16 %v1780, %v1779
      %1789 = vst [vmem:[%s382] sm:$0xff] %v1781
      %1790 = vst [vmem:[%s382 + $0x8] sm:$0xff] %v1782
      %1791 = vst [vmem:[%s382 + $0x10] sm:$0xff] %v1783
      %1792 = vst [vmem:[%s382 + $0x18] sm:$0xff] %v1784
      %s1793 = smul.u32 4, %s21
      %p1794 = scmp.lt.s32.totalorder %s20, 1
      %s1795 = scalar_select %p1794, %s20, 1
      %p1796 = scmp.lt.s32.totalorder %s1793, 7
      %s1797 = scalar_select %p1796, %s1793, 7
      %s1798 = smul.addr %s1797, 2
      %s1799 = smul.addr %s1795, 16
      %s1800 = sadd.s32 %s1798, %s1799
      %s1801 = smul.addr %s1800, 4
      %s1802 = scalar_lea.vmem %s5, %s1801
      // Predicated region
      $region41: #{vgg19_slice1.9} parent=39 // pred_check
        %p1803 = pneg %p190
      $region42: #{vgg19_slice1.9} parent=39 // pred_check_branch
        %1805 = sbr.rel (%p1803) target = $region44
      $region43: #{vgg19_slice1.9} parent=39 // pred_region
        %s1806 = smul.u32 4, %s21
      $region44: #{vgg19_slice1.9} parent=39 // pred_fallthru
        _
    $region40: #{vgg19_slice1.9} parent=5 // pred_fallthru
      _
    %p1807 = scmp.le.s32.totalorder 2, %s11
    // Predicated region
    $region45: #{vgg19_slice1.9} parent=5 // pred_check
      %p1808 = pneg %p1807
    $region46: #{vgg19_slice1.9} parent=5 // pred_check_branch
      %1810 = sbr.rel (%p1808) target = $region48
    $region47: #{vgg19_slice1.9} parent=5 // pred_region
      %s1811 = ssub.s32 %s11, 2
      // Predicated region
      $region49: #{vgg19_slice1.9} parent=47 // pred_check
        %p1812 = pneg %p196
      $region50: #{vgg19_slice1.9} parent=47 // pred_check_branch
        %1814 = sbr.rel (%p1812) target = $region52
      $region51: #{vgg19_slice1.9} parent=47 // pred_region
        %s1815 = smul.u32 4, %s23
        %p1816 = scmp.lt.s32.totalorder %s22, 1
        %s1817 = scalar_select %p1816, %s22, 1
        %p1818 = scmp.lt.s32.totalorder %s1815, 7
        %s1819 = scalar_select %p1818, %s1815, 7
        %s1820 = smul.addr %s1819, 2
        %s1821 = smul.addr %s1817, 16
        %s1822 = sadd.s32 %s1820, %s1821
        %s1823 = smul.addr %s1822, 4
        %s1824 = scalar_lea.vmem %s5, %s1823
      $region52: #{vgg19_slice1.9} parent=47 // pred_fallthru
        _
    $region48: #{vgg19_slice1.9} parent=5 // pred_fallthru
      _
  $region6: #{vgg19_slice1.9} parent=0 // loop_footer
    %s15 = sadd.s32 1, %s11
  $region7: #{vgg19_slice1.9} parent=0 // loop_footer_branch
    %10 = sbr.rel target = $region3
  $region8: #{vgg19_slice1.9} parent=0 // loop_exit
    _

</llo_original>
